<compile_context>
chip_gen: v6e
topology: v6e:2x2x1
jax: 0.10.0
libtpu: 0.0.40
codegen_flags: <defaults>
</compile_context>

<pallas_src>
import jax
import jax.numpy as jnp
from jax.experimental import pallas as pl
from jax.experimental.pallas import tpu as pltpu

EPS = 1e-6


# --------------------------------------------------------------------------- kernels
def _layernorm_f32(x_f32, a2, b2):
    d = x_f32.shape[-1]
    mean = jnp.mean(x_f32, axis=-1, keepdims=True)
    diff = x_f32 - mean
    # torch .std(): unbiased (ddof=1); eps added to std OUTSIDE the sqrt.
    std = jnp.sqrt(jnp.sum(diff * diff, axis=-1, keepdims=True) / (d - 1))
    return diff * (a2 / (std + EPS)) + b2


def _ffn_kernel_resident(x_ref, w1_ref, w2_ref, a2_ref, b2_ref, o_ref):
    """Full d_ff in one step; W1/W2 are VMEM-resident (constant block index)."""
    x = x_ref[...].astype(jnp.float32)
    normed = _layernorm_f32(x, a2_ref[...], b2_ref[...]).astype(w1_ref.dtype)
    h = jnp.maximum(
        jnp.dot(normed, w1_ref[...], preferred_element_type=jnp.float32), 0.0)
    y = x + jnp.dot(h.astype(w2_ref.dtype), w2_ref[...],
                    preferred_element_type=jnp.float32)
    o_ref[...] = y.astype(o_ref.dtype)


def _chunked_body(x_ref, w1_ref, w2_ref, a2_ref, b2_ref, o_ref, normed_ref, acc_ref):
    k = pl.program_id(1)
    nk = pl.num_programs(1)

    @pl.when(k == 0)
    def _():
        x = x_ref[...].astype(jnp.float32)
        normed_ref[...] = _layernorm_f32(
            x, a2_ref[...], b2_ref[...]).astype(normed_ref.dtype)
        # Residual folded into accumulator init: no zero-fill, no x re-read later.
        acc_ref[...] = x.astype(acc_ref.dtype)

    h = jnp.maximum(
        jnp.dot(normed_ref[...], w1_ref[...], preferred_element_type=jnp.float32), 0.0)
    acc_ref[...] += jnp.dot(h.astype(w2_ref.dtype), w2_ref[...],
                            preferred_element_type=jnp.float32).astype(acc_ref.dtype)

    if acc_ref is not o_ref:   # only needed when a separate f32 scratch acc is used
        @pl.when(k == nk - 1)
        def _():
            o_ref[...] = acc_ref[...].astype(o_ref.dtype)


def _ffn_kernel_chunked_acc_in_out(x_ref, w1_ref, w2_ref, a2_ref, b2_ref, o_ref,
                                   normed_ref):
    # f32 output: accumulate directly into o_ref (VMEM-resident across k).
    _chunked_body(x_ref, w1_ref, w2_ref, a2_ref, b2_ref, o_ref, normed_ref, o_ref)


def _ffn_kernel_chunked_scratch_acc(x_ref, w1_ref, w2_ref, a2_ref, b2_ref, o_ref,
                                    normed_ref, acc_ref):
    _chunked_body(x_ref, w1_ref, w2_ref, a2_ref, b2_ref, o_ref, normed_ref, acc_ref)


# --------------------------------------------------------------------------- wrapper
def _divisors_desc(n):
    ds = set()
    i = 1
    while i * i <= n:
        if n % i == 0:
            ds.add(i)
            ds.add(n // i)
        i += 1
    return sorted(ds, reverse=True)


def _physical_vmem_bytes():
    try:
        return int(pltpu.get_tpu_info().vmem_capacity_bytes)
    except Exception:
        return 64 * 1024 * 1024  # conservative (v7x-sized) fallback


def _is_multicore_chip():
    # v4 / v5p (megacore) and v7x expose two TensorCores to the "parallel" axis.
    try:
        kind = jax.devices()[0].device_kind.lower()
    except Exception:
        return False
    return any(tag in kind for tag in ("v4", "v5p", "v7", "7x"))


def poswise_ffn(inputs, w1, w2, a_2, b_2, *, tm=None, tff=None,
                mxu_dtype=jnp.bfloat16):
    """inputs: [batch, seq_len, d_model]; w1: [d_model, d_ff]; w2: [d_ff, d_model]."""
    B, S, D = inputs.shape
    d_ff = w1.shape[1]
    assert w1.shape == (D, d_ff) and w2.shape == (d_ff, D)
    M = B * S

    x2d = inputs.reshape(M, D)
    w1c = w1.astype(mxu_dtype)
    w2c = w2.astype(mxu_dtype)
    a2_2d = a_2.reshape(1, D).astype(jnp.float32)
    b2_2d = b_2.reshape(1, D).astype(jnp.float32)

    out_dtype = inputs.dtype
    xsize = jnp.dtype(inputs.dtype).itemsize
    osize = jnp.dtype(out_dtype).itemsize
    wsize = jnp.dtype(mxu_dtype).itemsize

    # --- generation-aware VMEM budgeting --------------------------------------
    phys_vmem = _physical_vmem_bytes()
    vmem_limit = int(phys_vmem * 0.80)   # leave headroom for compiler scratch/sems
    tile_budget = int(phys_vmem * 0.65)  # what we size tiles against
    multi_core = _is_multicore_chip()

    # --- d_ff chunking: only chunk when full weights don't fit -----------------
    full_w_bytes = 2 * D * d_ff * wsize            # W1 + W2, single-buffered
    if tff is None:
        if full_w_bytes <= tile_budget // 2:
            tff = d_ff                              # weights stay VMEM-resident
        else:
            # double-buffered W1+W2 chunks cost 4*D*tff*wsize; cap at ~40% of budget
            cap = max(128, (tile_budget * 2 // 5) // (4 * D * wsize))
            tff = 128
            for cand in _divisors_desc(d_ff):
                if cand % 128 == 0 and cand <= cap:
                    tff = cand
                    break
    assert d_ff % tff == 0, "d_ff must be divisible by tff"
    nk = d_ff // tff
    resident_weights = (nk == 1)

    # --- row tile selection -----------------------------------------------------
    def act_bytes(tm_):
        b = 2 * tm_ * D * xsize                    # x tile (double-buffered)
        b += 2 * tm_ * D * osize                   # out tile (double-buffered)
        b += tm_ * D * 4                           # f32 x / layernorm temps
        b += tm_ * D * wsize                       # normed (scratch or value)
        b += tm_ * tff * (4 + wsize)               # relu intermediate + cast
        if (not resident_weights) and out_dtype != jnp.float32:
            b += tm_ * D * 4                       # separate f32 accumulator scratch
        return b

    w_buf_bytes = full_w_bytes if resident_weights else 4 * D * tff * wsize

    if tm is None:
        cands = [d for d in _divisors_desc(M) if d % 8 == 0 or d == M]
        fitting = [c for c in cands if w_buf_bytes + act_bytes(c) <= tile_budget]
        if not fitting:
            fitting = [cands[-1]]
        tm = fitting[0]                            # largest tile that fits
        if multi_core:
            even = [c for c in fitting if (M // c) >= 2 and (M // c) % 2 == 0]
            if even:
                tm = even[0]                       # even # of row tiles for 2 TCs
    assert M % tm == 0, "batch*seq_len must be divisible by tm"
    nr = M // tm

    # --- cost estimate -----------------------------------------------------------
    w_hbm_bytes = 2 * D * d_ff * wsize * (1 if resident_weights else nr)
    cost = pl.CostEstimate(
        flops=4 * M * D * d_ff,                    # two matmuls
        transcendentals=M,                         # one sqrt per row
        bytes_accessed=M * D * (xsize + osize) + w_hbm_bytes,
    )

    resident = pl.Buffered(1)                      # constant-index operands

    if resident_weights:
        grid = (nr,)
        in_specs = [
            pl.BlockSpec((tm, D), lambda i: (i, 0)),                         # x rows
            pl.BlockSpec((D, d_ff), lambda i: (0, 0), pipeline_mode=resident),  # W1
            pl.BlockSpec((d_ff, D), lambda i: (0, 0), pipeline_mode=resident),  # W2
            pl.BlockSpec((1, D), lambda i: (0, 0), pipeline_mode=resident),     # a_2
            pl.BlockSpec((1, D), lambda i: (0, 0), pipeline_mode=resident),     # b_2
        ]
        out_specs = pl.BlockSpec((tm, D), lambda i: (i, 0))
        scratch_shapes = []
        kernel = _ffn_kernel_resident
        dims = ("parallel",)
    else:
        grid = (nr, nk)
        in_specs = [
            pl.BlockSpec((tm, D), lambda i, k: (i, 0)),                      # x rows
            pl.BlockSpec((D, tff), lambda i, k: (0, k)),                     # W1 chunk
            pl.BlockSpec((tff, D), lambda i, k: (k, 0)),                     # W2 chunk
            pl.BlockSpec((1, D), lambda i, k: (0, 0), pipeline_mode=resident),  # a_2
            pl.BlockSpec((1, D), lambda i, k: (0, 0), pipeline_mode=resident),  # b_2
        ]
        out_specs = pl.BlockSpec((tm, D), lambda i, k: (i, 0))
        if out_dtype == jnp.float32:
            kernel = _ffn_kernel_chunked_acc_in_out
            scratch_shapes = [pltpu.VMEM((tm, D), mxu_dtype)]   # cached LayerNorm out
        else:
            kernel = _ffn_kernel_chunked_scratch_acc
            scratch_shapes = [pltpu.VMEM((tm, D), mxu_dtype),
                              pltpu.VMEM((tm, D), jnp.float32)]
        dims = ("parallel", "arbitrary")

    out2d = pl.pallas_call(
        kernel,
        out_shape=jax.ShapeDtypeStruct((M, D), out_dtype),
        grid_spec=pltpu.PrefetchScalarGridSpec(
            num_scalar_prefetch=0,
            grid=grid,
            in_specs=in_specs,
            out_specs=out_specs,
            scratch_shapes=scratch_shapes,
        ),
        compiler_params=pltpu.CompilerParams(
            dimension_semantics=dims,
            vmem_limit_bytes=vmem_limit,
        ),
        cost_estimate=cost,
    )(x2d, w1c, w2c, a2_2d, b2_2d)

    return out2d.reshape(B, S, D)


# --------------------------------------------------------------------------- demo
if __name__ == "__main__":
    # Small shapes consistent with the module forward: inputs [batch, seq, d_model].
    # Full bf16 weights (1 MiB) fit VMEM -> resident-weight path (nk == 1).
    B, S, D, D_FF = 2, 256, 256, 1024

    key = jax.random.PRNGKey(0)
    k_x, k_w1, k_w2, k_a, k_b = jax.random.split(key, 5)

    x = jax.random.normal(k_x, (B, S, D), dtype=jnp.float32)
    # nn.Linear(d_model, d_ff, bias=False) stores weight as (d_ff, d_model); passed here
    # transposed as (d_model, d_ff) so the kernel computes normed @ W1 directly.
    w1 = jax.random.normal(k_w1, (D, D_FF), dtype=jnp.float32) / jnp.sqrt(D)
    w2 = jax.random.normal(k_w2, (D_FF, D), dtype=jnp.float32) / jnp.sqrt(D_FF)
    a_2 = 1.0 + 0.1 * jax.random.normal(k_a, (D,), dtype=jnp.float32)  # LN scale
    b_2 = 0.1 * jax.random.normal(k_b, (D,), dtype=jnp.float32)        # LN shift

    out = poswise_ffn(x, w1, w2, a_2, b_2)
    jax.block_until_ready(out)

    # Pure-JAX reference with the same bf16 MXU operands / f32 accumulation.
    mean = jnp.mean(x, axis=-1, keepdims=True)
    diff = x - mean
    std = jnp.sqrt(jnp.sum(diff * diff, axis=-1, keepdims=True) / (D - 1))
    normed = a_2 * diff / (std + EPS) + b_2
    h = jnp.maximum(
        jnp.dot(normed.astype(jnp.bfloat16), w1.astype(jnp.bfloat16),
                preferred_element_type=jnp.float32), 0.0)
    ref = x + jnp.dot(h.astype(jnp.bfloat16), w2.astype(jnp.bfloat16),
                      preferred_element_type=jnp.float32)

    max_err = float(jnp.max(jnp.abs(out - ref)))
    assert jnp.allclose(out, ref, atol=3e-2, rtol=3e-2), f"mismatch (max_err={max_err})"

    print("KERNEL_OK")
</pallas_src>

<mosaic_0001>
module attributes {stable_mosaic.version = 11 : i64} {
  func.func @_ffn_kernel_resident(%arg0: i32, %arg1: memref<512x256xf32, #tpu.memory_space<vmem>>, %arg2: memref<256x1024xbf16, #tpu.memory_space<vmem>>, %arg3: memref<1024x256xbf16, #tpu.memory_space<vmem>>, %arg4: memref<1x256xf32, #tpu.memory_space<vmem>>, %arg5: memref<1x256xf32, #tpu.memory_space<vmem>>, %arg6: memref<512x256xf32, #tpu.memory_space<vmem>>) attributes {dimension_semantics = [#tpu.dimension_semantics<parallel>], iteration_bounds = array<i64: 1>, scalar_prefetch = 0 : i64, scratch_operands = 0 : i64, tpu.core_type = #tpu.core_type<tc>, window_params = [{transform_indices = @transform_0, window_bounds = array<i64: 512, 256>}, {pipeline_mode = #tpu.pipeline_mode<synchronous>, transform_indices = @transform_1, window_bounds = array<i64: 256, 1024>}, {pipeline_mode = #tpu.pipeline_mode<synchronous>, transform_indices = @transform_2, window_bounds = array<i64: 1024, 256>}, {pipeline_mode = #tpu.pipeline_mode<synchronous>, transform_indices = @transform_3, window_bounds = array<i64: 1, 256>}, {pipeline_mode = #tpu.pipeline_mode<synchronous>, transform_indices = @transform_4, window_bounds = array<i64: 1, 256>}, {transform_indices = @transform_5, window_bounds = array<i64: 512, 256>}]} {
    %c0 = arith.constant 0 : index
    %c0_0 = arith.constant 0 : index
    %0 = vector.load %arg1[%c0, %c0_0] : memref<512x256xf32, #tpu.memory_space<vmem>>, vector<512x256xf32>
    %c0_1 = arith.constant 0 : index
    %c0_2 = arith.constant 0 : index
    %1 = vector.load %arg4[%c0_1, %c0_2] : memref<1x256xf32, #tpu.memory_space<vmem>>, vector<1x256xf32>
    %c0_3 = arith.constant 0 : index
    %c0_4 = arith.constant 0 : index
    %2 = vector.load %arg5[%c0_3, %c0_4] : memref<1x256xf32, #tpu.memory_space<vmem>>, vector<1x256xf32>
    %cst = arith.constant dense<0.000000e+00> : vector<512xf32>
    %3 = vector.multi_reduction <add>, %0, %cst [1] : vector<512x256xf32> to vector<512xf32>
    %4 = vector.shape_cast %3 : vector<512xf32> to vector<512x1xf32>
    %cst_5 = arith.constant 2.560000e+02 : f32
    %5 = vector.broadcast %cst_5 : f32 to vector<512x1xf32>
    %6 = arith.divf %4, %5 : vector<512x1xf32>
    %7 = vector.broadcast %6 : vector<512x1xf32> to vector<512x256xf32>
    %8 = arith.subf %0, %7 : vector<512x256xf32>
    %9 = arith.mulf %8, %8 : vector<512x256xf32>
    %cst_6 = arith.constant dense<0.000000e+00> : vector<512xf32>
    %10 = vector.multi_reduction <add>, %9, %cst_6 [1] : vector<512x256xf32> to vector<512xf32>
    %11 = vector.shape_cast %10 : vector<512xf32> to vector<512x1xf32>
    %cst_7 = arith.constant 2.550000e+02 : f32
    %12 = vector.broadcast %cst_7 : f32 to vector<512x1xf32>
    %13 = arith.divf %11, %12 : vector<512x1xf32>
    %14 = math.sqrt %13 : vector<512x1xf32>
    %cst_8 = arith.constant 9.99999997E-7 : f32
    %15 = vector.broadcast %cst_8 : f32 to vector<512x1xf32>
    %16 = arith.addf %14, %15 : vector<512x1xf32>
    %17 = vector.broadcast %1 : vector<1x256xf32> to vector<512x256xf32>
    %18 = vector.broadcast %16 : vector<512x1xf32> to vector<512x256xf32>
    %19 = arith.divf %17, %18 : vector<512x256xf32>
    %20 = arith.mulf %8, %19 : vector<512x256xf32>
    %21 = vector.broadcast %2 : vector<1x256xf32> to vector<512x256xf32>
    %22 = arith.addf %20, %21 : vector<512x256xf32>
    %23 = arith.truncf %22 : vector<512x256xf32> to vector<512x256xbf16>
    %c0_9 = arith.constant 0 : index
    %c0_10 = arith.constant 0 : index
    %24 = vector.load %arg2[%c0_9, %c0_10] : memref<256x1024xbf16, #tpu.memory_space<vmem>>, vector<256x1024xbf16>
    %cst_11 = arith.constant dense<0.000000e+00> : vector<512x1024xf32>
    %25 = tpu.matmul %23, %24, %cst_11 {dimension_numbers = #tpu.dot_dimension_numbers<[1], [0], [0], [1], [0, 0, 1, 1], [], []>} : vector<512x256xbf16>, vector<256x1024xbf16>, vector<512x1024xf32> -> vector<512x1024xf32>
    %cst_12 = arith.constant 0.000000e+00 : f32
    %26 = vector.broadcast %cst_12 : f32 to vector<512x1024xf32>
    %27 = arith.maximumf %25, %26 : vector<512x1024xf32>
    %28 = arith.truncf %27 : vector<512x1024xf32> to vector<512x1024xbf16>
    %c0_13 = arith.constant 0 : index
    %c0_14 = arith.constant 0 : index
    %29 = vector.load %arg3[%c0_13, %c0_14] : memref<1024x256xbf16, #tpu.memory_space<vmem>>, vector<1024x256xbf16>
    %cst_15 = arith.constant dense<0.000000e+00> : vector<512x256xf32>
    %30 = tpu.matmul %28, %29, %cst_15 {dimension_numbers = #tpu.dot_dimension_numbers<[1], [0], [0], [1], [0, 0, 1, 1], [], []>} : vector<512x1024xbf16>, vector<1024x256xbf16>, vector<512x256xf32> -> vector<512x256xf32>
    %31 = arith.addf %0, %30 : vector<512x256xf32>
    %c0_16 = arith.constant 0 : index
    %c0_17 = arith.constant 0 : index
    %32 = vector.load %arg6[%c0_16, %c0_17] : memref<512x256xf32, #tpu.memory_space<vmem>>, vector<512x256xf32>
    tpu.vector_store %arg6[%c0_16, %c0_17], %31 {strides = array<i32>} : memref<512x256xf32, #tpu.memory_space<vmem>>, vector<512x256xf32>,
    return
  }
  func.func @transform_0(%arg0: i32) -> (i32, i32) {
    %c0_i32 = arith.constant 0 : i32
    %c0_i32_0 = arith.constant 0 : i32
    return %arg0, %c0_i32 : i32, i32
  }
  func.func @transform_1(%arg0: i32) -> (i32, i32) {
    %c0_i32 = arith.constant 0 : i32
    %c0_i32_0 = arith.constant 0 : i32
    %c0_i32_1 = arith.constant 0 : i32
    return %c0_i32, %c0_i32_0 : i32, i32
  }
  func.func @transform_2(%arg0: i32) -> (i32, i32) {
    %c0_i32 = arith.constant 0 : i32
    %c0_i32_0 = arith.constant 0 : i32
    %c0_i32_1 = arith.constant 0 : i32
    return %c0_i32, %c0_i32_0 : i32, i32
  }
  func.func @transform_3(%arg0: i32) -> (i32, i32) {
    %c0_i32 = arith.constant 0 : i32
    %c0_i32_0 = arith.constant 0 : i32
    %c0_i32_1 = arith.constant 0 : i32
    return %c0_i32, %c0_i32_0 : i32, i32
  }
  func.func @transform_4(%arg0: i32) -> (i32, i32) {
    %c0_i32 = arith.constant 0 : i32
    %c0_i32_0 = arith.constant 0 : i32
    %c0_i32_1 = arith.constant 0 : i32
    return %c0_i32, %c0_i32_0 : i32, i32
  }
  func.func @transform_5(%arg0: i32) -> (i32, i32) {
    %c0_i32 = arith.constant 0 : i32
    %c0_i32_0 = arith.constant 0 : i32
    return %arg0, %c0_i32 : i32, i32
  }
}

</mosaic_0001>

<llo_original>
// kernel: tpu_custom_call.1
$region0: #{tpu_custom_call.1}
  #allocation0 [shape = 'u32[]', space=smem, size = 0x4, offset = 0x4, fixed_abs, tag = 'smem constant byte address 0x4 - core index']
  #allocation1 [shape = 'u32[144,128]{1,0:T(1,128)}', space=vmem, size = 0x12000, scoped, tag = 'internal scratch']
  %s0 = inlined_call_operand.hbm [shape: f32[512,256], index: 0, kind: input, shape index: {}]
  %s1 = inlined_call_operand.hbm [shape: bf16[256,1024], index: 1, kind: input, shape index: {}]
  %s2 = inlined_call_operand.hbm [shape: bf16[1024,256], index: 2, kind: input, shape index: {}]
  %s3 = inlined_call_operand.vmem [shape: f32[1,256], index: 3, kind: input, shape index: {}]
  %s4 = inlined_call_operand.vmem [shape: f32[1,256], index: 4, kind: input, shape index: {}]
  %s5 = inlined_call_operand.hbm [shape: f32[512,256], index: 5, kind: output, shape index: {}]
  %s6 = sld [smem:[#allocation0]]
  $region42: #{tpu_custom_call.1} parent=0
    _
  %s8 = ssub.s32 1, %s6
  %s9 = scalar_select 0, %s8, %s6
  $region1: #{tpu_custom_call.1} parent=0
    #allocation2 [shape = 'u8[524288]{0}', space=vmem, size = 0x80000, scoped, tag = 'input window, operand 0, single buffered']
    #allocation3 [shape = 's32[1]{0}', space=sflag, size = 0x4, scoped, tag = 'scoped memory for tpu_custom_call.1']
    #allocation4 [shape = 's32[1]{0}', space=sflag, size = 0x4, scoped, tag = 'scoped memory for tpu_custom_call.1']
    #allocation5 [shape = 'u8[524288]{0}', space=vmem, size = 0x80000, scoped, tag = 'input window, operand 1, single buffered']
    #allocation6 [shape = 's32[1]{0}', space=sflag, size = 0x4, scoped, tag = 'scoped memory for tpu_custom_call.1']
    #allocation7 [shape = 'u8[524288]{0}', space=vmem, size = 0x80000, scoped, tag = 'input window, operand 2, single buffered']
    #allocation8 [shape = 'u8[524288]{0}', space=vmem, size = 0x80000, scoped, tag = 'output window, operand 0, single buffered']
    %10 = vsyncpa [#allocation3], 0
    %11 = vsyncpa [#allocation6], 0
    %12 = vsyncpa [#allocation4], 0
    // Predicated region
    $region2: #{tpu_custom_call.1} parent=1 // pred_check
      _
    $region3: #{tpu_custom_call.1} parent=1 // pred_check_branch
      %14 = sbr.rel (0) target = $region5
    $region4: #{tpu_custom_call.1} parent=1 // pred_region
      %s16 = ssub.s32 16384, 16384
      %17 = vsyncadd [#allocation3], %s16
      %s18 = sshll.u32 [#allocation2], 4
      %s19 = int_to_ptr.vmem [resolvable:$true] %s18
      %24 = dma.hbm_to_vmem [thread:$0]  %s0, 16384, %s19, [#allocation3], 256, 256, 16
    $region5: #{tpu_custom_call.1} parent=1 // pred_fallthru
      _
    // Predicated region
    $region6: #{tpu_custom_call.1} parent=1 // pred_check
      _
    $region7: #{tpu_custom_call.1} parent=1 // pred_check_branch
      %26 = sbr.rel (0) target = $region9
    $region8: #{tpu_custom_call.1} parent=1 // pred_region
      %s28 = ssub.s32 16384, 16384
      %29 = vsyncadd [#allocation6], %s28
      %s30 = sshll.u32 [#allocation5], 4
      %s31 = int_to_ptr.vmem [resolvable:$true] %s30
      %36 = dma.hbm_to_vmem [thread:$0]  %s1, 16384, %s31, [#allocation6], 512, 512, 32
    $region9: #{tpu_custom_call.1} parent=1 // pred_fallthru
      _
    // Predicated region
    $region10: #{tpu_custom_call.1} parent=1 // pred_check
      _
    $region11: #{tpu_custom_call.1} parent=1 // pred_check_branch
      %38 = sbr.rel (0) target = $region13
    $region12: #{tpu_custom_call.1} parent=1 // pred_region
      %s40 = ssub.s32 16384, 16384
      %41 = vsyncadd [#allocation6], %s40
      %s42 = sshll.u32 [#allocation7], 4
      %s43 = int_to_ptr.vmem [resolvable:$true] %s42
      %48 = dma.hbm_to_vmem [thread:$0]  %s2, 16384, %s43, [#allocation6], 128, 128, 8
    $region13: #{tpu_custom_call.1} parent=1 // pred_fallthru
      _
    // Predicated region
    $region14: #{tpu_custom_call.1} parent=1 // pred_check
      _
    $region15: #{tpu_custom_call.1} parent=1 // pred_check_branch
      %50 = sbr.rel (0) target = $region17
    $region16: #{tpu_custom_call.1} parent=1 // pred_region
      _
    $region17: #{tpu_custom_call.1} parent=1 // pred_fallthru
      _
    // Predicated region
    $region18: #{tpu_custom_call.1} parent=1 // pred_check
      _
    $region19: #{tpu_custom_call.1} parent=1 // pred_check_branch
      %52 = sbr.rel (0) target = $region21
    $region20: #{tpu_custom_call.1} parent=1 // pred_region
      _
    $region21: #{tpu_custom_call.1} parent=1 // pred_fallthru
      _
    // Predicated region
    $region22: #{tpu_custom_call.1} parent=1 // pred_check
      _
    $region23: #{tpu_custom_call.1} parent=1 // pred_check_branch
      %54 = sbr.rel (0) target = $region25
    $region24: #{tpu_custom_call.1} parent=1 // pred_region
      %55 = dma.done [#allocation3], 16384
    $region25: #{tpu_custom_call.1} parent=1 // pred_fallthru
      _
    // Predicated region
    $region26: #{tpu_custom_call.1} parent=1 // pred_check
      _
    $region27: #{tpu_custom_call.1} parent=1 // pred_check_branch
      %57 = sbr.rel (0) target = $region29
    $region28: #{tpu_custom_call.1} parent=1 // pred_region
      %58 = dma.done [#allocation6], 16384
    $region29: #{tpu_custom_call.1} parent=1 // pred_fallthru
      _
    // Predicated region
    $region30: #{tpu_custom_call.1} parent=1 // pred_check
      _
    $region31: #{tpu_custom_call.1} parent=1 // pred_check_branch
      %60 = sbr.rel (0) target = $region33
    $region32: #{tpu_custom_call.1} parent=1 // pred_region
      %61 = dma.done [#allocation6], 16384
    $region33: #{tpu_custom_call.1} parent=1 // pred_fallthru
      _
    %v62 = vld [vmem:[#allocation2] sm:$0xff]
    %v63 = vld [vmem:[#allocation2 + $0x8] sm:$0xff]
    %v64 = vld [vmem:[#allocation2 + $0x10] sm:$0xff]
    %v65 = vld [vmem:[#allocation2 + $0x18] sm:$0xff]
    %v66 = vld [vmem:[#allocation2 + $0x20] sm:$0xff]
    %v67 = vld [vmem:[#allocation2 + $0x28] sm:$0xff]
    %v68 = vld [vmem:[#allocation2 + $0x30] sm:$0xff]
    %v69 = vld [vmem:[#allocation2 + $0x38] sm:$0xff]
    %v70 = vld [vmem:[#allocation2 + $0x40] sm:$0xff]
    %v71 = vld [vmem:[#allocation2 + $0x48] sm:$0xff]
    %v72 = vld [vmem:[#allocation2 + $0x50] sm:$0xff]
    %v73 = vld [vmem:[#allocation2 + $0x58] sm:$0xff]
    %v74 = vld [vmem:[#allocation2 + $0x60] sm:$0xff]
    %v75 = vld [vmem:[#allocation2 + $0x68] sm:$0xff]
    %v76 = vld [vmem:[#allocation2 + $0x70] sm:$0xff]
    %v77 = vld [vmem:[#allocation2 + $0x78] sm:$0xff]
    %v78 = vld [vmem:[#allocation2 + $0x80] sm:$0xff]
    %v79 = vld [vmem:[#allocation2 + $0x88] sm:$0xff]
    %v80 = vld [vmem:[#allocation2 + $0x90] sm:$0xff]
    %v81 = vld [vmem:[#allocation2 + $0x98] sm:$0xff]
    %v82 = vld [vmem:[#allocation2 + $0xa0] sm:$0xff]
    %v83 = vld [vmem:[#allocation2 + $0xa8] sm:$0xff]
    %v84 = vld [vmem:[#allocation2 + $0xb0] sm:$0xff]
    %v85 = vld [vmem:[#allocation2 + $0xb8] sm:$0xff]
    %v86 = vld [vmem:[#allocation2 + $0xc0] sm:$0xff]
    %v87 = vld [vmem:[#allocation2 + $0xc8] sm:$0xff]
    %v88 = vld [vmem:[#allocation2 + $0xd0] sm:$0xff]
    %v89 = vld [vmem:[#allocation2 + $0xd8] sm:$0xff]
    %v90 = vld [vmem:[#allocation2 + $0xe0] sm:$0xff]
    %v91 = vld [vmem:[#allocation2 + $0xe8] sm:$0xff]
    %v92 = vld [vmem:[#allocation2 + $0xf0] sm:$0xff]
    %v93 = vld [vmem:[#allocation2 + $0xf8] sm:$0xff]
    %v94 = vld [vmem:[#allocation2 + $0x100] sm:$0xff]
    %v95 = vld [vmem:[#allocation2 + $0x108] sm:$0xff]
    %v96 = vld [vmem:[#allocation2 + $0x110] sm:$0xff]
    %v97 = vld [vmem:[#allocation2 + $0x118] sm:$0xff]
    %v98 = vld [vmem:[#allocation2 + $0x120] sm:$0xff]
    %v99 = vld [vmem:[#allocation2 + $0x128] sm:$0xff]
    %v100 = vld [vmem:[#allocation2 + $0x130] sm:$0xff]
    %v101 = vld [vmem:[#allocation2 + $0x138] sm:$0xff]
    %v102 = vld [vmem:[#allocation2 + $0x140] sm:$0xff]
    %v103 = vld [vmem:[#allocation2 + $0x148] sm:$0xff]
    %v104 = vld [vmem:[#allocation2 + $0x150] sm:$0xff]
    %v105 = vld [vmem:[#allocation2 + $0x158] sm:$0xff]
    %v106 = vld [vmem:[#allocation2 + $0x160] sm:$0xff]
    %v107 = vld [vmem:[#allocation2 + $0x168] sm:$0xff]
    %v108 = vld [vmem:[#allocation2 + $0x170] sm:$0xff]
    %v109 = vld [vmem:[#allocation2 + $0x178] sm:$0xff]
    %v110 = vld [vmem:[#allocation2 + $0x180] sm:$0xff]
    %v111 = vld [vmem:[#allocation2 + $0x188] sm:$0xff]
    %v112 = vld [vmem:[#allocation2 + $0x190] sm:$0xff]
    %v113 = vld [vmem:[#allocation2 + $0x198] sm:$0xff]
    %v114 = vld [vmem:[#allocation2 + $0x1a0] sm:$0xff]
    %v115 = vld [vmem:[#allocation2 + $0x1a8] sm:$0xff]
    %v116 = vld [vmem:[#allocation2 + $0x1b0] sm:$0xff]
    %v117 = vld [vmem:[#allocation2 + $0x1b8] sm:$0xff]
    %v118 = vld [vmem:[#allocation2 + $0x1c0] sm:$0xff]
    %v119 = vld [vmem:[#allocation2 + $0x1c8] sm:$0xff]
    %v120 = vld [vmem:[#allocation2 + $0x1d0] sm:$0xff]
    %v121 = vld [vmem:[#allocation2 + $0x1d8] sm:$0xff]
    %v122 = vld [vmem:[#allocation2 + $0x1e0] sm:$0xff]
    %v123 = vld [vmem:[#allocation2 + $0x1e8] sm:$0xff]
    %v124 = vld [vmem:[#allocation2 + $0x1f0] sm:$0xff]
    %v125 = vld [vmem:[#allocation2 + $0x1f8] sm:$0xff]
    %v126 = vld [vmem:[#allocation2 + $0x200] sm:$0xff]
    %v127 = vld [vmem:[#allocation2 + $0x208] sm:$0xff]
    %v128 = vld [vmem:[#allocation2 + $0x210] sm:$0xff]
    %v129 = vld [vmem:[#allocation2 + $0x218] sm:$0xff]
    %v130 = vld [vmem:[#allocation2 + $0x220] sm:$0xff]
    %v131 = vld [vmem:[#allocation2 + $0x228] sm:$0xff]
    %v132 = vld [vmem:[#allocation2 + $0x230] sm:$0xff]
    %v133 = vld [vmem:[#allocation2 + $0x238] sm:$0xff]
    %v134 = vld [vmem:[#allocation2 + $0x240] sm:$0xff]
    %v135 = vld [vmem:[#allocation2 + $0x248] sm:$0xff]
    %v136 = vld [vmem:[#allocation2 + $0x250] sm:$0xff]
    %v137 = vld [vmem:[#allocation2 + $0x258] sm:$0xff]
    %v138 = vld [vmem:[#allocation2 + $0x260] sm:$0xff]
    %v139 = vld [vmem:[#allocation2 + $0x268] sm:$0xff]
    %v140 = vld [vmem:[#allocation2 + $0x270] sm:$0xff]
    %v141 = vld [vmem:[#allocation2 + $0x278] sm:$0xff]
    %v142 = vld [vmem:[#allocation2 + $0x280] sm:$0xff]
    %v143 = vld [vmem:[#allocation2 + $0x288] sm:$0xff]
    %v144 = vld [vmem:[#allocation2 + $0x290] sm:$0xff]
    %v145 = vld [vmem:[#allocation2 + $0x298] sm:$0xff]
    %v146 = vld [vmem:[#allocation2 + $0x2a0] sm:$0xff]
    %v147 = vld [vmem:[#allocation2 + $0x2a8] sm:$0xff]
    %v148 = vld [vmem:[#allocation2 + $0x2b0] sm:$0xff]
    %v149 = vld [vmem:[#allocation2 + $0x2b8] sm:$0xff]
    %v150 = vld [vmem:[#allocation2 + $0x2c0] sm:$0xff]
    %v151 = vld [vmem:[#allocation2 + $0x2c8] sm:$0xff]
    %v152 = vld [vmem:[#allocation2 + $0x2d0] sm:$0xff]
    %v153 = vld [vmem:[#allocation2 + $0x2d8] sm:$0xff]
    %v154 = vld [vmem:[#allocation2 + $0x2e0] sm:$0xff]
    %v155 = vld [vmem:[#allocation2 + $0x2e8] sm:$0xff]
    %v156 = vld [vmem:[#allocation2 + $0x2f0] sm:$0xff]
    %v157 = vld [vmem:[#allocation2 + $0x2f8] sm:$0xff]
    %v158 = vld [vmem:[#allocation2 + $0x300] sm:$0xff]
    %v159 = vld [vmem:[#allocation2 + $0x308] sm:$0xff]
    %v160 = vld [vmem:[#allocation2 + $0x310] sm:$0xff]
    %v161 = vld [vmem:[#allocation2 + $0x318] sm:$0xff]
    %v162 = vld [vmem:[#allocation2 + $0x320] sm:$0xff]
    %v163 = vld [vmem:[#allocation2 + $0x328] sm:$0xff]
    %v164 = vld [vmem:[#allocation2 + $0x330] sm:$0xff]
    %v165 = vld [vmem:[#allocation2 + $0x338] sm:$0xff]
    %v166 = vld [vmem:[#allocation2 + $0x340] sm:$0xff]
    %v167 = vld [vmem:[#allocation2 + $0x348] sm:$0xff]
    %v168 = vld [vmem:[#allocation2 + $0x350] sm:$0xff]
    %v169 = vld [vmem:[#allocation2 + $0x358] sm:$0xff]
    %v170 = vld [vmem:[#allocation2 + $0x360] sm:$0xff]
    %v171 = vld [vmem:[#allocation2 + $0x368] sm:$0xff]
    %v172 = vld [vmem:[#allocation2 + $0x370] sm:$0xff]
    %v173 = vld [vmem:[#allocation2 + $0x378] sm:$0xff]
    %v174 = vld [vmem:[#allocation2 + $0x380] sm:$0xff]
    %v175 = vld [vmem:[#allocation2 + $0x388] sm:$0xff]
    %v176 = vld [vmem:[#allocation2 + $0x390] sm:$0xff]
    %v177 = vld [vmem:[#allocation2 + $0x398] sm:$0xff]
    %v178 = vld [vmem:[#allocation2 + $0x3a0] sm:$0xff]
    %v179 = vld [vmem:[#allocation2 + $0x3a8] sm:$0xff]
    %v180 = vld [vmem:[#allocation2 + $0x3b0] sm:$0xff]
    %v181 = vld [vmem:[#allocation2 + $0x3b8] sm:$0xff]
    %v182 = vld [vmem:[#allocation2 + $0x3c0] sm:$0xff]
    %v183 = vld [vmem:[#allocation2 + $0x3c8] sm:$0xff]
    %v184 = vld [vmem:[#allocation2 + $0x3d0] sm:$0xff]
    %v185 = vld [vmem:[#allocation2 + $0x3d8] sm:$0xff]
    %v186 = vld [vmem:[#allocation2 + $0x3e0] sm:$0xff]
    %v187 = vld [vmem:[#allocation2 + $0x3e8] sm:$0xff]
    %v188 = vld [vmem:[#allocation2 + $0x3f0] sm:$0xff]
    %v189 = vld [vmem:[#allocation2 + $0x3f8] sm:$0xff]
    %v190 = vld [vmem:[%s3] sm:$0x3]
    %v191 = vld [vmem:[%s4] sm:$0x3]
    %v192 = vadd.f32 %v62, %v63
    %193 = vadd.xlane.f32.xlu0 %v192
    %v194 = vpop.xlane.xlu0 %193
    %v195 = vadd.f32 %v64, %v65
    %196 = vadd.xlane.f32.xlu0 %v195
    %v197 = vpop.xlane.xlu0 %196
    %v198 = vadd.f32 %v66, %v67
    %199 = vadd.xlane.f32.xlu0 %v198
    %v200 = vpop.xlane.xlu0 %199
    %v201 = vadd.f32 %v68, %v69
    %202 = vadd.xlane.f32.xlu0 %v201
    %v203 = vpop.xlane.xlu0 %202
    %v204 = vadd.f32 %v70, %v71
    %205 = vadd.xlane.f32.xlu0 %v204
    %v206 = vpop.xlane.xlu0 %205
    %v207 = vadd.f32 %v72, %v73
    %208 = vadd.xlane.f32.xlu0 %v207
    %v209 = vpop.xlane.xlu0 %208
    %v210 = vadd.f32 %v74, %v75
    %211 = vadd.xlane.f32.xlu0 %v210
    %v212 = vpop.xlane.xlu0 %211
    %v213 = vadd.f32 %v76, %v77
    %214 = vadd.xlane.f32.xlu0 %v213
    %v215 = vpop.xlane.xlu0 %214
    %v216 = vadd.f32 %v78, %v79
    %217 = vadd.xlane.f32.xlu0 %v216
    %v218 = vpop.xlane.xlu0 %217
    %v219 = vadd.f32 %v80, %v81
    %220 = vadd.xlane.f32.xlu0 %v219
    %v221 = vpop.xlane.xlu0 %220
    %v222 = vadd.f32 %v82, %v83
    %223 = vadd.xlane.f32.xlu0 %v222
    %v224 = vpop.xlane.xlu0 %223
    %v225 = vadd.f32 %v84, %v85
    %226 = vadd.xlane.f32.xlu0 %v225
    %v227 = vpop.xlane.xlu0 %226
    %v228 = vadd.f32 %v86, %v87
    %229 = vadd.xlane.f32.xlu0 %v228
    %v230 = vpop.xlane.xlu0 %229
    %v231 = vadd.f32 %v88, %v89
    %232 = vadd.xlane.f32.xlu0 %v231
    %v233 = vpop.xlane.xlu0 %232
    %v234 = vadd.f32 %v90, %v91
    %235 = vadd.xlane.f32.xlu0 %v234
    %v236 = vpop.xlane.xlu0 %235
    %v237 = vadd.f32 %v92, %v93
    %238 = vadd.xlane.f32.xlu0 %v237
    %v239 = vpop.xlane.xlu0 %238
    %v240 = vadd.f32 %v94, %v95
    %241 = vadd.xlane.f32.xlu0 %v240
    %v242 = vpop.xlane.xlu0 %241
    %v243 = vadd.f32 %v96, %v97
    %244 = vadd.xlane.f32.xlu0 %v243
    %v245 = vpop.xlane.xlu0 %244
    %v246 = vadd.f32 %v98, %v99
    %247 = vadd.xlane.f32.xlu0 %v246
    %v248 = vpop.xlane.xlu0 %247
    %v249 = vadd.f32 %v100, %v101
    %250 = vadd.xlane.f32.xlu0 %v249
    %v251 = vpop.xlane.xlu0 %250
    %v252 = vadd.f32 %v102, %v103
    %253 = vadd.xlane.f32.xlu0 %v252
    %v254 = vpop.xlane.xlu0 %253
    %v255 = vadd.f32 %v104, %v105
    %256 = vadd.xlane.f32.xlu0 %v255
    %v257 = vpop.xlane.xlu0 %256
    %v258 = vadd.f32 %v106, %v107
    %259 = vadd.xlane.f32.xlu0 %v258
    %v260 = vpop.xlane.xlu0 %259
    %v261 = vadd.f32 %v108, %v109
    %262 = vadd.xlane.f32.xlu0 %v261
    %v263 = vpop.xlane.xlu0 %262
    %v264 = vadd.f32 %v110, %v111
    %265 = vadd.xlane.f32.xlu0 %v264
    %v266 = vpop.xlane.xlu0 %265
    %v267 = vadd.f32 %v112, %v113
    %268 = vadd.xlane.f32.xlu0 %v267
    %v269 = vpop.xlane.xlu0 %268
    %v270 = vadd.f32 %v114, %v115
    %271 = vadd.xlane.f32.xlu0 %v270
    %v272 = vpop.xlane.xlu0 %271
    %v273 = vadd.f32 %v116, %v117
    %274 = vadd.xlane.f32.xlu0 %v273
    %v275 = vpop.xlane.xlu0 %274
    %v276 = vadd.f32 %v118, %v119
    %277 = vadd.xlane.f32.xlu0 %v276
    %v278 = vpop.xlane.xlu0 %277
    %v279 = vadd.f32 %v120, %v121
    %280 = vadd.xlane.f32.xlu0 %v279
    %v281 = vpop.xlane.xlu0 %280
    %v282 = vadd.f32 %v122, %v123
    %283 = vadd.xlane.f32.xlu0 %v282
    %v284 = vpop.xlane.xlu0 %283
    %v285 = vadd.f32 %v124, %v125
    %286 = vadd.xlane.f32.xlu0 %v285
    %v287 = vpop.xlane.xlu0 %286
    %v288 = vadd.f32 %v126, %v127
    %289 = vadd.xlane.f32.xlu0 %v288
    %v290 = vpop.xlane.xlu0 %289
    %v291 = vadd.f32 %v128, %v129
    %292 = vadd.xlane.f32.xlu0 %v291
    %v293 = vpop.xlane.xlu0 %292
    %v294 = vadd.f32 %v130, %v131
    %295 = vadd.xlane.f32.xlu0 %v294
    %v296 = vpop.xlane.xlu0 %295
    %v297 = vadd.f32 %v132, %v133
    %298 = vadd.xlane.f32.xlu0 %v297
    %v299 = vpop.xlane.xlu0 %298
    %v300 = vadd.f32 %v134, %v135
    %301 = vadd.xlane.f32.xlu0 %v300
    %v302 = vpop.xlane.xlu0 %301
    %v303 = vadd.f32 %v136, %v137
    %304 = vadd.xlane.f32.xlu0 %v303
    %v305 = vpop.xlane.xlu0 %304
    %v306 = vadd.f32 %v138, %v139
    %307 = vadd.xlane.f32.xlu0 %v306
    %v308 = vpop.xlane.xlu0 %307
    %v309 = vadd.f32 %v140, %v141
    %310 = vadd.xlane.f32.xlu0 %v309
    %v311 = vpop.xlane.xlu0 %310
    %v312 = vadd.f32 %v142, %v143
    %313 = vadd.xlane.f32.xlu0 %v312
    %v314 = vpop.xlane.xlu0 %313
    %v315 = vadd.f32 %v144, %v145
    %316 = vadd.xlane.f32.xlu0 %v315
    %v317 = vpop.xlane.xlu0 %316
    %v318 = vadd.f32 %v146, %v147
    %319 = vadd.xlane.f32.xlu0 %v318
    %v320 = vpop.xlane.xlu0 %319
    %v321 = vadd.f32 %v148, %v149
    %322 = vadd.xlane.f32.xlu0 %v321
    %v323 = vpop.xlane.xlu0 %322
    %v324 = vadd.f32 %v150, %v151
    %325 = vadd.xlane.f32.xlu0 %v324
    %v326 = vpop.xlane.xlu0 %325
    %v327 = vadd.f32 %v152, %v153
    %328 = vadd.xlane.f32.xlu0 %v327
    %v329 = vpop.xlane.xlu0 %328
    %v330 = vadd.f32 %v154, %v155
    %331 = vadd.xlane.f32.xlu0 %v330
    %v332 = vpop.xlane.xlu0 %331
    %v333 = vadd.f32 %v156, %v157
    %334 = vadd.xlane.f32.xlu0 %v333
    %v335 = vpop.xlane.xlu0 %334
    %v336 = vadd.f32 %v158, %v159
    %337 = vadd.xlane.f32.xlu0 %v336
    %v338 = vpop.xlane.xlu0 %337
    %v339 = vadd.f32 %v160, %v161
    %340 = vadd.xlane.f32.xlu0 %v339
    %v341 = vpop.xlane.xlu0 %340
    %v342 = vadd.f32 %v162, %v163
    %343 = vadd.xlane.f32.xlu0 %v342
    %v344 = vpop.xlane.xlu0 %343
    %v345 = vadd.f32 %v164, %v165
    %346 = vadd.xlane.f32.xlu0 %v345
    %v347 = vpop.xlane.xlu0 %346
    %v348 = vadd.f32 %v166, %v167
    %349 = vadd.xlane.f32.xlu0 %v348
    %v350 = vpop.xlane.xlu0 %349
    %v351 = vadd.f32 %v168, %v169
    %352 = vadd.xlane.f32.xlu0 %v351
    %v353 = vpop.xlane.xlu0 %352
    %v354 = vadd.f32 %v170, %v171
    %355 = vadd.xlane.f32.xlu0 %v354
    %v356 = vpop.xlane.xlu0 %355
    %v357 = vadd.f32 %v172, %v173
    %358 = vadd.xlane.f32.xlu0 %v357
    %v359 = vpop.xlane.xlu0 %358
    %v360 = vadd.f32 %v174, %v175
    %361 = vadd.xlane.f32.xlu0 %v360
    %v362 = vpop.xlane.xlu0 %361
    %v363 = vadd.f32 %v176, %v177
    %364 = vadd.xlane.f32.xlu0 %v363
    %v365 = vpop.xlane.xlu0 %364
    %v366 = vadd.f32 %v178, %v179
    %367 = vadd.xlane.f32.xlu0 %v366
    %v368 = vpop.xlane.xlu0 %367
    %v369 = vadd.f32 %v180, %v181
    %370 = vadd.xlane.f32.xlu0 %v369
    %v371 = vpop.xlane.xlu0 %370
    %v372 = vadd.f32 %v182, %v183
    %373 = vadd.xlane.f32.xlu0 %v372
    %v374 = vpop.xlane.xlu0 %373
    %v375 = vadd.f32 %v184, %v185
    %376 = vadd.xlane.f32.xlu0 %v375
    %v377 = vpop.xlane.xlu0 %376
    %v378 = vadd.f32 %v186, %v187
    %379 = vadd.xlane.f32.xlu0 %v378
    %v380 = vpop.xlane.xlu0 %379
    %v381 = vadd.f32 %v188, %v189
    %382 = vadd.xlane.f32.xlu0 %v381
    %v383 = vpop.xlane.xlu0 %382
    %v384 = vrcp.pop 256.0
    %v385 = vmul.f32 %v194, %v384
    %v386 = vmul.f32 %v197, %v384
    %v387 = vmul.f32 %v200, %v384
    %v388 = vmul.f32 %v203, %v384
    %v389 = vmul.f32 %v206, %v384
    %v390 = vmul.f32 %v209, %v384
    %v391 = vmul.f32 %v212, %v384
    %v392 = vmul.f32 %v215, %v384
    %v393 = vmul.f32 %v218, %v384
    %v394 = vmul.f32 %v221, %v384
    %v395 = vmul.f32 %v224, %v384
    %v396 = vmul.f32 %v227, %v384
    %v397 = vmul.f32 %v230, %v384
    %v398 = vmul.f32 %v233, %v384
    %v399 = vmul.f32 %v236, %v384
    %v400 = vmul.f32 %v239, %v384
    %v401 = vmul.f32 %v242, %v384
    %v402 = vmul.f32 %v245, %v384
    %v403 = vmul.f32 %v248, %v384
    %v404 = vmul.f32 %v251, %v384
    %v405 = vmul.f32 %v254, %v384
    %v406 = vmul.f32 %v257, %v384
    %v407 = vmul.f32 %v260, %v384
    %v408 = vmul.f32 %v263, %v384
    %v409 = vmul.f32 %v266, %v384
    %v410 = vmul.f32 %v269, %v384
    %v411 = vmul.f32 %v272, %v384
    %v412 = vmul.f32 %v275, %v384
    %v413 = vmul.f32 %v278, %v384
    %v414 = vmul.f32 %v281, %v384
    %v415 = vmul.f32 %v284, %v384
    %v416 = vmul.f32 %v287, %v384
    %v417 = vmul.f32 %v290, %v384
    %v418 = vmul.f32 %v293, %v384
    %v419 = vmul.f32 %v296, %v384
    %v420 = vmul.f32 %v299, %v384
    %v421 = vmul.f32 %v302, %v384
    %v422 = vmul.f32 %v305, %v384
    %v423 = vmul.f32 %v308, %v384
    %v424 = vmul.f32 %v311, %v384
    %v425 = vmul.f32 %v314, %v384
    %v426 = vmul.f32 %v317, %v384
    %v427 = vmul.f32 %v320, %v384
    %v428 = vmul.f32 %v323, %v384
    %v429 = vmul.f32 %v326, %v384
    %v430 = vmul.f32 %v329, %v384
    %v431 = vmul.f32 %v332, %v384
    %v432 = vmul.f32 %v335, %v384
    %v433 = vmul.f32 %v338, %v384
    %v434 = vmul.f32 %v341, %v384
    %v435 = vmul.f32 %v344, %v384
    %v436 = vmul.f32 %v347, %v384
    %v437 = vmul.f32 %v350, %v384
    %v438 = vmul.f32 %v353, %v384
    %v439 = vmul.f32 %v356, %v384
    %v440 = vmul.f32 %v359, %v384
    %v441 = vmul.f32 %v362, %v384
    %v442 = vmul.f32 %v365, %v384
    %v443 = vmul.f32 %v368, %v384
    %v444 = vmul.f32 %v371, %v384
    %v445 = vmul.f32 %v374, %v384
    %v446 = vmul.f32 %v377, %v384
    %v447 = vmul.f32 %v380, %v384
    %v448 = vmul.f32 %v383, %v384
    %v449 = vsub.f32 %v62, %v385
    %v450 = vsub.f32 %v63, %v385
    %v451 = vsub.f32 %v64, %v386
    %v452 = vsub.f32 %v65, %v386
    %v453 = vsub.f32 %v66, %v387
    %v454 = vsub.f32 %v67, %v387
    %v455 = vsub.f32 %v68, %v388
    %v456 = vsub.f32 %v69, %v388
    %v457 = vsub.f32 %v70, %v389
    %v458 = vsub.f32 %v71, %v389
    %v459 = vsub.f32 %v72, %v390
    %v460 = vsub.f32 %v73, %v390
    %v461 = vsub.f32 %v74, %v391
    %v462 = vsub.f32 %v75, %v391
    %v463 = vsub.f32 %v76, %v392
    %v464 = vsub.f32 %v77, %v392
    %v465 = vsub.f32 %v78, %v393
    %v466 = vsub.f32 %v79, %v393
    %v467 = vsub.f32 %v80, %v394
    %v468 = vsub.f32 %v81, %v394
    %v469 = vsub.f32 %v82, %v395
    %v470 = vsub.f32 %v83, %v395
    %v471 = vsub.f32 %v84, %v396
    %v472 = vsub.f32 %v85, %v396
    %v473 = vsub.f32 %v86, %v397
    %v474 = vsub.f32 %v87, %v397
    %v475 = vsub.f32 %v88, %v398
    %v476 = vsub.f32 %v89, %v398
    %v477 = vsub.f32 %v90, %v399
    %v478 = vsub.f32 %v91, %v399
    %v479 = vsub.f32 %v92, %v400
    %v480 = vsub.f32 %v93, %v400
    %v481 = vsub.f32 %v94, %v401
    %v482 = vsub.f32 %v95, %v401
    %v483 = vsub.f32 %v96, %v402
    %v484 = vsub.f32 %v97, %v402
    %v485 = vsub.f32 %v98, %v403
    %v486 = vsub.f32 %v99, %v403
    %v487 = vsub.f32 %v100, %v404
    %v488 = vsub.f32 %v101, %v404
    %v489 = vsub.f32 %v102, %v405
    %v490 = vsub.f32 %v103, %v405
    %v491 = vsub.f32 %v104, %v406
    %v492 = vsub.f32 %v105, %v406
    %v493 = vsub.f32 %v106, %v407
    %v494 = vsub.f32 %v107, %v407
    %v495 = vsub.f32 %v108, %v408
    %v496 = vsub.f32 %v109, %v408
    %v497 = vsub.f32 %v110, %v409
    %v498 = vsub.f32 %v111, %v409
    %v499 = vsub.f32 %v112, %v410
    %v500 = vsub.f32 %v113, %v410
    %v501 = vsub.f32 %v114, %v411
    %v502 = vsub.f32 %v115, %v411
    %v503 = vsub.f32 %v116, %v412
    %v504 = vsub.f32 %v117, %v412
    %v505 = vsub.f32 %v118, %v413
    %v506 = vsub.f32 %v119, %v413
    %v507 = vsub.f32 %v120, %v414
    %v508 = vsub.f32 %v121, %v414
    %v509 = vsub.f32 %v122, %v415
    %v510 = vsub.f32 %v123, %v415
    %v511 = vsub.f32 %v124, %v416
    %v512 = vsub.f32 %v125, %v416
    %v513 = vsub.f32 %v126, %v417
    %v514 = vsub.f32 %v127, %v417
    %v515 = vsub.f32 %v128, %v418
    %v516 = vsub.f32 %v129, %v418
    %v517 = vsub.f32 %v130, %v419
    %v518 = vsub.f32 %v131, %v419
    %v519 = vsub.f32 %v132, %v420
    %v520 = vsub.f32 %v133, %v420
    %v521 = vsub.f32 %v134, %v421
    %v522 = vsub.f32 %v135, %v421
    %v523 = vsub.f32 %v136, %v422
    %v524 = vsub.f32 %v137, %v422
    %v525 = vsub.f32 %v138, %v423
    %v526 = vsub.f32 %v139, %v423
    %v527 = vsub.f32 %v140, %v424
    %v528 = vsub.f32 %v141, %v424
    %v529 = vsub.f32 %v142, %v425
    %v530 = vsub.f32 %v143, %v425
    %v531 = vsub.f32 %v144, %v426
    %v532 = vsub.f32 %v145, %v426
    %v533 = vsub.f32 %v146, %v427
    %v534 = vsub.f32 %v147, %v427
    %v535 = vsub.f32 %v148, %v428
    %v536 = vsub.f32 %v149, %v428
    %v537 = vsub.f32 %v150, %v429
    %v538 = vsub.f32 %v151, %v429
    %v539 = vsub.f32 %v152, %v430
    %v540 = vsub.f32 %v153, %v430
    %v541 = vsub.f32 %v154, %v431
    %v542 = vsub.f32 %v155, %v431
    %v543 = vsub.f32 %v156, %v432
    %v544 = vsub.f32 %v157, %v432
    %v545 = vsub.f32 %v158, %v433
    %v546 = vsub.f32 %v159, %v433
    %v547 = vsub.f32 %v160, %v434
    %v548 = vsub.f32 %v161, %v434
    %v549 = vsub.f32 %v162, %v435
    %v550 = vsub.f32 %v163, %v435
    %v551 = vsub.f32 %v164, %v436
    %v552 = vsub.f32 %v165, %v436
    %v553 = vsub.f32 %v166, %v437
    %v554 = vsub.f32 %v167, %v437
    %v555 = vsub.f32 %v168, %v438
    %v556 = vsub.f32 %v169, %v438
    %v557 = vsub.f32 %v170, %v439
    %v558 = vsub.f32 %v171, %v439
    %v559 = vsub.f32 %v172, %v440
    %v560 = vsub.f32 %v173, %v440
    %v561 = vsub.f32 %v174, %v441
    %v562 = vsub.f32 %v175, %v441
    %v563 = vsub.f32 %v176, %v442
    %v564 = vsub.f32 %v177, %v442
    %v565 = vsub.f32 %v178, %v443
    %v566 = vsub.f32 %v179, %v443
    %v567 = vsub.f32 %v180, %v444
    %v568 = vsub.f32 %v181, %v444
    %v569 = vsub.f32 %v182, %v445
    %v570 = vsub.f32 %v183, %v445
    %v571 = vsub.f32 %v184, %v446
    %v572 = vsub.f32 %v185, %v446
    %v573 = vsub.f32 %v186, %v447
    %v574 = vsub.f32 %v187, %v447
    %v575 = vsub.f32 %v188, %v448
    %v576 = vsub.f32 %v189, %v448
    %v577 = vmul.f32 %v449, %v449
    %v578 = vmul.f32 %v450, %v450
    %v579 = vmul.f32 %v451, %v451
    %v580 = vmul.f32 %v452, %v452
    %v581 = vmul.f32 %v453, %v453
    %v582 = vmul.f32 %v454, %v454
    %v583 = vmul.f32 %v455, %v455
    %v584 = vmul.f32 %v456, %v456
    %v585 = vmul.f32 %v457, %v457
    %v586 = vmul.f32 %v458, %v458
    %v587 = vmul.f32 %v459, %v459
    %v588 = vmul.f32 %v460, %v460
    %v589 = vmul.f32 %v461, %v461
    %v590 = vmul.f32 %v462, %v462
    %v591 = vmul.f32 %v463, %v463
    %v592 = vmul.f32 %v464, %v464
    %v593 = vmul.f32 %v465, %v465
    %v594 = vmul.f32 %v466, %v466
    %v595 = vmul.f32 %v467, %v467
    %v596 = vmul.f32 %v468, %v468
    %v597 = vmul.f32 %v469, %v469
    %v598 = vmul.f32 %v470, %v470
    %v599 = vmul.f32 %v471, %v471
    %v600 = vmul.f32 %v472, %v472
    %v601 = vmul.f32 %v473, %v473
    %v602 = vmul.f32 %v474, %v474
    %v603 = vmul.f32 %v475, %v475
    %v604 = vmul.f32 %v476, %v476
    %v605 = vmul.f32 %v477, %v477
    %v606 = vmul.f32 %v478, %v478
    %v607 = vmul.f32 %v479, %v479
    %v608 = vmul.f32 %v480, %v480
    %v609 = vmul.f32 %v481, %v481
    %v610 = vmul.f32 %v482, %v482
    %v611 = vmul.f32 %v483, %v483
    %v612 = vmul.f32 %v484, %v484
    %v613 = vmul.f32 %v485, %v485
    %v614 = vmul.f32 %v486, %v486
    %v615 = vmul.f32 %v487, %v487
    %v616 = vmul.f32 %v488, %v488
    %v617 = vmul.f32 %v489, %v489
    %v618 = vmul.f32 %v490, %v490
    %v619 = vmul.f32 %v491, %v491
    %v620 = vmul.f32 %v492, %v492
    %v621 = vmul.f32 %v493, %v493
    %v622 = vmul.f32 %v494, %v494
    %v623 = vmul.f32 %v495, %v495
    %v624 = vmul.f32 %v496, %v496
    %v625 = vmul.f32 %v497, %v497
    %v626 = vmul.f32 %v498, %v498
    %v627 = vmul.f32 %v499, %v499
    %v628 = vmul.f32 %v500, %v500
    %v629 = vmul.f32 %v501, %v501
    %v630 = vmul.f32 %v502, %v502
    %v631 = vmul.f32 %v503, %v503
    %v632 = vmul.f32 %v504, %v504
    %v633 = vmul.f32 %v505, %v505
    %v634 = vmul.f32 %v506, %v506
    %v635 = vmul.f32 %v507, %v507
    %v636 = vmul.f32 %v508, %v508
    %v637 = vmul.f32 %v509, %v509
    %v638 = vmul.f32 %v510, %v510
    %v639 = vmul.f32 %v511, %v511
    %v640 = vmul.f32 %v512, %v512
    %v641 = vmul.f32 %v513, %v513
    %v642 = vmul.f32 %v514, %v514
    %v643 = vmul.f32 %v515, %v515
    %v644 = vmul.f32 %v516, %v516
    %v645 = vmul.f32 %v517, %v517
    %v646 = vmul.f32 %v518, %v518
    %v647 = vmul.f32 %v519, %v519
    %v648 = vmul.f32 %v520, %v520
    %v649 = vmul.f32 %v521, %v521
    %v650 = vmul.f32 %v522, %v522
    %v651 = vmul.f32 %v523, %v523
    %v652 = vmul.f32 %v524, %v524
    %v653 = vmul.f32 %v525, %v525
    %v654 = vmul.f32 %v526, %v526
    %v655 = vmul.f32 %v527, %v527
    %v656 = vmul.f32 %v528, %v528
    %v657 = vmul.f32 %v529, %v529
    %v658 = vmul.f32 %v530, %v530
    %v659 = vmul.f32 %v531, %v531
    %v660 = vmul.f32 %v532, %v532
    %v661 = vmul.f32 %v533, %v533
    %v662 = vmul.f32 %v534, %v534
    %v663 = vmul.f32 %v535, %v535
    %v664 = vmul.f32 %v536, %v536
    %v665 = vmul.f32 %v537, %v537
    %v666 = vmul.f32 %v538, %v538
    %v667 = vmul.f32 %v539, %v539
    %v668 = vmul.f32 %v540, %v540
    %v669 = vmul.f32 %v541, %v541
    %v670 = vmul.f32 %v542, %v542
    %v671 = vmul.f32 %v543, %v543
    %v672 = vmul.f32 %v544, %v544
    %v673 = vmul.f32 %v545, %v545
    %v674 = vmul.f32 %v546, %v546
    %v675 = vmul.f32 %v547, %v547
    %v676 = vmul.f32 %v548, %v548
    %v677 = vmul.f32 %v549, %v549
    %v678 = vmul.f32 %v550, %v550
    %v679 = vmul.f32 %v551, %v551
    %v680 = vmul.f32 %v552, %v552
    %v681 = vmul.f32 %v553, %v553
    %v682 = vmul.f32 %v554, %v554
    %v683 = vmul.f32 %v555, %v555
    %v684 = vmul.f32 %v556, %v556
    %v685 = vmul.f32 %v557, %v557
    %v686 = vmul.f32 %v558, %v558
    %v687 = vmul.f32 %v559, %v559
    %v688 = vmul.f32 %v560, %v560
    %v689 = vmul.f32 %v561, %v561
    %v690 = vmul.f32 %v562, %v562
    %v691 = vmul.f32 %v563, %v563
    %v692 = vmul.f32 %v564, %v564
    %v693 = vmul.f32 %v565, %v565
    %v694 = vmul.f32 %v566, %v566
    %v695 = vmul.f32 %v567, %v567
    %v696 = vmul.f32 %v568, %v568
    %v697 = vmul.f32 %v569, %v569
    %v698 = vmul.f32 %v570, %v570
    %v699 = vmul.f32 %v571, %v571
    %v700 = vmul.f32 %v572, %v572
    %v701 = vmul.f32 %v573, %v573
    %v702 = vmul.f32 %v574, %v574
    %v703 = vmul.f32 %v575, %v575
    %v704 = vmul.f32 %v576, %v576
    %v705 = vadd.f32 %v577, %v578
    %706 = vadd.xlane.f32.xlu0 %v705
    %v707 = vpop.xlane.xlu0 %706
    %v708 = vadd.f32 %v579, %v580
    %709 = vadd.xlane.f32.xlu0 %v708
    %v710 = vpop.xlane.xlu0 %709
    %v711 = vadd.f32 %v581, %v582
    %712 = vadd.xlane.f32.xlu0 %v711
    %v713 = vpop.xlane.xlu0 %712
    %v714 = vadd.f32 %v583, %v584
    %715 = vadd.xlane.f32.xlu0 %v714
    %v716 = vpop.xlane.xlu0 %715
    %v717 = vadd.f32 %v585, %v586
    %718 = vadd.xlane.f32.xlu0 %v717
    %v719 = vpop.xlane.xlu0 %718
    %v720 = vadd.f32 %v587, %v588
    %721 = vadd.xlane.f32.xlu0 %v720
    %v722 = vpop.xlane.xlu0 %721
    %v723 = vadd.f32 %v589, %v590
    %724 = vadd.xlane.f32.xlu0 %v723
    %v725 = vpop.xlane.xlu0 %724
    %v726 = vadd.f32 %v591, %v592
    %727 = vadd.xlane.f32.xlu0 %v726
    %v728 = vpop.xlane.xlu0 %727
    %v729 = vadd.f32 %v593, %v594
    %730 = vadd.xlane.f32.xlu0 %v729
    %v731 = vpop.xlane.xlu0 %730
    %v732 = vadd.f32 %v595, %v596
    %733 = vadd.xlane.f32.xlu0 %v732
    %v734 = vpop.xlane.xlu0 %733
    %v735 = vadd.f32 %v597, %v598
    %736 = vadd.xlane.f32.xlu0 %v735
    %v737 = vpop.xlane.xlu0 %736
    %v738 = vadd.f32 %v599, %v600
    %739 = vadd.xlane.f32.xlu0 %v738
    %v740 = vpop.xlane.xlu0 %739
    %v741 = vadd.f32 %v601, %v602
    %742 = vadd.xlane.f32.xlu0 %v741
    %v743 = vpop.xlane.xlu0 %742
    %v744 = vadd.f32 %v603, %v604
    %745 = vadd.xlane.f32.xlu0 %v744
    %v746 = vpop.xlane.xlu0 %745
    %v747 = vadd.f32 %v605, %v606
    %748 = vadd.xlane.f32.xlu0 %v747
    %v749 = vpop.xlane.xlu0 %748
    %v750 = vadd.f32 %v607, %v608
    %751 = vadd.xlane.f32.xlu0 %v750
    %v752 = vpop.xlane.xlu0 %751
    %v753 = vadd.f32 %v609, %v610
    %754 = vadd.xlane.f32.xlu0 %v753
    %v755 = vpop.xlane.xlu0 %754
    %v756 = vadd.f32 %v611, %v612
    %757 = vadd.xlane.f32.xlu0 %v756
    %v758 = vpop.xlane.xlu0 %757
    %v759 = vadd.f32 %v613, %v614
    %760 = vadd.xlane.f32.xlu0 %v759
    %v761 = vpop.xlane.xlu0 %760
    %v762 = vadd.f32 %v615, %v616
    %763 = vadd.xlane.f32.xlu0 %v762
    %v764 = vpop.xlane.xlu0 %763
    %v765 = vadd.f32 %v617, %v618
    %766 = vadd.xlane.f32.xlu0 %v765
    %v767 = vpop.xlane.xlu0 %766
    %v768 = vadd.f32 %v619, %v620
    %769 = vadd.xlane.f32.xlu0 %v768
    %v770 = vpop.xlane.xlu0 %769
    %v771 = vadd.f32 %v621, %v622
    %772 = vadd.xlane.f32.xlu0 %v771
    %v773 = vpop.xlane.xlu0 %772
    %v774 = vadd.f32 %v623, %v624
    %775 = vadd.xlane.f32.xlu0 %v774
    %v776 = vpop.xlane.xlu0 %775
    %v777 = vadd.f32 %v625, %v626
    %778 = vadd.xlane.f32.xlu0 %v777
    %v779 = vpop.xlane.xlu0 %778
    %v780 = vadd.f32 %v627, %v628
    %781 = vadd.xlane.f32.xlu0 %v780
    %v782 = vpop.xlane.xlu0 %781
    %v783 = vadd.f32 %v629, %v630
    %784 = vadd.xlane.f32.xlu0 %v783
    %v785 = vpop.xlane.xlu0 %784
    %v786 = vadd.f32 %v631, %v632
    %787 = vadd.xlane.f32.xlu0 %v786
    %v788 = vpop.xlane.xlu0 %787
    %v789 = vadd.f32 %v633, %v634
    %790 = vadd.xlane.f32.xlu0 %v789
    %v791 = vpop.xlane.xlu0 %790
    %v792 = vadd.f32 %v635, %v636
    %793 = vadd.xlane.f32.xlu0 %v792
    %v794 = vpop.xlane.xlu0 %793
    %v795 = vadd.f32 %v637, %v638
    %796 = vadd.xlane.f32.xlu0 %v795
    %v797 = vpop.xlane.xlu0 %796
    %v798 = vadd.f32 %v639, %v640
    %799 = vadd.xlane.f32.xlu0 %v798
    %v800 = vpop.xlane.xlu0 %799
    %v801 = vadd.f32 %v641, %v642
    %802 = vadd.xlane.f32.xlu0 %v801
    %v803 = vpop.xlane.xlu0 %802
    %v804 = vadd.f32 %v643, %v644
    %805 = vadd.xlane.f32.xlu0 %v804
    %v806 = vpop.xlane.xlu0 %805
    %v807 = vadd.f32 %v645, %v646
    %808 = vadd.xlane.f32.xlu0 %v807
    %v809 = vpop.xlane.xlu0 %808
    %v810 = vadd.f32 %v647, %v648
    %811 = vadd.xlane.f32.xlu0 %v810
    %v812 = vpop.xlane.xlu0 %811
    %v813 = vadd.f32 %v649, %v650
    %814 = vadd.xlane.f32.xlu0 %v813
    %v815 = vpop.xlane.xlu0 %814
    %v816 = vadd.f32 %v651, %v652
    %817 = vadd.xlane.f32.xlu0 %v816
    %v818 = vpop.xlane.xlu0 %817
    %v819 = vadd.f32 %v653, %v654
    %820 = vadd.xlane.f32.xlu0 %v819
    %v821 = vpop.xlane.xlu0 %820
    %v822 = vadd.f32 %v655, %v656
    %823 = vadd.xlane.f32.xlu0 %v822
    %v824 = vpop.xlane.xlu0 %823
    %v825 = vadd.f32 %v657, %v658
    %826 = vadd.xlane.f32.xlu0 %v825
    %v827 = vpop.xlane.xlu0 %826
    %v828 = vadd.f32 %v659, %v660
    %829 = vadd.xlane.f32.xlu0 %v828
    %v830 = vpop.xlane.xlu0 %829
    %v831 = vadd.f32 %v661, %v662
    %832 = vadd.xlane.f32.xlu0 %v831
    %v833 = vpop.xlane.xlu0 %832
    %v834 = vadd.f32 %v663, %v664
    %835 = vadd.xlane.f32.xlu0 %v834
    %v836 = vpop.xlane.xlu0 %835
    %v837 = vadd.f32 %v665, %v666
    %838 = vadd.xlane.f32.xlu0 %v837
    %v839 = vpop.xlane.xlu0 %838
    %v840 = vadd.f32 %v667, %v668
    %841 = vadd.xlane.f32.xlu0 %v840
    %v842 = vpop.xlane.xlu0 %841
    %v843 = vadd.f32 %v669, %v670
    %844 = vadd.xlane.f32.xlu0 %v843
    %v845 = vpop.xlane.xlu0 %844
    %v846 = vadd.f32 %v671, %v672
    %847 = vadd.xlane.f32.xlu0 %v846
    %v848 = vpop.xlane.xlu0 %847
    %v849 = vadd.f32 %v673, %v674
    %850 = vadd.xlane.f32.xlu0 %v849
    %v851 = vpop.xlane.xlu0 %850
    %v852 = vadd.f32 %v675, %v676
    %853 = vadd.xlane.f32.xlu0 %v852
    %v854 = vpop.xlane.xlu0 %853
    %v855 = vadd.f32 %v677, %v678
    %856 = vadd.xlane.f32.xlu0 %v855
    %v857 = vpop.xlane.xlu0 %856
    %v858 = vadd.f32 %v679, %v680
    %859 = vadd.xlane.f32.xlu0 %v858
    %v860 = vpop.xlane.xlu0 %859
    %v861 = vadd.f32 %v681, %v682
    %862 = vadd.xlane.f32.xlu0 %v861
    %v863 = vpop.xlane.xlu0 %862
    %v864 = vadd.f32 %v683, %v684
    %865 = vadd.xlane.f32.xlu0 %v864
    %v866 = vpop.xlane.xlu0 %865
    %v867 = vadd.f32 %v685, %v686
    %868 = vadd.xlane.f32.xlu0 %v867
    %v869 = vpop.xlane.xlu0 %868
    %v870 = vadd.f32 %v687, %v688
    %871 = vadd.xlane.f32.xlu0 %v870
    %v872 = vpop.xlane.xlu0 %871
    %v873 = vadd.f32 %v689, %v690
    %874 = vadd.xlane.f32.xlu0 %v873
    %v875 = vpop.xlane.xlu0 %874
    %v876 = vadd.f32 %v691, %v692
    %877 = vadd.xlane.f32.xlu0 %v876
    %v878 = vpop.xlane.xlu0 %877
    %v879 = vadd.f32 %v693, %v694
    %880 = vadd.xlane.f32.xlu0 %v879
    %v881 = vpop.xlane.xlu0 %880
    %v882 = vadd.f32 %v695, %v696
    %883 = vadd.xlane.f32.xlu0 %v882
    %v884 = vpop.xlane.xlu0 %883
    %v885 = vadd.f32 %v697, %v698
    %886 = vadd.xlane.f32.xlu0 %v885
    %v887 = vpop.xlane.xlu0 %886
    %v888 = vadd.f32 %v699, %v700
    %889 = vadd.xlane.f32.xlu0 %v888
    %v890 = vpop.xlane.xlu0 %889
    %v891 = vadd.f32 %v701, %v702
    %892 = vadd.xlane.f32.xlu0 %v891
    %v893 = vpop.xlane.xlu0 %892
    %v894 = vadd.f32 %v703, %v704
    %895 = vadd.xlane.f32.xlu0 %v894
    %v896 = vpop.xlane.xlu0 %895
    %v897 = vrcp.pop 255.0
    %v898 = vmul.f32 %v707, %v897
    %v899 = vmul.f32 %v710, %v897
    %v900 = vmul.f32 %v713, %v897
    %v901 = vmul.f32 %v716, %v897
    %v902 = vmul.f32 %v719, %v897
    %v903 = vmul.f32 %v722, %v897
    %v904 = vmul.f32 %v725, %v897
    %v905 = vmul.f32 %v728, %v897
    %v906 = vmul.f32 %v731, %v897
    %v907 = vmul.f32 %v734, %v897
    %v908 = vmul.f32 %v737, %v897
    %v909 = vmul.f32 %v740, %v897
    %v910 = vmul.f32 %v743, %v897
    %v911 = vmul.f32 %v746, %v897
    %v912 = vmul.f32 %v749, %v897
    %v913 = vmul.f32 %v752, %v897
    %v914 = vmul.f32 %v755, %v897
    %v915 = vmul.f32 %v758, %v897
    %v916 = vmul.f32 %v761, %v897
    %v917 = vmul.f32 %v764, %v897
    %v918 = vmul.f32 %v767, %v897
    %v919 = vmul.f32 %v770, %v897
    %v920 = vmul.f32 %v773, %v897
    %v921 = vmul.f32 %v776, %v897
    %v922 = vmul.f32 %v779, %v897
    %v923 = vmul.f32 %v782, %v897
    %v924 = vmul.f32 %v785, %v897
    %v925 = vmul.f32 %v788, %v897
    %v926 = vmul.f32 %v791, %v897
    %v927 = vmul.f32 %v794, %v897
    %v928 = vmul.f32 %v797, %v897
    %v929 = vmul.f32 %v800, %v897
    %v930 = vmul.f32 %v803, %v897
    %v931 = vmul.f32 %v806, %v897
    %v932 = vmul.f32 %v809, %v897
    %v933 = vmul.f32 %v812, %v897
    %v934 = vmul.f32 %v815, %v897
    %v935 = vmul.f32 %v818, %v897
    %v936 = vmul.f32 %v821, %v897
    %v937 = vmul.f32 %v824, %v897
    %v938 = vmul.f32 %v827, %v897
    %v939 = vmul.f32 %v830, %v897
    %v940 = vmul.f32 %v833, %v897
    %v941 = vmul.f32 %v836, %v897
    %v942 = vmul.f32 %v839, %v897
    %v943 = vmul.f32 %v842, %v897
    %v944 = vmul.f32 %v845, %v897
    %v945 = vmul.f32 %v848, %v897
    %v946 = vmul.f32 %v851, %v897
    %v947 = vmul.f32 %v854, %v897
    %v948 = vmul.f32 %v857, %v897
    %v949 = vmul.f32 %v860, %v897
    %v950 = vmul.f32 %v863, %v897
    %v951 = vmul.f32 %v866, %v897
    %v952 = vmul.f32 %v869, %v897
    %v953 = vmul.f32 %v872, %v897
    %v954 = vmul.f32 %v875, %v897
    %v955 = vmul.f32 %v878, %v897
    %v956 = vmul.f32 %v881, %v897
    %v957 = vmul.f32 %v884, %v897
    %v958 = vmul.f32 %v887, %v897
    %v959 = vmul.f32 %v890, %v897
    %v960 = vmul.f32 %v893, %v897
    %v961 = vmul.f32 %v896, %v897
    %v962 = vrsqrt.pop %v898
    %v963 = vmul.f32 %v898, %v962
    %vm964 = vcmp.eq.f32.partialorder %v898, inf
    %v965 = vsel %vm964, %v898, %v963
    %vm966 = vcmp.eq.f32.partialorder %v898, 0.0
    %v967 = vand.u32 %v898, 2147483648
    %v968 = vsel %vm966, %v967, %v965
    %v969 = vrsqrt.pop %v899
    %v970 = vmul.f32 %v899, %v969
    %vm971 = vcmp.eq.f32.partialorder %v899, inf
    %v972 = vsel %vm971, %v899, %v970
    %vm973 = vcmp.eq.f32.partialorder %v899, 0.0
    %v974 = vand.u32 %v899, 2147483648
    %v975 = vsel %vm973, %v974, %v972
    %v976 = vrsqrt.pop %v900
    %v977 = vmul.f32 %v900, %v976
    %vm978 = vcmp.eq.f32.partialorder %v900, inf
    %v979 = vsel %vm978, %v900, %v977
    %vm980 = vcmp.eq.f32.partialorder %v900, 0.0
    %v981 = vand.u32 %v900, 2147483648
    %v982 = vsel %vm980, %v981, %v979
    %v983 = vrsqrt.pop %v901
    %v984 = vmul.f32 %v901, %v983
    %vm985 = vcmp.eq.f32.partialorder %v901, inf
    %v986 = vsel %vm985, %v901, %v984
    %vm987 = vcmp.eq.f32.partialorder %v901, 0.0
    %v988 = vand.u32 %v901, 2147483648
    %v989 = vsel %vm987, %v988, %v986
    %v990 = vrsqrt.pop %v902
    %v991 = vmul.f32 %v902, %v990
    %vm992 = vcmp.eq.f32.partialorder %v902, inf
    %v993 = vsel %vm992, %v902, %v991
    %vm994 = vcmp.eq.f32.partialorder %v902, 0.0
    %v995 = vand.u32 %v902, 2147483648
    %v996 = vsel %vm994, %v995, %v993
    %v997 = vrsqrt.pop %v903
    %v998 = vmul.f32 %v903, %v997
    %vm999 = vcmp.eq.f32.partialorder %v903, inf
    %v1000 = vsel %vm999, %v903, %v998
    %vm1001 = vcmp.eq.f32.partialorder %v903, 0.0
    %v1002 = vand.u32 %v903, 2147483648
    %v1003 = vsel %vm1001, %v1002, %v1000
    %v1004 = vrsqrt.pop %v904
    %v1005 = vmul.f32 %v904, %v1004
    %vm1006 = vcmp.eq.f32.partialorder %v904, inf
    %v1007 = vsel %vm1006, %v904, %v1005
    %vm1008 = vcmp.eq.f32.partialorder %v904, 0.0
    %v1009 = vand.u32 %v904, 2147483648
    %v1010 = vsel %vm1008, %v1009, %v1007
    %v1011 = vrsqrt.pop %v905
    %v1012 = vmul.f32 %v905, %v1011
    %vm1013 = vcmp.eq.f32.partialorder %v905, inf
    %v1014 = vsel %vm1013, %v905, %v1012
    %vm1015 = vcmp.eq.f32.partialorder %v905, 0.0
    %v1016 = vand.u32 %v905, 2147483648
    %v1017 = vsel %vm1015, %v1016, %v1014
    %v1018 = vrsqrt.pop %v906
    %v1019 = vmul.f32 %v906, %v1018
    %vm1020 = vcmp.eq.f32.partialorder %v906, inf
    %v1021 = vsel %vm1020, %v906, %v1019
    %vm1022 = vcmp.eq.f32.partialorder %v906, 0.0
    %v1023 = vand.u32 %v906, 2147483648
    %v1024 = vsel %vm1022, %v1023, %v1021
    %v1025 = vrsqrt.pop %v907
    %v1026 = vmul.f32 %v907, %v1025
    %vm1027 = vcmp.eq.f32.partialorder %v907, inf
    %v1028 = vsel %vm1027, %v907, %v1026
    %vm1029 = vcmp.eq.f32.partialorder %v907, 0.0
    %v1030 = vand.u32 %v907, 2147483648
    %v1031 = vsel %vm1029, %v1030, %v1028
    %v1032 = vrsqrt.pop %v908
    %v1033 = vmul.f32 %v908, %v1032
    %vm1034 = vcmp.eq.f32.partialorder %v908, inf
    %v1035 = vsel %vm1034, %v908, %v1033
    %vm1036 = vcmp.eq.f32.partialorder %v908, 0.0
    %v1037 = vand.u32 %v908, 2147483648
    %v1038 = vsel %vm1036, %v1037, %v1035
    %v1039 = vrsqrt.pop %v909
    %v1040 = vmul.f32 %v909, %v1039
    %vm1041 = vcmp.eq.f32.partialorder %v909, inf
    %v1042 = vsel %vm1041, %v909, %v1040
    %vm1043 = vcmp.eq.f32.partialorder %v909, 0.0
    %v1044 = vand.u32 %v909, 2147483648
    %v1045 = vsel %vm1043, %v1044, %v1042
    %v1046 = vrsqrt.pop %v910
    %v1047 = vmul.f32 %v910, %v1046
    %vm1048 = vcmp.eq.f32.partialorder %v910, inf
    %v1049 = vsel %vm1048, %v910, %v1047
    %vm1050 = vcmp.eq.f32.partialorder %v910, 0.0
    %v1051 = vand.u32 %v910, 2147483648
    %v1052 = vsel %vm1050, %v1051, %v1049
    %v1053 = vrsqrt.pop %v911
    %v1054 = vmul.f32 %v911, %v1053
    %vm1055 = vcmp.eq.f32.partialorder %v911, inf
    %v1056 = vsel %vm1055, %v911, %v1054
    %vm1057 = vcmp.eq.f32.partialorder %v911, 0.0
    %v1058 = vand.u32 %v911, 2147483648
    %v1059 = vsel %vm1057, %v1058, %v1056
    %v1060 = vrsqrt.pop %v912
    %v1061 = vmul.f32 %v912, %v1060
    %vm1062 = vcmp.eq.f32.partialorder %v912, inf
    %v1063 = vsel %vm1062, %v912, %v1061
    %vm1064 = vcmp.eq.f32.partialorder %v912, 0.0
    %v1065 = vand.u32 %v912, 2147483648
    %v1066 = vsel %vm1064, %v1065, %v1063
    %v1067 = vrsqrt.pop %v913
    %v1068 = vmul.f32 %v913, %v1067
    %vm1069 = vcmp.eq.f32.partialorder %v913, inf
    %v1070 = vsel %vm1069, %v913, %v1068
    %vm1071 = vcmp.eq.f32.partialorder %v913, 0.0
    %v1072 = vand.u32 %v913, 2147483648
    %v1073 = vsel %vm1071, %v1072, %v1070
    %v1074 = vrsqrt.pop %v914
    %v1075 = vmul.f32 %v914, %v1074
    %vm1076 = vcmp.eq.f32.partialorder %v914, inf
    %v1077 = vsel %vm1076, %v914, %v1075
    %vm1078 = vcmp.eq.f32.partialorder %v914, 0.0
    %v1079 = vand.u32 %v914, 2147483648
    %v1080 = vsel %vm1078, %v1079, %v1077
    %v1081 = vrsqrt.pop %v915
    %v1082 = vmul.f32 %v915, %v1081
    %vm1083 = vcmp.eq.f32.partialorder %v915, inf
    %v1084 = vsel %vm1083, %v915, %v1082
    %vm1085 = vcmp.eq.f32.partialorder %v915, 0.0
    %v1086 = vand.u32 %v915, 2147483648
    %v1087 = vsel %vm1085, %v1086, %v1084
    %v1088 = vrsqrt.pop %v916
    %v1089 = vmul.f32 %v916, %v1088
    %vm1090 = vcmp.eq.f32.partialorder %v916, inf
    %v1091 = vsel %vm1090, %v916, %v1089
    %vm1092 = vcmp.eq.f32.partialorder %v916, 0.0
    %v1093 = vand.u32 %v916, 2147483648
    %v1094 = vsel %vm1092, %v1093, %v1091
    %v1095 = vrsqrt.pop %v917
    %v1096 = vmul.f32 %v917, %v1095
    %vm1097 = vcmp.eq.f32.partialorder %v917, inf
    %v1098 = vsel %vm1097, %v917, %v1096
    %vm1099 = vcmp.eq.f32.partialorder %v917, 0.0
    %v1100 = vand.u32 %v917, 2147483648
    %v1101 = vsel %vm1099, %v1100, %v1098
    %v1102 = vrsqrt.pop %v918
    %v1103 = vmul.f32 %v918, %v1102
    %vm1104 = vcmp.eq.f32.partialorder %v918, inf
    %v1105 = vsel %vm1104, %v918, %v1103
    %vm1106 = vcmp.eq.f32.partialorder %v918, 0.0
    %v1107 = vand.u32 %v918, 2147483648
    %v1108 = vsel %vm1106, %v1107, %v1105
    %v1109 = vrsqrt.pop %v919
    %v1110 = vmul.f32 %v919, %v1109
    %vm1111 = vcmp.eq.f32.partialorder %v919, inf
    %v1112 = vsel %vm1111, %v919, %v1110
    %vm1113 = vcmp.eq.f32.partialorder %v919, 0.0
    %v1114 = vand.u32 %v919, 2147483648
    %v1115 = vsel %vm1113, %v1114, %v1112
    %v1116 = vrsqrt.pop %v920
    %v1117 = vmul.f32 %v920, %v1116
    %vm1118 = vcmp.eq.f32.partialorder %v920, inf
    %v1119 = vsel %vm1118, %v920, %v1117
    %vm1120 = vcmp.eq.f32.partialorder %v920, 0.0
    %v1121 = vand.u32 %v920, 2147483648
    %v1122 = vsel %vm1120, %v1121, %v1119
    %v1123 = vrsqrt.pop %v921
    %v1124 = vmul.f32 %v921, %v1123
    %vm1125 = vcmp.eq.f32.partialorder %v921, inf
    %v1126 = vsel %vm1125, %v921, %v1124
    %vm1127 = vcmp.eq.f32.partialorder %v921, 0.0
    %v1128 = vand.u32 %v921, 2147483648
    %v1129 = vsel %vm1127, %v1128, %v1126
    %v1130 = vrsqrt.pop %v922
    %v1131 = vmul.f32 %v922, %v1130
    %vm1132 = vcmp.eq.f32.partialorder %v922, inf
    %v1133 = vsel %vm1132, %v922, %v1131
    %vm1134 = vcmp.eq.f32.partialorder %v922, 0.0
    %v1135 = vand.u32 %v922, 2147483648
    %v1136 = vsel %vm1134, %v1135, %v1133
    %v1137 = vrsqrt.pop %v923
    %v1138 = vmul.f32 %v923, %v1137
    %vm1139 = vcmp.eq.f32.partialorder %v923, inf
    %v1140 = vsel %vm1139, %v923, %v1138
    %vm1141 = vcmp.eq.f32.partialorder %v923, 0.0
    %v1142 = vand.u32 %v923, 2147483648
    %v1143 = vsel %vm1141, %v1142, %v1140
    %v1144 = vrsqrt.pop %v924
    %v1145 = vmul.f32 %v924, %v1144
    %vm1146 = vcmp.eq.f32.partialorder %v924, inf
    %v1147 = vsel %vm1146, %v924, %v1145
    %vm1148 = vcmp.eq.f32.partialorder %v924, 0.0
    %v1149 = vand.u32 %v924, 2147483648
    %v1150 = vsel %vm1148, %v1149, %v1147
    %v1151 = vrsqrt.pop %v925
    %v1152 = vmul.f32 %v925, %v1151
    %vm1153 = vcmp.eq.f32.partialorder %v925, inf
    %v1154 = vsel %vm1153, %v925, %v1152
    %vm1155 = vcmp.eq.f32.partialorder %v925, 0.0
    %v1156 = vand.u32 %v925, 2147483648
    %v1157 = vsel %vm1155, %v1156, %v1154
    %v1158 = vrsqrt.pop %v926
    %v1159 = vmul.f32 %v926, %v1158
    %vm1160 = vcmp.eq.f32.partialorder %v926, inf
    %v1161 = vsel %vm1160, %v926, %v1159
    %vm1162 = vcmp.eq.f32.partialorder %v926, 0.0
    %v1163 = vand.u32 %v926, 2147483648
    %v1164 = vsel %vm1162, %v1163, %v1161
    %v1165 = vrsqrt.pop %v927
    %v1166 = vmul.f32 %v927, %v1165
    %vm1167 = vcmp.eq.f32.partialorder %v927, inf
    %v1168 = vsel %vm1167, %v927, %v1166
    %vm1169 = vcmp.eq.f32.partialorder %v927, 0.0
    %v1170 = vand.u32 %v927, 2147483648
    %v1171 = vsel %vm1169, %v1170, %v1168
    %v1172 = vrsqrt.pop %v928
    %v1173 = vmul.f32 %v928, %v1172
    %vm1174 = vcmp.eq.f32.partialorder %v928, inf
    %v1175 = vsel %vm1174, %v928, %v1173
    %vm1176 = vcmp.eq.f32.partialorder %v928, 0.0
    %v1177 = vand.u32 %v928, 2147483648
    %v1178 = vsel %vm1176, %v1177, %v1175
    %v1179 = vrsqrt.pop %v929
    %v1180 = vmul.f32 %v929, %v1179
    %vm1181 = vcmp.eq.f32.partialorder %v929, inf
    %v1182 = vsel %vm1181, %v929, %v1180
    %vm1183 = vcmp.eq.f32.partialorder %v929, 0.0
    %v1184 = vand.u32 %v929, 2147483648
    %v1185 = vsel %vm1183, %v1184, %v1182
    %v1186 = vrsqrt.pop %v930
    %v1187 = vmul.f32 %v930, %v1186
    %vm1188 = vcmp.eq.f32.partialorder %v930, inf
    %v1189 = vsel %vm1188, %v930, %v1187
    %vm1190 = vcmp.eq.f32.partialorder %v930, 0.0
    %v1191 = vand.u32 %v930, 2147483648
    %v1192 = vsel %vm1190, %v1191, %v1189
    %v1193 = vrsqrt.pop %v931
    %v1194 = vmul.f32 %v931, %v1193
    %vm1195 = vcmp.eq.f32.partialorder %v931, inf
    %v1196 = vsel %vm1195, %v931, %v1194
    %vm1197 = vcmp.eq.f32.partialorder %v931, 0.0
    %v1198 = vand.u32 %v931, 2147483648
    %v1199 = vsel %vm1197, %v1198, %v1196
    %v1200 = vrsqrt.pop %v932
    %v1201 = vmul.f32 %v932, %v1200
    %vm1202 = vcmp.eq.f32.partialorder %v932, inf
    %v1203 = vsel %vm1202, %v932, %v1201
    %vm1204 = vcmp.eq.f32.partialorder %v932, 0.0
    %v1205 = vand.u32 %v932, 2147483648
    %v1206 = vsel %vm1204, %v1205, %v1203
    %v1207 = vrsqrt.pop %v933
    %v1208 = vmul.f32 %v933, %v1207
    %vm1209 = vcmp.eq.f32.partialorder %v933, inf
    %v1210 = vsel %vm1209, %v933, %v1208
    %vm1211 = vcmp.eq.f32.partialorder %v933, 0.0
    %v1212 = vand.u32 %v933, 2147483648
    %v1213 = vsel %vm1211, %v1212, %v1210
    %v1214 = vrsqrt.pop %v934
    %v1215 = vmul.f32 %v934, %v1214
    %vm1216 = vcmp.eq.f32.partialorder %v934, inf
    %v1217 = vsel %vm1216, %v934, %v1215
    %vm1218 = vcmp.eq.f32.partialorder %v934, 0.0
    %v1219 = vand.u32 %v934, 2147483648
    %v1220 = vsel %vm1218, %v1219, %v1217
    %v1221 = vrsqrt.pop %v935
    %v1222 = vmul.f32 %v935, %v1221
    %vm1223 = vcmp.eq.f32.partialorder %v935, inf
    %v1224 = vsel %vm1223, %v935, %v1222
    %vm1225 = vcmp.eq.f32.partialorder %v935, 0.0
    %v1226 = vand.u32 %v935, 2147483648
    %v1227 = vsel %vm1225, %v1226, %v1224
    %v1228 = vrsqrt.pop %v936
    %v1229 = vmul.f32 %v936, %v1228
    %vm1230 = vcmp.eq.f32.partialorder %v936, inf
    %v1231 = vsel %vm1230, %v936, %v1229
    %vm1232 = vcmp.eq.f32.partialorder %v936, 0.0
    %v1233 = vand.u32 %v936, 2147483648
    %v1234 = vsel %vm1232, %v1233, %v1231
    %v1235 = vrsqrt.pop %v937
    %v1236 = vmul.f32 %v937, %v1235
    %vm1237 = vcmp.eq.f32.partialorder %v937, inf
    %v1238 = vsel %vm1237, %v937, %v1236
    %vm1239 = vcmp.eq.f32.partialorder %v937, 0.0
    %v1240 = vand.u32 %v937, 2147483648
    %v1241 = vsel %vm1239, %v1240, %v1238
    %v1242 = vrsqrt.pop %v938
    %v1243 = vmul.f32 %v938, %v1242
    %vm1244 = vcmp.eq.f32.partialorder %v938, inf
    %v1245 = vsel %vm1244, %v938, %v1243
    %vm1246 = vcmp.eq.f32.partialorder %v938, 0.0
    %v1247 = vand.u32 %v938, 2147483648
    %v1248 = vsel %vm1246, %v1247, %v1245
    %v1249 = vrsqrt.pop %v939
    %v1250 = vmul.f32 %v939, %v1249
    %vm1251 = vcmp.eq.f32.partialorder %v939, inf
    %v1252 = vsel %vm1251, %v939, %v1250
    %vm1253 = vcmp.eq.f32.partialorder %v939, 0.0
    %v1254 = vand.u32 %v939, 2147483648
    %v1255 = vsel %vm1253, %v1254, %v1252
    %v1256 = vrsqrt.pop %v940
    %v1257 = vmul.f32 %v940, %v1256
    %vm1258 = vcmp.eq.f32.partialorder %v940, inf
    %v1259 = vsel %vm1258, %v940, %v1257
    %vm1260 = vcmp.eq.f32.partialorder %v940, 0.0
    %v1261 = vand.u32 %v940, 2147483648
    %v1262 = vsel %vm1260, %v1261, %v1259
    %v1263 = vrsqrt.pop %v941
    %v1264 = vmul.f32 %v941, %v1263
    %vm1265 = vcmp.eq.f32.partialorder %v941, inf
    %v1266 = vsel %vm1265, %v941, %v1264
    %vm1267 = vcmp.eq.f32.partialorder %v941, 0.0
    %v1268 = vand.u32 %v941, 2147483648
    %v1269 = vsel %vm1267, %v1268, %v1266
    %v1270 = vrsqrt.pop %v942
    %v1271 = vmul.f32 %v942, %v1270
    %vm1272 = vcmp.eq.f32.partialorder %v942, inf
    %v1273 = vsel %vm1272, %v942, %v1271
    %vm1274 = vcmp.eq.f32.partialorder %v942, 0.0
    %v1275 = vand.u32 %v942, 2147483648
    %v1276 = vsel %vm1274, %v1275, %v1273
    %v1277 = vrsqrt.pop %v943
    %v1278 = vmul.f32 %v943, %v1277
    %vm1279 = vcmp.eq.f32.partialorder %v943, inf
    %v1280 = vsel %vm1279, %v943, %v1278
    %vm1281 = vcmp.eq.f32.partialorder %v943, 0.0
    %v1282 = vand.u32 %v943, 2147483648
    %v1283 = vsel %vm1281, %v1282, %v1280
    %v1284 = vrsqrt.pop %v944
    %v1285 = vmul.f32 %v944, %v1284
    %vm1286 = vcmp.eq.f32.partialorder %v944, inf
    %v1287 = vsel %vm1286, %v944, %v1285
    %vm1288 = vcmp.eq.f32.partialorder %v944, 0.0
    %v1289 = vand.u32 %v944, 2147483648
    %v1290 = vsel %vm1288, %v1289, %v1287
    %v1291 = vrsqrt.pop %v945
    %v1292 = vmul.f32 %v945, %v1291
    %vm1293 = vcmp.eq.f32.partialorder %v945, inf
    %v1294 = vsel %vm1293, %v945, %v1292
    %vm1295 = vcmp.eq.f32.partialorder %v945, 0.0
    %v1296 = vand.u32 %v945, 2147483648
    %v1297 = vsel %vm1295, %v1296, %v1294
    %v1298 = vrsqrt.pop %v946
    %v1299 = vmul.f32 %v946, %v1298
    %vm1300 = vcmp.eq.f32.partialorder %v946, inf
    %v1301 = vsel %vm1300, %v946, %v1299
    %vm1302 = vcmp.eq.f32.partialorder %v946, 0.0
    %v1303 = vand.u32 %v946, 2147483648
    %v1304 = vsel %vm1302, %v1303, %v1301
    %v1305 = vrsqrt.pop %v947
    %v1306 = vmul.f32 %v947, %v1305
    %vm1307 = vcmp.eq.f32.partialorder %v947, inf
    %v1308 = vsel %vm1307, %v947, %v1306
    %vm1309 = vcmp.eq.f32.partialorder %v947, 0.0
    %v1310 = vand.u32 %v947, 2147483648
    %v1311 = vsel %vm1309, %v1310, %v1308
    %v1312 = vrsqrt.pop %v948
    %v1313 = vmul.f32 %v948, %v1312
    %vm1314 = vcmp.eq.f32.partialorder %v948, inf
    %v1315 = vsel %vm1314, %v948, %v1313
    %vm1316 = vcmp.eq.f32.partialorder %v948, 0.0
    %v1317 = vand.u32 %v948, 2147483648
    %v1318 = vsel %vm1316, %v1317, %v1315
    %v1319 = vrsqrt.pop %v949
    %v1320 = vmul.f32 %v949, %v1319
    %vm1321 = vcmp.eq.f32.partialorder %v949, inf
    %v1322 = vsel %vm1321, %v949, %v1320
    %vm1323 = vcmp.eq.f32.partialorder %v949, 0.0
    %v1324 = vand.u32 %v949, 2147483648
    %v1325 = vsel %vm1323, %v1324, %v1322
    %v1326 = vrsqrt.pop %v950
    %v1327 = vmul.f32 %v950, %v1326
    %vm1328 = vcmp.eq.f32.partialorder %v950, inf
    %v1329 = vsel %vm1328, %v950, %v1327
    %vm1330 = vcmp.eq.f32.partialorder %v950, 0.0
    %v1331 = vand.u32 %v950, 2147483648
    %v1332 = vsel %vm1330, %v1331, %v1329
    %v1333 = vrsqrt.pop %v951
    %v1334 = vmul.f32 %v951, %v1333
    %vm1335 = vcmp.eq.f32.partialorder %v951, inf
    %v1336 = vsel %vm1335, %v951, %v1334
    %vm1337 = vcmp.eq.f32.partialorder %v951, 0.0
    %v1338 = vand.u32 %v951, 2147483648
    %v1339 = vsel %vm1337, %v1338, %v1336
    %v1340 = vrsqrt.pop %v952
    %v1341 = vmul.f32 %v952, %v1340
    %vm1342 = vcmp.eq.f32.partialorder %v952, inf
    %v1343 = vsel %vm1342, %v952, %v1341
    %vm1344 = vcmp.eq.f32.partialorder %v952, 0.0
    %v1345 = vand.u32 %v952, 2147483648
    %v1346 = vsel %vm1344, %v1345, %v1343
    %v1347 = vrsqrt.pop %v953
    %v1348 = vmul.f32 %v953, %v1347
    %vm1349 = vcmp.eq.f32.partialorder %v953, inf
    %v1350 = vsel %vm1349, %v953, %v1348
    %vm1351 = vcmp.eq.f32.partialorder %v953, 0.0
    %v1352 = vand.u32 %v953, 2147483648
    %v1353 = vsel %vm1351, %v1352, %v1350
    %v1354 = vrsqrt.pop %v954
    %v1355 = vmul.f32 %v954, %v1354
    %vm1356 = vcmp.eq.f32.partialorder %v954, inf
    %v1357 = vsel %vm1356, %v954, %v1355
    %vm1358 = vcmp.eq.f32.partialorder %v954, 0.0
    %v1359 = vand.u32 %v954, 2147483648
    %v1360 = vsel %vm1358, %v1359, %v1357
    %v1361 = vrsqrt.pop %v955
    %v1362 = vmul.f32 %v955, %v1361
    %vm1363 = vcmp.eq.f32.partialorder %v955, inf
    %v1364 = vsel %vm1363, %v955, %v1362
    %vm1365 = vcmp.eq.f32.partialorder %v955, 0.0
    %v1366 = vand.u32 %v955, 2147483648
    %v1367 = vsel %vm1365, %v1366, %v1364
    %v1368 = vrsqrt.pop %v956
    %v1369 = vmul.f32 %v956, %v1368
    %vm1370 = vcmp.eq.f32.partialorder %v956, inf
    %v1371 = vsel %vm1370, %v956, %v1369
    %vm1372 = vcmp.eq.f32.partialorder %v956, 0.0
    %v1373 = vand.u32 %v956, 2147483648
    %v1374 = vsel %vm1372, %v1373, %v1371
    %v1375 = vrsqrt.pop %v957
    %v1376 = vmul.f32 %v957, %v1375
    %vm1377 = vcmp.eq.f32.partialorder %v957, inf
    %v1378 = vsel %vm1377, %v957, %v1376
    %vm1379 = vcmp.eq.f32.partialorder %v957, 0.0
    %v1380 = vand.u32 %v957, 2147483648
    %v1381 = vsel %vm1379, %v1380, %v1378
    %v1382 = vrsqrt.pop %v958
    %v1383 = vmul.f32 %v958, %v1382
    %vm1384 = vcmp.eq.f32.partialorder %v958, inf
    %v1385 = vsel %vm1384, %v958, %v1383
    %vm1386 = vcmp.eq.f32.partialorder %v958, 0.0
    %v1387 = vand.u32 %v958, 2147483648
    %v1388 = vsel %vm1386, %v1387, %v1385
    %v1389 = vrsqrt.pop %v959
    %v1390 = vmul.f32 %v959, %v1389
    %vm1391 = vcmp.eq.f32.partialorder %v959, inf
    %v1392 = vsel %vm1391, %v959, %v1390
    %vm1393 = vcmp.eq.f32.partialorder %v959, 0.0
    %v1394 = vand.u32 %v959, 2147483648
    %v1395 = vsel %vm1393, %v1394, %v1392
    %v1396 = vrsqrt.pop %v960
    %v1397 = vmul.f32 %v960, %v1396
    %vm1398 = vcmp.eq.f32.partialorder %v960, inf
    %v1399 = vsel %vm1398, %v960, %v1397
    %vm1400 = vcmp.eq.f32.partialorder %v960, 0.0
    %v1401 = vand.u32 %v960, 2147483648
    %v1402 = vsel %vm1400, %v1401, %v1399
    %v1403 = vrsqrt.pop %v961
    %v1404 = vmul.f32 %v961, %v1403
    %vm1405 = vcmp.eq.f32.partialorder %v961, inf
    %v1406 = vsel %vm1405, %v961, %v1404
    %vm1407 = vcmp.eq.f32.partialorder %v961, 0.0
    %v1408 = vand.u32 %v961, 2147483648
    %v1409 = vsel %vm1407, %v1408, %v1406
    %v1410 = vadd.f32 %v968, 1e-06
    %v1411 = vadd.f32 %v975, 1e-06
    %v1412 = vadd.f32 %v982, 1e-06
    %v1413 = vadd.f32 %v989, 1e-06
    %v1414 = vadd.f32 %v996, 1e-06
    %v1415 = vadd.f32 %v1003, 1e-06
    %v1416 = vadd.f32 %v1010, 1e-06
    %v1417 = vadd.f32 %v1017, 1e-06
    %v1418 = vadd.f32 %v1024, 1e-06
    %v1419 = vadd.f32 %v1031, 1e-06
    %v1420 = vadd.f32 %v1038, 1e-06
    %v1421 = vadd.f32 %v1045, 1e-06
    %v1422 = vadd.f32 %v1052, 1e-06
    %v1423 = vadd.f32 %v1059, 1e-06
    %v1424 = vadd.f32 %v1066, 1e-06
    %v1425 = vadd.f32 %v1073, 1e-06
    %v1426 = vadd.f32 %v1080, 1e-06
    %v1427 = vadd.f32 %v1087, 1e-06
    %v1428 = vadd.f32 %v1094, 1e-06
    %v1429 = vadd.f32 %v1101, 1e-06
    %v1430 = vadd.f32 %v1108, 1e-06
    %v1431 = vadd.f32 %v1115, 1e-06
    %v1432 = vadd.f32 %v1122, 1e-06
    %v1433 = vadd.f32 %v1129, 1e-06
    %v1434 = vadd.f32 %v1136, 1e-06
    %v1435 = vadd.f32 %v1143, 1e-06
    %v1436 = vadd.f32 %v1150, 1e-06
    %v1437 = vadd.f32 %v1157, 1e-06
    %v1438 = vadd.f32 %v1164, 1e-06
    %v1439 = vadd.f32 %v1171, 1e-06
    %v1440 = vadd.f32 %v1178, 1e-06
    %v1441 = vadd.f32 %v1185, 1e-06
    %v1442 = vadd.f32 %v1192, 1e-06
    %v1443 = vadd.f32 %v1199, 1e-06
    %v1444 = vadd.f32 %v1206, 1e-06
    %v1445 = vadd.f32 %v1213, 1e-06
    %v1446 = vadd.f32 %v1220, 1e-06
    %v1447 = vadd.f32 %v1227, 1e-06
    %v1448 = vadd.f32 %v1234, 1e-06
    %v1449 = vadd.f32 %v1241, 1e-06
    %v1450 = vadd.f32 %v1248, 1e-06
    %v1451 = vadd.f32 %v1255, 1e-06
    %v1452 = vadd.f32 %v1262, 1e-06
    %v1453 = vadd.f32 %v1269, 1e-06
    %v1454 = vadd.f32 %v1276, 1e-06
    %v1455 = vadd.f32 %v1283, 1e-06
    %v1456 = vadd.f32 %v1290, 1e-06
    %v1457 = vadd.f32 %v1297, 1e-06
    %v1458 = vadd.f32 %v1304, 1e-06
    %v1459 = vadd.f32 %v1311, 1e-06
    %v1460 = vadd.f32 %v1318, 1e-06
    %v1461 = vadd.f32 %v1325, 1e-06
    %v1462 = vadd.f32 %v1332, 1e-06
    %v1463 = vadd.f32 %v1339, 1e-06
    %v1464 = vadd.f32 %v1346, 1e-06
    %v1465 = vadd.f32 %v1353, 1e-06
    %v1466 = vadd.f32 %v1360, 1e-06
    %v1467 = vadd.f32 %v1367, 1e-06
    %v1468 = vadd.f32 %v1374, 1e-06
    %v1469 = vadd.f32 %v1381, 1e-06
    %v1470 = vadd.f32 %v1388, 1e-06
    %v1471 = vadd.f32 %v1395, 1e-06
    %v1472 = vadd.f32 %v1402, 1e-06
    %v1473 = vadd.f32 %v1409, 1e-06
    %v1475 = vlaneseq
    %v1476 = vshrl.u32 %v1475, 7
    %v1477 = vsub.s32 0, %v1476
    %v1478 = vrot.slane %v190, %v1477
    %v1479 = vlaneseq
    %v1480 = vshrl.u32 %v1479, 7
    %v1481 = vsub.s32 1, %v1480
    %v1482 = vrot.slane %v190, %v1481
    %v1485 = vrcp.pop %v1410
    %v1486 = vmul.f32 %v1478, %v1485
    %v1487 = vmul.f32 %v1482, %v1485
    %v1488 = vrcp.pop %v1411
    %v1489 = vmul.f32 %v1478, %v1488
    %v1490 = vmul.f32 %v1482, %v1488
    %v1491 = vrcp.pop %v1412
    %v1492 = vmul.f32 %v1478, %v1491
    %v1493 = vmul.f32 %v1482, %v1491
    %v1494 = vrcp.pop %v1413
    %v1495 = vmul.f32 %v1478, %v1494
    %v1496 = vmul.f32 %v1482, %v1494
    %v1497 = vrcp.pop %v1414
    %v1498 = vmul.f32 %v1478, %v1497
    %v1499 = vmul.f32 %v1482, %v1497
    %v1500 = vrcp.pop %v1415
    %v1501 = vmul.f32 %v1478, %v1500
    %v1502 = vmul.f32 %v1482, %v1500
    %v1503 = vrcp.pop %v1416
    %v1504 = vmul.f32 %v1478, %v1503
    %v1505 = vmul.f32 %v1482, %v1503
    %v1506 = vrcp.pop %v1417
    %v1507 = vmul.f32 %v1478, %v1506
    %v1508 = vmul.f32 %v1482, %v1506
    %v1509 = vrcp.pop %v1418
    %v1510 = vmul.f32 %v1478, %v1509
    %v1511 = vmul.f32 %v1482, %v1509
    %v1512 = vrcp.pop %v1419
    %v1513 = vmul.f32 %v1478, %v1512
    %v1514 = vmul.f32 %v1482, %v1512
    %v1515 = vrcp.pop %v1420
    %v1516 = vmul.f32 %v1478, %v1515
    %v1517 = vmul.f32 %v1482, %v1515
    %v1518 = vrcp.pop %v1421
    %v1519 = vmul.f32 %v1478, %v1518
    %v1520 = vmul.f32 %v1482, %v1518
    %v1521 = vrcp.pop %v1422
    %v1522 = vmul.f32 %v1478, %v1521
    %v1523 = vmul.f32 %v1482, %v1521
    %v1524 = vrcp.pop %v1423
    %v1525 = vmul.f32 %v1478, %v1524
    %v1526 = vmul.f32 %v1482, %v1524
    %v1527 = vrcp.pop %v1424
    %v1528 = vmul.f32 %v1478, %v1527
    %v1529 = vmul.f32 %v1482, %v1527
    %v1530 = vrcp.pop %v1425
    %v1531 = vmul.f32 %v1478, %v1530
    %v1532 = vmul.f32 %v1482, %v1530
    %v1533 = vrcp.pop %v1426
    %v1534 = vmul.f32 %v1478, %v1533
    %v1535 = vmul.f32 %v1482, %v1533
    %v1536 = vrcp.pop %v1427
    %v1537 = vmul.f32 %v1478, %v1536
    %v1538 = vmul.f32 %v1482, %v1536
    %v1539 = vrcp.pop %v1428
    %v1540 = vmul.f32 %v1478, %v1539
    %v1541 = vmul.f32 %v1482, %v1539
    %v1542 = vrcp.pop %v1429
    %v1543 = vmul.f32 %v1478, %v1542
    %v1544 = vmul.f32 %v1482, %v1542
    %v1545 = vrcp.pop %v1430
    %v1546 = vmul.f32 %v1478, %v1545
    %v1547 = vmul.f32 %v1482, %v1545
    %v1548 = vrcp.pop %v1431
    %v1549 = vmul.f32 %v1478, %v1548
    %v1550 = vmul.f32 %v1482, %v1548
    %v1551 = vrcp.pop %v1432
    %v1552 = vmul.f32 %v1478, %v1551
    %v1553 = vmul.f32 %v1482, %v1551
    %v1554 = vrcp.pop %v1433
    %v1555 = vmul.f32 %v1478, %v1554
    %v1556 = vmul.f32 %v1482, %v1554
    %v1557 = vrcp.pop %v1434
    %v1558 = vmul.f32 %v1478, %v1557
    %v1559 = vmul.f32 %v1482, %v1557
    %v1560 = vrcp.pop %v1435
    %v1561 = vmul.f32 %v1478, %v1560
    %v1562 = vmul.f32 %v1482, %v1560
    %v1563 = vrcp.pop %v1436
    %v1564 = vmul.f32 %v1478, %v1563
    %v1565 = vmul.f32 %v1482, %v1563
    %v1566 = vrcp.pop %v1437
    %v1567 = vmul.f32 %v1478, %v1566
    %v1568 = vmul.f32 %v1482, %v1566
    %v1569 = vrcp.pop %v1438
    %v1570 = vmul.f32 %v1478, %v1569
    %v1571 = vmul.f32 %v1482, %v1569
    %v1572 = vrcp.pop %v1439
    %v1573 = vmul.f32 %v1478, %v1572
    %v1574 = vmul.f32 %v1482, %v1572
    %v1575 = vrcp.pop %v1440
    %v1576 = vmul.f32 %v1478, %v1575
    %v1577 = vmul.f32 %v1482, %v1575
    %v1578 = vrcp.pop %v1441
    %v1579 = vmul.f32 %v1478, %v1578
    %v1580 = vmul.f32 %v1482, %v1578
    %v1581 = vrcp.pop %v1442
    %v1582 = vmul.f32 %v1478, %v1581
    %v1583 = vmul.f32 %v1482, %v1581
    %v1584 = vrcp.pop %v1443
    %v1585 = vmul.f32 %v1478, %v1584
    %v1586 = vmul.f32 %v1482, %v1584
    %v1587 = vrcp.pop %v1444
    %v1588 = vmul.f32 %v1478, %v1587
    %v1589 = vmul.f32 %v1482, %v1587
    %v1590 = vrcp.pop %v1445
    %v1591 = vmul.f32 %v1478, %v1590
    %v1592 = vmul.f32 %v1482, %v1590
    %v1593 = vrcp.pop %v1446
    %v1594 = vmul.f32 %v1478, %v1593
    %v1595 = vmul.f32 %v1482, %v1593
    %v1596 = vrcp.pop %v1447
    %v1597 = vmul.f32 %v1478, %v1596
    %v1598 = vmul.f32 %v1482, %v1596
    %v1599 = vrcp.pop %v1448
    %v1600 = vmul.f32 %v1478, %v1599
    %v1601 = vmul.f32 %v1482, %v1599
    %v1602 = vrcp.pop %v1449
    %v1603 = vmul.f32 %v1478, %v1602
    %v1604 = vmul.f32 %v1482, %v1602
    %v1605 = vrcp.pop %v1450
    %v1606 = vmul.f32 %v1478, %v1605
    %v1607 = vmul.f32 %v1482, %v1605
    %v1608 = vrcp.pop %v1451
    %v1609 = vmul.f32 %v1478, %v1608
    %v1610 = vmul.f32 %v1482, %v1608
    %v1611 = vrcp.pop %v1452
    %v1612 = vmul.f32 %v1478, %v1611
    %v1613 = vmul.f32 %v1482, %v1611
    %v1614 = vrcp.pop %v1453
    %v1615 = vmul.f32 %v1478, %v1614
    %v1616 = vmul.f32 %v1482, %v1614
    %v1617 = vrcp.pop %v1454
    %v1618 = vmul.f32 %v1478, %v1617
    %v1619 = vmul.f32 %v1482, %v1617
    %v1620 = vrcp.pop %v1455
    %v1621 = vmul.f32 %v1478, %v1620
    %v1622 = vmul.f32 %v1482, %v1620
    %v1623 = vrcp.pop %v1456
    %v1624 = vmul.f32 %v1478, %v1623
    %v1625 = vmul.f32 %v1482, %v1623
    %v1626 = vrcp.pop %v1457
    %v1627 = vmul.f32 %v1478, %v1626
    %v1628 = vmul.f32 %v1482, %v1626
    %v1629 = vrcp.pop %v1458
    %v1630 = vmul.f32 %v1478, %v1629
    %v1631 = vmul.f32 %v1482, %v1629
    %v1632 = vrcp.pop %v1459
    %v1633 = vmul.f32 %v1478, %v1632
    %v1634 = vmul.f32 %v1482, %v1632
    %v1635 = vrcp.pop %v1460
    %v1636 = vmul.f32 %v1478, %v1635
    %v1637 = vmul.f32 %v1482, %v1635
    %v1638 = vrcp.pop %v1461
    %v1639 = vmul.f32 %v1478, %v1638
    %v1640 = vmul.f32 %v1482, %v1638
    %v1641 = vrcp.pop %v1462
    %v1642 = vmul.f32 %v1478, %v1641
    %v1643 = vmul.f32 %v1482, %v1641
    %v1644 = vrcp.pop %v1463
    %v1645 = vmul.f32 %v1478, %v1644
    %v1646 = vmul.f32 %v1482, %v1644
    %v1647 = vrcp.pop %v1464
    %v1648 = vmul.f32 %v1478, %v1647
    %v1649 = vmul.f32 %v1482, %v1647
    %v1650 = vrcp.pop %v1465
    %v1651 = vmul.f32 %v1478, %v1650
    %v1652 = vmul.f32 %v1482, %v1650
    %v1653 = vrcp.pop %v1466
    %v1654 = vmul.f32 %v1478, %v1653
    %v1655 = vmul.f32 %v1482, %v1653
    %v1656 = vrcp.pop %v1467
    %v1657 = vmul.f32 %v1478, %v1656
    %v1658 = vmul.f32 %v1482, %v1656
    %v1659 = vrcp.pop %v1468
    %v1660 = vmul.f32 %v1478, %v1659
    %v1661 = vmul.f32 %v1482, %v1659
    %v1662 = vrcp.pop %v1469
    %v1663 = vmul.f32 %v1478, %v1662
    %v1664 = vmul.f32 %v1482, %v1662
    %v1665 = vrcp.pop %v1470
    %v1666 = vmul.f32 %v1478, %v1665
    %v1667 = vmul.f32 %v1482, %v1665
    %v1668 = vrcp.pop %v1471
    %v1669 = vmul.f32 %v1478, %v1668
    %v1670 = vmul.f32 %v1482, %v1668
    %v1671 = vrcp.pop %v1472
    %v1672 = vmul.f32 %v1478, %v1671
    %v1673 = vmul.f32 %v1482, %v1671
    %v1674 = vrcp.pop %v1473
    %v1675 = vmul.f32 %v1478, %v1674
    %v1676 = vmul.f32 %v1482, %v1674
    %v1677 = vmul.f32 %v449, %v1486
    %v1678 = vmul.f32 %v450, %v1487
    %v1679 = vmul.f32 %v451, %v1489
    %v1680 = vmul.f32 %v452, %v1490
    %v1681 = vmul.f32 %v453, %v1492
    %v1682 = vmul.f32 %v454, %v1493
    %v1683 = vmul.f32 %v455, %v1495
    %v1684 = vmul.f32 %v456, %v1496
    %v1685 = vmul.f32 %v457, %v1498
    %v1686 = vmul.f32 %v458, %v1499
    %v1687 = vmul.f32 %v459, %v1501
    %v1688 = vmul.f32 %v460, %v1502
    %v1689 = vmul.f32 %v461, %v1504
    %v1690 = vmul.f32 %v462, %v1505
    %v1691 = vmul.f32 %v463, %v1507
    %v1692 = vmul.f32 %v464, %v1508
    %v1693 = vmul.f32 %v465, %v1510
    %v1694 = vmul.f32 %v466, %v1511
    %v1695 = vmul.f32 %v467, %v1513
    %v1696 = vmul.f32 %v468, %v1514
    %v1697 = vmul.f32 %v469, %v1516
    %v1698 = vmul.f32 %v470, %v1517
    %v1699 = vmul.f32 %v471, %v1519
    %v1700 = vmul.f32 %v472, %v1520
    %v1701 = vmul.f32 %v473, %v1522
    %v1702 = vmul.f32 %v474, %v1523
    %v1703 = vmul.f32 %v475, %v1525
    %v1704 = vmul.f32 %v476, %v1526
    %v1705 = vmul.f32 %v477, %v1528
    %v1706 = vmul.f32 %v478, %v1529
    %v1707 = vmul.f32 %v479, %v1531
    %v1708 = vmul.f32 %v480, %v1532
    %v1709 = vmul.f32 %v481, %v1534
    %v1710 = vmul.f32 %v482, %v1535
    %v1711 = vmul.f32 %v483, %v1537
    %v1712 = vmul.f32 %v484, %v1538
    %v1713 = vmul.f32 %v485, %v1540
    %v1714 = vmul.f32 %v486, %v1541
    %v1715 = vmul.f32 %v487, %v1543
    %v1716 = vmul.f32 %v488, %v1544
    %v1717 = vmul.f32 %v489, %v1546
    %v1718 = vmul.f32 %v490, %v1547
    %v1719 = vmul.f32 %v491, %v1549
    %v1720 = vmul.f32 %v492, %v1550
    %v1721 = vmul.f32 %v493, %v1552
    %v1722 = vmul.f32 %v494, %v1553
    %v1723 = vmul.f32 %v495, %v1555
    %v1724 = vmul.f32 %v496, %v1556
    %v1725 = vmul.f32 %v497, %v1558
    %v1726 = vmul.f32 %v498, %v1559
    %v1727 = vmul.f32 %v499, %v1561
    %v1728 = vmul.f32 %v500, %v1562
    %v1729 = vmul.f32 %v501, %v1564
    %v1730 = vmul.f32 %v502, %v1565
    %v1731 = vmul.f32 %v503, %v1567
    %v1732 = vmul.f32 %v504, %v1568
    %v1733 = vmul.f32 %v505, %v1570
    %v1734 = vmul.f32 %v506, %v1571
    %v1735 = vmul.f32 %v507, %v1573
    %v1736 = vmul.f32 %v508, %v1574
    %v1737 = vmul.f32 %v509, %v1576
    %v1738 = vmul.f32 %v510, %v1577
    %v1739 = vmul.f32 %v511, %v1579
    %v1740 = vmul.f32 %v512, %v1580
    %v1741 = vmul.f32 %v513, %v1582
    %v1742 = vmul.f32 %v514, %v1583
    %v1743 = vmul.f32 %v515, %v1585
    %v1744 = vmul.f32 %v516, %v1586
    %v1745 = vmul.f32 %v517, %v1588
    %v1746 = vmul.f32 %v518, %v1589
    %v1747 = vmul.f32 %v519, %v1591
    %v1748 = vmul.f32 %v520, %v1592
    %v1749 = vmul.f32 %v521, %v1594
    %v1750 = vmul.f32 %v522, %v1595
    %v1751 = vmul.f32 %v523, %v1597
    %v1752 = vmul.f32 %v524, %v1598
    %v1753 = vmul.f32 %v525, %v1600
    %v1754 = vmul.f32 %v526, %v1601
    %v1755 = vmul.f32 %v527, %v1603
    %v1756 = vmul.f32 %v528, %v1604
    %v1757 = vmul.f32 %v529, %v1606
    %v1758 = vmul.f32 %v530, %v1607
    %v1759 = vmul.f32 %v531, %v1609
    %v1760 = vmul.f32 %v532, %v1610
    %v1761 = vmul.f32 %v533, %v1612
    %v1762 = vmul.f32 %v534, %v1613
    %v1763 = vmul.f32 %v535, %v1615
    %v1764 = vmul.f32 %v536, %v1616
    %v1765 = vmul.f32 %v537, %v1618
    %v1766 = vmul.f32 %v538, %v1619
    %v1767 = vmul.f32 %v539, %v1621
    %v1768 = vmul.f32 %v540, %v1622
    %v1769 = vmul.f32 %v541, %v1624
    %v1770 = vmul.f32 %v542, %v1625
    %v1771 = vmul.f32 %v543, %v1627
    %v1772 = vmul.f32 %v544, %v1628
    %v1773 = vmul.f32 %v545, %v1630
    %v1774 = vmul.f32 %v546, %v1631
    %v1775 = vmul.f32 %v547, %v1633
    %v1776 = vmul.f32 %v548, %v1634
    %v1777 = vmul.f32 %v549, %v1636
    %v1778 = vmul.f32 %v550, %v1637
    %v1779 = vmul.f32 %v551, %v1639
    %v1780 = vmul.f32 %v552, %v1640
    %v1781 = vmul.f32 %v553, %v1642
    %v1782 = vmul.f32 %v554, %v1643
    %v1783 = vmul.f32 %v555, %v1645
    %v1784 = vmul.f32 %v556, %v1646
    %v1785 = vmul.f32 %v557, %v1648
    %v1786 = vmul.f32 %v558, %v1649
    %v1787 = vmul.f32 %v559, %v1651
    %v1788 = vmul.f32 %v560, %v1652
    %v1789 = vmul.f32 %v561, %v1654
    %v1790 = vmul.f32 %v562, %v1655
    %v1791 = vmul.f32 %v563, %v1657
    %v1792 = vmul.f32 %v564, %v1658
    %v1793 = vmul.f32 %v565, %v1660
    %v1794 = vmul.f32 %v566, %v1661
    %v1795 = vmul.f32 %v567, %v1663
    %v1796 = vmul.f32 %v568, %v1664
    %v1797 = vmul.f32 %v569, %v1666
    %v1798 = vmul.f32 %v570, %v1667
    %v1799 = vmul.f32 %v571, %v1669
    %v1800 = vmul.f32 %v572, %v1670
    %v1801 = vmul.f32 %v573, %v1672
    %v1802 = vmul.f32 %v574, %v1673
    %v1803 = vmul.f32 %v575, %v1675
    %v1804 = vmul.f32 %v576, %v1676
    %v1806 = vlaneseq
    %v1807 = vshrl.u32 %v1806, 7
    %v1808 = vsub.s32 0, %v1807
    %v1809 = vrot.slane %v191, %v1808
    %v1810 = vlaneseq
    %v1811 = vshrl.u32 %v1810, 7
    %v1812 = vsub.s32 1, %v1811
    %v1813 = vrot.slane %v191, %v1812
    %v1816 = vadd.f32 %v1677, %v1809
    %v1817 = vadd.f32 %v1678, %v1813
    %v1818 = vadd.f32 %v1679, %v1809
    %v1819 = vadd.f32 %v1680, %v1813
    %v1820 = vadd.f32 %v1681, %v1809
    %v1821 = vadd.f32 %v1682, %v1813
    %v1822 = vadd.f32 %v1683, %v1809
    %v1823 = vadd.f32 %v1684, %v1813
    %v1824 = vadd.f32 %v1685, %v1809
    %v1825 = vadd.f32 %v1686, %v1813
    %v1826 = vadd.f32 %v1687, %v1809
    %v1827 = vadd.f32 %v1688, %v1813
    %v1828 = vadd.f32 %v1689, %v1809
    %v1829 = vadd.f32 %v1690, %v1813
    %v1830 = vadd.f32 %v1691, %v1809
    %v1831 = vadd.f32 %v1692, %v1813
    %v1832 = vadd.f32 %v1693, %v1809
    %v1833 = vadd.f32 %v1694, %v1813
    %v1834 = vadd.f32 %v1695, %v1809
    %v1835 = vadd.f32 %v1696, %v1813
    %v1836 = vadd.f32 %v1697, %v1809
    %v1837 = vadd.f32 %v1698, %v1813
    %v1838 = vadd.f32 %v1699, %v1809
    %v1839 = vadd.f32 %v1700, %v1813
    %v1840 = vadd.f32 %v1701, %v1809
    %v1841 = vadd.f32 %v1702, %v1813
    %v1842 = vadd.f32 %v1703, %v1809
    %v1843 = vadd.f32 %v1704, %v1813
    %v1844 = vadd.f32 %v1705, %v1809
    %v1845 = vadd.f32 %v1706, %v1813
    %v1846 = vadd.f32 %v1707, %v1809
    %v1847 = vadd.f32 %v1708, %v1813
    %v1848 = vadd.f32 %v1709, %v1809
    %v1849 = vadd.f32 %v1710, %v1813
    %v1850 = vadd.f32 %v1711, %v1809
    %v1851 = vadd.f32 %v1712, %v1813
    %v1852 = vadd.f32 %v1713, %v1809
    %v1853 = vadd.f32 %v1714, %v1813
    %v1854 = vadd.f32 %v1715, %v1809
    %v1855 = vadd.f32 %v1716, %v1813
    %v1856 = vadd.f32 %v1717, %v1809
    %v1857 = vadd.f32 %v1718, %v1813
    %v1858 = vadd.f32 %v1719, %v1809
    %v1859 = vadd.f32 %v1720, %v1813
    %v1860 = vadd.f32 %v1721, %v1809
    %v1861 = vadd.f32 %v1722, %v1813
    %v1862 = vadd.f32 %v1723, %v1809
    %v1863 = vadd.f32 %v1724, %v1813
    %v1864 = vadd.f32 %v1725, %v1809
    %v1865 = vadd.f32 %v1726, %v1813
    %v1866 = vadd.f32 %v1727, %v1809
    %v1867 = vadd.f32 %v1728, %v1813
    %v1868 = vadd.f32 %v1729, %v1809
    %v1869 = vadd.f32 %v1730, %v1813
    %v1870 = vadd.f32 %v1731, %v1809
    %v1871 = vadd.f32 %v1732, %v1813
    %v1872 = vadd.f32 %v1733, %v1809
    %v1873 = vadd.f32 %v1734, %v1813
    %v1874 = vadd.f32 %v1735, %v1809
    %v1875 = vadd.f32 %v1736, %v1813
    %v1876 = vadd.f32 %v1737, %v1809
    %v1877 = vadd.f32 %v1738, %v1813
    %v1878 = vadd.f32 %v1739, %v1809
    %v1879 = vadd.f32 %v1740, %v1813
    %v1880 = vadd.f32 %v1741, %v1809
    %v1881 = vadd.f32 %v1742, %v1813
    %v1882 = vadd.f32 %v1743, %v1809
    %v1883 = vadd.f32 %v1744, %v1813
    %v1884 = vadd.f32 %v1745, %v1809
    %v1885 = vadd.f32 %v1746, %v1813
    %v1886 = vadd.f32 %v1747, %v1809
    %v1887 = vadd.f32 %v1748, %v1813
    %v1888 = vadd.f32 %v1749, %v1809
    %v1889 = vadd.f32 %v1750, %v1813
    %v1890 = vadd.f32 %v1751, %v1809
    %v1891 = vadd.f32 %v1752, %v1813
    %v1892 = vadd.f32 %v1753, %v1809
    %v1893 = vadd.f32 %v1754, %v1813
    %v1894 = vadd.f32 %v1755, %v1809
    %v1895 = vadd.f32 %v1756, %v1813
    %v1896 = vadd.f32 %v1757, %v1809
    %v1897 = vadd.f32 %v1758, %v1813
    %v1898 = vadd.f32 %v1759, %v1809
    %v1899 = vadd.f32 %v1760, %v1813
    %v1900 = vadd.f32 %v1761, %v1809
    %v1901 = vadd.f32 %v1762, %v1813
    %v1902 = vadd.f32 %v1763, %v1809
    %v1903 = vadd.f32 %v1764, %v1813
    %v1904 = vadd.f32 %v1765, %v1809
    %v1905 = vadd.f32 %v1766, %v1813
    %v1906 = vadd.f32 %v1767, %v1809
    %v1907 = vadd.f32 %v1768, %v1813
    %v1908 = vadd.f32 %v1769, %v1809
    %v1909 = vadd.f32 %v1770, %v1813
    %v1910 = vadd.f32 %v1771, %v1809
    %v1911 = vadd.f32 %v1772, %v1813
    %v1912 = vadd.f32 %v1773, %v1809
    %v1913 = vadd.f32 %v1774, %v1813
    %v1914 = vadd.f32 %v1775, %v1809
    %v1915 = vadd.f32 %v1776, %v1813
    %v1916 = vadd.f32 %v1777, %v1809
    %v1917 = vadd.f32 %v1778, %v1813
    %v1918 = vadd.f32 %v1779, %v1809
    %v1919 = vadd.f32 %v1780, %v1813
    %v1920 = vadd.f32 %v1781, %v1809
    %v1921 = vadd.f32 %v1782, %v1813
    %v1922 = vadd.f32 %v1783, %v1809
    %v1923 = vadd.f32 %v1784, %v1813
    %v1924 = vadd.f32 %v1785, %v1809
    %v1925 = vadd.f32 %v1786, %v1813
    %v1926 = vadd.f32 %v1787, %v1809
    %v1927 = vadd.f32 %v1788, %v1813
    %v1928 = vadd.f32 %v1789, %v1809
    %v1929 = vadd.f32 %v1790, %v1813
    %v1930 = vadd.f32 %v1791, %v1809
    %v1931 = vadd.f32 %v1792, %v1813
    %v1932 = vadd.f32 %v1793, %v1809
    %v1933 = vadd.f32 %v1794, %v1813
    %v1934 = vadd.f32 %v1795, %v1809
    %v1935 = vadd.f32 %v1796, %v1813
    %v1936 = vadd.f32 %v1797, %v1809
    %v1937 = vadd.f32 %v1798, %v1813
    %v1938 = vadd.f32 %v1799, %v1809
    %v1939 = vadd.f32 %v1800, %v1813
    %v1940 = vadd.f32 %v1801, %v1809
    %v1941 = vadd.f32 %v1802, %v1813
    %v1942 = vadd.f32 %v1803, %v1809
    %v1943 = vadd.f32 %v1804, %v1813
    %v1944 = vpack.c.bf16 %v1818, %v1816
    %v1945 = vpack.c.bf16 %v1819, %v1817
    %v1946 = vpack.c.bf16 %v1822, %v1820
    %v1947 = vpack.c.bf16 %v1823, %v1821
    %v1948 = vpack.c.bf16 %v1826, %v1824
    %v1949 = vpack.c.bf16 %v1827, %v1825
    %v1950 = vpack.c.bf16 %v1830, %v1828
    %v1951 = vpack.c.bf16 %v1831, %v1829
    %v1952 = vpack.c.bf16 %v1834, %v1832
    %v1953 = vpack.c.bf16 %v1835, %v1833
    %v1954 = vpack.c.bf16 %v1838, %v1836
    %v1955 = vpack.c.bf16 %v1839, %v1837
    %v1956 = vpack.c.bf16 %v1842, %v1840
    %v1957 = vpack.c.bf16 %v1843, %v1841
    %v1958 = vpack.c.bf16 %v1846, %v1844
    %v1959 = vpack.c.bf16 %v1847, %v1845
    %v1960 = vpack.c.bf16 %v1850, %v1848
    %v1961 = vpack.c.bf16 %v1851, %v1849
    %v1962 = vpack.c.bf16 %v1854, %v1852
    %v1963 = vpack.c.bf16 %v1855, %v1853
    %v1964 = vpack.c.bf16 %v1858, %v1856
    %v1965 = vpack.c.bf16 %v1859, %v1857
    %v1966 = vpack.c.bf16 %v1862, %v1860
    %v1967 = vpack.c.bf16 %v1863, %v1861
    %v1968 = vpack.c.bf16 %v1866, %v1864
    %v1969 = vpack.c.bf16 %v1867, %v1865
    %v1970 = vpack.c.bf16 %v1870, %v1868
    %v1971 = vpack.c.bf16 %v1871, %v1869
    %v1972 = vpack.c.bf16 %v1874, %v1872
    %v1973 = vpack.c.bf16 %v1875, %v1873
    %v1974 = vpack.c.bf16 %v1878, %v1876
    %v1975 = vpack.c.bf16 %v1879, %v1877
    %v1976 = vpack.c.bf16 %v1882, %v1880
    %v1977 = vpack.c.bf16 %v1883, %v1881
    %v1978 = vpack.c.bf16 %v1886, %v1884
    %v1979 = vpack.c.bf16 %v1887, %v1885
    %v1980 = vpack.c.bf16 %v1890, %v1888
    %v1981 = vpack.c.bf16 %v1891, %v1889
    %v1982 = vpack.c.bf16 %v1894, %v1892
    %v1983 = vpack.c.bf16 %v1895, %v1893
    %v1984 = vpack.c.bf16 %v1898, %v1896
    %v1985 = vpack.c.bf16 %v1899, %v1897
    %v1986 = vpack.c.bf16 %v1902, %v1900
    %v1987 = vpack.c.bf16 %v1903, %v1901
    %v1988 = vpack.c.bf16 %v1906, %v1904
    %v1989 = vpack.c.bf16 %v1907, %v1905
    %v1990 = vpack.c.bf16 %v1910, %v1908
    %v1991 = vpack.c.bf16 %v1911, %v1909
    %v1992 = vpack.c.bf16 %v1914, %v1912
    %v1993 = vpack.c.bf16 %v1915, %v1913
    %v1994 = vpack.c.bf16 %v1918, %v1916
    %v1995 = vpack.c.bf16 %v1919, %v1917
    %v1996 = vpack.c.bf16 %v1922, %v1920
    %v1997 = vpack.c.bf16 %v1923, %v1921
    %v1998 = vpack.c.bf16 %v1926, %v1924
    %v1999 = vpack.c.bf16 %v1927, %v1925
    %v2000 = vpack.c.bf16 %v1930, %v1928
    %v2001 = vpack.c.bf16 %v1931, %v1929
    %v2002 = vpack.c.bf16 %v1934, %v1932
    %v2003 = vpack.c.bf16 %v1935, %v1933
    %v2004 = vpack.c.bf16 %v1938, %v1936
    %v2005 = vpack.c.bf16 %v1939, %v1937
    %v2006 = vpack.c.bf16 %v1942, %v1940
    %v2007 = vpack.c.bf16 %v1943, %v1941
    %v2008 = vld [vmem:[#allocation5] sm:$0xff]
    %v2009 = vld [vmem:[#allocation5 + $0x8] sm:$0xff]
    %v2010 = vld [vmem:[#allocation5 + $0x10] sm:$0xff]
    %v2011 = vld [vmem:[#allocation5 + $0x18] sm:$0xff]
    %v2012 = vld [vmem:[#allocation5 + $0x20] sm:$0xff]
    %v2013 = vld [vmem:[#allocation5 + $0x28] sm:$0xff]
    %v2014 = vld [vmem:[#allocation5 + $0x30] sm:$0xff]
    %v2015 = vld [vmem:[#allocation5 + $0x38] sm:$0xff]
    %v2016 = vld [vmem:[#allocation5 + $0x40] sm:$0xff]
    %v2017 = vld [vmem:[#allocation5 + $0x48] sm:$0xff]
    %v2018 = vld [vmem:[#allocation5 + $0x50] sm:$0xff]
    %v2019 = vld [vmem:[#allocation5 + $0x58] sm:$0xff]
    %v2020 = vld [vmem:[#allocation5 + $0x60] sm:$0xff]
    %v2021 = vld [vmem:[#allocation5 + $0x68] sm:$0xff]
    %v2022 = vld [vmem:[#allocation5 + $0x70] sm:$0xff]
    %v2023 = vld [vmem:[#allocation5 + $0x78] sm:$0xff]
    %v2024 = vld [vmem:[#allocation5 + $0x80] sm:$0xff]
    %v2025 = vld [vmem:[#allocation5 + $0x88] sm:$0xff]
    %v2026 = vld [vmem:[#allocation5 + $0x90] sm:$0xff]
    %v2027 = vld [vmem:[#allocation5 + $0x98] sm:$0xff]
    %v2028 = vld [vmem:[#allocation5 + $0xa0] sm:$0xff]
    %v2029 = vld [vmem:[#allocation5 + $0xa8] sm:$0xff]
    %v2030 = vld [vmem:[#allocation5 + $0xb0] sm:$0xff]
    %v2031 = vld [vmem:[#allocation5 + $0xb8] sm:$0xff]
    %v2032 = vld [vmem:[#allocation5 + $0xc0] sm:$0xff]
    %v2033 = vld [vmem:[#allocation5 + $0xc8] sm:$0xff]
    %v2034 = vld [vmem:[#allocation5 + $0xd0] sm:$0xff]
    %v2035 = vld [vmem:[#allocation5 + $0xd8] sm:$0xff]
    %v2036 = vld [vmem:[#allocation5 + $0xe0] sm:$0xff]
    %v2037 = vld [vmem:[#allocation5 + $0xe8] sm:$0xff]
    %v2038 = vld [vmem:[#allocation5 + $0xf0] sm:$0xff]
    %v2039 = vld [vmem:[#allocation5 + $0xf8] sm:$0xff]
    %v2040 = vld [vmem:[#allocation5 + $0x100] sm:$0xff]
    %v2041 = vld [vmem:[#allocation5 + $0x108] sm:$0xff]
    %v2042 = vld [vmem:[#allocation5 + $0x110] sm:$0xff]
    %v2043 = vld [vmem:[#allocation5 + $0x118] sm:$0xff]
    %v2044 = vld [vmem:[#allocation5 + $0x120] sm:$0xff]
    %v2045 = vld [vmem:[#allocation5 + $0x128] sm:$0xff]
    %v2046 = vld [vmem:[#allocation5 + $0x130] sm:$0xff]
    %v2047 = vld [vmem:[#allocation5 + $0x138] sm:$0xff]
    %v2048 = vld [vmem:[#allocation5 + $0x140] sm:$0xff]
    %v2049 = vld [vmem:[#allocation5 + $0x148] sm:$0xff]
    %v2050 = vld [vmem:[#allocation5 + $0x150] sm:$0xff]
    %v2051 = vld [vmem:[#allocation5 + $0x158] sm:$0xff]
    %v2052 = vld [vmem:[#allocation5 + $0x160] sm:$0xff]
    %v2053 = vld [vmem:[#allocation5 + $0x168] sm:$0xff]
    %v2054 = vld [vmem:[#allocation5 + $0x170] sm:$0xff]
    %v2055 = vld [vmem:[#allocation5 + $0x178] sm:$0xff]
    %v2056 = vld [vmem:[#allocation5 + $0x180] sm:$0xff]
    %v2057 = vld [vmem:[#allocation5 + $0x188] sm:$0xff]
    %v2058 = vld [vmem:[#allocation5 + $0x190] sm:$0xff]
    %v2059 = vld [vmem:[#allocation5 + $0x198] sm:$0xff]
    %v2060 = vld [vmem:[#allocation5 + $0x1a0] sm:$0xff]
    %v2061 = vld [vmem:[#allocation5 + $0x1a8] sm:$0xff]
    %v2062 = vld [vmem:[#allocation5 + $0x1b0] sm:$0xff]
    %v2063 = vld [vmem:[#allocation5 + $0x1b8] sm:$0xff]
    %v2064 = vld [vmem:[#allocation5 + $0x1c0] sm:$0xff]
    %v2065 = vld [vmem:[#allocation5 + $0x1c8] sm:$0xff]
    %v2066 = vld [vmem:[#allocation5 + $0x1d0] sm:$0xff]
    %v2067 = vld [vmem:[#allocation5 + $0x1d8] sm:$0xff]
    %v2068 = vld [vmem:[#allocation5 + $0x1e0] sm:$0xff]
    %v2069 = vld [vmem:[#allocation5 + $0x1e8] sm:$0xff]
    %v2070 = vld [vmem:[#allocation5 + $0x1f0] sm:$0xff]
    %v2071 = vld [vmem:[#allocation5 + $0x1f8] sm:$0xff]
    %v2072 = vld [vmem:[#allocation5 + $0x200] sm:$0xff]
    %v2073 = vld [vmem:[#allocation5 + $0x208] sm:$0xff]
    %v2074 = vld [vmem:[#allocation5 + $0x210] sm:$0xff]
    %v2075 = vld [vmem:[#allocation5 + $0x218] sm:$0xff]
    %v2076 = vld [vmem:[#allocation5 + $0x220] sm:$0xff]
    %v2077 = vld [vmem:[#allocation5 + $0x228] sm:$0xff]
    %v2078 = vld [vmem:[#allocation5 + $0x230] sm:$0xff]
    %v2079 = vld [vmem:[#allocation5 + $0x238] sm:$0xff]
    %v2080 = vld [vmem:[#allocation5 + $0x240] sm:$0xff]
    %v2081 = vld [vmem:[#allocation5 + $0x248] sm:$0xff]
    %v2082 = vld [vmem:[#allocation5 + $0x250] sm:$0xff]
    %v2083 = vld [vmem:[#allocation5 + $0x258] sm:$0xff]
    %v2084 = vld [vmem:[#allocation5 + $0x260] sm:$0xff]
    %v2085 = vld [vmem:[#allocation5 + $0x268] sm:$0xff]
    %v2086 = vld [vmem:[#allocation5 + $0x270] sm:$0xff]
    %v2087 = vld [vmem:[#allocation5 + $0x278] sm:$0xff]
    %v2088 = vld [vmem:[#allocation5 + $0x280] sm:$0xff]
    %v2089 = vld [vmem:[#allocation5 + $0x288] sm:$0xff]
    %v2090 = vld [vmem:[#allocation5 + $0x290] sm:$0xff]
    %v2091 = vld [vmem:[#allocation5 + $0x298] sm:$0xff]
    %v2092 = vld [vmem:[#allocation5 + $0x2a0] sm:$0xff]
    %v2093 = vld [vmem:[#allocation5 + $0x2a8] sm:$0xff]
    %v2094 = vld [vmem:[#allocation5 + $0x2b0] sm:$0xff]
    %v2095 = vld [vmem:[#allocation5 + $0x2b8] sm:$0xff]
    %v2096 = vld [vmem:[#allocation5 + $0x2c0] sm:$0xff]
    %v2097 = vld [vmem:[#allocation5 + $0x2c8] sm:$0xff]
    %v2098 = vld [vmem:[#allocation5 + $0x2d0] sm:$0xff]
    %v2099 = vld [vmem:[#allocation5 + $0x2d8] sm:$0xff]
    %v2100 = vld [vmem:[#allocation5 + $0x2e0] sm:$0xff]
    %v2101 = vld [vmem:[#allocation5 + $0x2e8] sm:$0xff]
    %v2102 = vld [vmem:[#allocation5 + $0x2f0] sm:$0xff]
    %v2103 = vld [vmem:[#allocation5 + $0x2f8] sm:$0xff]
    %v2104 = vld [vmem:[#allocation5 + $0x300] sm:$0xff]
    %v2105 = vld [vmem:[#allocation5 + $0x308] sm:$0xff]
    %v2106 = vld [vmem:[#allocation5 + $0x310] sm:$0xff]
    %v2107 = vld [vmem:[#allocation5 + $0x318] sm:$0xff]
    %v2108 = vld [vmem:[#allocation5 + $0x320] sm:$0xff]
    %v2109 = vld [vmem:[#allocation5 + $0x328] sm:$0xff]
    %v2110 = vld [vmem:[#allocation5 + $0x330] sm:$0xff]
    %v2111 = vld [vmem:[#allocation5 + $0x338] sm:$0xff]
    %v2112 = vld [vmem:[#allocation5 + $0x340] sm:$0xff]
    %v2113 = vld [vmem:[#allocation5 + $0x348] sm:$0xff]
    %v2114 = vld [vmem:[#allocation5 + $0x350] sm:$0xff]
    %v2115 = vld [vmem:[#allocation5 + $0x358] sm:$0xff]
    %v2116 = vld [vmem:[#allocation5 + $0x360] sm:$0xff]
    %v2117 = vld [vmem:[#allocation5 + $0x368] sm:$0xff]
    %v2118 = vld [vmem:[#allocation5 + $0x370] sm:$0xff]
    %v2119 = vld [vmem:[#allocation5 + $0x378] sm:$0xff]
    %v2120 = vld [vmem:[#allocation5 + $0x380] sm:$0xff]
    %v2121 = vld [vmem:[#allocation5 + $0x388] sm:$0xff]
    %v2122 = vld [vmem:[#allocation5 + $0x390] sm:$0xff]
    %v2123 = vld [vmem:[#allocation5 + $0x398] sm:$0xff]
    %v2124 = vld [vmem:[#allocation5 + $0x3a0] sm:$0xff]
    %v2125 = vld [vmem:[#allocation5 + $0x3a8] sm:$0xff]
    %v2126 = vld [vmem:[#allocation5 + $0x3b0] sm:$0xff]
    %v2127 = vld [vmem:[#allocation5 + $0x3b8] sm:$0xff]
    %v2128 = vld [vmem:[#allocation5 + $0x3c0] sm:$0xff]
    %v2129 = vld [vmem:[#allocation5 + $0x3c8] sm:$0xff]
    %v2130 = vld [vmem:[#allocation5 + $0x3d0] sm:$0xff]
    %v2131 = vld [vmem:[#allocation5 + $0x3d8] sm:$0xff]
    %v2132 = vld [vmem:[#allocation5 + $0x3e0] sm:$0xff]
    %v2133 = vld [vmem:[#allocation5 + $0x3e8] sm:$0xff]
    %v2134 = vld [vmem:[#allocation5 + $0x3f0] sm:$0xff]
    %v2135 = vld [vmem:[#allocation5 + $0x3f8] sm:$0xff]
    %v2264 = vunpack.c.l.b16 %v2008
    %v2265 = vunpack.c.h.b16 %v2008
    %v2266 = vunpack.c.l.b16 %v2009
    %v2267 = vunpack.c.h.b16 %v2009
    %v2268 = vunpack.c.l.b16 %v2010
    %v2269 = vunpack.c.h.b16 %v2010
    %v2270 = vunpack.c.l.b16 %v2011
    %v2271 = vunpack.c.h.b16 %v2011
    %v2272 = vunpack.c.l.b16 %v2012
    %v2273 = vunpack.c.h.b16 %v2012
    %v2274 = vunpack.c.l.b16 %v2013
    %v2275 = vunpack.c.h.b16 %v2013
    %v2276 = vunpack.c.l.b16 %v2014
    %v2277 = vunpack.c.h.b16 %v2014
    %v2278 = vunpack.c.l.b16 %v2015
    %v2279 = vunpack.c.h.b16 %v2015
    %v2280 = vunpack.c.l.b16 %v2016
    %v2281 = vunpack.c.h.b16 %v2016
    %v2282 = vunpack.c.l.b16 %v2017
    %v2283 = vunpack.c.h.b16 %v2017
    %v2284 = vunpack.c.l.b16 %v2018
    %v2285 = vunpack.c.h.b16 %v2018
    %v2286 = vunpack.c.l.b16 %v2019
    %v2287 = vunpack.c.h.b16 %v2019
    %v2288 = vunpack.c.l.b16 %v2020
    %v2289 = vunpack.c.h.b16 %v2020
    %v2290 = vunpack.c.l.b16 %v2021
    %v2291 = vunpack.c.h.b16 %v2021
    %v2292 = vunpack.c.l.b16 %v2022
    %v2293 = vunpack.c.h.b16 %v2022
    %v2294 = vunpack.c.l.b16 %v2023
    %v2295 = vunpack.c.h.b16 %v2023
    %v2296 = vunpack.c.l.b16 %v2024
    %v2297 = vunpack.c.h.b16 %v2024
    %v2298 = vunpack.c.l.b16 %v2025
    %v2299 = vunpack.c.h.b16 %v2025
    %v2300 = vunpack.c.l.b16 %v2026
    %v2301 = vunpack.c.h.b16 %v2026
    %v2302 = vunpack.c.l.b16 %v2027
    %v2303 = vunpack.c.h.b16 %v2027
    %v2304 = vunpack.c.l.b16 %v2028
    %v2305 = vunpack.c.h.b16 %v2028
    %v2306 = vunpack.c.l.b16 %v2029
    %v2307 = vunpack.c.h.b16 %v2029
    %v2308 = vunpack.c.l.b16 %v2030
    %v2309 = vunpack.c.h.b16 %v2030
    %v2310 = vunpack.c.l.b16 %v2031
    %v2311 = vunpack.c.h.b16 %v2031
    %v2312 = vunpack.c.l.b16 %v2032
    %v2313 = vunpack.c.h.b16 %v2032
    %v2314 = vunpack.c.l.b16 %v2033
    %v2315 = vunpack.c.h.b16 %v2033
    %v2316 = vunpack.c.l.b16 %v2034
    %v2317 = vunpack.c.h.b16 %v2034
    %v2318 = vunpack.c.l.b16 %v2035
    %v2319 = vunpack.c.h.b16 %v2035
    %v2320 = vunpack.c.l.b16 %v2036
    %v2321 = vunpack.c.h.b16 %v2036
    %v2322 = vunpack.c.l.b16 %v2037
    %v2323 = vunpack.c.h.b16 %v2037
    %v2324 = vunpack.c.l.b16 %v2038
    %v2325 = vunpack.c.h.b16 %v2038
    %v2326 = vunpack.c.l.b16 %v2039
    %v2327 = vunpack.c.h.b16 %v2039
    %v2328 = vunpack.c.l.b16 %v2040
    %v2329 = vunpack.c.h.b16 %v2040
    %v2330 = vunpack.c.l.b16 %v2041
    %v2331 = vunpack.c.h.b16 %v2041
    %v2332 = vunpack.c.l.b16 %v2042
    %v2333 = vunpack.c.h.b16 %v2042
    %v2334 = vunpack.c.l.b16 %v2043
    %v2335 = vunpack.c.h.b16 %v2043
    %v2336 = vunpack.c.l.b16 %v2044
    %v2337 = vunpack.c.h.b16 %v2044
    %v2338 = vunpack.c.l.b16 %v2045
    %v2339 = vunpack.c.h.b16 %v2045
    %v2340 = vunpack.c.l.b16 %v2046
    %v2341 = vunpack.c.h.b16 %v2046
    %v2342 = vunpack.c.l.b16 %v2047
    %v2343 = vunpack.c.h.b16 %v2047
    %v2344 = vunpack.c.l.b16 %v2048
    %v2345 = vunpack.c.h.b16 %v2048
    %v2346 = vunpack.c.l.b16 %v2049
    %v2347 = vunpack.c.h.b16 %v2049
    %v2348 = vunpack.c.l.b16 %v2050
    %v2349 = vunpack.c.h.b16 %v2050
    %v2350 = vunpack.c.l.b16 %v2051
    %v2351 = vunpack.c.h.b16 %v2051
    %v2352 = vunpack.c.l.b16 %v2052
    %v2353 = vunpack.c.h.b16 %v2052
    %v2354 = vunpack.c.l.b16 %v2053
    %v2355 = vunpack.c.h.b16 %v2053
    %v2356 = vunpack.c.l.b16 %v2054
    %v2357 = vunpack.c.h.b16 %v2054
    %v2358 = vunpack.c.l.b16 %v2055
    %v2359 = vunpack.c.h.b16 %v2055
    %v2360 = vunpack.c.l.b16 %v2056
    %v2361 = vunpack.c.h.b16 %v2056
    %v2362 = vunpack.c.l.b16 %v2057
    %v2363 = vunpack.c.h.b16 %v2057
    %v2364 = vunpack.c.l.b16 %v2058
    %v2365 = vunpack.c.h.b16 %v2058
    %v2366 = vunpack.c.l.b16 %v2059
    %v2367 = vunpack.c.h.b16 %v2059
    %v2368 = vunpack.c.l.b16 %v2060
    %v2369 = vunpack.c.h.b16 %v2060
    %v2370 = vunpack.c.l.b16 %v2061
    %v2371 = vunpack.c.h.b16 %v2061
    %v2372 = vunpack.c.l.b16 %v2062
    %v2373 = vunpack.c.h.b16 %v2062
    %v2374 = vunpack.c.l.b16 %v2063
    %v2375 = vunpack.c.h.b16 %v2063
    %v2376 = vunpack.c.l.b16 %v2064
    %v2377 = vunpack.c.h.b16 %v2064
    %v2378 = vunpack.c.l.b16 %v2065
    %v2379 = vunpack.c.h.b16 %v2065
    %v2380 = vunpack.c.l.b16 %v2066
    %v2381 = vunpack.c.h.b16 %v2066
    %v2382 = vunpack.c.l.b16 %v2067
    %v2383 = vunpack.c.h.b16 %v2067
    %v2384 = vunpack.c.l.b16 %v2068
    %v2385 = vunpack.c.h.b16 %v2068
    %v2386 = vunpack.c.l.b16 %v2069
    %v2387 = vunpack.c.h.b16 %v2069
    %v2388 = vunpack.c.l.b16 %v2070
    %v2389 = vunpack.c.h.b16 %v2070
    %v2390 = vunpack.c.l.b16 %v2071
    %v2391 = vunpack.c.h.b16 %v2071
    %v2392 = vunpack.c.l.b16 %v2072
    %v2393 = vunpack.c.h.b16 %v2072
    %v2394 = vunpack.c.l.b16 %v2073
    %v2395 = vunpack.c.h.b16 %v2073
    %v2396 = vunpack.c.l.b16 %v2074
    %v2397 = vunpack.c.h.b16 %v2074
    %v2398 = vunpack.c.l.b16 %v2075
    %v2399 = vunpack.c.h.b16 %v2075
    %v2400 = vunpack.c.l.b16 %v2076
    %v2401 = vunpack.c.h.b16 %v2076
    %v2402 = vunpack.c.l.b16 %v2077
    %v2403 = vunpack.c.h.b16 %v2077
    %v2404 = vunpack.c.l.b16 %v2078
    %v2405 = vunpack.c.h.b16 %v2078
    %v2406 = vunpack.c.l.b16 %v2079
    %v2407 = vunpack.c.h.b16 %v2079
    %v2408 = vunpack.c.l.b16 %v2080
    %v2409 = vunpack.c.h.b16 %v2080
    %v2410 = vunpack.c.l.b16 %v2081
    %v2411 = vunpack.c.h.b16 %v2081
    %v2412 = vunpack.c.l.b16 %v2082
    %v2413 = vunpack.c.h.b16 %v2082
    %v2414 = vunpack.c.l.b16 %v2083
    %v2415 = vunpack.c.h.b16 %v2083
    %v2416 = vunpack.c.l.b16 %v2084
    %v2417 = vunpack.c.h.b16 %v2084
    %v2418 = vunpack.c.l.b16 %v2085
    %v2419 = vunpack.c.h.b16 %v2085
    %v2420 = vunpack.c.l.b16 %v2086
    %v2421 = vunpack.c.h.b16 %v2086
    %v2422 = vunpack.c.l.b16 %v2087
    %v2423 = vunpack.c.h.b16 %v2087
    %v2424 = vunpack.c.l.b16 %v2088
    %v2425 = vunpack.c.h.b16 %v2088
    %v2426 = vunpack.c.l.b16 %v2089
    %v2427 = vunpack.c.h.b16 %v2089
    %v2428 = vunpack.c.l.b16 %v2090
    %v2429 = vunpack.c.h.b16 %v2090
    %v2430 = vunpack.c.l.b16 %v2091
    %v2431 = vunpack.c.h.b16 %v2091
    %v2432 = vunpack.c.l.b16 %v2092
    %v2433 = vunpack.c.h.b16 %v2092
    %v2434 = vunpack.c.l.b16 %v2093
    %v2435 = vunpack.c.h.b16 %v2093
    %v2436 = vunpack.c.l.b16 %v2094
    %v2437 = vunpack.c.h.b16 %v2094
    %v2438 = vunpack.c.l.b16 %v2095
    %v2439 = vunpack.c.h.b16 %v2095
    %v2440 = vunpack.c.l.b16 %v2096
    %v2441 = vunpack.c.h.b16 %v2096
    %v2442 = vunpack.c.l.b16 %v2097
    %v2443 = vunpack.c.h.b16 %v2097
    %v2444 = vunpack.c.l.b16 %v2098
    %v2445 = vunpack.c.h.b16 %v2098
    %v2446 = vunpack.c.l.b16 %v2099
    %v2447 = vunpack.c.h.b16 %v2099
    %v2448 = vunpack.c.l.b16 %v2100
    %v2449 = vunpack.c.h.b16 %v2100
    %v2450 = vunpack.c.l.b16 %v2101
    %v2451 = vunpack.c.h.b16 %v2101
    %v2452 = vunpack.c.l.b16 %v2102
    %v2453 = vunpack.c.h.b16 %v2102
    %v2454 = vunpack.c.l.b16 %v2103
    %v2455 = vunpack.c.h.b16 %v2103
    %v2456 = vunpack.c.l.b16 %v2104
    %v2457 = vunpack.c.h.b16 %v2104
    %v2458 = vunpack.c.l.b16 %v2105
    %v2459 = vunpack.c.h.b16 %v2105
    %v2460 = vunpack.c.l.b16 %v2106
    %v2461 = vunpack.c.h.b16 %v2106
    %v2462 = vunpack.c.l.b16 %v2107
    %v2463 = vunpack.c.h.b16 %v2107
    %v2464 = vunpack.c.l.b16 %v2108
    %v2465 = vunpack.c.h.b16 %v2108
    %v2466 = vunpack.c.l.b16 %v2109
    %v2467 = vunpack.c.h.b16 %v2109
    %v2468 = vunpack.c.l.b16 %v2110
    %v2469 = vunpack.c.h.b16 %v2110
    %v2470 = vunpack.c.l.b16 %v2111
    %v2471 = vunpack.c.h.b16 %v2111
    %v2472 = vunpack.c.l.b16 %v2112
    %v2473 = vunpack.c.h.b16 %v2112
    %v2474 = vunpack.c.l.b16 %v2113
    %v2475 = vunpack.c.h.b16 %v2113
    %v2476 = vunpack.c.l.b16 %v2114
    %v2477 = vunpack.c.h.b16 %v2114
    %v2478 = vunpack.c.l.b16 %v2115
    %v2479 = vunpack.c.h.b16 %v2115
    %v2480 = vunpack.c.l.b16 %v2116
    %v2481 = vunpack.c.h.b16 %v2116
    %v2482 = vunpack.c.l.b16 %v2117
    %v2483 = vunpack.c.h.b16 %v2117
    %v2484 = vunpack.c.l.b16 %v2118
    %v2485 = vunpack.c.h.b16 %v2118
    %v2486 = vunpack.c.l.b16 %v2119
    %v2487 = vunpack.c.h.b16 %v2119
    %v2488 = vunpack.c.l.b16 %v2120
    %v2489 = vunpack.c.h.b16 %v2120
    %v2490 = vunpack.c.l.b16 %v2121
    %v2491 = vunpack.c.h.b16 %v2121
    %v2492 = vunpack.c.l.b16 %v2122
    %v2493 = vunpack.c.h.b16 %v2122
    %v2494 = vunpack.c.l.b16 %v2123
    %v2495 = vunpack.c.h.b16 %v2123
    %v2496 = vunpack.c.l.b16 %v2124
    %v2497 = vunpack.c.h.b16 %v2124
    %v2498 = vunpack.c.l.b16 %v2125
    %v2499 = vunpack.c.h.b16 %v2125
    %v2500 = vunpack.c.l.b16 %v2126
    %v2501 = vunpack.c.h.b16 %v2126
    %v2502 = vunpack.c.l.b16 %v2127
    %v2503 = vunpack.c.h.b16 %v2127
    %v2504 = vunpack.c.l.b16 %v2128
    %v2505 = vunpack.c.h.b16 %v2128
    %v2506 = vunpack.c.l.b16 %v2129
    %v2507 = vunpack.c.h.b16 %v2129
    %v2508 = vunpack.c.l.b16 %v2130
    %v2509 = vunpack.c.h.b16 %v2130
    %v2510 = vunpack.c.l.b16 %v2131
    %v2511 = vunpack.c.h.b16 %v2131
    %v2512 = vunpack.c.l.b16 %v2132
    %v2513 = vunpack.c.h.b16 %v2132
    %v2514 = vunpack.c.l.b16 %v2133
    %v2515 = vunpack.c.h.b16 %v2133
    %v2516 = vunpack.c.l.b16 %v2134
    %v2517 = vunpack.c.h.b16 %v2134
    %v2518 = vunpack.c.l.b16 %v2135
    %v2519 = vunpack.c.h.b16 %v2135
    %v2520 = vpack.c.b16 %v2272, %v2264
    %v2521 = vpack.c.b16 %v2273, %v2265
    %v2522 = vpack.c.b16 %v2274, %v2266
    %v2523 = vpack.c.b16 %v2275, %v2267
    %v2524 = vpack.c.b16 %v2276, %v2268
    %v2525 = vpack.c.b16 %v2277, %v2269
    %v2526 = vpack.c.b16 %v2278, %v2270
    %v2527 = vpack.c.b16 %v2279, %v2271
    %v2528 = vpack.c.b16 %v2288, %v2280
    %v2529 = vpack.c.b16 %v2289, %v2281
    %v2530 = vpack.c.b16 %v2290, %v2282
    %v2531 = vpack.c.b16 %v2291, %v2283
    %v2532 = vpack.c.b16 %v2292, %v2284
    %v2533 = vpack.c.b16 %v2293, %v2285
    %v2534 = vpack.c.b16 %v2294, %v2286
    %v2535 = vpack.c.b16 %v2295, %v2287
    %v2536 = vpack.c.b16 %v2304, %v2296
    %v2537 = vpack.c.b16 %v2305, %v2297
    %v2538 = vpack.c.b16 %v2306, %v2298
    %v2539 = vpack.c.b16 %v2307, %v2299
    %v2540 = vpack.c.b16 %v2308, %v2300
    %v2541 = vpack.c.b16 %v2309, %v2301
    %v2542 = vpack.c.b16 %v2310, %v2302
    %v2543 = vpack.c.b16 %v2311, %v2303
    %v2544 = vpack.c.b16 %v2320, %v2312
    %v2545 = vpack.c.b16 %v2321, %v2313
    %v2546 = vpack.c.b16 %v2322, %v2314
    %v2547 = vpack.c.b16 %v2323, %v2315
    %v2548 = vpack.c.b16 %v2324, %v2316
    %v2549 = vpack.c.b16 %v2325, %v2317
    %v2550 = vpack.c.b16 %v2326, %v2318
    %v2551 = vpack.c.b16 %v2327, %v2319
    %v2552 = vpack.c.b16 %v2336, %v2328
    %v2553 = vpack.c.b16 %v2337, %v2329
    %v2554 = vpack.c.b16 %v2338, %v2330
    %v2555 = vpack.c.b16 %v2339, %v2331
    %v2556 = vpack.c.b16 %v2340, %v2332
    %v2557 = vpack.c.b16 %v2341, %v2333
    %v2558 = vpack.c.b16 %v2342, %v2334
    %v2559 = vpack.c.b16 %v2343, %v2335
    %v2560 = vpack.c.b16 %v2352, %v2344
    %v2561 = vpack.c.b16 %v2353, %v2345
    %v2562 = vpack.c.b16 %v2354, %v2346
    %v2563 = vpack.c.b16 %v2355, %v2347
    %v2564 = vpack.c.b16 %v2356, %v2348
    %v2565 = vpack.c.b16 %v2357, %v2349
    %v2566 = vpack.c.b16 %v2358, %v2350
    %v2567 = vpack.c.b16 %v2359, %v2351
    %v2568 = vpack.c.b16 %v2368, %v2360
    %v2569 = vpack.c.b16 %v2369, %v2361
    %v2570 = vpack.c.b16 %v2370, %v2362
    %v2571 = vpack.c.b16 %v2371, %v2363
    %v2572 = vpack.c.b16 %v2372, %v2364
    %v2573 = vpack.c.b16 %v2373, %v2365
    %v2574 = vpack.c.b16 %v2374, %v2366
    %v2575 = vpack.c.b16 %v2375, %v2367
    %v2576 = vpack.c.b16 %v2384, %v2376
    %v2577 = vpack.c.b16 %v2385, %v2377
    %v2578 = vpack.c.b16 %v2386, %v2378
    %v2579 = vpack.c.b16 %v2387, %v2379
    %v2580 = vpack.c.b16 %v2388, %v2380
    %v2581 = vpack.c.b16 %v2389, %v2381
    %v2582 = vpack.c.b16 %v2390, %v2382
    %v2583 = vpack.c.b16 %v2391, %v2383
    %v2584 = vpack.c.b16 %v2400, %v2392
    %v2585 = vpack.c.b16 %v2401, %v2393
    %v2586 = vpack.c.b16 %v2402, %v2394
    %v2587 = vpack.c.b16 %v2403, %v2395
    %v2588 = vpack.c.b16 %v2404, %v2396
    %v2589 = vpack.c.b16 %v2405, %v2397
    %v2590 = vpack.c.b16 %v2406, %v2398
    %v2591 = vpack.c.b16 %v2407, %v2399
    %v2592 = vpack.c.b16 %v2416, %v2408
    %v2593 = vpack.c.b16 %v2417, %v2409
    %v2594 = vpack.c.b16 %v2418, %v2410
    %v2595 = vpack.c.b16 %v2419, %v2411
    %v2596 = vpack.c.b16 %v2420, %v2412
    %v2597 = vpack.c.b16 %v2421, %v2413
    %v2598 = vpack.c.b16 %v2422, %v2414
    %v2599 = vpack.c.b16 %v2423, %v2415
    %v2600 = vpack.c.b16 %v2432, %v2424
    %v2601 = vpack.c.b16 %v2433, %v2425
    %v2602 = vpack.c.b16 %v2434, %v2426
    %v2603 = vpack.c.b16 %v2435, %v2427
    %v2604 = vpack.c.b16 %v2436, %v2428
    %v2605 = vpack.c.b16 %v2437, %v2429
    %v2606 = vpack.c.b16 %v2438, %v2430
    %v2607 = vpack.c.b16 %v2439, %v2431
    %v2608 = vpack.c.b16 %v2448, %v2440
    %v2609 = vpack.c.b16 %v2449, %v2441
    %v2610 = vpack.c.b16 %v2450, %v2442
    %v2611 = vpack.c.b16 %v2451, %v2443
    %v2612 = vpack.c.b16 %v2452, %v2444
    %v2613 = vpack.c.b16 %v2453, %v2445
    %v2614 = vpack.c.b16 %v2454, %v2446
    %v2615 = vpack.c.b16 %v2455, %v2447
    %v2616 = vpack.c.b16 %v2464, %v2456
    %v2617 = vpack.c.b16 %v2465, %v2457
    %v2618 = vpack.c.b16 %v2466, %v2458
    %v2619 = vpack.c.b16 %v2467, %v2459
    %v2620 = vpack.c.b16 %v2468, %v2460
    %v2621 = vpack.c.b16 %v2469, %v2461
    %v2622 = vpack.c.b16 %v2470, %v2462
    %v2623 = vpack.c.b16 %v2471, %v2463
    %v2624 = vpack.c.b16 %v2480, %v2472
    %v2625 = vpack.c.b16 %v2481, %v2473
    %v2626 = vpack.c.b16 %v2482, %v2474
    %v2627 = vpack.c.b16 %v2483, %v2475
    %v2628 = vpack.c.b16 %v2484, %v2476
    %v2629 = vpack.c.b16 %v2485, %v2477
    %v2630 = vpack.c.b16 %v2486, %v2478
    %v2631 = vpack.c.b16 %v2487, %v2479
    %v2632 = vpack.c.b16 %v2496, %v2488
    %v2633 = vpack.c.b16 %v2497, %v2489
    %v2634 = vpack.c.b16 %v2498, %v2490
    %v2635 = vpack.c.b16 %v2499, %v2491
    %v2636 = vpack.c.b16 %v2500, %v2492
    %v2637 = vpack.c.b16 %v2501, %v2493
    %v2638 = vpack.c.b16 %v2502, %v2494
    %v2639 = vpack.c.b16 %v2503, %v2495
    %v2640 = vpack.c.b16 %v2512, %v2504
    %v2641 = vpack.c.b16 %v2513, %v2505
    %v2642 = vpack.c.b16 %v2514, %v2506
    %v2643 = vpack.c.b16 %v2515, %v2507
    %v2644 = vpack.c.b16 %v2516, %v2508
    %v2645 = vpack.c.b16 %v2517, %v2509
    %v2646 = vpack.c.b16 %v2518, %v2510
    %v2647 = vpack.c.b16 %v2519, %v2511
    %2776 = vmatprep.subr.bf16.mxu0 %v2577
    %2777 = vmatpush1.bf16.msra.mxu0 %v2576
    %2778 = vmatprep.subr.bf16.mxu0 %v2569
    %2779 = vmatpush1.bf16.msra.mxu0 %v2568
    %2780 = vmatprep.subr.bf16.mxu0 %v2561
    %2781 = vmatpush1.bf16.msra.mxu0 %v2560
    %2782 = vmatprep.subr.bf16.mxu0 %v2553
    %2783 = vmatpush1.bf16.msra.mxu0 %v2552
    %2784 = vmatprep.subr.bf16.mxu0 %v2545
    %2785 = vmatpush1.bf16.msra.mxu0 %v2544
    %2786 = vmatprep.subr.bf16.mxu0 %v2537
    %2787 = vmatpush1.bf16.msra.mxu0 %v2536
    %2788 = vmatprep.subr.bf16.mxu0 %v2529
    %2789 = vmatpush1.bf16.msra.mxu0 %v2528
    %2790 = vmatprep.subr.bf16.mxu0 %v2521
    %2791 = vmatpush1.bf16.msra.mxu0 %v2520
    %2792 = vmatprep.subr.bf16.mxu0 %v2641
    %2793 = vmatpush2.bf16.msra.mxu0 %v2640
    %2794 = vmatprep.subr.bf16.mxu0 %v2633
    %2795 = vmatpush2.bf16.msra.mxu0 %v2632
    %2796 = vmatprep.subr.bf16.mxu0 %v2625
    %2797 = vmatpush2.bf16.msra.mxu0 %v2624
    %2798 = vmatprep.subr.bf16.mxu0 %v2617
    %2799 = vmatpush2.bf16.msra.mxu0 %v2616
    %2800 = vmatprep.subr.bf16.mxu0 %v2609
    %2801 = vmatpush2.bf16.msra.mxu0 %v2608
    %2802 = vmatprep.subr.bf16.mxu0 %v2601
    %2803 = vmatpush2.bf16.msra.mxu0 %v2600
    %2804 = vmatprep.subr.bf16.mxu0 %v2593
    %2805 = vmatpush2.bf16.msra.mxu0 %v2592
    %2806 = vmatprep.subr.bf16.mxu0 %v2585
    %2807 = vmatpush2.bf16.msra.mxu0 %v2584
    %2808 = vmatprep.mubr.bf16.mxu0 %v1945
    %2809 = vmatmul.mubr.bf16.gmra.mxu0 %v1944
    %v2810 = vpop.f32.mrf.mxu0
    %v2811 = vadd.f32 0.0, %v2810
    %v2812 = vpop.f32.mrf.mxu0
    %v2813 = vadd.f32 0.0, %v2812
    %v2814 = vpop.f32.mrf.mxu0
    %v2815 = vadd.f32 0.0, %v2814
    %v2816 = vpop.f32.mrf.mxu0
    %v2817 = vadd.f32 0.0, %v2816
    %2818 = vmatprep.mubr.bf16.mxu0 %v1947
    %2819 = vmatmul.mubr.bf16.gmra.mxu0 %v1946
    %v2820 = vpop.f32.mrf.mxu0
    %v2821 = vadd.f32 0.0, %v2820
    %v2822 = vpop.f32.mrf.mxu0
    %v2823 = vadd.f32 0.0, %v2822
    %v2824 = vpop.f32.mrf.mxu0
    %v2825 = vadd.f32 0.0, %v2824
    %v2826 = vpop.f32.mrf.mxu0
    %v2827 = vadd.f32 0.0, %v2826
    %2828 = vmatprep.mubr.bf16.mxu0 %v1949
    %2829 = vmatmul.mubr.bf16.gmra.mxu0 %v1948
    %v2830 = vpop.f32.mrf.mxu0
    %v2831 = vadd.f32 0.0, %v2830
    %v2832 = vpop.f32.mrf.mxu0
    %v2833 = vadd.f32 0.0, %v2832
    %v2834 = vpop.f32.mrf.mxu0
    %v2835 = vadd.f32 0.0, %v2834
    %v2836 = vpop.f32.mrf.mxu0
    %v2837 = vadd.f32 0.0, %v2836
    %2838 = vmatprep.mubr.bf16.mxu0 %v1951
    %2839 = vmatmul.mubr.bf16.gmra.mxu0 %v1950
    %v2840 = vpop.f32.mrf.mxu0
    %v2841 = vadd.f32 0.0, %v2840
    %v2842 = vpop.f32.mrf.mxu0
    %v2843 = vadd.f32 0.0, %v2842
    %v2844 = vpop.f32.mrf.mxu0
    %v2845 = vadd.f32 0.0, %v2844
    %v2846 = vpop.f32.mrf.mxu0
    %v2847 = vadd.f32 0.0, %v2846
    %2848 = vmatprep.mubr.bf16.mxu0 %v1953
    %2849 = vmatmul.mubr.bf16.gmra.mxu0 %v1952
    %v2850 = vpop.f32.mrf.mxu0
    %v2851 = vadd.f32 0.0, %v2850
    %v2852 = vpop.f32.mrf.mxu0
    %v2853 = vadd.f32 0.0, %v2852
    %v2854 = vpop.f32.mrf.mxu0
    %v2855 = vadd.f32 0.0, %v2854
    %v2856 = vpop.f32.mrf.mxu0
    %v2857 = vadd.f32 0.0, %v2856
    %2858 = vmatprep.mubr.bf16.mxu0 %v1955
    %2859 = vmatmul.mubr.bf16.gmra.mxu0 %v1954
    %v2860 = vpop.f32.mrf.mxu0
    %v2861 = vadd.f32 0.0, %v2860
    %v2862 = vpop.f32.mrf.mxu0
    %v2863 = vadd.f32 0.0, %v2862
    %v2864 = vpop.f32.mrf.mxu0
    %v2865 = vadd.f32 0.0, %v2864
    %v2866 = vpop.f32.mrf.mxu0
    %v2867 = vadd.f32 0.0, %v2866
    %2868 = vmatprep.mubr.bf16.mxu0 %v1957
    %2869 = vmatmul.mubr.bf16.gmra.mxu0 %v1956
    %v2870 = vpop.f32.mrf.mxu0
    %v2871 = vadd.f32 0.0, %v2870
    %v2872 = vpop.f32.mrf.mxu0
    %v2873 = vadd.f32 0.0, %v2872
    %v2874 = vpop.f32.mrf.mxu0
    %v2875 = vadd.f32 0.0, %v2874
    %v2876 = vpop.f32.mrf.mxu0
    %v2877 = vadd.f32 0.0, %v2876
    %2878 = vmatprep.mubr.bf16.mxu0 %v1959
    %2879 = vmatmul.mubr.bf16.gmra.mxu0 %v1958
    %v2880 = vpop.f32.mrf.mxu0
    %v2881 = vadd.f32 0.0, %v2880
    %v2882 = vpop.f32.mrf.mxu0
    %v2883 = vadd.f32 0.0, %v2882
    %v2884 = vpop.f32.mrf.mxu0
    %v2885 = vadd.f32 0.0, %v2884
    %v2886 = vpop.f32.mrf.mxu0
    %v2887 = vadd.f32 0.0, %v2886
    %2888 = vmatprep.mubr.bf16.mxu0 %v1961
    %2889 = vmatmul.mubr.bf16.gmra.mxu0 %v1960
    %v2890 = vpop.f32.mrf.mxu0
    %v2891 = vadd.f32 0.0, %v2890
    %v2892 = vpop.f32.mrf.mxu0
    %v2893 = vadd.f32 0.0, %v2892
    %v2894 = vpop.f32.mrf.mxu0
    %v2895 = vadd.f32 0.0, %v2894
    %v2896 = vpop.f32.mrf.mxu0
    %v2897 = vadd.f32 0.0, %v2896
    %2898 = vmatprep.mubr.bf16.mxu0 %v1963
    %2899 = vmatmul.mubr.bf16.gmra.mxu0 %v1962
    %v2900 = vpop.f32.mrf.mxu0
    %v2901 = vadd.f32 0.0, %v2900
    %v2902 = vpop.f32.mrf.mxu0
    %v2903 = vadd.f32 0.0, %v2902
    %v2904 = vpop.f32.mrf.mxu0
    %v2905 = vadd.f32 0.0, %v2904
    %v2906 = vpop.f32.mrf.mxu0
    %v2907 = vadd.f32 0.0, %v2906
    %2908 = vmatprep.mubr.bf16.mxu0 %v1965
    %2909 = vmatmul.mubr.bf16.gmra.mxu0 %v1964
    %v2910 = vpop.f32.mrf.mxu0
    %v2911 = vadd.f32 0.0, %v2910
    %v2912 = vpop.f32.mrf.mxu0
    %v2913 = vadd.f32 0.0, %v2912
    %v2914 = vpop.f32.mrf.mxu0
    %v2915 = vadd.f32 0.0, %v2914
    %v2916 = vpop.f32.mrf.mxu0
    %v2917 = vadd.f32 0.0, %v2916
    %2918 = vmatprep.mubr.bf16.mxu0 %v1967
    %2919 = vmatmul.mubr.bf16.gmra.mxu0 %v1966
    %v2920 = vpop.f32.mrf.mxu0
    %v2921 = vadd.f32 0.0, %v2920
    %v2922 = vpop.f32.mrf.mxu0
    %v2923 = vadd.f32 0.0, %v2922
    %v2924 = vpop.f32.mrf.mxu0
    %v2925 = vadd.f32 0.0, %v2924
    %v2926 = vpop.f32.mrf.mxu0
    %v2927 = vadd.f32 0.0, %v2926
    %2928 = vmatprep.mubr.bf16.mxu0 %v1969
    %2929 = vmatmul.mubr.bf16.gmra.mxu0 %v1968
    %v2930 = vpop.f32.mrf.mxu0
    %v2931 = vadd.f32 0.0, %v2930
    %v2932 = vpop.f32.mrf.mxu0
    %v2933 = vadd.f32 0.0, %v2932
    %v2934 = vpop.f32.mrf.mxu0
    %v2935 = vadd.f32 0.0, %v2934
    %v2936 = vpop.f32.mrf.mxu0
    %v2937 = vadd.f32 0.0, %v2936
    %2938 = vmatprep.mubr.bf16.mxu0 %v1971
    %2939 = vmatmul.mubr.bf16.gmra.mxu0 %v1970
    %v2940 = vpop.f32.mrf.mxu0
    %v2941 = vadd.f32 0.0, %v2940
    %v2942 = vpop.f32.mrf.mxu0
    %v2943 = vadd.f32 0.0, %v2942
    %v2944 = vpop.f32.mrf.mxu0
    %v2945 = vadd.f32 0.0, %v2944
    %v2946 = vpop.f32.mrf.mxu0
    %v2947 = vadd.f32 0.0, %v2946
    %2948 = vmatprep.mubr.bf16.mxu0 %v1973
    %2949 = vmatmul.mubr.bf16.gmra.mxu0 %v1972
    %v2950 = vpop.f32.mrf.mxu0
    %v2951 = vadd.f32 0.0, %v2950
    %v2952 = vpop.f32.mrf.mxu0
    %v2953 = vadd.f32 0.0, %v2952
    %v2954 = vpop.f32.mrf.mxu0
    %v2955 = vadd.f32 0.0, %v2954
    %v2956 = vpop.f32.mrf.mxu0
    %v2957 = vadd.f32 0.0, %v2956
    %2958 = vmatprep.mubr.bf16.mxu0 %v1975
    %2959 = vmatmul.mubr.bf16.gmra.mxu0 %v1974
    %v2960 = vpop.f32.mrf.mxu0
    %v2961 = vadd.f32 0.0, %v2960
    %v2962 = vpop.f32.mrf.mxu0
    %v2963 = vadd.f32 0.0, %v2962
    %v2964 = vpop.f32.mrf.mxu0
    %v2965 = vadd.f32 0.0, %v2964
    %v2966 = vpop.f32.mrf.mxu0
    %v2967 = vadd.f32 0.0, %v2966
    %2968 = vmatprep.mubr.bf16.mxu0 %v1977
    %2969 = vmatmul.mubr.bf16.gmra.mxu0 %v1976
    %v2970 = vpop.f32.mrf.mxu0
    %v2971 = vadd.f32 0.0, %v2970
    %v2972 = vpop.f32.mrf.mxu0
    %v2973 = vadd.f32 0.0, %v2972
    %v2974 = vpop.f32.mrf.mxu0
    %v2975 = vadd.f32 0.0, %v2974
    %v2976 = vpop.f32.mrf.mxu0
    %v2977 = vadd.f32 0.0, %v2976
    %2978 = vmatprep.mubr.bf16.mxu0 %v1979
    %2979 = vmatmul.mubr.bf16.gmra.mxu0 %v1978
    %v2980 = vpop.f32.mrf.mxu0
    %v2981 = vadd.f32 0.0, %v2980
    %v2982 = vpop.f32.mrf.mxu0
    %v2983 = vadd.f32 0.0, %v2982
    %v2984 = vpop.f32.mrf.mxu0
    %v2985 = vadd.f32 0.0, %v2984
    %v2986 = vpop.f32.mrf.mxu0
    %v2987 = vadd.f32 0.0, %v2986
    %2988 = vmatprep.mubr.bf16.mxu0 %v1981
    %2989 = vmatmul.mubr.bf16.gmra.mxu0 %v1980
    %v2990 = vpop.f32.mrf.mxu0
    %v2991 = vadd.f32 0.0, %v2990
    %v2992 = vpop.f32.mrf.mxu0
    %v2993 = vadd.f32 0.0, %v2992
    %v2994 = vpop.f32.mrf.mxu0
    %v2995 = vadd.f32 0.0, %v2994
    %v2996 = vpop.f32.mrf.mxu0
    %v2997 = vadd.f32 0.0, %v2996
    %2998 = vmatprep.mubr.bf16.mxu0 %v1983
    %2999 = vmatmul.mubr.bf16.gmra.mxu0 %v1982
    %v3000 = vpop.f32.mrf.mxu0
    %v3001 = vadd.f32 0.0, %v3000
    %v3002 = vpop.f32.mrf.mxu0
    %v3003 = vadd.f32 0.0, %v3002
    %v3004 = vpop.f32.mrf.mxu0
    %v3005 = vadd.f32 0.0, %v3004
    %v3006 = vpop.f32.mrf.mxu0
    %v3007 = vadd.f32 0.0, %v3006
    %3008 = vmatprep.mubr.bf16.mxu0 %v1985
    %3009 = vmatmul.mubr.bf16.gmra.mxu0 %v1984
    %v3010 = vpop.f32.mrf.mxu0
    %v3011 = vadd.f32 0.0, %v3010
    %v3012 = vpop.f32.mrf.mxu0
    %v3013 = vadd.f32 0.0, %v3012
    %v3014 = vpop.f32.mrf.mxu0
    %v3015 = vadd.f32 0.0, %v3014
    %v3016 = vpop.f32.mrf.mxu0
    %v3017 = vadd.f32 0.0, %v3016
    %3018 = vmatprep.mubr.bf16.mxu0 %v1987
    %3019 = vmatmul.mubr.bf16.gmra.mxu0 %v1986
    %v3020 = vpop.f32.mrf.mxu0
    %v3021 = vadd.f32 0.0, %v3020
    %v3022 = vpop.f32.mrf.mxu0
    %v3023 = vadd.f32 0.0, %v3022
    %v3024 = vpop.f32.mrf.mxu0
    %v3025 = vadd.f32 0.0, %v3024
    %v3026 = vpop.f32.mrf.mxu0
    %v3027 = vadd.f32 0.0, %v3026
    %3028 = vmatprep.mubr.bf16.mxu0 %v1989
    %3029 = vmatmul.mubr.bf16.gmra.mxu0 %v1988
    %v3030 = vpop.f32.mrf.mxu0
    %v3031 = vadd.f32 0.0, %v3030
    %v3032 = vpop.f32.mrf.mxu0
    %v3033 = vadd.f32 0.0, %v3032
    %v3034 = vpop.f32.mrf.mxu0
    %v3035 = vadd.f32 0.0, %v3034
    %v3036 = vpop.f32.mrf.mxu0
    %v3037 = vadd.f32 0.0, %v3036
    %3038 = vmatprep.mubr.bf16.mxu0 %v1991
    %3039 = vmatmul.mubr.bf16.gmra.mxu0 %v1990
    %v3040 = vpop.f32.mrf.mxu0
    %v3041 = vadd.f32 0.0, %v3040
    %v3042 = vpop.f32.mrf.mxu0
    %v3043 = vadd.f32 0.0, %v3042
    %v3044 = vpop.f32.mrf.mxu0
    %v3045 = vadd.f32 0.0, %v3044
    %v3046 = vpop.f32.mrf.mxu0
    %v3047 = vadd.f32 0.0, %v3046
    %3048 = vmatprep.mubr.bf16.mxu0 %v1993
    %3049 = vmatmul.mubr.bf16.gmra.mxu0 %v1992
    %v3050 = vpop.f32.mrf.mxu0
    %v3051 = vadd.f32 0.0, %v3050
    %v3052 = vpop.f32.mrf.mxu0
    %v3053 = vadd.f32 0.0, %v3052
    %v3054 = vpop.f32.mrf.mxu0
    %v3055 = vadd.f32 0.0, %v3054
    %v3056 = vpop.f32.mrf.mxu0
    %v3057 = vadd.f32 0.0, %v3056
    %3058 = vmatprep.mubr.bf16.mxu0 %v1995
    %3059 = vmatmul.mubr.bf16.gmra.mxu0 %v1994
    %v3060 = vpop.f32.mrf.mxu0
    %v3061 = vadd.f32 0.0, %v3060
    %v3062 = vpop.f32.mrf.mxu0
    %v3063 = vadd.f32 0.0, %v3062
    %v3064 = vpop.f32.mrf.mxu0
    %v3065 = vadd.f32 0.0, %v3064
    %v3066 = vpop.f32.mrf.mxu0
    %v3067 = vadd.f32 0.0, %v3066
    %3068 = vmatprep.mubr.bf16.mxu0 %v1997
    %3069 = vmatmul.mubr.bf16.gmra.mxu0 %v1996
    %v3070 = vpop.f32.mrf.mxu0
    %v3071 = vadd.f32 0.0, %v3070
    %v3072 = vpop.f32.mrf.mxu0
    %v3073 = vadd.f32 0.0, %v3072
    %v3074 = vpop.f32.mrf.mxu0
    %v3075 = vadd.f32 0.0, %v3074
    %v3076 = vpop.f32.mrf.mxu0
    %v3077 = vadd.f32 0.0, %v3076
    %3078 = vmatprep.mubr.bf16.mxu0 %v1999
    %3079 = vmatmul.mubr.bf16.gmra.mxu0 %v1998
    %v3080 = vpop.f32.mrf.mxu0
    %v3081 = vadd.f32 0.0, %v3080
    %v3082 = vpop.f32.mrf.mxu0
    %v3083 = vadd.f32 0.0, %v3082
    %v3084 = vpop.f32.mrf.mxu0
    %v3085 = vadd.f32 0.0, %v3084
    %v3086 = vpop.f32.mrf.mxu0
    %v3087 = vadd.f32 0.0, %v3086
    %3088 = vmatprep.mubr.bf16.mxu0 %v2001
    %3089 = vmatmul.mubr.bf16.gmra.mxu0 %v2000
    %v3090 = vpop.f32.mrf.mxu0
    %v3091 = vadd.f32 0.0, %v3090
    %v3092 = vpop.f32.mrf.mxu0
    %v3093 = vadd.f32 0.0, %v3092
    %v3094 = vpop.f32.mrf.mxu0
    %v3095 = vadd.f32 0.0, %v3094
    %v3096 = vpop.f32.mrf.mxu0
    %v3097 = vadd.f32 0.0, %v3096
    %3098 = vmatprep.mubr.bf16.mxu0 %v2003
    %3099 = vmatmul.mubr.bf16.gmra.mxu0 %v2002
    %v3100 = vpop.f32.mrf.mxu0
    %v3101 = vadd.f32 0.0, %v3100
    %v3102 = vpop.f32.mrf.mxu0
    %v3103 = vadd.f32 0.0, %v3102
    %v3104 = vpop.f32.mrf.mxu0
    %v3105 = vadd.f32 0.0, %v3104
    %v3106 = vpop.f32.mrf.mxu0
    %v3107 = vadd.f32 0.0, %v3106
    %3108 = vmatprep.mubr.bf16.mxu0 %v2005
    %3109 = vmatmul.mubr.bf16.gmra.mxu0 %v2004
    %v3110 = vpop.f32.mrf.mxu0
    %v3111 = vadd.f32 0.0, %v3110
    %v3112 = vpop.f32.mrf.mxu0
    %v3113 = vadd.f32 0.0, %v3112
    %v3114 = vpop.f32.mrf.mxu0
    %v3115 = vadd.f32 0.0, %v3114
    %v3116 = vpop.f32.mrf.mxu0
    %v3117 = vadd.f32 0.0, %v3116
    %3118 = vmatprep.mubr.bf16.mxu0 %v2007
    %3119 = vmatmul.mubr.bf16.gmra.mxu0 %v2006
    %v3120 = vpop.f32.mrf.mxu0
    %v3121 = vadd.f32 0.0, %v3120
    %v3122 = vpop.f32.mrf.mxu0
    %v3123 = vadd.f32 0.0, %v3122
    %v3124 = vpop.f32.mrf.mxu0
    %v3125 = vadd.f32 0.0, %v3124
    %v3126 = vpop.f32.mrf.mxu0
    %v3127 = vadd.f32 0.0, %v3126
    %3128 = vdwg.mxu0
    %3129 = vmatprep.subr.bf16.mxu0 %v2579
    %3130 = vmatpush1.bf16.msra.mxu0 %v2578
    %3131 = vmatprep.subr.bf16.mxu0 %v2571
    %3132 = vmatpush1.bf16.msra.mxu0 %v2570
    %3133 = vmatprep.subr.bf16.mxu0 %v2563
    %3134 = vmatpush1.bf16.msra.mxu0 %v2562
    %3135 = vmatprep.subr.bf16.mxu0 %v2555
    %3136 = vmatpush1.bf16.msra.mxu0 %v2554
    %3137 = vmatprep.subr.bf16.mxu0 %v2547
    %3138 = vmatpush1.bf16.msra.mxu0 %v2546
    %3139 = vmatprep.subr.bf16.mxu0 %v2539
    %3140 = vmatpush1.bf16.msra.mxu0 %v2538
    %3141 = vmatprep.subr.bf16.mxu0 %v2531
    %3142 = vmatpush1.bf16.msra.mxu0 %v2530
    %3143 = vmatprep.subr.bf16.mxu0 %v2523
    %3144 = vmatpush1.bf16.msra.mxu0 %v2522
    %3145 = vmatprep.subr.bf16.mxu0 %v2643
    %3146 = vmatpush2.bf16.msra.mxu0 %v2642
    %3147 = vmatprep.subr.bf16.mxu0 %v2635
    %3148 = vmatpush2.bf16.msra.mxu0 %v2634
    %3149 = vmatprep.subr.bf16.mxu0 %v2627
    %3150 = vmatpush2.bf16.msra.mxu0 %v2626
    %3151 = vmatprep.subr.bf16.mxu0 %v2619
    %3152 = vmatpush2.bf16.msra.mxu0 %v2618
    %3153 = vmatprep.subr.bf16.mxu0 %v2611
    %3154 = vmatpush2.bf16.msra.mxu0 %v2610
    %3155 = vmatprep.subr.bf16.mxu0 %v2603
    %3156 = vmatpush2.bf16.msra.mxu0 %v2602
    %3157 = vmatprep.subr.bf16.mxu0 %v2595
    %3158 = vmatpush2.bf16.msra.mxu0 %v2594
    %3159 = vmatprep.subr.bf16.mxu0 %v2587
    %3160 = vmatpush2.bf16.msra.mxu0 %v2586
    %3161 = vmatprep.mubr.bf16.mxu0 %v1945
    %3162 = vmatmul.mubr.bf16.gmra.mxu0 %v1944
    %v3163 = vpop.f32.mrf.mxu0
    %v3164 = vadd.f32 0.0, %v3163
    %v3165 = vpop.f32.mrf.mxu0
    %v3166 = vadd.f32 0.0, %v3165
    %v3167 = vpop.f32.mrf.mxu0
    %v3168 = vadd.f32 0.0, %v3167
    %v3169 = vpop.f32.mrf.mxu0
    %v3170 = vadd.f32 0.0, %v3169
    %3171 = vmatprep.mubr.bf16.mxu0 %v1947
    %3172 = vmatmul.mubr.bf16.gmra.mxu0 %v1946
    %v3173 = vpop.f32.mrf.mxu0
    %v3174 = vadd.f32 0.0, %v3173
    %v3175 = vpop.f32.mrf.mxu0
    %v3176 = vadd.f32 0.0, %v3175
    %v3177 = vpop.f32.mrf.mxu0
    %v3178 = vadd.f32 0.0, %v3177
    %v3179 = vpop.f32.mrf.mxu0
    %v3180 = vadd.f32 0.0, %v3179
    %3181 = vmatprep.mubr.bf16.mxu0 %v1949
    %3182 = vmatmul.mubr.bf16.gmra.mxu0 %v1948
    %v3183 = vpop.f32.mrf.mxu0
    %v3184 = vadd.f32 0.0, %v3183
    %v3185 = vpop.f32.mrf.mxu0
    %v3186 = vadd.f32 0.0, %v3185
    %v3187 = vpop.f32.mrf.mxu0
    %v3188 = vadd.f32 0.0, %v3187
    %v3189 = vpop.f32.mrf.mxu0
    %v3190 = vadd.f32 0.0, %v3189
    %3191 = vmatprep.mubr.bf16.mxu0 %v1951
    %3192 = vmatmul.mubr.bf16.gmra.mxu0 %v1950
    %v3193 = vpop.f32.mrf.mxu0
    %v3194 = vadd.f32 0.0, %v3193
    %v3195 = vpop.f32.mrf.mxu0
    %v3196 = vadd.f32 0.0, %v3195
    %v3197 = vpop.f32.mrf.mxu0
    %v3198 = vadd.f32 0.0, %v3197
    %v3199 = vpop.f32.mrf.mxu0
    %v3200 = vadd.f32 0.0, %v3199
    %3201 = vmatprep.mubr.bf16.mxu0 %v1953
    %3202 = vmatmul.mubr.bf16.gmra.mxu0 %v1952
    %v3203 = vpop.f32.mrf.mxu0
    %v3204 = vadd.f32 0.0, %v3203
    %v3205 = vpop.f32.mrf.mxu0
    %v3206 = vadd.f32 0.0, %v3205
    %v3207 = vpop.f32.mrf.mxu0
    %v3208 = vadd.f32 0.0, %v3207
    %v3209 = vpop.f32.mrf.mxu0
    %v3210 = vadd.f32 0.0, %v3209
    %3211 = vmatprep.mubr.bf16.mxu0 %v1955
    %3212 = vmatmul.mubr.bf16.gmra.mxu0 %v1954
    %v3213 = vpop.f32.mrf.mxu0
    %v3214 = vadd.f32 0.0, %v3213
    %v3215 = vpop.f32.mrf.mxu0
    %v3216 = vadd.f32 0.0, %v3215
    %v3217 = vpop.f32.mrf.mxu0
    %v3218 = vadd.f32 0.0, %v3217
    %v3219 = vpop.f32.mrf.mxu0
    %v3220 = vadd.f32 0.0, %v3219
    %3221 = vmatprep.mubr.bf16.mxu0 %v1957
    %3222 = vmatmul.mubr.bf16.gmra.mxu0 %v1956
    %v3223 = vpop.f32.mrf.mxu0
    %v3224 = vadd.f32 0.0, %v3223
    %v3225 = vpop.f32.mrf.mxu0
    %v3226 = vadd.f32 0.0, %v3225
    %v3227 = vpop.f32.mrf.mxu0
    %v3228 = vadd.f32 0.0, %v3227
    %v3229 = vpop.f32.mrf.mxu0
    %v3230 = vadd.f32 0.0, %v3229
    %3231 = vmatprep.mubr.bf16.mxu0 %v1959
    %3232 = vmatmul.mubr.bf16.gmra.mxu0 %v1958
    %v3233 = vpop.f32.mrf.mxu0
    %v3234 = vadd.f32 0.0, %v3233
    %v3235 = vpop.f32.mrf.mxu0
    %v3236 = vadd.f32 0.0, %v3235
    %v3237 = vpop.f32.mrf.mxu0
    %v3238 = vadd.f32 0.0, %v3237
    %v3239 = vpop.f32.mrf.mxu0
    %v3240 = vadd.f32 0.0, %v3239
    %3241 = vmatprep.mubr.bf16.mxu0 %v1961
    %3242 = vmatmul.mubr.bf16.gmra.mxu0 %v1960
    %v3243 = vpop.f32.mrf.mxu0
    %v3244 = vadd.f32 0.0, %v3243
    %v3245 = vpop.f32.mrf.mxu0
    %v3246 = vadd.f32 0.0, %v3245
    %v3247 = vpop.f32.mrf.mxu0
    %v3248 = vadd.f32 0.0, %v3247
    %v3249 = vpop.f32.mrf.mxu0
    %v3250 = vadd.f32 0.0, %v3249
    %3251 = vmatprep.mubr.bf16.mxu0 %v1963
    %3252 = vmatmul.mubr.bf16.gmra.mxu0 %v1962
    %v3253 = vpop.f32.mrf.mxu0
    %v3254 = vadd.f32 0.0, %v3253
    %v3255 = vpop.f32.mrf.mxu0
    %v3256 = vadd.f32 0.0, %v3255
    %v3257 = vpop.f32.mrf.mxu0
    %v3258 = vadd.f32 0.0, %v3257
    %v3259 = vpop.f32.mrf.mxu0
    %v3260 = vadd.f32 0.0, %v3259
    %3261 = vmatprep.mubr.bf16.mxu0 %v1965
    %3262 = vmatmul.mubr.bf16.gmra.mxu0 %v1964
    %v3263 = vpop.f32.mrf.mxu0
    %v3264 = vadd.f32 0.0, %v3263
    %v3265 = vpop.f32.mrf.mxu0
    %v3266 = vadd.f32 0.0, %v3265
    %v3267 = vpop.f32.mrf.mxu0
    %v3268 = vadd.f32 0.0, %v3267
    %v3269 = vpop.f32.mrf.mxu0
    %v3270 = vadd.f32 0.0, %v3269
    %3271 = vmatprep.mubr.bf16.mxu0 %v1967
    %3272 = vmatmul.mubr.bf16.gmra.mxu0 %v1966
    %v3273 = vpop.f32.mrf.mxu0
    %v3274 = vadd.f32 0.0, %v3273
    %v3275 = vpop.f32.mrf.mxu0
    %v3276 = vadd.f32 0.0, %v3275
    %v3277 = vpop.f32.mrf.mxu0
    %v3278 = vadd.f32 0.0, %v3277
    %v3279 = vpop.f32.mrf.mxu0
    %v3280 = vadd.f32 0.0, %v3279
    %3281 = vmatprep.mubr.bf16.mxu0 %v1969
    %3282 = vmatmul.mubr.bf16.gmra.mxu0 %v1968
    %v3283 = vpop.f32.mrf.mxu0
    %v3284 = vadd.f32 0.0, %v3283
    %v3285 = vpop.f32.mrf.mxu0
    %v3286 = vadd.f32 0.0, %v3285
    %v3287 = vpop.f32.mrf.mxu0
    %v3288 = vadd.f32 0.0, %v3287
    %v3289 = vpop.f32.mrf.mxu0
    %v3290 = vadd.f32 0.0, %v3289
    %3291 = vmatprep.mubr.bf16.mxu0 %v1971
    %3292 = vmatmul.mubr.bf16.gmra.mxu0 %v1970
    %v3293 = vpop.f32.mrf.mxu0
    %v3294 = vadd.f32 0.0, %v3293
    %v3295 = vpop.f32.mrf.mxu0
    %v3296 = vadd.f32 0.0, %v3295
    %v3297 = vpop.f32.mrf.mxu0
    %v3298 = vadd.f32 0.0, %v3297
    %v3299 = vpop.f32.mrf.mxu0
    %v3300 = vadd.f32 0.0, %v3299
    %3301 = vmatprep.mubr.bf16.mxu0 %v1973
    %3302 = vmatmul.mubr.bf16.gmra.mxu0 %v1972
    %v3303 = vpop.f32.mrf.mxu0
    %v3304 = vadd.f32 0.0, %v3303
    %v3305 = vpop.f32.mrf.mxu0
    %v3306 = vadd.f32 0.0, %v3305
    %v3307 = vpop.f32.mrf.mxu0
    %v3308 = vadd.f32 0.0, %v3307
    %v3309 = vpop.f32.mrf.mxu0
    %v3310 = vadd.f32 0.0, %v3309
    %3311 = vmatprep.mubr.bf16.mxu0 %v1975
    %3312 = vmatmul.mubr.bf16.gmra.mxu0 %v1974
    %v3313 = vpop.f32.mrf.mxu0
    %v3314 = vadd.f32 0.0, %v3313
    %v3315 = vpop.f32.mrf.mxu0
    %v3316 = vadd.f32 0.0, %v3315
    %v3317 = vpop.f32.mrf.mxu0
    %v3318 = vadd.f32 0.0, %v3317
    %v3319 = vpop.f32.mrf.mxu0
    %v3320 = vadd.f32 0.0, %v3319
    %3321 = vmatprep.mubr.bf16.mxu0 %v1977
    %3322 = vmatmul.mubr.bf16.gmra.mxu0 %v1976
    %v3323 = vpop.f32.mrf.mxu0
    %v3324 = vadd.f32 0.0, %v3323
    %v3325 = vpop.f32.mrf.mxu0
    %v3326 = vadd.f32 0.0, %v3325
    %v3327 = vpop.f32.mrf.mxu0
    %v3328 = vadd.f32 0.0, %v3327
    %v3329 = vpop.f32.mrf.mxu0
    %v3330 = vadd.f32 0.0, %v3329
    %3331 = vmatprep.mubr.bf16.mxu0 %v1979
    %3332 = vmatmul.mubr.bf16.gmra.mxu0 %v1978
    %v3333 = vpop.f32.mrf.mxu0
    %v3334 = vadd.f32 0.0, %v3333
    %v3335 = vpop.f32.mrf.mxu0
    %v3336 = vadd.f32 0.0, %v3335
    %v3337 = vpop.f32.mrf.mxu0
    %v3338 = vadd.f32 0.0, %v3337
    %v3339 = vpop.f32.mrf.mxu0
    %v3340 = vadd.f32 0.0, %v3339
    %3341 = vmatprep.mubr.bf16.mxu0 %v1981
    %3342 = vmatmul.mubr.bf16.gmra.mxu0 %v1980
    %v3343 = vpop.f32.mrf.mxu0
    %v3344 = vadd.f32 0.0, %v3343
    %v3345 = vpop.f32.mrf.mxu0
    %v3346 = vadd.f32 0.0, %v3345
    %v3347 = vpop.f32.mrf.mxu0
    %v3348 = vadd.f32 0.0, %v3347
    %v3349 = vpop.f32.mrf.mxu0
    %v3350 = vadd.f32 0.0, %v3349
    %3351 = vmatprep.mubr.bf16.mxu0 %v1983
    %3352 = vmatmul.mubr.bf16.gmra.mxu0 %v1982
    %v3353 = vpop.f32.mrf.mxu0
    %v3354 = vadd.f32 0.0, %v3353
    %v3355 = vpop.f32.mrf.mxu0
    %v3356 = vadd.f32 0.0, %v3355
    %v3357 = vpop.f32.mrf.mxu0
    %v3358 = vadd.f32 0.0, %v3357
    %v3359 = vpop.f32.mrf.mxu0
    %v3360 = vadd.f32 0.0, %v3359
    %3361 = vmatprep.mubr.bf16.mxu0 %v1985
    %3362 = vmatmul.mubr.bf16.gmra.mxu0 %v1984
    %v3363 = vpop.f32.mrf.mxu0
    %v3364 = vadd.f32 0.0, %v3363
    %v3365 = vpop.f32.mrf.mxu0
    %v3366 = vadd.f32 0.0, %v3365
    %v3367 = vpop.f32.mrf.mxu0
    %v3368 = vadd.f32 0.0, %v3367
    %v3369 = vpop.f32.mrf.mxu0
    %v3370 = vadd.f32 0.0, %v3369
    %3371 = vmatprep.mubr.bf16.mxu0 %v1987
    %3372 = vmatmul.mubr.bf16.gmra.mxu0 %v1986
    %v3373 = vpop.f32.mrf.mxu0
    %v3374 = vadd.f32 0.0, %v3373
    %v3375 = vpop.f32.mrf.mxu0
    %v3376 = vadd.f32 0.0, %v3375
    %v3377 = vpop.f32.mrf.mxu0
    %v3378 = vadd.f32 0.0, %v3377
    %v3379 = vpop.f32.mrf.mxu0
    %v3380 = vadd.f32 0.0, %v3379
    %3381 = vmatprep.mubr.bf16.mxu0 %v1989
    %3382 = vmatmul.mubr.bf16.gmra.mxu0 %v1988
    %v3383 = vpop.f32.mrf.mxu0
    %v3384 = vadd.f32 0.0, %v3383
    %v3385 = vpop.f32.mrf.mxu0
    %v3386 = vadd.f32 0.0, %v3385
    %v3387 = vpop.f32.mrf.mxu0
    %v3388 = vadd.f32 0.0, %v3387
    %v3389 = vpop.f32.mrf.mxu0
    %v3390 = vadd.f32 0.0, %v3389
    %3391 = vmatprep.mubr.bf16.mxu0 %v1991
    %3392 = vmatmul.mubr.bf16.gmra.mxu0 %v1990
    %v3393 = vpop.f32.mrf.mxu0
    %v3394 = vadd.f32 0.0, %v3393
    %v3395 = vpop.f32.mrf.mxu0
    %v3396 = vadd.f32 0.0, %v3395
    %v3397 = vpop.f32.mrf.mxu0
    %v3398 = vadd.f32 0.0, %v3397
    %v3399 = vpop.f32.mrf.mxu0
    %v3400 = vadd.f32 0.0, %v3399
    %3401 = vmatprep.mubr.bf16.mxu0 %v1993
    %3402 = vmatmul.mubr.bf16.gmra.mxu0 %v1992
    %v3403 = vpop.f32.mrf.mxu0
    %v3404 = vadd.f32 0.0, %v3403
    %v3405 = vpop.f32.mrf.mxu0
    %v3406 = vadd.f32 0.0, %v3405
    %v3407 = vpop.f32.mrf.mxu0
    %v3408 = vadd.f32 0.0, %v3407
    %v3409 = vpop.f32.mrf.mxu0
    %v3410 = vadd.f32 0.0, %v3409
    %3411 = vmatprep.mubr.bf16.mxu0 %v1995
    %3412 = vmatmul.mubr.bf16.gmra.mxu0 %v1994
    %v3413 = vpop.f32.mrf.mxu0
    %v3414 = vadd.f32 0.0, %v3413
    %v3415 = vpop.f32.mrf.mxu0
    %v3416 = vadd.f32 0.0, %v3415
    %v3417 = vpop.f32.mrf.mxu0
    %v3418 = vadd.f32 0.0, %v3417
    %v3419 = vpop.f32.mrf.mxu0
    %v3420 = vadd.f32 0.0, %v3419
    %3421 = vmatprep.mubr.bf16.mxu0 %v1997
    %3422 = vmatmul.mubr.bf16.gmra.mxu0 %v1996
    %v3423 = vpop.f32.mrf.mxu0
    %v3424 = vadd.f32 0.0, %v3423
    %v3425 = vpop.f32.mrf.mxu0
    %v3426 = vadd.f32 0.0, %v3425
    %v3427 = vpop.f32.mrf.mxu0
    %v3428 = vadd.f32 0.0, %v3427
    %v3429 = vpop.f32.mrf.mxu0
    %v3430 = vadd.f32 0.0, %v3429
    %3431 = vmatprep.mubr.bf16.mxu0 %v1999
    %3432 = vmatmul.mubr.bf16.gmra.mxu0 %v1998
    %v3433 = vpop.f32.mrf.mxu0
    %v3434 = vadd.f32 0.0, %v3433
    %v3435 = vpop.f32.mrf.mxu0
    %v3436 = vadd.f32 0.0, %v3435
    %v3437 = vpop.f32.mrf.mxu0
    %v3438 = vadd.f32 0.0, %v3437
    %v3439 = vpop.f32.mrf.mxu0
    %v3440 = vadd.f32 0.0, %v3439
    %3441 = vmatprep.mubr.bf16.mxu0 %v2001
    %3442 = vmatmul.mubr.bf16.gmra.mxu0 %v2000
    %v3443 = vpop.f32.mrf.mxu0
    %v3444 = vadd.f32 0.0, %v3443
    %v3445 = vpop.f32.mrf.mxu0
    %v3446 = vadd.f32 0.0, %v3445
    %v3447 = vpop.f32.mrf.mxu0
    %v3448 = vadd.f32 0.0, %v3447
    %v3449 = vpop.f32.mrf.mxu0
    %v3450 = vadd.f32 0.0, %v3449
    %3451 = vmatprep.mubr.bf16.mxu0 %v2003
    %3452 = vmatmul.mubr.bf16.gmra.mxu0 %v2002
    %v3453 = vpop.f32.mrf.mxu0
    %v3454 = vadd.f32 0.0, %v3453
    %v3455 = vpop.f32.mrf.mxu0
    %v3456 = vadd.f32 0.0, %v3455
    %v3457 = vpop.f32.mrf.mxu0
    %v3458 = vadd.f32 0.0, %v3457
    %v3459 = vpop.f32.mrf.mxu0
    %v3460 = vadd.f32 0.0, %v3459
    %3461 = vmatprep.mubr.bf16.mxu0 %v2005
    %3462 = vmatmul.mubr.bf16.gmra.mxu0 %v2004
    %v3463 = vpop.f32.mrf.mxu0
    %v3464 = vadd.f32 0.0, %v3463
    %v3465 = vpop.f32.mrf.mxu0
    %v3466 = vadd.f32 0.0, %v3465
    %v3467 = vpop.f32.mrf.mxu0
    %v3468 = vadd.f32 0.0, %v3467
    %v3469 = vpop.f32.mrf.mxu0
    %v3470 = vadd.f32 0.0, %v3469
    %3471 = vmatprep.mubr.bf16.mxu0 %v2007
    %3472 = vmatmul.mubr.bf16.gmra.mxu0 %v2006
    %v3473 = vpop.f32.mrf.mxu0
    %v3474 = vadd.f32 0.0, %v3473
    %v3475 = vpop.f32.mrf.mxu0
    %v3476 = vadd.f32 0.0, %v3475
    %v3477 = vpop.f32.mrf.mxu0
    %v3478 = vadd.f32 0.0, %v3477
    %v3479 = vpop.f32.mrf.mxu0
    %v3480 = vadd.f32 0.0, %v3479
    %3481 = vdwg.mxu0
    %3482 = vmatprep.subr.bf16.mxu0 %v2581
    %3483 = vmatpush1.bf16.msra.mxu0 %v2580
    %3484 = vmatprep.subr.bf16.mxu0 %v2573
    %3485 = vmatpush1.bf16.msra.mxu0 %v2572
    %3486 = vmatprep.subr.bf16.mxu0 %v2565
    %3487 = vmatpush1.bf16.msra.mxu0 %v2564
    %3488 = vmatprep.subr.bf16.mxu0 %v2557
    %3489 = vmatpush1.bf16.msra.mxu0 %v2556
    %3490 = vmatprep.subr.bf16.mxu0 %v2549
    %3491 = vmatpush1.bf16.msra.mxu0 %v2548
    %3492 = vmatprep.subr.bf16.mxu0 %v2541
    %3493 = vmatpush1.bf16.msra.mxu0 %v2540
    %3494 = vmatprep.subr.bf16.mxu0 %v2533
    %3495 = vmatpush1.bf16.msra.mxu0 %v2532
    %3496 = vmatprep.subr.bf16.mxu0 %v2525
    %3497 = vmatpush1.bf16.msra.mxu0 %v2524
    %3498 = vmatprep.subr.bf16.mxu0 %v2645
    %3499 = vmatpush2.bf16.msra.mxu0 %v2644
    %3500 = vmatprep.subr.bf16.mxu0 %v2637
    %3501 = vmatpush2.bf16.msra.mxu0 %v2636
    %3502 = vmatprep.subr.bf16.mxu0 %v2629
    %3503 = vmatpush2.bf16.msra.mxu0 %v2628
    %3504 = vmatprep.subr.bf16.mxu0 %v2621
    %3505 = vmatpush2.bf16.msra.mxu0 %v2620
    %3506 = vmatprep.subr.bf16.mxu0 %v2613
    %3507 = vmatpush2.bf16.msra.mxu0 %v2612
    %3508 = vmatprep.subr.bf16.mxu0 %v2605
    %3509 = vmatpush2.bf16.msra.mxu0 %v2604
    %3510 = vmatprep.subr.bf16.mxu0 %v2597
    %3511 = vmatpush2.bf16.msra.mxu0 %v2596
    %3512 = vmatprep.subr.bf16.mxu0 %v2589
    %3513 = vmatpush2.bf16.msra.mxu0 %v2588
    %3514 = vmatprep.mubr.bf16.mxu0 %v1945
    %3515 = vmatmul.mubr.bf16.gmra.mxu0 %v1944
    %v3516 = vpop.f32.mrf.mxu0
    %v3517 = vadd.f32 0.0, %v3516
    %v3518 = vpop.f32.mrf.mxu0
    %v3519 = vadd.f32 0.0, %v3518
    %v3520 = vpop.f32.mrf.mxu0
    %v3521 = vadd.f32 0.0, %v3520
    %v3522 = vpop.f32.mrf.mxu0
    %v3523 = vadd.f32 0.0, %v3522
    %3524 = vmatprep.mubr.bf16.mxu0 %v1947
    %3525 = vmatmul.mubr.bf16.gmra.mxu0 %v1946
    %v3526 = vpop.f32.mrf.mxu0
    %v3527 = vadd.f32 0.0, %v3526
    %v3528 = vpop.f32.mrf.mxu0
    %v3529 = vadd.f32 0.0, %v3528
    %v3530 = vpop.f32.mrf.mxu0
    %v3531 = vadd.f32 0.0, %v3530
    %v3532 = vpop.f32.mrf.mxu0
    %v3533 = vadd.f32 0.0, %v3532
    %3534 = vmatprep.mubr.bf16.mxu0 %v1949
    %3535 = vmatmul.mubr.bf16.gmra.mxu0 %v1948
    %v3536 = vpop.f32.mrf.mxu0
    %v3537 = vadd.f32 0.0, %v3536
    %v3538 = vpop.f32.mrf.mxu0
    %v3539 = vadd.f32 0.0, %v3538
    %v3540 = vpop.f32.mrf.mxu0
    %v3541 = vadd.f32 0.0, %v3540
    %v3542 = vpop.f32.mrf.mxu0
    %v3543 = vadd.f32 0.0, %v3542
    %3544 = vmatprep.mubr.bf16.mxu0 %v1951
    %3545 = vmatmul.mubr.bf16.gmra.mxu0 %v1950
    %v3546 = vpop.f32.mrf.mxu0
    %v3547 = vadd.f32 0.0, %v3546
    %v3548 = vpop.f32.mrf.mxu0
    %v3549 = vadd.f32 0.0, %v3548
    %v3550 = vpop.f32.mrf.mxu0
    %v3551 = vadd.f32 0.0, %v3550
    %v3552 = vpop.f32.mrf.mxu0
    %v3553 = vadd.f32 0.0, %v3552
    %3554 = vmatprep.mubr.bf16.mxu0 %v1953
    %3555 = vmatmul.mubr.bf16.gmra.mxu0 %v1952
    %v3556 = vpop.f32.mrf.mxu0
    %v3557 = vadd.f32 0.0, %v3556
    %v3558 = vpop.f32.mrf.mxu0
    %v3559 = vadd.f32 0.0, %v3558
    %v3560 = vpop.f32.mrf.mxu0
    %v3561 = vadd.f32 0.0, %v3560
    %v3562 = vpop.f32.mrf.mxu0
    %v3563 = vadd.f32 0.0, %v3562
    %3564 = vmatprep.mubr.bf16.mxu0 %v1955
    %3565 = vmatmul.mubr.bf16.gmra.mxu0 %v1954
    %v3566 = vpop.f32.mrf.mxu0
    %v3567 = vadd.f32 0.0, %v3566
    %v3568 = vpop.f32.mrf.mxu0
    %v3569 = vadd.f32 0.0, %v3568
    %v3570 = vpop.f32.mrf.mxu0
    %v3571 = vadd.f32 0.0, %v3570
    %v3572 = vpop.f32.mrf.mxu0
    %v3573 = vadd.f32 0.0, %v3572
    %3574 = vmatprep.mubr.bf16.mxu0 %v1957
    %3575 = vmatmul.mubr.bf16.gmra.mxu0 %v1956
    %v3576 = vpop.f32.mrf.mxu0
    %v3577 = vadd.f32 0.0, %v3576
    %v3578 = vpop.f32.mrf.mxu0
    %v3579 = vadd.f32 0.0, %v3578
    %v3580 = vpop.f32.mrf.mxu0
    %v3581 = vadd.f32 0.0, %v3580
    %v3582 = vpop.f32.mrf.mxu0
    %v3583 = vadd.f32 0.0, %v3582
    %3584 = vmatprep.mubr.bf16.mxu0 %v1959
    %3585 = vmatmul.mubr.bf16.gmra.mxu0 %v1958
    %v3586 = vpop.f32.mrf.mxu0
    %v3587 = vadd.f32 0.0, %v3586
    %v3588 = vpop.f32.mrf.mxu0
    %v3589 = vadd.f32 0.0, %v3588
    %v3590 = vpop.f32.mrf.mxu0
    %v3591 = vadd.f32 0.0, %v3590
    %v3592 = vpop.f32.mrf.mxu0
    %v3593 = vadd.f32 0.0, %v3592
    %3594 = vmatprep.mubr.bf16.mxu0 %v1961
    %3595 = vmatmul.mubr.bf16.gmra.mxu0 %v1960
    %v3596 = vpop.f32.mrf.mxu0
    %v3597 = vadd.f32 0.0, %v3596
    %v3598 = vpop.f32.mrf.mxu0
    %v3599 = vadd.f32 0.0, %v3598
    %v3600 = vpop.f32.mrf.mxu0
    %v3601 = vadd.f32 0.0, %v3600
    %v3602 = vpop.f32.mrf.mxu0
    %v3603 = vadd.f32 0.0, %v3602
    %3604 = vmatprep.mubr.bf16.mxu0 %v1963
    %3605 = vmatmul.mubr.bf16.gmra.mxu0 %v1962
    %v3606 = vpop.f32.mrf.mxu0
    %v3607 = vadd.f32 0.0, %v3606
    %v3608 = vpop.f32.mrf.mxu0
    %v3609 = vadd.f32 0.0, %v3608
    %v3610 = vpop.f32.mrf.mxu0
    %v3611 = vadd.f32 0.0, %v3610
    %v3612 = vpop.f32.mrf.mxu0
    %v3613 = vadd.f32 0.0, %v3612
    %3614 = vmatprep.mubr.bf16.mxu0 %v1965
    %3615 = vmatmul.mubr.bf16.gmra.mxu0 %v1964
    %v3616 = vpop.f32.mrf.mxu0
    %v3617 = vadd.f32 0.0, %v3616
    %v3618 = vpop.f32.mrf.mxu0
    %v3619 = vadd.f32 0.0, %v3618
    %v3620 = vpop.f32.mrf.mxu0
    %v3621 = vadd.f32 0.0, %v3620
    %v3622 = vpop.f32.mrf.mxu0
    %v3623 = vadd.f32 0.0, %v3622
    %3624 = vmatprep.mubr.bf16.mxu0 %v1967
    %3625 = vmatmul.mubr.bf16.gmra.mxu0 %v1966
    %v3626 = vpop.f32.mrf.mxu0
    %v3627 = vadd.f32 0.0, %v3626
    %v3628 = vpop.f32.mrf.mxu0
    %v3629 = vadd.f32 0.0, %v3628
    %v3630 = vpop.f32.mrf.mxu0
    %v3631 = vadd.f32 0.0, %v3630
    %v3632 = vpop.f32.mrf.mxu0
    %v3633 = vadd.f32 0.0, %v3632
    %3634 = vmatprep.mubr.bf16.mxu0 %v1969
    %3635 = vmatmul.mubr.bf16.gmra.mxu0 %v1968
    %v3636 = vpop.f32.mrf.mxu0
    %v3637 = vadd.f32 0.0, %v3636
    %v3638 = vpop.f32.mrf.mxu0
    %v3639 = vadd.f32 0.0, %v3638
    %v3640 = vpop.f32.mrf.mxu0
    %v3641 = vadd.f32 0.0, %v3640
    %v3642 = vpop.f32.mrf.mxu0
    %v3643 = vadd.f32 0.0, %v3642
    %3644 = vmatprep.mubr.bf16.mxu0 %v1971
    %3645 = vmatmul.mubr.bf16.gmra.mxu0 %v1970
    %v3646 = vpop.f32.mrf.mxu0
    %v3647 = vadd.f32 0.0, %v3646
    %v3648 = vpop.f32.mrf.mxu0
    %v3649 = vadd.f32 0.0, %v3648
    %v3650 = vpop.f32.mrf.mxu0
    %v3651 = vadd.f32 0.0, %v3650
    %v3652 = vpop.f32.mrf.mxu0
    %v3653 = vadd.f32 0.0, %v3652
    %3654 = vmatprep.mubr.bf16.mxu0 %v1973
    %3655 = vmatmul.mubr.bf16.gmra.mxu0 %v1972
    %v3656 = vpop.f32.mrf.mxu0
    %v3657 = vadd.f32 0.0, %v3656
    %v3658 = vpop.f32.mrf.mxu0
    %v3659 = vadd.f32 0.0, %v3658
    %v3660 = vpop.f32.mrf.mxu0
    %v3661 = vadd.f32 0.0, %v3660
    %v3662 = vpop.f32.mrf.mxu0
    %v3663 = vadd.f32 0.0, %v3662
    %3664 = vmatprep.mubr.bf16.mxu0 %v1975
    %3665 = vmatmul.mubr.bf16.gmra.mxu0 %v1974
    %v3666 = vpop.f32.mrf.mxu0
    %v3667 = vadd.f32 0.0, %v3666
    %v3668 = vpop.f32.mrf.mxu0
    %v3669 = vadd.f32 0.0, %v3668
    %v3670 = vpop.f32.mrf.mxu0
    %v3671 = vadd.f32 0.0, %v3670
    %v3672 = vpop.f32.mrf.mxu0
    %v3673 = vadd.f32 0.0, %v3672
    %3674 = vmatprep.mubr.bf16.mxu0 %v1977
    %3675 = vmatmul.mubr.bf16.gmra.mxu0 %v1976
    %v3676 = vpop.f32.mrf.mxu0
    %v3677 = vadd.f32 0.0, %v3676
    %v3678 = vpop.f32.mrf.mxu0
    %v3679 = vadd.f32 0.0, %v3678
    %v3680 = vpop.f32.mrf.mxu0
    %v3681 = vadd.f32 0.0, %v3680
    %v3682 = vpop.f32.mrf.mxu0
    %v3683 = vadd.f32 0.0, %v3682
    %3684 = vmatprep.mubr.bf16.mxu0 %v1979
    %3685 = vmatmul.mubr.bf16.gmra.mxu0 %v1978
    %v3686 = vpop.f32.mrf.mxu0
    %v3687 = vadd.f32 0.0, %v3686
    %v3688 = vpop.f32.mrf.mxu0
    %v3689 = vadd.f32 0.0, %v3688
    %v3690 = vpop.f32.mrf.mxu0
    %v3691 = vadd.f32 0.0, %v3690
    %v3692 = vpop.f32.mrf.mxu0
    %v3693 = vadd.f32 0.0, %v3692
    %3694 = vmatprep.mubr.bf16.mxu0 %v1981
    %3695 = vmatmul.mubr.bf16.gmra.mxu0 %v1980
    %v3696 = vpop.f32.mrf.mxu0
    %v3697 = vadd.f32 0.0, %v3696
    %v3698 = vpop.f32.mrf.mxu0
    %v3699 = vadd.f32 0.0, %v3698
    %v3700 = vpop.f32.mrf.mxu0
    %v3701 = vadd.f32 0.0, %v3700
    %v3702 = vpop.f32.mrf.mxu0
    %v3703 = vadd.f32 0.0, %v3702
    %3704 = vmatprep.mubr.bf16.mxu0 %v1983
    %3705 = vmatmul.mubr.bf16.gmra.mxu0 %v1982
    %v3706 = vpop.f32.mrf.mxu0
    %v3707 = vadd.f32 0.0, %v3706
    %v3708 = vpop.f32.mrf.mxu0
    %v3709 = vadd.f32 0.0, %v3708
    %v3710 = vpop.f32.mrf.mxu0
    %v3711 = vadd.f32 0.0, %v3710
    %v3712 = vpop.f32.mrf.mxu0
    %v3713 = vadd.f32 0.0, %v3712
    %3714 = vmatprep.mubr.bf16.mxu0 %v1985
    %3715 = vmatmul.mubr.bf16.gmra.mxu0 %v1984
    %v3716 = vpop.f32.mrf.mxu0
    %v3717 = vadd.f32 0.0, %v3716
    %v3718 = vpop.f32.mrf.mxu0
    %v3719 = vadd.f32 0.0, %v3718
    %v3720 = vpop.f32.mrf.mxu0
    %v3721 = vadd.f32 0.0, %v3720
    %v3722 = vpop.f32.mrf.mxu0
    %v3723 = vadd.f32 0.0, %v3722
    %3724 = vmatprep.mubr.bf16.mxu0 %v1987
    %3725 = vmatmul.mubr.bf16.gmra.mxu0 %v1986
    %v3726 = vpop.f32.mrf.mxu0
    %v3727 = vadd.f32 0.0, %v3726
    %v3728 = vpop.f32.mrf.mxu0
    %v3729 = vadd.f32 0.0, %v3728
    %v3730 = vpop.f32.mrf.mxu0
    %v3731 = vadd.f32 0.0, %v3730
    %v3732 = vpop.f32.mrf.mxu0
    %v3733 = vadd.f32 0.0, %v3732
    %3734 = vmatprep.mubr.bf16.mxu0 %v1989
    %3735 = vmatmul.mubr.bf16.gmra.mxu0 %v1988
    %v3736 = vpop.f32.mrf.mxu0
    %v3737 = vadd.f32 0.0, %v3736
    %v3738 = vpop.f32.mrf.mxu0
    %v3739 = vadd.f32 0.0, %v3738
    %v3740 = vpop.f32.mrf.mxu0
    %v3741 = vadd.f32 0.0, %v3740
    %v3742 = vpop.f32.mrf.mxu0
    %v3743 = vadd.f32 0.0, %v3742
    %3744 = vmatprep.mubr.bf16.mxu0 %v1991
    %3745 = vmatmul.mubr.bf16.gmra.mxu0 %v1990
    %v3746 = vpop.f32.mrf.mxu0
    %v3747 = vadd.f32 0.0, %v3746
    %v3748 = vpop.f32.mrf.mxu0
    %v3749 = vadd.f32 0.0, %v3748
    %v3750 = vpop.f32.mrf.mxu0
    %v3751 = vadd.f32 0.0, %v3750
    %v3752 = vpop.f32.mrf.mxu0
    %v3753 = vadd.f32 0.0, %v3752
    %3754 = vmatprep.mubr.bf16.mxu0 %v1993
    %3755 = vmatmul.mubr.bf16.gmra.mxu0 %v1992
    %v3756 = vpop.f32.mrf.mxu0
    %v3757 = vadd.f32 0.0, %v3756
    %v3758 = vpop.f32.mrf.mxu0
    %v3759 = vadd.f32 0.0, %v3758
    %v3760 = vpop.f32.mrf.mxu0
    %v3761 = vadd.f32 0.0, %v3760
    %v3762 = vpop.f32.mrf.mxu0
    %v3763 = vadd.f32 0.0, %v3762
    %3764 = vmatprep.mubr.bf16.mxu0 %v1995
    %3765 = vmatmul.mubr.bf16.gmra.mxu0 %v1994
    %v3766 = vpop.f32.mrf.mxu0
    %v3767 = vadd.f32 0.0, %v3766
    %v3768 = vpop.f32.mrf.mxu0
    %v3769 = vadd.f32 0.0, %v3768
    %v3770 = vpop.f32.mrf.mxu0
    %v3771 = vadd.f32 0.0, %v3770
    %v3772 = vpop.f32.mrf.mxu0
    %v3773 = vadd.f32 0.0, %v3772
    %3774 = vmatprep.mubr.bf16.mxu0 %v1997
    %3775 = vmatmul.mubr.bf16.gmra.mxu0 %v1996
    %v3776 = vpop.f32.mrf.mxu0
    %v3777 = vadd.f32 0.0, %v3776
    %v3778 = vpop.f32.mrf.mxu0
    %v3779 = vadd.f32 0.0, %v3778
    %v3780 = vpop.f32.mrf.mxu0
    %v3781 = vadd.f32 0.0, %v3780
    %v3782 = vpop.f32.mrf.mxu0
    %v3783 = vadd.f32 0.0, %v3782
    %3784 = vmatprep.mubr.bf16.mxu0 %v1999
    %3785 = vmatmul.mubr.bf16.gmra.mxu0 %v1998
    %v3786 = vpop.f32.mrf.mxu0
    %v3787 = vadd.f32 0.0, %v3786
    %v3788 = vpop.f32.mrf.mxu0
    %v3789 = vadd.f32 0.0, %v3788
    %v3790 = vpop.f32.mrf.mxu0
    %v3791 = vadd.f32 0.0, %v3790
    %v3792 = vpop.f32.mrf.mxu0
    %v3793 = vadd.f32 0.0, %v3792
    %3794 = vmatprep.mubr.bf16.mxu0 %v2001
    %3795 = vmatmul.mubr.bf16.gmra.mxu0 %v2000
    %v3796 = vpop.f32.mrf.mxu0
    %v3797 = vadd.f32 0.0, %v3796
    %v3798 = vpop.f32.mrf.mxu0
    %v3799 = vadd.f32 0.0, %v3798
    %v3800 = vpop.f32.mrf.mxu0
    %v3801 = vadd.f32 0.0, %v3800
    %v3802 = vpop.f32.mrf.mxu0
    %v3803 = vadd.f32 0.0, %v3802
    %3804 = vmatprep.mubr.bf16.mxu0 %v2003
    %3805 = vmatmul.mubr.bf16.gmra.mxu0 %v2002
    %v3806 = vpop.f32.mrf.mxu0
    %v3807 = vadd.f32 0.0, %v3806
    %v3808 = vpop.f32.mrf.mxu0
    %v3809 = vadd.f32 0.0, %v3808
    %v3810 = vpop.f32.mrf.mxu0
    %v3811 = vadd.f32 0.0, %v3810
    %v3812 = vpop.f32.mrf.mxu0
    %v3813 = vadd.f32 0.0, %v3812
    %3814 = vmatprep.mubr.bf16.mxu0 %v2005
    %3815 = vmatmul.mubr.bf16.gmra.mxu0 %v2004
    %v3816 = vpop.f32.mrf.mxu0
    %v3817 = vadd.f32 0.0, %v3816
    %v3818 = vpop.f32.mrf.mxu0
    %v3819 = vadd.f32 0.0, %v3818
    %v3820 = vpop.f32.mrf.mxu0
    %v3821 = vadd.f32 0.0, %v3820
    %v3822 = vpop.f32.mrf.mxu0
    %v3823 = vadd.f32 0.0, %v3822
    %3824 = vmatprep.mubr.bf16.mxu0 %v2007
    %3825 = vmatmul.mubr.bf16.gmra.mxu0 %v2006
    %v3826 = vpop.f32.mrf.mxu0
    %v3827 = vadd.f32 0.0, %v3826
    %v3828 = vpop.f32.mrf.mxu0
    %v3829 = vadd.f32 0.0, %v3828
    %v3830 = vpop.f32.mrf.mxu0
    %v3831 = vadd.f32 0.0, %v3830
    %v3832 = vpop.f32.mrf.mxu0
    %v3833 = vadd.f32 0.0, %v3832
    %3834 = vdwg.mxu0
    %3835 = vmatprep.subr.bf16.mxu0 %v2583
    %3836 = vmatpush1.bf16.msra.mxu0 %v2582
    %3837 = vmatprep.subr.bf16.mxu0 %v2575
    %3838 = vmatpush1.bf16.msra.mxu0 %v2574
    %3839 = vmatprep.subr.bf16.mxu0 %v2567
    %3840 = vmatpush1.bf16.msra.mxu0 %v2566
    %3841 = vmatprep.subr.bf16.mxu0 %v2559
    %3842 = vmatpush1.bf16.msra.mxu0 %v2558
    %3843 = vmatprep.subr.bf16.mxu0 %v2551
    %3844 = vmatpush1.bf16.msra.mxu0 %v2550
    %3845 = vmatprep.subr.bf16.mxu0 %v2543
    %3846 = vmatpush1.bf16.msra.mxu0 %v2542
    %3847 = vmatprep.subr.bf16.mxu0 %v2535
    %3848 = vmatpush1.bf16.msra.mxu0 %v2534
    %3849 = vmatprep.subr.bf16.mxu0 %v2527
    %3850 = vmatpush1.bf16.msra.mxu0 %v2526
    %3851 = vmatprep.subr.bf16.mxu0 %v2647
    %3852 = vmatpush2.bf16.msra.mxu0 %v2646
    %3853 = vmatprep.subr.bf16.mxu0 %v2639
    %3854 = vmatpush2.bf16.msra.mxu0 %v2638
    %3855 = vmatprep.subr.bf16.mxu0 %v2631
    %3856 = vmatpush2.bf16.msra.mxu0 %v2630
    %3857 = vmatprep.subr.bf16.mxu0 %v2623
    %3858 = vmatpush2.bf16.msra.mxu0 %v2622
    %3859 = vmatprep.subr.bf16.mxu0 %v2615
    %3860 = vmatpush2.bf16.msra.mxu0 %v2614
    %3861 = vmatprep.subr.bf16.mxu0 %v2607
    %3862 = vmatpush2.bf16.msra.mxu0 %v2606
    %3863 = vmatprep.subr.bf16.mxu0 %v2599
    %3864 = vmatpush2.bf16.msra.mxu0 %v2598
    %3865 = vmatprep.subr.bf16.mxu0 %v2591
    %3866 = vmatpush2.bf16.msra.mxu0 %v2590
    %3867 = vmatprep.mubr.bf16.mxu0 %v1945
    %3868 = vmatmul.mubr.bf16.gmra.mxu0 %v1944
    %v3869 = vpop.f32.mrf.mxu0
    %v3870 = vadd.f32 0.0, %v3869
    %v3871 = vpop.f32.mrf.mxu0
    %v3872 = vadd.f32 0.0, %v3871
    %v3873 = vpop.f32.mrf.mxu0
    %v3874 = vadd.f32 0.0, %v3873
    %v3875 = vpop.f32.mrf.mxu0
    %v3876 = vadd.f32 0.0, %v3875
    %3877 = vmatprep.mubr.bf16.mxu0 %v1947
    %3878 = vmatmul.mubr.bf16.gmra.mxu0 %v1946
    %v3879 = vpop.f32.mrf.mxu0
    %v3880 = vadd.f32 0.0, %v3879
    %v3881 = vpop.f32.mrf.mxu0
    %v3882 = vadd.f32 0.0, %v3881
    %v3883 = vpop.f32.mrf.mxu0
    %v3884 = vadd.f32 0.0, %v3883
    %v3885 = vpop.f32.mrf.mxu0
    %v3886 = vadd.f32 0.0, %v3885
    %3887 = vmatprep.mubr.bf16.mxu0 %v1949
    %3888 = vmatmul.mubr.bf16.gmra.mxu0 %v1948
    %v3889 = vpop.f32.mrf.mxu0
    %v3890 = vadd.f32 0.0, %v3889
    %v3891 = vpop.f32.mrf.mxu0
    %v3892 = vadd.f32 0.0, %v3891
    %v3893 = vpop.f32.mrf.mxu0
    %v3894 = vadd.f32 0.0, %v3893
    %v3895 = vpop.f32.mrf.mxu0
    %v3896 = vadd.f32 0.0, %v3895
    %3897 = vmatprep.mubr.bf16.mxu0 %v1951
    %3898 = vmatmul.mubr.bf16.gmra.mxu0 %v1950
    %v3899 = vpop.f32.mrf.mxu0
    %v3900 = vadd.f32 0.0, %v3899
    %v3901 = vpop.f32.mrf.mxu0
    %v3902 = vadd.f32 0.0, %v3901
    %v3903 = vpop.f32.mrf.mxu0
    %v3904 = vadd.f32 0.0, %v3903
    %v3905 = vpop.f32.mrf.mxu0
    %v3906 = vadd.f32 0.0, %v3905
    %3907 = vmatprep.mubr.bf16.mxu0 %v1953
    %3908 = vmatmul.mubr.bf16.gmra.mxu0 %v1952
    %v3909 = vpop.f32.mrf.mxu0
    %v3910 = vadd.f32 0.0, %v3909
    %v3911 = vpop.f32.mrf.mxu0
    %v3912 = vadd.f32 0.0, %v3911
    %v3913 = vpop.f32.mrf.mxu0
    %v3914 = vadd.f32 0.0, %v3913
    %v3915 = vpop.f32.mrf.mxu0
    %v3916 = vadd.f32 0.0, %v3915
    %3917 = vmatprep.mubr.bf16.mxu0 %v1955
    %3918 = vmatmul.mubr.bf16.gmra.mxu0 %v1954
    %v3919 = vpop.f32.mrf.mxu0
    %v3920 = vadd.f32 0.0, %v3919
    %v3921 = vpop.f32.mrf.mxu0
    %v3922 = vadd.f32 0.0, %v3921
    %v3923 = vpop.f32.mrf.mxu0
    %v3924 = vadd.f32 0.0, %v3923
    %v3925 = vpop.f32.mrf.mxu0
    %v3926 = vadd.f32 0.0, %v3925
    %3927 = vmatprep.mubr.bf16.mxu0 %v1957
    %3928 = vmatmul.mubr.bf16.gmra.mxu0 %v1956
    %v3929 = vpop.f32.mrf.mxu0
    %v3930 = vadd.f32 0.0, %v3929
    %v3931 = vpop.f32.mrf.mxu0
    %v3932 = vadd.f32 0.0, %v3931
    %v3933 = vpop.f32.mrf.mxu0
    %v3934 = vadd.f32 0.0, %v3933
    %v3935 = vpop.f32.mrf.mxu0
    %v3936 = vadd.f32 0.0, %v3935
    %3937 = vmatprep.mubr.bf16.mxu0 %v1959
    %3938 = vmatmul.mubr.bf16.gmra.mxu0 %v1958
    %v3939 = vpop.f32.mrf.mxu0
    %v3940 = vadd.f32 0.0, %v3939
    %v3941 = vpop.f32.mrf.mxu0
    %v3942 = vadd.f32 0.0, %v3941
    %v3943 = vpop.f32.mrf.mxu0
    %v3944 = vadd.f32 0.0, %v3943
    %v3945 = vpop.f32.mrf.mxu0
    %v3946 = vadd.f32 0.0, %v3945
    %3947 = vmatprep.mubr.bf16.mxu0 %v1961
    %3948 = vmatmul.mubr.bf16.gmra.mxu0 %v1960
    %v3949 = vpop.f32.mrf.mxu0
    %v3950 = vadd.f32 0.0, %v3949
    %v3951 = vpop.f32.mrf.mxu0
    %v3952 = vadd.f32 0.0, %v3951
    %v3953 = vpop.f32.mrf.mxu0
    %v3954 = vadd.f32 0.0, %v3953
    %v3955 = vpop.f32.mrf.mxu0
    %v3956 = vadd.f32 0.0, %v3955
    %3957 = vmatprep.mubr.bf16.mxu0 %v1963
    %3958 = vmatmul.mubr.bf16.gmra.mxu0 %v1962
    %v3959 = vpop.f32.mrf.mxu0
    %v3960 = vadd.f32 0.0, %v3959
    %v3961 = vpop.f32.mrf.mxu0
    %v3962 = vadd.f32 0.0, %v3961
    %v3963 = vpop.f32.mrf.mxu0
    %v3964 = vadd.f32 0.0, %v3963
    %v3965 = vpop.f32.mrf.mxu0
    %v3966 = vadd.f32 0.0, %v3965
    %3967 = vmatprep.mubr.bf16.mxu0 %v1965
    %3968 = vmatmul.mubr.bf16.gmra.mxu0 %v1964
    %v3969 = vpop.f32.mrf.mxu0
    %v3970 = vadd.f32 0.0, %v3969
    %v3971 = vpop.f32.mrf.mxu0
    %v3972 = vadd.f32 0.0, %v3971
    %v3973 = vpop.f32.mrf.mxu0
    %v3974 = vadd.f32 0.0, %v3973
    %v3975 = vpop.f32.mrf.mxu0
    %v3976 = vadd.f32 0.0, %v3975
    %3977 = vmatprep.mubr.bf16.mxu0 %v1967
    %3978 = vmatmul.mubr.bf16.gmra.mxu0 %v1966
    %v3979 = vpop.f32.mrf.mxu0
    %v3980 = vadd.f32 0.0, %v3979
    %v3981 = vpop.f32.mrf.mxu0
    %v3982 = vadd.f32 0.0, %v3981
    %v3983 = vpop.f32.mrf.mxu0
    %v3984 = vadd.f32 0.0, %v3983
    %v3985 = vpop.f32.mrf.mxu0
    %v3986 = vadd.f32 0.0, %v3985
    %3987 = vmatprep.mubr.bf16.mxu0 %v1969
    %3988 = vmatmul.mubr.bf16.gmra.mxu0 %v1968
    %v3989 = vpop.f32.mrf.mxu0
    %v3990 = vadd.f32 0.0, %v3989
    %v3991 = vpop.f32.mrf.mxu0
    %v3992 = vadd.f32 0.0, %v3991
    %v3993 = vpop.f32.mrf.mxu0
    %v3994 = vadd.f32 0.0, %v3993
    %v3995 = vpop.f32.mrf.mxu0
    %v3996 = vadd.f32 0.0, %v3995
    %3997 = vmatprep.mubr.bf16.mxu0 %v1971
    %3998 = vmatmul.mubr.bf16.gmra.mxu0 %v1970
    %v3999 = vpop.f32.mrf.mxu0
    %v4000 = vadd.f32 0.0, %v3999
    %v4001 = vpop.f32.mrf.mxu0
    %v4002 = vadd.f32 0.0, %v4001
    %v4003 = vpop.f32.mrf.mxu0
    %v4004 = vadd.f32 0.0, %v4003
    %v4005 = vpop.f32.mrf.mxu0
    %v4006 = vadd.f32 0.0, %v4005
    %4007 = vmatprep.mubr.bf16.mxu0 %v1973
    %4008 = vmatmul.mubr.bf16.gmra.mxu0 %v1972
    %v4009 = vpop.f32.mrf.mxu0
    %v4010 = vadd.f32 0.0, %v4009
    %v4011 = vpop.f32.mrf.mxu0
    %v4012 = vadd.f32 0.0, %v4011
    %v4013 = vpop.f32.mrf.mxu0
    %v4014 = vadd.f32 0.0, %v4013
    %v4015 = vpop.f32.mrf.mxu0
    %v4016 = vadd.f32 0.0, %v4015
    %4017 = vmatprep.mubr.bf16.mxu0 %v1975
    %4018 = vmatmul.mubr.bf16.gmra.mxu0 %v1974
    %v4019 = vpop.f32.mrf.mxu0
    %v4020 = vadd.f32 0.0, %v4019
    %v4021 = vpop.f32.mrf.mxu0
    %v4022 = vadd.f32 0.0, %v4021
    %v4023 = vpop.f32.mrf.mxu0
    %v4024 = vadd.f32 0.0, %v4023
    %v4025 = vpop.f32.mrf.mxu0
    %v4026 = vadd.f32 0.0, %v4025
    %4027 = vmatprep.mubr.bf16.mxu0 %v1977
    %4028 = vmatmul.mubr.bf16.gmra.mxu0 %v1976
    %v4029 = vpop.f32.mrf.mxu0
    %v4030 = vadd.f32 0.0, %v4029
    %v4031 = vpop.f32.mrf.mxu0
    %v4032 = vadd.f32 0.0, %v4031
    %v4033 = vpop.f32.mrf.mxu0
    %v4034 = vadd.f32 0.0, %v4033
    %v4035 = vpop.f32.mrf.mxu0
    %v4036 = vadd.f32 0.0, %v4035
    %4037 = vmatprep.mubr.bf16.mxu0 %v1979
    %4038 = vmatmul.mubr.bf16.gmra.mxu0 %v1978
    %v4039 = vpop.f32.mrf.mxu0
    %v4040 = vadd.f32 0.0, %v4039
    %v4041 = vpop.f32.mrf.mxu0
    %v4042 = vadd.f32 0.0, %v4041
    %v4043 = vpop.f32.mrf.mxu0
    %v4044 = vadd.f32 0.0, %v4043
    %v4045 = vpop.f32.mrf.mxu0
    %v4046 = vadd.f32 0.0, %v4045
    %4047 = vmatprep.mubr.bf16.mxu0 %v1981
    %4048 = vmatmul.mubr.bf16.gmra.mxu0 %v1980
    %v4049 = vpop.f32.mrf.mxu0
    %v4050 = vadd.f32 0.0, %v4049
    %v4051 = vpop.f32.mrf.mxu0
    %v4052 = vadd.f32 0.0, %v4051
    %v4053 = vpop.f32.mrf.mxu0
    %v4054 = vadd.f32 0.0, %v4053
    %v4055 = vpop.f32.mrf.mxu0
    %v4056 = vadd.f32 0.0, %v4055
    %4057 = vmatprep.mubr.bf16.mxu0 %v1983
    %4058 = vmatmul.mubr.bf16.gmra.mxu0 %v1982
    %v4059 = vpop.f32.mrf.mxu0
    %v4060 = vadd.f32 0.0, %v4059
    %v4061 = vpop.f32.mrf.mxu0
    %v4062 = vadd.f32 0.0, %v4061
    %v4063 = vpop.f32.mrf.mxu0
    %v4064 = vadd.f32 0.0, %v4063
    %v4065 = vpop.f32.mrf.mxu0
    %v4066 = vadd.f32 0.0, %v4065
    %4067 = vmatprep.mubr.bf16.mxu0 %v1985
    %4068 = vmatmul.mubr.bf16.gmra.mxu0 %v1984
    %v4069 = vpop.f32.mrf.mxu0
    %v4070 = vadd.f32 0.0, %v4069
    %v4071 = vpop.f32.mrf.mxu0
    %v4072 = vadd.f32 0.0, %v4071
    %v4073 = vpop.f32.mrf.mxu0
    %v4074 = vadd.f32 0.0, %v4073
    %v4075 = vpop.f32.mrf.mxu0
    %v4076 = vadd.f32 0.0, %v4075
    %4077 = vmatprep.mubr.bf16.mxu0 %v1987
    %4078 = vmatmul.mubr.bf16.gmra.mxu0 %v1986
    %v4079 = vpop.f32.mrf.mxu0
    %v4080 = vadd.f32 0.0, %v4079
    %v4081 = vpop.f32.mrf.mxu0
    %v4082 = vadd.f32 0.0, %v4081
    %v4083 = vpop.f32.mrf.mxu0
    %v4084 = vadd.f32 0.0, %v4083
    %v4085 = vpop.f32.mrf.mxu0
    %v4086 = vadd.f32 0.0, %v4085
    %4087 = vmatprep.mubr.bf16.mxu0 %v1989
    %4088 = vmatmul.mubr.bf16.gmra.mxu0 %v1988
    %v4089 = vpop.f32.mrf.mxu0
    %v4090 = vadd.f32 0.0, %v4089
    %v4091 = vpop.f32.mrf.mxu0
    %v4092 = vadd.f32 0.0, %v4091
    %v4093 = vpop.f32.mrf.mxu0
    %v4094 = vadd.f32 0.0, %v4093
    %v4095 = vpop.f32.mrf.mxu0
    %v4096 = vadd.f32 0.0, %v4095
    %4097 = vmatprep.mubr.bf16.mxu0 %v1991
    %4098 = vmatmul.mubr.bf16.gmra.mxu0 %v1990
    %v4099 = vpop.f32.mrf.mxu0
    %v4100 = vadd.f32 0.0, %v4099
    %v4101 = vpop.f32.mrf.mxu0
    %v4102 = vadd.f32 0.0, %v4101
    %v4103 = vpop.f32.mrf.mxu0
    %v4104 = vadd.f32 0.0, %v4103
    %v4105 = vpop.f32.mrf.mxu0
    %v4106 = vadd.f32 0.0, %v4105
    %4107 = vmatprep.mubr.bf16.mxu0 %v1993
    %4108 = vmatmul.mubr.bf16.gmra.mxu0 %v1992
    %v4109 = vpop.f32.mrf.mxu0
    %v4110 = vadd.f32 0.0, %v4109
    %v4111 = vpop.f32.mrf.mxu0
    %v4112 = vadd.f32 0.0, %v4111
    %v4113 = vpop.f32.mrf.mxu0
    %v4114 = vadd.f32 0.0, %v4113
    %v4115 = vpop.f32.mrf.mxu0
    %v4116 = vadd.f32 0.0, %v4115
    %4117 = vmatprep.mubr.bf16.mxu0 %v1995
    %4118 = vmatmul.mubr.bf16.gmra.mxu0 %v1994
    %v4119 = vpop.f32.mrf.mxu0
    %v4120 = vadd.f32 0.0, %v4119
    %v4121 = vpop.f32.mrf.mxu0
    %v4122 = vadd.f32 0.0, %v4121
    %v4123 = vpop.f32.mrf.mxu0
    %v4124 = vadd.f32 0.0, %v4123
    %v4125 = vpop.f32.mrf.mxu0
    %v4126 = vadd.f32 0.0, %v4125
    %4127 = vmatprep.mubr.bf16.mxu0 %v1997
    %4128 = vmatmul.mubr.bf16.gmra.mxu0 %v1996
    %v4129 = vpop.f32.mrf.mxu0
    %v4130 = vadd.f32 0.0, %v4129
    %v4131 = vpop.f32.mrf.mxu0
    %v4132 = vadd.f32 0.0, %v4131
    %v4133 = vpop.f32.mrf.mxu0
    %v4134 = vadd.f32 0.0, %v4133
    %v4135 = vpop.f32.mrf.mxu0
    %v4136 = vadd.f32 0.0, %v4135
    %4137 = vmatprep.mubr.bf16.mxu0 %v1999
    %4138 = vmatmul.mubr.bf16.gmra.mxu0 %v1998
    %v4139 = vpop.f32.mrf.mxu0
    %v4140 = vadd.f32 0.0, %v4139
    %v4141 = vpop.f32.mrf.mxu0
    %v4142 = vadd.f32 0.0, %v4141
    %v4143 = vpop.f32.mrf.mxu0
    %v4144 = vadd.f32 0.0, %v4143
    %v4145 = vpop.f32.mrf.mxu0
    %v4146 = vadd.f32 0.0, %v4145
    %4147 = vmatprep.mubr.bf16.mxu0 %v2001
    %4148 = vmatmul.mubr.bf16.gmra.mxu0 %v2000
    %v4149 = vpop.f32.mrf.mxu0
    %v4150 = vadd.f32 0.0, %v4149
    %v4151 = vpop.f32.mrf.mxu0
    %v4152 = vadd.f32 0.0, %v4151
    %v4153 = vpop.f32.mrf.mxu0
    %v4154 = vadd.f32 0.0, %v4153
    %v4155 = vpop.f32.mrf.mxu0
    %v4156 = vadd.f32 0.0, %v4155
    %4157 = vmatprep.mubr.bf16.mxu0 %v2003
    %4158 = vmatmul.mubr.bf16.gmra.mxu0 %v2002
    %v4159 = vpop.f32.mrf.mxu0
    %v4160 = vadd.f32 0.0, %v4159
    %v4161 = vpop.f32.mrf.mxu0
    %v4162 = vadd.f32 0.0, %v4161
    %v4163 = vpop.f32.mrf.mxu0
    %v4164 = vadd.f32 0.0, %v4163
    %v4165 = vpop.f32.mrf.mxu0
    %v4166 = vadd.f32 0.0, %v4165
    %4167 = vmatprep.mubr.bf16.mxu0 %v2005
    %4168 = vmatmul.mubr.bf16.gmra.mxu0 %v2004
    %v4169 = vpop.f32.mrf.mxu0
    %v4170 = vadd.f32 0.0, %v4169
    %v4171 = vpop.f32.mrf.mxu0
    %v4172 = vadd.f32 0.0, %v4171
    %v4173 = vpop.f32.mrf.mxu0
    %v4174 = vadd.f32 0.0, %v4173
    %v4175 = vpop.f32.mrf.mxu0
    %v4176 = vadd.f32 0.0, %v4175
    %4177 = vmatprep.mubr.bf16.mxu0 %v2007
    %4178 = vmatmul.mubr.bf16.gmra.mxu0 %v2006
    %v4179 = vpop.f32.mrf.mxu0
    %v4180 = vadd.f32 0.0, %v4179
    %v4181 = vpop.f32.mrf.mxu0
    %v4182 = vadd.f32 0.0, %v4181
    %v4183 = vpop.f32.mrf.mxu0
    %v4184 = vadd.f32 0.0, %v4183
    %v4185 = vpop.f32.mrf.mxu0
    %v4186 = vadd.f32 0.0, %v4185
    %4187 = vdwg.mxu0
    %v4188 = vmax.f32 %v2811, 0.0
    %v4189 = vmax.f32 %v2813, 0.0
    %v4190 = vmax.f32 %v3164, 0.0
    %v4191 = vmax.f32 %v3166, 0.0
    %v4192 = vmax.f32 %v3517, 0.0
    %v4193 = vmax.f32 %v3519, 0.0
    %v4194 = vmax.f32 %v3870, 0.0
    %v4195 = vmax.f32 %v3872, 0.0
    %v4196 = vmax.f32 %v2815, 0.0
    %v4197 = vmax.f32 %v2817, 0.0
    %v4198 = vmax.f32 %v3168, 0.0
    %v4199 = vmax.f32 %v3170, 0.0
    %v4200 = vmax.f32 %v3521, 0.0
    %v4201 = vmax.f32 %v3523, 0.0
    %v4202 = vmax.f32 %v3874, 0.0
    %v4203 = vmax.f32 %v3876, 0.0
    %v4204 = vmax.f32 %v2821, 0.0
    %v4205 = vmax.f32 %v2823, 0.0
    %v4206 = vmax.f32 %v3174, 0.0
    %v4207 = vmax.f32 %v3176, 0.0
    %v4208 = vmax.f32 %v3527, 0.0
    %v4209 = vmax.f32 %v3529, 0.0
    %v4210 = vmax.f32 %v3880, 0.0
    %v4211 = vmax.f32 %v3882, 0.0
    %v4212 = vmax.f32 %v2825, 0.0
    %v4213 = vmax.f32 %v2827, 0.0
    %v4214 = vmax.f32 %v3178, 0.0
    %v4215 = vmax.f32 %v3180, 0.0
    %v4216 = vmax.f32 %v3531, 0.0
    %v4217 = vmax.f32 %v3533, 0.0
    %v4218 = vmax.f32 %v3884, 0.0
    %v4219 = vmax.f32 %v3886, 0.0
    %v4220 = vmax.f32 %v2831, 0.0
    %v4221 = vmax.f32 %v2833, 0.0
    %v4222 = vmax.f32 %v3184, 0.0
    %v4223 = vmax.f32 %v3186, 0.0
    %v4224 = vmax.f32 %v3537, 0.0
    %v4225 = vmax.f32 %v3539, 0.0
    %v4226 = vmax.f32 %v3890, 0.0
    %v4227 = vmax.f32 %v3892, 0.0
    %v4228 = vmax.f32 %v2835, 0.0
    %v4229 = vmax.f32 %v2837, 0.0
    %v4230 = vmax.f32 %v3188, 0.0
    %v4231 = vmax.f32 %v3190, 0.0
    %v4232 = vmax.f32 %v3541, 0.0
    %v4233 = vmax.f32 %v3543, 0.0
    %v4234 = vmax.f32 %v3894, 0.0
    %v4235 = vmax.f32 %v3896, 0.0
    %v4236 = vmax.f32 %v2841, 0.0
    %v4237 = vmax.f32 %v2843, 0.0
    %v4238 = vmax.f32 %v3194, 0.0
    %v4239 = vmax.f32 %v3196, 0.0
    %v4240 = vmax.f32 %v3547, 0.0
    %v4241 = vmax.f32 %v3549, 0.0
    %v4242 = vmax.f32 %v3900, 0.0
    %v4243 = vmax.f32 %v3902, 0.0
    %v4244 = vmax.f32 %v2845, 0.0
    %v4245 = vmax.f32 %v2847, 0.0
    %v4246 = vmax.f32 %v3198, 0.0
    %v4247 = vmax.f32 %v3200, 0.0
    %v4248 = vmax.f32 %v3551, 0.0
    %v4249 = vmax.f32 %v3553, 0.0
    %v4250 = vmax.f32 %v3904, 0.0
    %v4251 = vmax.f32 %v3906, 0.0
    %v4252 = vmax.f32 %v2851, 0.0
    %v4253 = vmax.f32 %v2853, 0.0
    %v4254 = vmax.f32 %v3204, 0.0
    %v4255 = vmax.f32 %v3206, 0.0
    %v4256 = vmax.f32 %v3557, 0.0
    %v4257 = vmax.f32 %v3559, 0.0
    %v4258 = vmax.f32 %v3910, 0.0
    %v4259 = vmax.f32 %v3912, 0.0
    %v4260 = vmax.f32 %v2855, 0.0
    %v4261 = vmax.f32 %v2857, 0.0
    %v4262 = vmax.f32 %v3208, 0.0
    %v4263 = vmax.f32 %v3210, 0.0
    %v4264 = vmax.f32 %v3561, 0.0
    %v4265 = vmax.f32 %v3563, 0.0
    %v4266 = vmax.f32 %v3914, 0.0
    %v4267 = vmax.f32 %v3916, 0.0
    %v4268 = vmax.f32 %v2861, 0.0
    %v4269 = vmax.f32 %v2863, 0.0
    %v4270 = vmax.f32 %v3214, 0.0
    %v4271 = vmax.f32 %v3216, 0.0
    %v4272 = vmax.f32 %v3567, 0.0
    %v4273 = vmax.f32 %v3569, 0.0
    %v4274 = vmax.f32 %v3920, 0.0
    %v4275 = vmax.f32 %v3922, 0.0
    %v4276 = vmax.f32 %v2865, 0.0
    %v4277 = vmax.f32 %v2867, 0.0
    %v4278 = vmax.f32 %v3218, 0.0
    %v4279 = vmax.f32 %v3220, 0.0
    %v4280 = vmax.f32 %v3571, 0.0
    %v4281 = vmax.f32 %v3573, 0.0
    %v4282 = vmax.f32 %v3924, 0.0
    %v4283 = vmax.f32 %v3926, 0.0
    %v4284 = vmax.f32 %v2871, 0.0
    %v4285 = vmax.f32 %v2873, 0.0
    %v4286 = vmax.f32 %v3224, 0.0
    %v4287 = vmax.f32 %v3226, 0.0
    %v4288 = vmax.f32 %v3577, 0.0
    %v4289 = vmax.f32 %v3579, 0.0
    %v4290 = vmax.f32 %v3930, 0.0
    %v4291 = vmax.f32 %v3932, 0.0
    %v4292 = vmax.f32 %v2875, 0.0
    %v4293 = vmax.f32 %v2877, 0.0
    %v4294 = vmax.f32 %v3228, 0.0
    %v4295 = vmax.f32 %v3230, 0.0
    %v4296 = vmax.f32 %v3581, 0.0
    %v4297 = vmax.f32 %v3583, 0.0
    %v4298 = vmax.f32 %v3934, 0.0
    %v4299 = vmax.f32 %v3936, 0.0
    %v4300 = vmax.f32 %v2881, 0.0
    %v4301 = vmax.f32 %v2883, 0.0
    %v4302 = vmax.f32 %v3234, 0.0
    %v4303 = vmax.f32 %v3236, 0.0
    %v4304 = vmax.f32 %v3587, 0.0
    %v4305 = vmax.f32 %v3589, 0.0
    %v4306 = vmax.f32 %v3940, 0.0
    %v4307 = vmax.f32 %v3942, 0.0
    %v4308 = vmax.f32 %v2885, 0.0
    %v4309 = vmax.f32 %v2887, 0.0
    %v4310 = vmax.f32 %v3238, 0.0
    %v4311 = vmax.f32 %v3240, 0.0
    %v4312 = vmax.f32 %v3591, 0.0
    %v4313 = vmax.f32 %v3593, 0.0
    %v4314 = vmax.f32 %v3944, 0.0
    %v4315 = vmax.f32 %v3946, 0.0
    %v4316 = vmax.f32 %v2891, 0.0
    %v4317 = vmax.f32 %v2893, 0.0
    %v4318 = vmax.f32 %v3244, 0.0
    %v4319 = vmax.f32 %v3246, 0.0
    %v4320 = vmax.f32 %v3597, 0.0
    %v4321 = vmax.f32 %v3599, 0.0
    %v4322 = vmax.f32 %v3950, 0.0
    %v4323 = vmax.f32 %v3952, 0.0
    %v4324 = vmax.f32 %v2895, 0.0
    %v4325 = vmax.f32 %v2897, 0.0
    %v4326 = vmax.f32 %v3248, 0.0
    %v4327 = vmax.f32 %v3250, 0.0
    %v4328 = vmax.f32 %v3601, 0.0
    %v4329 = vmax.f32 %v3603, 0.0
    %v4330 = vmax.f32 %v3954, 0.0
    %v4331 = vmax.f32 %v3956, 0.0
    %v4332 = vmax.f32 %v2901, 0.0
    %v4333 = vmax.f32 %v2903, 0.0
    %v4334 = vmax.f32 %v3254, 0.0
    %v4335 = vmax.f32 %v3256, 0.0
    %v4336 = vmax.f32 %v3607, 0.0
    %v4337 = vmax.f32 %v3609, 0.0
    %v4338 = vmax.f32 %v3960, 0.0
    %v4339 = vmax.f32 %v3962, 0.0
    %v4340 = vmax.f32 %v2905, 0.0
    %v4341 = vmax.f32 %v2907, 0.0
    %v4342 = vmax.f32 %v3258, 0.0
    %v4343 = vmax.f32 %v3260, 0.0
    %v4344 = vmax.f32 %v3611, 0.0
    %v4345 = vmax.f32 %v3613, 0.0
    %v4346 = vmax.f32 %v3964, 0.0
    %v4347 = vmax.f32 %v3966, 0.0
    %v4348 = vmax.f32 %v2911, 0.0
    %v4349 = vmax.f32 %v2913, 0.0
    %v4350 = vmax.f32 %v3264, 0.0
    %v4351 = vmax.f32 %v3266, 0.0
    %v4352 = vmax.f32 %v3617, 0.0
    %v4353 = vmax.f32 %v3619, 0.0
    %v4354 = vmax.f32 %v3970, 0.0
    %v4355 = vmax.f32 %v3972, 0.0
    %v4356 = vmax.f32 %v2915, 0.0
    %v4357 = vmax.f32 %v2917, 0.0
    %v4358 = vmax.f32 %v3268, 0.0
    %v4359 = vmax.f32 %v3270, 0.0
    %v4360 = vmax.f32 %v3621, 0.0
    %v4361 = vmax.f32 %v3623, 0.0
    %v4362 = vmax.f32 %v3974, 0.0
    %v4363 = vmax.f32 %v3976, 0.0
    %v4364 = vmax.f32 %v2921, 0.0
    %v4365 = vmax.f32 %v2923, 0.0
    %v4366 = vmax.f32 %v3274, 0.0
    %v4367 = vmax.f32 %v3276, 0.0
    %v4368 = vmax.f32 %v3627, 0.0
    %v4369 = vmax.f32 %v3629, 0.0
    %v4370 = vmax.f32 %v3980, 0.0
    %v4371 = vmax.f32 %v3982, 0.0
    %v4372 = vmax.f32 %v2925, 0.0
    %v4373 = vmax.f32 %v2927, 0.0
    %v4374 = vmax.f32 %v3278, 0.0
    %v4375 = vmax.f32 %v3280, 0.0
    %v4376 = vmax.f32 %v3631, 0.0
    %v4377 = vmax.f32 %v3633, 0.0
    %v4378 = vmax.f32 %v3984, 0.0
    %v4379 = vmax.f32 %v3986, 0.0
    %v4380 = vmax.f32 %v2931, 0.0
    %v4381 = vmax.f32 %v2933, 0.0
    %v4382 = vmax.f32 %v3284, 0.0
    %v4383 = vmax.f32 %v3286, 0.0
    %v4384 = vmax.f32 %v3637, 0.0
    %v4385 = vmax.f32 %v3639, 0.0
    %v4386 = vmax.f32 %v3990, 0.0
    %v4387 = vmax.f32 %v3992, 0.0
    %v4388 = vmax.f32 %v2935, 0.0
    %v4389 = vmax.f32 %v2937, 0.0
    %v4390 = vmax.f32 %v3288, 0.0
    %v4391 = vmax.f32 %v3290, 0.0
    %v4392 = vmax.f32 %v3641, 0.0
    %v4393 = vmax.f32 %v3643, 0.0
    %v4394 = vmax.f32 %v3994, 0.0
    %v4395 = vmax.f32 %v3996, 0.0
    %v4396 = vmax.f32 %v2941, 0.0
    %v4397 = vmax.f32 %v2943, 0.0
    %v4398 = vmax.f32 %v3294, 0.0
    %v4399 = vmax.f32 %v3296, 0.0
    %v4400 = vmax.f32 %v3647, 0.0
    %v4401 = vmax.f32 %v3649, 0.0
    %v4402 = vmax.f32 %v4000, 0.0
    %v4403 = vmax.f32 %v4002, 0.0
    %v4404 = vmax.f32 %v2945, 0.0
    %v4405 = vmax.f32 %v2947, 0.0
    %v4406 = vmax.f32 %v3298, 0.0
    %v4407 = vmax.f32 %v3300, 0.0
    %v4408 = vmax.f32 %v3651, 0.0
    %v4409 = vmax.f32 %v3653, 0.0
    %v4410 = vmax.f32 %v4004, 0.0
    %v4411 = vmax.f32 %v4006, 0.0
    %v4412 = vmax.f32 %v2951, 0.0
    %v4413 = vmax.f32 %v2953, 0.0
    %v4414 = vmax.f32 %v3304, 0.0
    %v4415 = vmax.f32 %v3306, 0.0
    %v4416 = vmax.f32 %v3657, 0.0
    %v4417 = vmax.f32 %v3659, 0.0
    %v4418 = vmax.f32 %v4010, 0.0
    %v4419 = vmax.f32 %v4012, 0.0
    %v4420 = vmax.f32 %v2955, 0.0
    %v4421 = vmax.f32 %v2957, 0.0
    %v4422 = vmax.f32 %v3308, 0.0
    %v4423 = vmax.f32 %v3310, 0.0
    %v4424 = vmax.f32 %v3661, 0.0
    %v4425 = vmax.f32 %v3663, 0.0
    %v4426 = vmax.f32 %v4014, 0.0
    %v4427 = vmax.f32 %v4016, 0.0
    %v4428 = vmax.f32 %v2961, 0.0
    %v4429 = vmax.f32 %v2963, 0.0
    %v4430 = vmax.f32 %v3314, 0.0
    %v4431 = vmax.f32 %v3316, 0.0
    %v4432 = vmax.f32 %v3667, 0.0
    %v4433 = vmax.f32 %v3669, 0.0
    %v4434 = vmax.f32 %v4020, 0.0
    %v4435 = vmax.f32 %v4022, 0.0
    %v4436 = vmax.f32 %v2965, 0.0
    %v4437 = vmax.f32 %v2967, 0.0
    %v4438 = vmax.f32 %v3318, 0.0
    %v4439 = vmax.f32 %v3320, 0.0
    %v4440 = vmax.f32 %v3671, 0.0
    %v4441 = vmax.f32 %v3673, 0.0
    %v4442 = vmax.f32 %v4024, 0.0
    %v4443 = vmax.f32 %v4026, 0.0
    %v4444 = vmax.f32 %v2971, 0.0
    %v4445 = vmax.f32 %v2973, 0.0
    %v4446 = vmax.f32 %v3324, 0.0
    %v4447 = vmax.f32 %v3326, 0.0
    %v4448 = vmax.f32 %v3677, 0.0
    %v4449 = vmax.f32 %v3679, 0.0
    %v4450 = vmax.f32 %v4030, 0.0
    %v4451 = vmax.f32 %v4032, 0.0
    %v4452 = vmax.f32 %v2975, 0.0
    %v4453 = vmax.f32 %v2977, 0.0
    %v4454 = vmax.f32 %v3328, 0.0
    %v4455 = vmax.f32 %v3330, 0.0
    %v4456 = vmax.f32 %v3681, 0.0
    %v4457 = vmax.f32 %v3683, 0.0
    %v4458 = vmax.f32 %v4034, 0.0
    %v4459 = vmax.f32 %v4036, 0.0
    %v4460 = vmax.f32 %v2981, 0.0
    %v4461 = vmax.f32 %v2983, 0.0
    %v4462 = vmax.f32 %v3334, 0.0
    %v4463 = vmax.f32 %v3336, 0.0
    %v4464 = vmax.f32 %v3687, 0.0
    %v4465 = vmax.f32 %v3689, 0.0
    %v4466 = vmax.f32 %v4040, 0.0
    %v4467 = vmax.f32 %v4042, 0.0
    %v4468 = vmax.f32 %v2985, 0.0
    %v4469 = vmax.f32 %v2987, 0.0
    %v4470 = vmax.f32 %v3338, 0.0
    %v4471 = vmax.f32 %v3340, 0.0
    %v4472 = vmax.f32 %v3691, 0.0
    %v4473 = vmax.f32 %v3693, 0.0
    %v4474 = vmax.f32 %v4044, 0.0
    %v4475 = vmax.f32 %v4046, 0.0
    %v4476 = vmax.f32 %v2991, 0.0
    %v4477 = vmax.f32 %v2993, 0.0
    %v4478 = vmax.f32 %v3344, 0.0
    %v4479 = vmax.f32 %v3346, 0.0
    %v4480 = vmax.f32 %v3697, 0.0
    %v4481 = vmax.f32 %v3699, 0.0
    %v4482 = vmax.f32 %v4050, 0.0
    %v4483 = vmax.f32 %v4052, 0.0
    %v4484 = vmax.f32 %v2995, 0.0
    %v4485 = vmax.f32 %v2997, 0.0
    %v4486 = vmax.f32 %v3348, 0.0
    %v4487 = vmax.f32 %v3350, 0.0
    %v4488 = vmax.f32 %v3701, 0.0
    %v4489 = vmax.f32 %v3703, 0.0
    %v4490 = vmax.f32 %v4054, 0.0
    %v4491 = vmax.f32 %v4056, 0.0
    %v4492 = vmax.f32 %v3001, 0.0
    %v4493 = vmax.f32 %v3003, 0.0
    %v4494 = vmax.f32 %v3354, 0.0
    %v4495 = vmax.f32 %v3356, 0.0
    %v4496 = vmax.f32 %v3707, 0.0
    %v4497 = vmax.f32 %v3709, 0.0
    %v4498 = vmax.f32 %v4060, 0.0
    %v4499 = vmax.f32 %v4062, 0.0
    %v4500 = vmax.f32 %v3005, 0.0
    %v4501 = vmax.f32 %v3007, 0.0
    %v4502 = vmax.f32 %v3358, 0.0
    %v4503 = vmax.f32 %v3360, 0.0
    %v4504 = vmax.f32 %v3711, 0.0
    %v4505 = vmax.f32 %v3713, 0.0
    %v4506 = vmax.f32 %v4064, 0.0
    %v4507 = vmax.f32 %v4066, 0.0
    %v4508 = vmax.f32 %v3011, 0.0
    %v4509 = vmax.f32 %v3013, 0.0
    %v4510 = vmax.f32 %v3364, 0.0
    %v4511 = vmax.f32 %v3366, 0.0
    %v4512 = vmax.f32 %v3717, 0.0
    %v4513 = vmax.f32 %v3719, 0.0
    %v4514 = vmax.f32 %v4070, 0.0
    %v4515 = vmax.f32 %v4072, 0.0
    %v4516 = vmax.f32 %v3015, 0.0
    %v4517 = vmax.f32 %v3017, 0.0
    %v4518 = vmax.f32 %v3368, 0.0
    %v4519 = vmax.f32 %v3370, 0.0
    %v4520 = vmax.f32 %v3721, 0.0
    %v4521 = vmax.f32 %v3723, 0.0
    %v4522 = vmax.f32 %v4074, 0.0
    %v4523 = vmax.f32 %v4076, 0.0
    %v4524 = vmax.f32 %v3021, 0.0
    %v4525 = vmax.f32 %v3023, 0.0
    %v4526 = vmax.f32 %v3374, 0.0
    %v4527 = vmax.f32 %v3376, 0.0
    %v4528 = vmax.f32 %v3727, 0.0
    %v4529 = vmax.f32 %v3729, 0.0
    %v4530 = vmax.f32 %v4080, 0.0
    %v4531 = vmax.f32 %v4082, 0.0
    %v4532 = vmax.f32 %v3025, 0.0
    %v4533 = vmax.f32 %v3027, 0.0
    %v4534 = vmax.f32 %v3378, 0.0
    %v4535 = vmax.f32 %v3380, 0.0
    %v4536 = vmax.f32 %v3731, 0.0
    %v4537 = vmax.f32 %v3733, 0.0
    %v4538 = vmax.f32 %v4084, 0.0
    %v4539 = vmax.f32 %v4086, 0.0
    %v4540 = vmax.f32 %v3031, 0.0
    %v4541 = vmax.f32 %v3033, 0.0
    %v4542 = vmax.f32 %v3384, 0.0
    %v4543 = vmax.f32 %v3386, 0.0
    %v4544 = vmax.f32 %v3737, 0.0
    %v4545 = vmax.f32 %v3739, 0.0
    %v4546 = vmax.f32 %v4090, 0.0
    %v4547 = vmax.f32 %v4092, 0.0
    %v4548 = vmax.f32 %v3035, 0.0
    %v4549 = vmax.f32 %v3037, 0.0
    %v4550 = vmax.f32 %v3388, 0.0
    %v4551 = vmax.f32 %v3390, 0.0
    %v4552 = vmax.f32 %v3741, 0.0
    %v4553 = vmax.f32 %v3743, 0.0
    %v4554 = vmax.f32 %v4094, 0.0
    %v4555 = vmax.f32 %v4096, 0.0
    %v4556 = vmax.f32 %v3041, 0.0
    %v4557 = vmax.f32 %v3043, 0.0
    %v4558 = vmax.f32 %v3394, 0.0
    %v4559 = vmax.f32 %v3396, 0.0
    %v4560 = vmax.f32 %v3747, 0.0
    %v4561 = vmax.f32 %v3749, 0.0
    %v4562 = vmax.f32 %v4100, 0.0
    %v4563 = vmax.f32 %v4102, 0.0
    %v4564 = vmax.f32 %v3045, 0.0
    %v4565 = vmax.f32 %v3047, 0.0
    %v4566 = vmax.f32 %v3398, 0.0
    %v4567 = vmax.f32 %v3400, 0.0
    %v4568 = vmax.f32 %v3751, 0.0
    %v4569 = vmax.f32 %v3753, 0.0
    %v4570 = vmax.f32 %v4104, 0.0
    %v4571 = vmax.f32 %v4106, 0.0
    %v4572 = vmax.f32 %v3051, 0.0
    %v4573 = vmax.f32 %v3053, 0.0
    %v4574 = vmax.f32 %v3404, 0.0
    %v4575 = vmax.f32 %v3406, 0.0
    %v4576 = vmax.f32 %v3757, 0.0
    %v4577 = vmax.f32 %v3759, 0.0
    %v4578 = vmax.f32 %v4110, 0.0
    %v4579 = vmax.f32 %v4112, 0.0
    %v4580 = vmax.f32 %v3055, 0.0
    %v4581 = vmax.f32 %v3057, 0.0
    %v4582 = vmax.f32 %v3408, 0.0
    %v4583 = vmax.f32 %v3410, 0.0
    %v4584 = vmax.f32 %v3761, 0.0
    %v4585 = vmax.f32 %v3763, 0.0
    %v4586 = vmax.f32 %v4114, 0.0
    %v4587 = vmax.f32 %v4116, 0.0
    %v4588 = vmax.f32 %v3061, 0.0
    %v4589 = vmax.f32 %v3063, 0.0
    %v4590 = vmax.f32 %v3414, 0.0
    %v4591 = vmax.f32 %v3416, 0.0
    %v4592 = vmax.f32 %v3767, 0.0
    %v4593 = vmax.f32 %v3769, 0.0
    %v4594 = vmax.f32 %v4120, 0.0
    %v4595 = vmax.f32 %v4122, 0.0
    %v4596 = vmax.f32 %v3065, 0.0
    %v4597 = vmax.f32 %v3067, 0.0
    %v4598 = vmax.f32 %v3418, 0.0
    %v4599 = vmax.f32 %v3420, 0.0
    %v4600 = vmax.f32 %v3771, 0.0
    %v4601 = vmax.f32 %v3773, 0.0
    %v4602 = vmax.f32 %v4124, 0.0
    %v4603 = vmax.f32 %v4126, 0.0
    %v4604 = vmax.f32 %v3071, 0.0
    %v4605 = vmax.f32 %v3073, 0.0
    %v4606 = vmax.f32 %v3424, 0.0
    %v4607 = vmax.f32 %v3426, 0.0
    %v4608 = vmax.f32 %v3777, 0.0
    %v4609 = vmax.f32 %v3779, 0.0
    %v4610 = vmax.f32 %v4130, 0.0
    %v4611 = vmax.f32 %v4132, 0.0
    %v4612 = vmax.f32 %v3075, 0.0
    %v4613 = vmax.f32 %v3077, 0.0
    %v4614 = vmax.f32 %v3428, 0.0
    %v4615 = vmax.f32 %v3430, 0.0
    %v4616 = vmax.f32 %v3781, 0.0
    %v4617 = vmax.f32 %v3783, 0.0
    %v4618 = vmax.f32 %v4134, 0.0
    %v4619 = vmax.f32 %v4136, 0.0
    %v4620 = vmax.f32 %v3081, 0.0
    %v4621 = vmax.f32 %v3083, 0.0
    %v4622 = vmax.f32 %v3434, 0.0
    %v4623 = vmax.f32 %v3436, 0.0
    %v4624 = vmax.f32 %v3787, 0.0
    %v4625 = vmax.f32 %v3789, 0.0
    %v4626 = vmax.f32 %v4140, 0.0
    %v4627 = vmax.f32 %v4142, 0.0
    %v4628 = vmax.f32 %v3085, 0.0
    %v4629 = vmax.f32 %v3087, 0.0
    %v4630 = vmax.f32 %v3438, 0.0
    %v4631 = vmax.f32 %v3440, 0.0
    %v4632 = vmax.f32 %v3791, 0.0
    %v4633 = vmax.f32 %v3793, 0.0
    %v4634 = vmax.f32 %v4144, 0.0
    %v4635 = vmax.f32 %v4146, 0.0
    %v4636 = vmax.f32 %v3091, 0.0
    %v4637 = vmax.f32 %v3093, 0.0
    %v4638 = vmax.f32 %v3444, 0.0
    %v4639 = vmax.f32 %v3446, 0.0
    %v4640 = vmax.f32 %v3797, 0.0
    %v4641 = vmax.f32 %v3799, 0.0
    %v4642 = vmax.f32 %v4150, 0.0
    %v4643 = vmax.f32 %v4152, 0.0
    %v4644 = vmax.f32 %v3095, 0.0
    %v4645 = vmax.f32 %v3097, 0.0
    %v4646 = vmax.f32 %v3448, 0.0
    %v4647 = vmax.f32 %v3450, 0.0
    %v4648 = vmax.f32 %v3801, 0.0
    %v4649 = vmax.f32 %v3803, 0.0
    %v4650 = vmax.f32 %v4154, 0.0
    %v4651 = vmax.f32 %v4156, 0.0
    %v4652 = vmax.f32 %v3101, 0.0
    %v4653 = vmax.f32 %v3103, 0.0
    %v4654 = vmax.f32 %v3454, 0.0
    %v4655 = vmax.f32 %v3456, 0.0
    %v4656 = vmax.f32 %v3807, 0.0
    %v4657 = vmax.f32 %v3809, 0.0
    %v4658 = vmax.f32 %v4160, 0.0
    %v4659 = vmax.f32 %v4162, 0.0
    %v4660 = vmax.f32 %v3105, 0.0
    %v4661 = vmax.f32 %v3107, 0.0
    %v4662 = vmax.f32 %v3458, 0.0
    %v4663 = vmax.f32 %v3460, 0.0
    %v4664 = vmax.f32 %v3811, 0.0
    %v4665 = vmax.f32 %v3813, 0.0
    %v4666 = vmax.f32 %v4164, 0.0
    %v4667 = vmax.f32 %v4166, 0.0
    %v4668 = vmax.f32 %v3111, 0.0
    %v4669 = vmax.f32 %v3113, 0.0
    %v4670 = vmax.f32 %v3464, 0.0
    %v4671 = vmax.f32 %v3466, 0.0
    %v4672 = vmax.f32 %v3817, 0.0
    %v4673 = vmax.f32 %v3819, 0.0
    %v4674 = vmax.f32 %v4170, 0.0
    %v4675 = vmax.f32 %v4172, 0.0
    %v4676 = vmax.f32 %v3115, 0.0
    %v4677 = vmax.f32 %v3117, 0.0
    %v4678 = vmax.f32 %v3468, 0.0
    %v4679 = vmax.f32 %v3470, 0.0
    %v4680 = vmax.f32 %v3821, 0.0
    %v4681 = vmax.f32 %v3823, 0.0
    %v4682 = vmax.f32 %v4174, 0.0
    %v4683 = vmax.f32 %v4176, 0.0
    %v4684 = vmax.f32 %v3121, 0.0
    %v4685 = vmax.f32 %v3123, 0.0
    %v4686 = vmax.f32 %v3474, 0.0
    %v4687 = vmax.f32 %v3476, 0.0
    %v4688 = vmax.f32 %v3827, 0.0
    %v4689 = vmax.f32 %v3829, 0.0
    %v4690 = vmax.f32 %v4180, 0.0
    %v4691 = vmax.f32 %v4182, 0.0
    %v4692 = vmax.f32 %v3125, 0.0
    %v4693 = vmax.f32 %v3127, 0.0
    %v4694 = vmax.f32 %v3478, 0.0
    %v4695 = vmax.f32 %v3480, 0.0
    %v4696 = vmax.f32 %v3831, 0.0
    %v4697 = vmax.f32 %v3833, 0.0
    %v4698 = vmax.f32 %v4184, 0.0
    %v4699 = vmax.f32 %v4186, 0.0
    %v4700 = vpack.c.bf16 %v4196, %v4188
    %v4701 = vpack.c.bf16 %v4197, %v4189
    %v4702 = vpack.c.bf16 %v4198, %v4190
    %v4703 = vpack.c.bf16 %v4199, %v4191
    %v4704 = vpack.c.bf16 %v4200, %v4192
    %v4705 = vpack.c.bf16 %v4201, %v4193
    %v4706 = vpack.c.bf16 %v4202, %v4194
    %v4707 = vpack.c.bf16 %v4203, %v4195
    %v4708 = vpack.c.bf16 %v4212, %v4204
    %v4709 = vpack.c.bf16 %v4213, %v4205
    %v4710 = vpack.c.bf16 %v4214, %v4206
    %v4711 = vpack.c.bf16 %v4215, %v4207
    %v4712 = vpack.c.bf16 %v4216, %v4208
    %v4713 = vpack.c.bf16 %v4217, %v4209
    %v4714 = vpack.c.bf16 %v4218, %v4210
    %v4715 = vpack.c.bf16 %v4219, %v4211
    %v4716 = vpack.c.bf16 %v4228, %v4220
    %v4717 = vpack.c.bf16 %v4229, %v4221
    %v4718 = vpack.c.bf16 %v4230, %v4222
    %v4719 = vpack.c.bf16 %v4231, %v4223
    %v4720 = vpack.c.bf16 %v4232, %v4224
    %v4721 = vpack.c.bf16 %v4233, %v4225
    %v4722 = vpack.c.bf16 %v4234, %v4226
    %v4723 = vpack.c.bf16 %v4235, %v4227
    %v4724 = vpack.c.bf16 %v4244, %v4236
    %v4725 = vpack.c.bf16 %v4245, %v4237
    %v4726 = vpack.c.bf16 %v4246, %v4238
    %v4727 = vpack.c.bf16 %v4247, %v4239
    %v4728 = vpack.c.bf16 %v4248, %v4240
    %v4729 = vpack.c.bf16 %v4249, %v4241
    %v4730 = vpack.c.bf16 %v4250, %v4242
    %v4731 = vpack.c.bf16 %v4251, %v4243
    %v4732 = vpack.c.bf16 %v4260, %v4252
    %v4733 = vpack.c.bf16 %v4261, %v4253
    %v4734 = vpack.c.bf16 %v4262, %v4254
    %v4735 = vpack.c.bf16 %v4263, %v4255
    %v4736 = vpack.c.bf16 %v4264, %v4256
    %v4737 = vpack.c.bf16 %v4265, %v4257
    %v4738 = vpack.c.bf16 %v4266, %v4258
    %v4739 = vpack.c.bf16 %v4267, %v4259
    %v4740 = vpack.c.bf16 %v4276, %v4268
    %v4741 = vpack.c.bf16 %v4277, %v4269
    %v4742 = vpack.c.bf16 %v4278, %v4270
    %v4743 = vpack.c.bf16 %v4279, %v4271
    %v4744 = vpack.c.bf16 %v4280, %v4272
    %v4745 = vpack.c.bf16 %v4281, %v4273
    %v4746 = vpack.c.bf16 %v4282, %v4274
    %v4747 = vpack.c.bf16 %v4283, %v4275
    %v4748 = vpack.c.bf16 %v4292, %v4284
    %v4749 = vpack.c.bf16 %v4293, %v4285
    %v4750 = vpack.c.bf16 %v4294, %v4286
    %v4751 = vpack.c.bf16 %v4295, %v4287
    %v4752 = vpack.c.bf16 %v4296, %v4288
    %v4753 = vpack.c.bf16 %v4297, %v4289
    %v4754 = vpack.c.bf16 %v4298, %v4290
    %v4755 = vpack.c.bf16 %v4299, %v4291
    %v4756 = vpack.c.bf16 %v4308, %v4300
    %v4757 = vpack.c.bf16 %v4309, %v4301
    %v4758 = vpack.c.bf16 %v4310, %v4302
    %v4759 = vpack.c.bf16 %v4311, %v4303
    %v4760 = vpack.c.bf16 %v4312, %v4304
    %v4761 = vpack.c.bf16 %v4313, %v4305
    %v4762 = vpack.c.bf16 %v4314, %v4306
    %v4763 = vpack.c.bf16 %v4315, %v4307
    %v4764 = vpack.c.bf16 %v4324, %v4316
    %v4765 = vpack.c.bf16 %v4325, %v4317
    %v4766 = vpack.c.bf16 %v4326, %v4318
    %v4767 = vpack.c.bf16 %v4327, %v4319
    %v4768 = vpack.c.bf16 %v4328, %v4320
    %v4769 = vpack.c.bf16 %v4329, %v4321
    %v4770 = vpack.c.bf16 %v4330, %v4322
    %v4771 = vpack.c.bf16 %v4331, %v4323
    %v4772 = vpack.c.bf16 %v4340, %v4332
    %v4773 = vpack.c.bf16 %v4341, %v4333
    %v4774 = vpack.c.bf16 %v4342, %v4334
    %v4775 = vpack.c.bf16 %v4343, %v4335
    %v4776 = vpack.c.bf16 %v4344, %v4336
    %v4777 = vpack.c.bf16 %v4345, %v4337
    %v4778 = vpack.c.bf16 %v4346, %v4338
    %v4779 = vpack.c.bf16 %v4347, %v4339
    %v4780 = vpack.c.bf16 %v4356, %v4348
    %v4781 = vpack.c.bf16 %v4357, %v4349
    %v4782 = vpack.c.bf16 %v4358, %v4350
    %v4783 = vpack.c.bf16 %v4359, %v4351
    %v4784 = vpack.c.bf16 %v4360, %v4352
    %v4785 = vpack.c.bf16 %v4361, %v4353
    %v4786 = vpack.c.bf16 %v4362, %v4354
    %v4787 = vpack.c.bf16 %v4363, %v4355
    %v4788 = vpack.c.bf16 %v4372, %v4364
    %v4789 = vpack.c.bf16 %v4373, %v4365
    %v4790 = vpack.c.bf16 %v4374, %v4366
    %v4791 = vpack.c.bf16 %v4375, %v4367
    %v4792 = vpack.c.bf16 %v4376, %v4368
    %v4793 = vpack.c.bf16 %v4377, %v4369
    %v4794 = vpack.c.bf16 %v4378, %v4370
    %v4795 = vpack.c.bf16 %v4379, %v4371
    %v4796 = vpack.c.bf16 %v4388, %v4380
    %v4797 = vpack.c.bf16 %v4389, %v4381
    %v4798 = vpack.c.bf16 %v4390, %v4382
    %v4799 = vpack.c.bf16 %v4391, %v4383
    %v4800 = vpack.c.bf16 %v4392, %v4384
    %v4801 = vpack.c.bf16 %v4393, %v4385
    %v4802 = vpack.c.bf16 %v4394, %v4386
    %v4803 = vpack.c.bf16 %v4395, %v4387
    %v4804 = vpack.c.bf16 %v4404, %v4396
    %v4805 = vpack.c.bf16 %v4405, %v4397
    %v4806 = vpack.c.bf16 %v4406, %v4398
    %v4807 = vpack.c.bf16 %v4407, %v4399
    %v4808 = vpack.c.bf16 %v4408, %v4400
    %v4809 = vpack.c.bf16 %v4409, %v4401
    %v4810 = vpack.c.bf16 %v4410, %v4402
    %v4811 = vpack.c.bf16 %v4411, %v4403
    %v4812 = vpack.c.bf16 %v4420, %v4412
    %v4813 = vpack.c.bf16 %v4421, %v4413
    %v4814 = vpack.c.bf16 %v4422, %v4414
    %v4815 = vpack.c.bf16 %v4423, %v4415
    %v4816 = vpack.c.bf16 %v4424, %v4416
    %v4817 = vpack.c.bf16 %v4425, %v4417
    %v4818 = vpack.c.bf16 %v4426, %v4418
    %v4819 = vpack.c.bf16 %v4427, %v4419
    %v4820 = vpack.c.bf16 %v4436, %v4428
    %v4821 = vpack.c.bf16 %v4437, %v4429
    %v4822 = vpack.c.bf16 %v4438, %v4430
    %v4823 = vpack.c.bf16 %v4439, %v4431
    %v4824 = vpack.c.bf16 %v4440, %v4432
    %v4825 = vpack.c.bf16 %v4441, %v4433
    %v4826 = vpack.c.bf16 %v4442, %v4434
    %v4827 = vpack.c.bf16 %v4443, %v4435
    %v4828 = vpack.c.bf16 %v4452, %v4444
    %v4829 = vpack.c.bf16 %v4453, %v4445
    %v4830 = vpack.c.bf16 %v4454, %v4446
    %v4831 = vpack.c.bf16 %v4455, %v4447
    %v4832 = vpack.c.bf16 %v4456, %v4448
    %v4833 = vpack.c.bf16 %v4457, %v4449
    %v4834 = vpack.c.bf16 %v4458, %v4450
    %v4835 = vpack.c.bf16 %v4459, %v4451
    %v4836 = vpack.c.bf16 %v4468, %v4460
    %v4837 = vpack.c.bf16 %v4469, %v4461
    %v4838 = vpack.c.bf16 %v4470, %v4462
    %v4839 = vpack.c.bf16 %v4471, %v4463
    %v4840 = vpack.c.bf16 %v4472, %v4464
    %v4841 = vpack.c.bf16 %v4473, %v4465
    %v4842 = vpack.c.bf16 %v4474, %v4466
    %v4843 = vpack.c.bf16 %v4475, %v4467
    %v4844 = vpack.c.bf16 %v4484, %v4476
    %v4845 = vpack.c.bf16 %v4485, %v4477
    %v4846 = vpack.c.bf16 %v4486, %v4478
    %v4847 = vpack.c.bf16 %v4487, %v4479
    %v4848 = vpack.c.bf16 %v4488, %v4480
    %v4849 = vpack.c.bf16 %v4489, %v4481
    %v4850 = vpack.c.bf16 %v4490, %v4482
    %v4851 = vpack.c.bf16 %v4491, %v4483
    %v4852 = vpack.c.bf16 %v4500, %v4492
    %v4853 = vpack.c.bf16 %v4501, %v4493
    %v4854 = vpack.c.bf16 %v4502, %v4494
    %v4855 = vpack.c.bf16 %v4503, %v4495
    %v4856 = vpack.c.bf16 %v4504, %v4496
    %v4857 = vpack.c.bf16 %v4505, %v4497
    %v4858 = vpack.c.bf16 %v4506, %v4498
    %v4859 = vpack.c.bf16 %v4507, %v4499
    %v4860 = vpack.c.bf16 %v4516, %v4508
    %v4861 = vpack.c.bf16 %v4517, %v4509
    %v4862 = vpack.c.bf16 %v4518, %v4510
    %v4863 = vpack.c.bf16 %v4519, %v4511
    %v4864 = vpack.c.bf16 %v4520, %v4512
    %v4865 = vpack.c.bf16 %v4521, %v4513
    %v4866 = vpack.c.bf16 %v4522, %v4514
    %v4867 = vpack.c.bf16 %v4523, %v4515
    %v4868 = vpack.c.bf16 %v4532, %v4524
    %v4869 = vpack.c.bf16 %v4533, %v4525
    %v4870 = vpack.c.bf16 %v4534, %v4526
    %v4871 = vpack.c.bf16 %v4535, %v4527
    %v4872 = vpack.c.bf16 %v4536, %v4528
    %v4873 = vpack.c.bf16 %v4537, %v4529
    %v4874 = vpack.c.bf16 %v4538, %v4530
    %v4875 = vpack.c.bf16 %v4539, %v4531
    %v4876 = vpack.c.bf16 %v4548, %v4540
    %v4877 = vpack.c.bf16 %v4549, %v4541
    %v4878 = vpack.c.bf16 %v4550, %v4542
    %v4879 = vpack.c.bf16 %v4551, %v4543
    %v4880 = vpack.c.bf16 %v4552, %v4544
    %v4881 = vpack.c.bf16 %v4553, %v4545
    %v4882 = vpack.c.bf16 %v4554, %v4546
    %v4883 = vpack.c.bf16 %v4555, %v4547
    %v4884 = vpack.c.bf16 %v4564, %v4556
    %v4885 = vpack.c.bf16 %v4565, %v4557
    %v4886 = vpack.c.bf16 %v4566, %v4558
    %v4887 = vpack.c.bf16 %v4567, %v4559
    %v4888 = vpack.c.bf16 %v4568, %v4560
    %v4889 = vpack.c.bf16 %v4569, %v4561
    %v4890 = vpack.c.bf16 %v4570, %v4562
    %v4891 = vpack.c.bf16 %v4571, %v4563
    %v4892 = vpack.c.bf16 %v4580, %v4572
    %v4893 = vpack.c.bf16 %v4581, %v4573
    %v4894 = vpack.c.bf16 %v4582, %v4574
    %v4895 = vpack.c.bf16 %v4583, %v4575
    %v4896 = vpack.c.bf16 %v4584, %v4576
    %v4897 = vpack.c.bf16 %v4585, %v4577
    %v4898 = vpack.c.bf16 %v4586, %v4578
    %v4899 = vpack.c.bf16 %v4587, %v4579
    %v4900 = vpack.c.bf16 %v4596, %v4588
    %v4901 = vpack.c.bf16 %v4597, %v4589
    %v4902 = vpack.c.bf16 %v4598, %v4590
    %v4903 = vpack.c.bf16 %v4599, %v4591
    %v4904 = vpack.c.bf16 %v4600, %v4592
    %v4905 = vpack.c.bf16 %v4601, %v4593
    %v4906 = vpack.c.bf16 %v4602, %v4594
    %v4907 = vpack.c.bf16 %v4603, %v4595
    %v4908 = vpack.c.bf16 %v4612, %v4604
    %v4909 = vpack.c.bf16 %v4613, %v4605
    %v4910 = vpack.c.bf16 %v4614, %v4606
    %v4911 = vpack.c.bf16 %v4615, %v4607
    %v4912 = vpack.c.bf16 %v4616, %v4608
    %v4913 = vpack.c.bf16 %v4617, %v4609
    %v4914 = vpack.c.bf16 %v4618, %v4610
    %v4915 = vpack.c.bf16 %v4619, %v4611
    %v4916 = vpack.c.bf16 %v4628, %v4620
    %v4917 = vpack.c.bf16 %v4629, %v4621
    %v4918 = vpack.c.bf16 %v4630, %v4622
    %v4919 = vpack.c.bf16 %v4631, %v4623
    %v4920 = vpack.c.bf16 %v4632, %v4624
    %v4921 = vpack.c.bf16 %v4633, %v4625
    %v4922 = vpack.c.bf16 %v4634, %v4626
    %v4923 = vpack.c.bf16 %v4635, %v4627
    %v4924 = vpack.c.bf16 %v4644, %v4636
    %v4925 = vpack.c.bf16 %v4645, %v4637
    %v4926 = vpack.c.bf16 %v4646, %v4638
    %v4927 = vpack.c.bf16 %v4647, %v4639
    %v4928 = vpack.c.bf16 %v4648, %v4640
    %v4929 = vpack.c.bf16 %v4649, %v4641
    %v4930 = vpack.c.bf16 %v4650, %v4642
    %v4931 = vpack.c.bf16 %v4651, %v4643
    %v4932 = vpack.c.bf16 %v4660, %v4652
    %v4933 = vpack.c.bf16 %v4661, %v4653
    %v4934 = vpack.c.bf16 %v4662, %v4654
    %v4935 = vpack.c.bf16 %v4663, %v4655
    %v4936 = vpack.c.bf16 %v4664, %v4656
    %v4937 = vpack.c.bf16 %v4665, %v4657
    %v4938 = vpack.c.bf16 %v4666, %v4658
    %v4939 = vpack.c.bf16 %v4667, %v4659
    %v4940 = vpack.c.bf16 %v4676, %v4668
    %v4941 = vpack.c.bf16 %v4677, %v4669
    %v4942 = vpack.c.bf16 %v4678, %v4670
    %v4943 = vpack.c.bf16 %v4679, %v4671
    %v4944 = vpack.c.bf16 %v4680, %v4672
    %v4945 = vpack.c.bf16 %v4681, %v4673
    %v4946 = vpack.c.bf16 %v4682, %v4674
    %v4947 = vpack.c.bf16 %v4683, %v4675
    %v4948 = vpack.c.bf16 %v4692, %v4684
    %v4949 = vpack.c.bf16 %v4693, %v4685
    %v4950 = vpack.c.bf16 %v4694, %v4686
    %v4951 = vpack.c.bf16 %v4695, %v4687
    %v4952 = vpack.c.bf16 %v4696, %v4688
    %v4953 = vpack.c.bf16 %v4697, %v4689
    %v4954 = vpack.c.bf16 %v4698, %v4690
    %v4955 = vpack.c.bf16 %v4699, %v4691
    %v4956 = vld [vmem:[#allocation7] sm:$0xff]
    %v4957 = vld [vmem:[#allocation7 + $0x8] sm:$0xff]
    %v4958 = vld [vmem:[#allocation7 + $0x10] sm:$0xff]
    %v4959 = vld [vmem:[#allocation7 + $0x18] sm:$0xff]
    %v4960 = vld [vmem:[#allocation7 + $0x20] sm:$0xff]
    %v4961 = vld [vmem:[#allocation7 + $0x28] sm:$0xff]
    %v4962 = vld [vmem:[#allocation7 + $0x30] sm:$0xff]
    %v4963 = vld [vmem:[#allocation7 + $0x38] sm:$0xff]
    %v4964 = vld [vmem:[#allocation7 + $0x40] sm:$0xff]
    %v4965 = vld [vmem:[#allocation7 + $0x48] sm:$0xff]
    %v4966 = vld [vmem:[#allocation7 + $0x50] sm:$0xff]
    %v4967 = vld [vmem:[#allocation7 + $0x58] sm:$0xff]
    %v4968 = vld [vmem:[#allocation7 + $0x60] sm:$0xff]
    %v4969 = vld [vmem:[#allocation7 + $0x68] sm:$0xff]
    %v4970 = vld [vmem:[#allocation7 + $0x70] sm:$0xff]
    %v4971 = vld [vmem:[#allocation7 + $0x78] sm:$0xff]
    %v4972 = vld [vmem:[#allocation7 + $0x80] sm:$0xff]
    %v4973 = vld [vmem:[#allocation7 + $0x88] sm:$0xff]
    %v4974 = vld [vmem:[#allocation7 + $0x90] sm:$0xff]
    %v4975 = vld [vmem:[#allocation7 + $0x98] sm:$0xff]
    %v4976 = vld [vmem:[#allocation7 + $0xa0] sm:$0xff]
    %v4977 = vld [vmem:[#allocation7 + $0xa8] sm:$0xff]
    %v4978 = vld [vmem:[#allocation7 + $0xb0] sm:$0xff]
    %v4979 = vld [vmem:[#allocation7 + $0xb8] sm:$0xff]
    %v4980 = vld [vmem:[#allocation7 + $0xc0] sm:$0xff]
    %v4981 = vld [vmem:[#allocation7 + $0xc8] sm:$0xff]
    %v4982 = vld [vmem:[#allocation7 + $0xd0] sm:$0xff]
    %v4983 = vld [vmem:[#allocation7 + $0xd8] sm:$0xff]
    %v4984 = vld [vmem:[#allocation7 + $0xe0] sm:$0xff]
    %v4985 = vld [vmem:[#allocation7 + $0xe8] sm:$0xff]
    %v4986 = vld [vmem:[#allocation7 + $0xf0] sm:$0xff]
    %v4987 = vld [vmem:[#allocation7 + $0xf8] sm:$0xff]
    %v4988 = vld [vmem:[#allocation7 + $0x100] sm:$0xff]
    %v4989 = vld [vmem:[#allocation7 + $0x108] sm:$0xff]
    %v4990 = vld [vmem:[#allocation7 + $0x110] sm:$0xff]
    %v4991 = vld [vmem:[#allocation7 + $0x118] sm:$0xff]
    %v4992 = vld [vmem:[#allocation7 + $0x120] sm:$0xff]
    %v4993 = vld [vmem:[#allocation7 + $0x128] sm:$0xff]
    %v4994 = vld [vmem:[#allocation7 + $0x130] sm:$0xff]
    %v4995 = vld [vmem:[#allocation7 + $0x138] sm:$0xff]
    %v4996 = vld [vmem:[#allocation7 + $0x140] sm:$0xff]
    %v4997 = vld [vmem:[#allocation7 + $0x148] sm:$0xff]
    %v4998 = vld [vmem:[#allocation7 + $0x150] sm:$0xff]
    %v4999 = vld [vmem:[#allocation7 + $0x158] sm:$0xff]
    %v5000 = vld [vmem:[#allocation7 + $0x160] sm:$0xff]
    %v5001 = vld [vmem:[#allocation7 + $0x168] sm:$0xff]
    %v5002 = vld [vmem:[#allocation7 + $0x170] sm:$0xff]
    %v5003 = vld [vmem:[#allocation7 + $0x178] sm:$0xff]
    %v5004 = vld [vmem:[#allocation7 + $0x180] sm:$0xff]
    %v5005 = vld [vmem:[#allocation7 + $0x188] sm:$0xff]
    %v5006 = vld [vmem:[#allocation7 + $0x190] sm:$0xff]
    %v5007 = vld [vmem:[#allocation7 + $0x198] sm:$0xff]
    %v5008 = vld [vmem:[#allocation7 + $0x1a0] sm:$0xff]
    %v5009 = vld [vmem:[#allocation7 + $0x1a8] sm:$0xff]
    %v5010 = vld [vmem:[#allocation7 + $0x1b0] sm:$0xff]
    %v5011 = vld [vmem:[#allocation7 + $0x1b8] sm:$0xff]
    %v5012 = vld [vmem:[#allocation7 + $0x1c0] sm:$0xff]
    %v5013 = vld [vmem:[#allocation7 + $0x1c8] sm:$0xff]
    %v5014 = vld [vmem:[#allocation7 + $0x1d0] sm:$0xff]
    %v5015 = vld [vmem:[#allocation7 + $0x1d8] sm:$0xff]
    %v5016 = vld [vmem:[#allocation7 + $0x1e0] sm:$0xff]
    %v5017 = vld [vmem:[#allocation7 + $0x1e8] sm:$0xff]
    %v5018 = vld [vmem:[#allocation7 + $0x1f0] sm:$0xff]
    %v5019 = vld [vmem:[#allocation7 + $0x1f8] sm:$0xff]
    %v5020 = vld [vmem:[#allocation7 + $0x200] sm:$0xff]
    %v5021 = vld [vmem:[#allocation7 + $0x208] sm:$0xff]
    %v5022 = vld [vmem:[#allocation7 + $0x210] sm:$0xff]
    %v5023 = vld [vmem:[#allocation7 + $0x218] sm:$0xff]
    %v5024 = vld [vmem:[#allocation7 + $0x220] sm:$0xff]
    %v5025 = vld [vmem:[#allocation7 + $0x228] sm:$0xff]
    %v5026 = vld [vmem:[#allocation7 + $0x230] sm:$0xff]
    %v5027 = vld [vmem:[#allocation7 + $0x238] sm:$0xff]
    %v5028 = vld [vmem:[#allocation7 + $0x240] sm:$0xff]
    %v5029 = vld [vmem:[#allocation7 + $0x248] sm:$0xff]
    %v5030 = vld [vmem:[#allocation7 + $0x250] sm:$0xff]
    %v5031 = vld [vmem:[#allocation7 + $0x258] sm:$0xff]
    %v5032 = vld [vmem:[#allocation7 + $0x260] sm:$0xff]
    %v5033 = vld [vmem:[#allocation7 + $0x268] sm:$0xff]
    %v5034 = vld [vmem:[#allocation7 + $0x270] sm:$0xff]
    %v5035 = vld [vmem:[#allocation7 + $0x278] sm:$0xff]
    %v5036 = vld [vmem:[#allocation7 + $0x280] sm:$0xff]
    %v5037 = vld [vmem:[#allocation7 + $0x288] sm:$0xff]
    %v5038 = vld [vmem:[#allocation7 + $0x290] sm:$0xff]
    %v5039 = vld [vmem:[#allocation7 + $0x298] sm:$0xff]
    %v5040 = vld [vmem:[#allocation7 + $0x2a0] sm:$0xff]
    %v5041 = vld [vmem:[#allocation7 + $0x2a8] sm:$0xff]
    %v5042 = vld [vmem:[#allocation7 + $0x2b0] sm:$0xff]
    %v5043 = vld [vmem:[#allocation7 + $0x2b8] sm:$0xff]
    %v5044 = vld [vmem:[#allocation7 + $0x2c0] sm:$0xff]
    %v5045 = vld [vmem:[#allocation7 + $0x2c8] sm:$0xff]
    %v5046 = vld [vmem:[#allocation7 + $0x2d0] sm:$0xff]
    %v5047 = vld [vmem:[#allocation7 + $0x2d8] sm:$0xff]
    %v5048 = vld [vmem:[#allocation7 + $0x2e0] sm:$0xff]
    %v5049 = vld [vmem:[#allocation7 + $0x2e8] sm:$0xff]
    %v5050 = vld [vmem:[#allocation7 + $0x2f0] sm:$0xff]
    %v5051 = vld [vmem:[#allocation7 + $0x2f8] sm:$0xff]
    %v5052 = vld [vmem:[#allocation7 + $0x300] sm:$0xff]
    %v5053 = vld [vmem:[#allocation7 + $0x308] sm:$0xff]
    %v5054 = vld [vmem:[#allocation7 + $0x310] sm:$0xff]
    %v5055 = vld [vmem:[#allocation7 + $0x318] sm:$0xff]
    %v5056 = vld [vmem:[#allocation7 + $0x320] sm:$0xff]
    %v5057 = vld [vmem:[#allocation7 + $0x328] sm:$0xff]
    %v5058 = vld [vmem:[#allocation7 + $0x330] sm:$0xff]
    %v5059 = vld [vmem:[#allocation7 + $0x338] sm:$0xff]
    %v5060 = vld [vmem:[#allocation7 + $0x340] sm:$0xff]
    %v5061 = vld [vmem:[#allocation7 + $0x348] sm:$0xff]
    %v5062 = vld [vmem:[#allocation7 + $0x350] sm:$0xff]
    %v5063 = vld [vmem:[#allocation7 + $0x358] sm:$0xff]
    %v5064 = vld [vmem:[#allocation7 + $0x360] sm:$0xff]
    %v5065 = vld [vmem:[#allocation7 + $0x368] sm:$0xff]
    %v5066 = vld [vmem:[#allocation7 + $0x370] sm:$0xff]
    %v5067 = vld [vmem:[#allocation7 + $0x378] sm:$0xff]
    %v5068 = vld [vmem:[#allocation7 + $0x380] sm:$0xff]
    %v5069 = vld [vmem:[#allocation7 + $0x388] sm:$0xff]
    %v5070 = vld [vmem:[#allocation7 + $0x390] sm:$0xff]
    %v5071 = vld [vmem:[#allocation7 + $0x398] sm:$0xff]
    %v5072 = vld [vmem:[#allocation7 + $0x3a0] sm:$0xff]
    %v5073 = vld [vmem:[#allocation7 + $0x3a8] sm:$0xff]
    %v5074 = vld [vmem:[#allocation7 + $0x3b0] sm:$0xff]
    %v5075 = vld [vmem:[#allocation7 + $0x3b8] sm:$0xff]
    %v5076 = vld [vmem:[#allocation7 + $0x3c0] sm:$0xff]
    %v5077 = vld [vmem:[#allocation7 + $0x3c8] sm:$0xff]
    %v5078 = vld [vmem:[#allocation7 + $0x3d0] sm:$0xff]
    %v5079 = vld [vmem:[#allocation7 + $0x3d8] sm:$0xff]
    %v5080 = vld [vmem:[#allocation7 + $0x3e0] sm:$0xff]
    %v5081 = vld [vmem:[#allocation7 + $0x3e8] sm:$0xff]
    %v5082 = vld [vmem:[#allocation7 + $0x3f0] sm:$0xff]
    %v5083 = vld [vmem:[#allocation7 + $0x3f8] sm:$0xff]
    %v5212 = vunpack.c.l.b16 %v4956
    %v5213 = vunpack.c.h.b16 %v4956
    %v5214 = vunpack.c.l.b16 %v4957
    %v5215 = vunpack.c.h.b16 %v4957
    %v5216 = vunpack.c.l.b16 %v4958
    %v5217 = vunpack.c.h.b16 %v4958
    %v5218 = vunpack.c.l.b16 %v4959
    %v5219 = vunpack.c.h.b16 %v4959
    %v5220 = vunpack.c.l.b16 %v4960
    %v5221 = vunpack.c.h.b16 %v4960
    %v5222 = vunpack.c.l.b16 %v4961
    %v5223 = vunpack.c.h.b16 %v4961
    %v5224 = vunpack.c.l.b16 %v4962
    %v5225 = vunpack.c.h.b16 %v4962
    %v5226 = vunpack.c.l.b16 %v4963
    %v5227 = vunpack.c.h.b16 %v4963
    %v5228 = vunpack.c.l.b16 %v4964
    %v5229 = vunpack.c.h.b16 %v4964
    %v5230 = vunpack.c.l.b16 %v4965
    %v5231 = vunpack.c.h.b16 %v4965
    %v5232 = vunpack.c.l.b16 %v4966
    %v5233 = vunpack.c.h.b16 %v4966
    %v5234 = vunpack.c.l.b16 %v4967
    %v5235 = vunpack.c.h.b16 %v4967
    %v5236 = vunpack.c.l.b16 %v4968
    %v5237 = vunpack.c.h.b16 %v4968
    %v5238 = vunpack.c.l.b16 %v4969
    %v5239 = vunpack.c.h.b16 %v4969
    %v5240 = vunpack.c.l.b16 %v4970
    %v5241 = vunpack.c.h.b16 %v4970
    %v5242 = vunpack.c.l.b16 %v4971
    %v5243 = vunpack.c.h.b16 %v4971
    %v5244 = vunpack.c.l.b16 %v4972
    %v5245 = vunpack.c.h.b16 %v4972
    %v5246 = vunpack.c.l.b16 %v4973
    %v5247 = vunpack.c.h.b16 %v4973
    %v5248 = vunpack.c.l.b16 %v4974
    %v5249 = vunpack.c.h.b16 %v4974
    %v5250 = vunpack.c.l.b16 %v4975
    %v5251 = vunpack.c.h.b16 %v4975
    %v5252 = vunpack.c.l.b16 %v4976
    %v5253 = vunpack.c.h.b16 %v4976
    %v5254 = vunpack.c.l.b16 %v4977
    %v5255 = vunpack.c.h.b16 %v4977
    %v5256 = vunpack.c.l.b16 %v4978
    %v5257 = vunpack.c.h.b16 %v4978
    %v5258 = vunpack.c.l.b16 %v4979
    %v5259 = vunpack.c.h.b16 %v4979
    %v5260 = vunpack.c.l.b16 %v4980
    %v5261 = vunpack.c.h.b16 %v4980
    %v5262 = vunpack.c.l.b16 %v4981
    %v5263 = vunpack.c.h.b16 %v4981
    %v5264 = vunpack.c.l.b16 %v4982
    %v5265 = vunpack.c.h.b16 %v4982
    %v5266 = vunpack.c.l.b16 %v4983
    %v5267 = vunpack.c.h.b16 %v4983
    %v5268 = vunpack.c.l.b16 %v4984
    %v5269 = vunpack.c.h.b16 %v4984
    %v5270 = vunpack.c.l.b16 %v4985
    %v5271 = vunpack.c.h.b16 %v4985
    %v5272 = vunpack.c.l.b16 %v4986
    %v5273 = vunpack.c.h.b16 %v4986
    %v5274 = vunpack.c.l.b16 %v4987
    %v5275 = vunpack.c.h.b16 %v4987
    %v5276 = vunpack.c.l.b16 %v4988
    %v5277 = vunpack.c.h.b16 %v4988
    %v5278 = vunpack.c.l.b16 %v4989
    %v5279 = vunpack.c.h.b16 %v4989
    %v5280 = vunpack.c.l.b16 %v4990
    %v5281 = vunpack.c.h.b16 %v4990
    %v5282 = vunpack.c.l.b16 %v4991
    %v5283 = vunpack.c.h.b16 %v4991
    %v5284 = vunpack.c.l.b16 %v4992
    %v5285 = vunpack.c.h.b16 %v4992
    %v5286 = vunpack.c.l.b16 %v4993
    %v5287 = vunpack.c.h.b16 %v4993
    %v5288 = vunpack.c.l.b16 %v4994
    %v5289 = vunpack.c.h.b16 %v4994
    %v5290 = vunpack.c.l.b16 %v4995
    %v5291 = vunpack.c.h.b16 %v4995
    %v5292 = vunpack.c.l.b16 %v4996
    %v5293 = vunpack.c.h.b16 %v4996
    %v5294 = vunpack.c.l.b16 %v4997
    %v5295 = vunpack.c.h.b16 %v4997
    %v5296 = vunpack.c.l.b16 %v4998
    %v5297 = vunpack.c.h.b16 %v4998
    %v5298 = vunpack.c.l.b16 %v4999
    %v5299 = vunpack.c.h.b16 %v4999
    %v5300 = vunpack.c.l.b16 %v5000
    %v5301 = vunpack.c.h.b16 %v5000
    %v5302 = vunpack.c.l.b16 %v5001
    %v5303 = vunpack.c.h.b16 %v5001
    %v5304 = vunpack.c.l.b16 %v5002
    %v5305 = vunpack.c.h.b16 %v5002
    %v5306 = vunpack.c.l.b16 %v5003
    %v5307 = vunpack.c.h.b16 %v5003
    %v5308 = vunpack.c.l.b16 %v5004
    %v5309 = vunpack.c.h.b16 %v5004
    %v5310 = vunpack.c.l.b16 %v5005
    %v5311 = vunpack.c.h.b16 %v5005
    %v5312 = vunpack.c.l.b16 %v5006
    %v5313 = vunpack.c.h.b16 %v5006
    %v5314 = vunpack.c.l.b16 %v5007
    %v5315 = vunpack.c.h.b16 %v5007
    %v5316 = vunpack.c.l.b16 %v5008
    %v5317 = vunpack.c.h.b16 %v5008
    %v5318 = vunpack.c.l.b16 %v5009
    %v5319 = vunpack.c.h.b16 %v5009
    %v5320 = vunpack.c.l.b16 %v5010
    %v5321 = vunpack.c.h.b16 %v5010
    %v5322 = vunpack.c.l.b16 %v5011
    %v5323 = vunpack.c.h.b16 %v5011
    %v5324 = vunpack.c.l.b16 %v5012
    %v5325 = vunpack.c.h.b16 %v5012
    %v5326 = vunpack.c.l.b16 %v5013
    %v5327 = vunpack.c.h.b16 %v5013
    %v5328 = vunpack.c.l.b16 %v5014
    %v5329 = vunpack.c.h.b16 %v5014
    %v5330 = vunpack.c.l.b16 %v5015
    %v5331 = vunpack.c.h.b16 %v5015
    %v5332 = vunpack.c.l.b16 %v5016
    %v5333 = vunpack.c.h.b16 %v5016
    %v5334 = vunpack.c.l.b16 %v5017
    %v5335 = vunpack.c.h.b16 %v5017
    %v5336 = vunpack.c.l.b16 %v5018
    %v5337 = vunpack.c.h.b16 %v5018
    %v5338 = vunpack.c.l.b16 %v5019
    %v5339 = vunpack.c.h.b16 %v5019
    %v5340 = vunpack.c.l.b16 %v5020
    %v5341 = vunpack.c.h.b16 %v5020
    %v5342 = vunpack.c.l.b16 %v5021
    %v5343 = vunpack.c.h.b16 %v5021
    %v5344 = vunpack.c.l.b16 %v5022
    %v5345 = vunpack.c.h.b16 %v5022
    %v5346 = vunpack.c.l.b16 %v5023
    %v5347 = vunpack.c.h.b16 %v5023
    %v5348 = vunpack.c.l.b16 %v5024
    %v5349 = vunpack.c.h.b16 %v5024
    %v5350 = vunpack.c.l.b16 %v5025
    %v5351 = vunpack.c.h.b16 %v5025
    %v5352 = vunpack.c.l.b16 %v5026
    %v5353 = vunpack.c.h.b16 %v5026
    %v5354 = vunpack.c.l.b16 %v5027
    %v5355 = vunpack.c.h.b16 %v5027
    %v5356 = vunpack.c.l.b16 %v5028
    %v5357 = vunpack.c.h.b16 %v5028
    %v5358 = vunpack.c.l.b16 %v5029
    %v5359 = vunpack.c.h.b16 %v5029
    %v5360 = vunpack.c.l.b16 %v5030
    %v5361 = vunpack.c.h.b16 %v5030
    %v5362 = vunpack.c.l.b16 %v5031
    %v5363 = vunpack.c.h.b16 %v5031
    %v5364 = vunpack.c.l.b16 %v5032
    %v5365 = vunpack.c.h.b16 %v5032
    %v5366 = vunpack.c.l.b16 %v5033
    %v5367 = vunpack.c.h.b16 %v5033
    %v5368 = vunpack.c.l.b16 %v5034
    %v5369 = vunpack.c.h.b16 %v5034
    %v5370 = vunpack.c.l.b16 %v5035
    %v5371 = vunpack.c.h.b16 %v5035
    %v5372 = vunpack.c.l.b16 %v5036
    %v5373 = vunpack.c.h.b16 %v5036
    %v5374 = vunpack.c.l.b16 %v5037
    %v5375 = vunpack.c.h.b16 %v5037
    %v5376 = vunpack.c.l.b16 %v5038
    %v5377 = vunpack.c.h.b16 %v5038
    %v5378 = vunpack.c.l.b16 %v5039
    %v5379 = vunpack.c.h.b16 %v5039
    %v5380 = vunpack.c.l.b16 %v5040
    %v5381 = vunpack.c.h.b16 %v5040
    %v5382 = vunpack.c.l.b16 %v5041
    %v5383 = vunpack.c.h.b16 %v5041
    %v5384 = vunpack.c.l.b16 %v5042
    %v5385 = vunpack.c.h.b16 %v5042
    %v5386 = vunpack.c.l.b16 %v5043
    %v5387 = vunpack.c.h.b16 %v5043
    %v5388 = vunpack.c.l.b16 %v5044
    %v5389 = vunpack.c.h.b16 %v5044
    %v5390 = vunpack.c.l.b16 %v5045
    %v5391 = vunpack.c.h.b16 %v5045
    %v5392 = vunpack.c.l.b16 %v5046
    %v5393 = vunpack.c.h.b16 %v5046
    %v5394 = vunpack.c.l.b16 %v5047
    %v5395 = vunpack.c.h.b16 %v5047
    %v5396 = vunpack.c.l.b16 %v5048
    %v5397 = vunpack.c.h.b16 %v5048
    %v5398 = vunpack.c.l.b16 %v5049
    %v5399 = vunpack.c.h.b16 %v5049
    %v5400 = vunpack.c.l.b16 %v5050
    %v5401 = vunpack.c.h.b16 %v5050
    %v5402 = vunpack.c.l.b16 %v5051
    %v5403 = vunpack.c.h.b16 %v5051
    %v5404 = vunpack.c.l.b16 %v5052
    %v5405 = vunpack.c.h.b16 %v5052
    %v5406 = vunpack.c.l.b16 %v5053
    %v5407 = vunpack.c.h.b16 %v5053
    %v5408 = vunpack.c.l.b16 %v5054
    %v5409 = vunpack.c.h.b16 %v5054
    %v5410 = vunpack.c.l.b16 %v5055
    %v5411 = vunpack.c.h.b16 %v5055
    %v5412 = vunpack.c.l.b16 %v5056
    %v5413 = vunpack.c.h.b16 %v5056
    %v5414 = vunpack.c.l.b16 %v5057
    %v5415 = vunpack.c.h.b16 %v5057
    %v5416 = vunpack.c.l.b16 %v5058
    %v5417 = vunpack.c.h.b16 %v5058
    %v5418 = vunpack.c.l.b16 %v5059
    %v5419 = vunpack.c.h.b16 %v5059
    %v5420 = vunpack.c.l.b16 %v5060
    %v5421 = vunpack.c.h.b16 %v5060
    %v5422 = vunpack.c.l.b16 %v5061
    %v5423 = vunpack.c.h.b16 %v5061
    %v5424 = vunpack.c.l.b16 %v5062
    %v5425 = vunpack.c.h.b16 %v5062
    %v5426 = vunpack.c.l.b16 %v5063
    %v5427 = vunpack.c.h.b16 %v5063
    %v5428 = vunpack.c.l.b16 %v5064
    %v5429 = vunpack.c.h.b16 %v5064
    %v5430 = vunpack.c.l.b16 %v5065
    %v5431 = vunpack.c.h.b16 %v5065
    %v5432 = vunpack.c.l.b16 %v5066
    %v5433 = vunpack.c.h.b16 %v5066
    %v5434 = vunpack.c.l.b16 %v5067
    %v5435 = vunpack.c.h.b16 %v5067
    %v5436 = vunpack.c.l.b16 %v5068
    %v5437 = vunpack.c.h.b16 %v5068
    %v5438 = vunpack.c.l.b16 %v5069
    %v5439 = vunpack.c.h.b16 %v5069
    %v5440 = vunpack.c.l.b16 %v5070
    %v5441 = vunpack.c.h.b16 %v5070
    %v5442 = vunpack.c.l.b16 %v5071
    %v5443 = vunpack.c.h.b16 %v5071
    %v5444 = vunpack.c.l.b16 %v5072
    %v5445 = vunpack.c.h.b16 %v5072
    %v5446 = vunpack.c.l.b16 %v5073
    %v5447 = vunpack.c.h.b16 %v5073
    %v5448 = vunpack.c.l.b16 %v5074
    %v5449 = vunpack.c.h.b16 %v5074
    %v5450 = vunpack.c.l.b16 %v5075
    %v5451 = vunpack.c.h.b16 %v5075
    %v5452 = vunpack.c.l.b16 %v5076
    %v5453 = vunpack.c.h.b16 %v5076
    %v5454 = vunpack.c.l.b16 %v5077
    %v5455 = vunpack.c.h.b16 %v5077
    %v5456 = vunpack.c.l.b16 %v5078
    %v5457 = vunpack.c.h.b16 %v5078
    %v5458 = vunpack.c.l.b16 %v5079
    %v5459 = vunpack.c.h.b16 %v5079
    %v5460 = vunpack.c.l.b16 %v5080
    %v5461 = vunpack.c.h.b16 %v5080
    %v5462 = vunpack.c.l.b16 %v5081
    %v5463 = vunpack.c.h.b16 %v5081
    %v5464 = vunpack.c.l.b16 %v5082
    %v5465 = vunpack.c.h.b16 %v5082
    %v5466 = vunpack.c.l.b16 %v5083
    %v5467 = vunpack.c.h.b16 %v5083
    %v5468 = vpack.c.b16 %v5214, %v5212
    %v5469 = vpack.c.b16 %v5215, %v5213
    %v5470 = vpack.c.b16 %v5218, %v5216
    %v5471 = vpack.c.b16 %v5219, %v5217
    %v5472 = vpack.c.b16 %v5222, %v5220
    %v5473 = vpack.c.b16 %v5223, %v5221
    %v5474 = vpack.c.b16 %v5226, %v5224
    %v5475 = vpack.c.b16 %v5227, %v5225
    %v5476 = vpack.c.b16 %v5230, %v5228
    %v5477 = vpack.c.b16 %v5231, %v5229
    %v5478 = vpack.c.b16 %v5234, %v5232
    %v5479 = vpack.c.b16 %v5235, %v5233
    %v5480 = vpack.c.b16 %v5238, %v5236
    %v5481 = vpack.c.b16 %v5239, %v5237
    %v5482 = vpack.c.b16 %v5242, %v5240
    %v5483 = vpack.c.b16 %v5243, %v5241
    %v5484 = vpack.c.b16 %v5246, %v5244
    %v5485 = vpack.c.b16 %v5247, %v5245
    %v5486 = vpack.c.b16 %v5250, %v5248
    %v5487 = vpack.c.b16 %v5251, %v5249
    %v5488 = vpack.c.b16 %v5254, %v5252
    %v5489 = vpack.c.b16 %v5255, %v5253
    %v5490 = vpack.c.b16 %v5258, %v5256
    %v5491 = vpack.c.b16 %v5259, %v5257
    %v5492 = vpack.c.b16 %v5262, %v5260
    %v5493 = vpack.c.b16 %v5263, %v5261
    %v5494 = vpack.c.b16 %v5266, %v5264
    %v5495 = vpack.c.b16 %v5267, %v5265
    %v5496 = vpack.c.b16 %v5270, %v5268
    %v5497 = vpack.c.b16 %v5271, %v5269
    %v5498 = vpack.c.b16 %v5274, %v5272
    %v5499 = vpack.c.b16 %v5275, %v5273
    %v5500 = vpack.c.b16 %v5278, %v5276
    %v5501 = vpack.c.b16 %v5279, %v5277
    %v5502 = vpack.c.b16 %v5282, %v5280
    %v5503 = vpack.c.b16 %v5283, %v5281
    %v5504 = vpack.c.b16 %v5286, %v5284
    %v5505 = vpack.c.b16 %v5287, %v5285
    %v5506 = vpack.c.b16 %v5290, %v5288
    %v5507 = vpack.c.b16 %v5291, %v5289
    %v5508 = vpack.c.b16 %v5294, %v5292
    %v5509 = vpack.c.b16 %v5295, %v5293
    %v5510 = vpack.c.b16 %v5298, %v5296
    %v5511 = vpack.c.b16 %v5299, %v5297
    %v5512 = vpack.c.b16 %v5302, %v5300
    %v5513 = vpack.c.b16 %v5303, %v5301
    %v5514 = vpack.c.b16 %v5306, %v5304
    %v5515 = vpack.c.b16 %v5307, %v5305
    %v5516 = vpack.c.b16 %v5310, %v5308
    %v5517 = vpack.c.b16 %v5311, %v5309
    %v5518 = vpack.c.b16 %v5314, %v5312
    %v5519 = vpack.c.b16 %v5315, %v5313
    %v5520 = vpack.c.b16 %v5318, %v5316
    %v5521 = vpack.c.b16 %v5319, %v5317
    %v5522 = vpack.c.b16 %v5322, %v5320
    %v5523 = vpack.c.b16 %v5323, %v5321
    %v5524 = vpack.c.b16 %v5326, %v5324
    %v5525 = vpack.c.b16 %v5327, %v5325
    %v5526 = vpack.c.b16 %v5330, %v5328
    %v5527 = vpack.c.b16 %v5331, %v5329
    %v5528 = vpack.c.b16 %v5334, %v5332
    %v5529 = vpack.c.b16 %v5335, %v5333
    %v5530 = vpack.c.b16 %v5338, %v5336
    %v5531 = vpack.c.b16 %v5339, %v5337
    %v5532 = vpack.c.b16 %v5342, %v5340
    %v5533 = vpack.c.b16 %v5343, %v5341
    %v5534 = vpack.c.b16 %v5346, %v5344
    %v5535 = vpack.c.b16 %v5347, %v5345
    %v5536 = vpack.c.b16 %v5350, %v5348
    %v5537 = vpack.c.b16 %v5351, %v5349
    %v5538 = vpack.c.b16 %v5354, %v5352
    %v5539 = vpack.c.b16 %v5355, %v5353
    %v5540 = vpack.c.b16 %v5358, %v5356
    %v5541 = vpack.c.b16 %v5359, %v5357
    %v5542 = vpack.c.b16 %v5362, %v5360
    %v5543 = vpack.c.b16 %v5363, %v5361
    %v5544 = vpack.c.b16 %v5366, %v5364
    %v5545 = vpack.c.b16 %v5367, %v5365
    %v5546 = vpack.c.b16 %v5370, %v5368
    %v5547 = vpack.c.b16 %v5371, %v5369
    %v5548 = vpack.c.b16 %v5374, %v5372
    %v5549 = vpack.c.b16 %v5375, %v5373
    %v5550 = vpack.c.b16 %v5378, %v5376
    %v5551 = vpack.c.b16 %v5379, %v5377
    %v5552 = vpack.c.b16 %v5382, %v5380
    %v5553 = vpack.c.b16 %v5383, %v5381
    %v5554 = vpack.c.b16 %v5386, %v5384
    %v5555 = vpack.c.b16 %v5387, %v5385
    %v5556 = vpack.c.b16 %v5390, %v5388
    %v5557 = vpack.c.b16 %v5391, %v5389
    %v5558 = vpack.c.b16 %v5394, %v5392
    %v5559 = vpack.c.b16 %v5395, %v5393
    %v5560 = vpack.c.b16 %v5398, %v5396
    %v5561 = vpack.c.b16 %v5399, %v5397
    %v5562 = vpack.c.b16 %v5402, %v5400
    %v5563 = vpack.c.b16 %v5403, %v5401
    %v5564 = vpack.c.b16 %v5406, %v5404
    %v5565 = vpack.c.b16 %v5407, %v5405
    %v5566 = vpack.c.b16 %v5410, %v5408
    %v5567 = vpack.c.b16 %v5411, %v5409
    %v5568 = vpack.c.b16 %v5414, %v5412
    %v5569 = vpack.c.b16 %v5415, %v5413
    %v5570 = vpack.c.b16 %v5418, %v5416
    %v5571 = vpack.c.b16 %v5419, %v5417
    %v5572 = vpack.c.b16 %v5422, %v5420
    %v5573 = vpack.c.b16 %v5423, %v5421
    %v5574 = vpack.c.b16 %v5426, %v5424
    %v5575 = vpack.c.b16 %v5427, %v5425
    %v5576 = vpack.c.b16 %v5430, %v5428
    %v5577 = vpack.c.b16 %v5431, %v5429
    %v5578 = vpack.c.b16 %v5434, %v5432
    %v5579 = vpack.c.b16 %v5435, %v5433
    %v5580 = vpack.c.b16 %v5438, %v5436
    %v5581 = vpack.c.b16 %v5439, %v5437
    %v5582 = vpack.c.b16 %v5442, %v5440
    %v5583 = vpack.c.b16 %v5443, %v5441
    %v5584 = vpack.c.b16 %v5446, %v5444
    %v5585 = vpack.c.b16 %v5447, %v5445
    %v5586 = vpack.c.b16 %v5450, %v5448
    %v5587 = vpack.c.b16 %v5451, %v5449
    %v5588 = vpack.c.b16 %v5454, %v5452
    %v5589 = vpack.c.b16 %v5455, %v5453
    %v5590 = vpack.c.b16 %v5458, %v5456
    %v5591 = vpack.c.b16 %v5459, %v5457
    %v5592 = vpack.c.b16 %v5462, %v5460
    %v5593 = vpack.c.b16 %v5463, %v5461
    %v5594 = vpack.c.b16 %v5466, %v5464
    %v5595 = vpack.c.b16 %v5467, %v5465
    %5724 = vmatprep.subr.bf16.mxu0 %v5483
    %5725 = vmatpush1.bf16.msra.mxu0 %v5482
    %5726 = vmatprep.subr.bf16.mxu0 %v5481
    %5727 = vmatpush1.bf16.msra.mxu0 %v5480
    %5728 = vmatprep.subr.bf16.mxu0 %v5479
    %5729 = vmatpush1.bf16.msra.mxu0 %v5478
    %5730 = vmatprep.subr.bf16.mxu0 %v5477
    %5731 = vmatpush1.bf16.msra.mxu0 %v5476
    %5732 = vmatprep.subr.bf16.mxu0 %v5475
    %5733 = vmatpush1.bf16.msra.mxu0 %v5474
    %5734 = vmatprep.subr.bf16.mxu0 %v5473
    %5735 = vmatpush1.bf16.msra.mxu0 %v5472
    %5736 = vmatprep.subr.bf16.mxu0 %v5471
    %5737 = vmatpush1.bf16.msra.mxu0 %v5470
    %5738 = vmatprep.subr.bf16.mxu0 %v5469
    %5739 = vmatpush1.bf16.msra.mxu0 %v5468
    %5740 = vmatprep.subr.bf16.mxu0 %v5499
    %5741 = vmatpush2.bf16.msra.mxu0 %v5498
    %5742 = vmatprep.subr.bf16.mxu0 %v5497
    %5743 = vmatpush2.bf16.msra.mxu0 %v5496
    %5744 = vmatprep.subr.bf16.mxu0 %v5495
    %5745 = vmatpush2.bf16.msra.mxu0 %v5494
    %5746 = vmatprep.subr.bf16.mxu0 %v5493
    %5747 = vmatpush2.bf16.msra.mxu0 %v5492
    %5748 = vmatprep.subr.bf16.mxu0 %v5491
    %5749 = vmatpush2.bf16.msra.mxu0 %v5490
    %5750 = vmatprep.subr.bf16.mxu0 %v5489
    %5751 = vmatpush2.bf16.msra.mxu0 %v5488
    %5752 = vmatprep.subr.bf16.mxu0 %v5487
    %5753 = vmatpush2.bf16.msra.mxu0 %v5486
    %5754 = vmatprep.subr.bf16.mxu0 %v5485
    %5755 = vmatpush2.bf16.msra.mxu0 %v5484
    %5756 = vmatprep.mubr.bf16.mxu0 %v4701
    %5757 = vmatmul.mubr.bf16.gmra.mxu0 %v4700
    %v5758 = vpop.f32.mrf.mxu0
    %v5759 = vadd.f32 0.0, %v5758
    %v5760 = vpop.f32.mrf.mxu0
    %v5761 = vadd.f32 0.0, %v5760
    %v5762 = vpop.f32.mrf.mxu0
    %v5763 = vadd.f32 0.0, %v5762
    %v5764 = vpop.f32.mrf.mxu0
    %v5765 = vadd.f32 0.0, %v5764
    %5766 = vmatprep.mubr.bf16.mxu0 %v4709
    %5767 = vmatmul.mubr.bf16.gmra.mxu0 %v4708
    %v5768 = vpop.f32.mrf.mxu0
    %v5769 = vadd.f32 0.0, %v5768
    %v5770 = vpop.f32.mrf.mxu0
    %v5771 = vadd.f32 0.0, %v5770
    %v5772 = vpop.f32.mrf.mxu0
    %v5773 = vadd.f32 0.0, %v5772
    %v5774 = vpop.f32.mrf.mxu0
    %v5775 = vadd.f32 0.0, %v5774
    %5776 = vmatprep.mubr.bf16.mxu0 %v4717
    %5777 = vmatmul.mubr.bf16.gmra.mxu0 %v4716
    %v5778 = vpop.f32.mrf.mxu0
    %v5779 = vadd.f32 0.0, %v5778
    %v5780 = vpop.f32.mrf.mxu0
    %v5781 = vadd.f32 0.0, %v5780
    %v5782 = vpop.f32.mrf.mxu0
    %v5783 = vadd.f32 0.0, %v5782
    %v5784 = vpop.f32.mrf.mxu0
    %v5785 = vadd.f32 0.0, %v5784
    %5786 = vmatprep.mubr.bf16.mxu0 %v4725
    %5787 = vmatmul.mubr.bf16.gmra.mxu0 %v4724
    %v5788 = vpop.f32.mrf.mxu0
    %v5789 = vadd.f32 0.0, %v5788
    %v5790 = vpop.f32.mrf.mxu0
    %v5791 = vadd.f32 0.0, %v5790
    %v5792 = vpop.f32.mrf.mxu0
    %v5793 = vadd.f32 0.0, %v5792
    %v5794 = vpop.f32.mrf.mxu0
    %v5795 = vadd.f32 0.0, %v5794
    %5796 = vmatprep.mubr.bf16.mxu0 %v4733
    %5797 = vmatmul.mubr.bf16.gmra.mxu0 %v4732
    %v5798 = vpop.f32.mrf.mxu0
    %v5799 = vadd.f32 0.0, %v5798
    %v5800 = vpop.f32.mrf.mxu0
    %v5801 = vadd.f32 0.0, %v5800
    %v5802 = vpop.f32.mrf.mxu0
    %v5803 = vadd.f32 0.0, %v5802
    %v5804 = vpop.f32.mrf.mxu0
    %v5805 = vadd.f32 0.0, %v5804
    %5806 = vmatprep.mubr.bf16.mxu0 %v4741
    %5807 = vmatmul.mubr.bf16.gmra.mxu0 %v4740
    %v5808 = vpop.f32.mrf.mxu0
    %v5809 = vadd.f32 0.0, %v5808
    %v5810 = vpop.f32.mrf.mxu0
    %v5811 = vadd.f32 0.0, %v5810
    %v5812 = vpop.f32.mrf.mxu0
    %v5813 = vadd.f32 0.0, %v5812
    %v5814 = vpop.f32.mrf.mxu0
    %v5815 = vadd.f32 0.0, %v5814
    %5816 = vmatprep.mubr.bf16.mxu0 %v4749
    %5817 = vmatmul.mubr.bf16.gmra.mxu0 %v4748
    %v5818 = vpop.f32.mrf.mxu0
    %v5819 = vadd.f32 0.0, %v5818
    %v5820 = vpop.f32.mrf.mxu0
    %v5821 = vadd.f32 0.0, %v5820
    %v5822 = vpop.f32.mrf.mxu0
    %v5823 = vadd.f32 0.0, %v5822
    %v5824 = vpop.f32.mrf.mxu0
    %v5825 = vadd.f32 0.0, %v5824
    %5826 = vmatprep.mubr.bf16.mxu0 %v4757
    %5827 = vmatmul.mubr.bf16.gmra.mxu0 %v4756
    %v5828 = vpop.f32.mrf.mxu0
    %v5829 = vadd.f32 0.0, %v5828
    %v5830 = vpop.f32.mrf.mxu0
    %v5831 = vadd.f32 0.0, %v5830
    %v5832 = vpop.f32.mrf.mxu0
    %v5833 = vadd.f32 0.0, %v5832
    %v5834 = vpop.f32.mrf.mxu0
    %v5835 = vadd.f32 0.0, %v5834
    %5836 = vmatprep.mubr.bf16.mxu0 %v4765
    %5837 = vmatmul.mubr.bf16.gmra.mxu0 %v4764
    %v5838 = vpop.f32.mrf.mxu0
    %v5839 = vadd.f32 0.0, %v5838
    %v5840 = vpop.f32.mrf.mxu0
    %v5841 = vadd.f32 0.0, %v5840
    %v5842 = vpop.f32.mrf.mxu0
    %v5843 = vadd.f32 0.0, %v5842
    %v5844 = vpop.f32.mrf.mxu0
    %v5845 = vadd.f32 0.0, %v5844
    %5846 = vmatprep.mubr.bf16.mxu0 %v4773
    %5847 = vmatmul.mubr.bf16.gmra.mxu0 %v4772
    %v5848 = vpop.f32.mrf.mxu0
    %v5849 = vadd.f32 0.0, %v5848
    %v5850 = vpop.f32.mrf.mxu0
    %v5851 = vadd.f32 0.0, %v5850
    %v5852 = vpop.f32.mrf.mxu0
    %v5853 = vadd.f32 0.0, %v5852
    %v5854 = vpop.f32.mrf.mxu0
    %v5855 = vadd.f32 0.0, %v5854
    %5856 = vmatprep.mubr.bf16.mxu0 %v4781
    %5857 = vmatmul.mubr.bf16.gmra.mxu0 %v4780
    %v5858 = vpop.f32.mrf.mxu0
    %v5859 = vadd.f32 0.0, %v5858
    %v5860 = vpop.f32.mrf.mxu0
    %v5861 = vadd.f32 0.0, %v5860
    %v5862 = vpop.f32.mrf.mxu0
    %v5863 = vadd.f32 0.0, %v5862
    %v5864 = vpop.f32.mrf.mxu0
    %v5865 = vadd.f32 0.0, %v5864
    %5866 = vmatprep.mubr.bf16.mxu0 %v4789
    %5867 = vmatmul.mubr.bf16.gmra.mxu0 %v4788
    %v5868 = vpop.f32.mrf.mxu0
    %v5869 = vadd.f32 0.0, %v5868
    %v5870 = vpop.f32.mrf.mxu0
    %v5871 = vadd.f32 0.0, %v5870
    %v5872 = vpop.f32.mrf.mxu0
    %v5873 = vadd.f32 0.0, %v5872
    %v5874 = vpop.f32.mrf.mxu0
    %v5875 = vadd.f32 0.0, %v5874
    %5876 = vmatprep.mubr.bf16.mxu0 %v4797
    %5877 = vmatmul.mubr.bf16.gmra.mxu0 %v4796
    %v5878 = vpop.f32.mrf.mxu0
    %v5879 = vadd.f32 0.0, %v5878
    %v5880 = vpop.f32.mrf.mxu0
    %v5881 = vadd.f32 0.0, %v5880
    %v5882 = vpop.f32.mrf.mxu0
    %v5883 = vadd.f32 0.0, %v5882
    %v5884 = vpop.f32.mrf.mxu0
    %v5885 = vadd.f32 0.0, %v5884
    %5886 = vmatprep.mubr.bf16.mxu0 %v4805
    %5887 = vmatmul.mubr.bf16.gmra.mxu0 %v4804
    %v5888 = vpop.f32.mrf.mxu0
    %v5889 = vadd.f32 0.0, %v5888
    %v5890 = vpop.f32.mrf.mxu0
    %v5891 = vadd.f32 0.0, %v5890
    %v5892 = vpop.f32.mrf.mxu0
    %v5893 = vadd.f32 0.0, %v5892
    %v5894 = vpop.f32.mrf.mxu0
    %v5895 = vadd.f32 0.0, %v5894
    %5896 = vmatprep.mubr.bf16.mxu0 %v4813
    %5897 = vmatmul.mubr.bf16.gmra.mxu0 %v4812
    %v5898 = vpop.f32.mrf.mxu0
    %v5899 = vadd.f32 0.0, %v5898
    %v5900 = vpop.f32.mrf.mxu0
    %v5901 = vadd.f32 0.0, %v5900
    %v5902 = vpop.f32.mrf.mxu0
    %v5903 = vadd.f32 0.0, %v5902
    %v5904 = vpop.f32.mrf.mxu0
    %v5905 = vadd.f32 0.0, %v5904
    %5906 = vmatprep.mubr.bf16.mxu0 %v4821
    %5907 = vmatmul.mubr.bf16.gmra.mxu0 %v4820
    %v5908 = vpop.f32.mrf.mxu0
    %v5909 = vadd.f32 0.0, %v5908
    %v5910 = vpop.f32.mrf.mxu0
    %v5911 = vadd.f32 0.0, %v5910
    %v5912 = vpop.f32.mrf.mxu0
    %v5913 = vadd.f32 0.0, %v5912
    %v5914 = vpop.f32.mrf.mxu0
    %v5915 = vadd.f32 0.0, %v5914
    %5916 = vmatprep.mubr.bf16.mxu0 %v4829
    %5917 = vmatmul.mubr.bf16.gmra.mxu0 %v4828
    %v5918 = vpop.f32.mrf.mxu0
    %v5919 = vadd.f32 0.0, %v5918
    %v5920 = vpop.f32.mrf.mxu0
    %v5921 = vadd.f32 0.0, %v5920
    %v5922 = vpop.f32.mrf.mxu0
    %v5923 = vadd.f32 0.0, %v5922
    %v5924 = vpop.f32.mrf.mxu0
    %v5925 = vadd.f32 0.0, %v5924
    %5926 = vmatprep.mubr.bf16.mxu0 %v4837
    %5927 = vmatmul.mubr.bf16.gmra.mxu0 %v4836
    %v5928 = vpop.f32.mrf.mxu0
    %v5929 = vadd.f32 0.0, %v5928
    %v5930 = vpop.f32.mrf.mxu0
    %v5931 = vadd.f32 0.0, %v5930
    %v5932 = vpop.f32.mrf.mxu0
    %v5933 = vadd.f32 0.0, %v5932
    %v5934 = vpop.f32.mrf.mxu0
    %v5935 = vadd.f32 0.0, %v5934
    %5936 = vmatprep.mubr.bf16.mxu0 %v4845
    %5937 = vmatmul.mubr.bf16.gmra.mxu0 %v4844
    %v5938 = vpop.f32.mrf.mxu0
    %v5939 = vadd.f32 0.0, %v5938
    %v5940 = vpop.f32.mrf.mxu0
    %v5941 = vadd.f32 0.0, %v5940
    %v5942 = vpop.f32.mrf.mxu0
    %v5943 = vadd.f32 0.0, %v5942
    %v5944 = vpop.f32.mrf.mxu0
    %v5945 = vadd.f32 0.0, %v5944
    %5946 = vmatprep.mubr.bf16.mxu0 %v4853
    %5947 = vmatmul.mubr.bf16.gmra.mxu0 %v4852
    %v5948 = vpop.f32.mrf.mxu0
    %v5949 = vadd.f32 0.0, %v5948
    %v5950 = vpop.f32.mrf.mxu0
    %v5951 = vadd.f32 0.0, %v5950
    %v5952 = vpop.f32.mrf.mxu0
    %v5953 = vadd.f32 0.0, %v5952
    %v5954 = vpop.f32.mrf.mxu0
    %v5955 = vadd.f32 0.0, %v5954
    %5956 = vmatprep.mubr.bf16.mxu0 %v4861
    %5957 = vmatmul.mubr.bf16.gmra.mxu0 %v4860
    %v5958 = vpop.f32.mrf.mxu0
    %v5959 = vadd.f32 0.0, %v5958
    %v5960 = vpop.f32.mrf.mxu0
    %v5961 = vadd.f32 0.0, %v5960
    %v5962 = vpop.f32.mrf.mxu0
    %v5963 = vadd.f32 0.0, %v5962
    %v5964 = vpop.f32.mrf.mxu0
    %v5965 = vadd.f32 0.0, %v5964
    %5966 = vmatprep.mubr.bf16.mxu0 %v4869
    %5967 = vmatmul.mubr.bf16.gmra.mxu0 %v4868
    %v5968 = vpop.f32.mrf.mxu0
    %v5969 = vadd.f32 0.0, %v5968
    %v5970 = vpop.f32.mrf.mxu0
    %v5971 = vadd.f32 0.0, %v5970
    %v5972 = vpop.f32.mrf.mxu0
    %v5973 = vadd.f32 0.0, %v5972
    %v5974 = vpop.f32.mrf.mxu0
    %v5975 = vadd.f32 0.0, %v5974
    %5976 = vmatprep.mubr.bf16.mxu0 %v4877
    %5977 = vmatmul.mubr.bf16.gmra.mxu0 %v4876
    %v5978 = vpop.f32.mrf.mxu0
    %v5979 = vadd.f32 0.0, %v5978
    %v5980 = vpop.f32.mrf.mxu0
    %v5981 = vadd.f32 0.0, %v5980
    %v5982 = vpop.f32.mrf.mxu0
    %v5983 = vadd.f32 0.0, %v5982
    %v5984 = vpop.f32.mrf.mxu0
    %v5985 = vadd.f32 0.0, %v5984
    %5986 = vmatprep.mubr.bf16.mxu0 %v4885
    %5987 = vmatmul.mubr.bf16.gmra.mxu0 %v4884
    %v5988 = vpop.f32.mrf.mxu0
    %v5989 = vadd.f32 0.0, %v5988
    %v5990 = vpop.f32.mrf.mxu0
    %v5991 = vadd.f32 0.0, %v5990
    %v5992 = vpop.f32.mrf.mxu0
    %v5993 = vadd.f32 0.0, %v5992
    %v5994 = vpop.f32.mrf.mxu0
    %v5995 = vadd.f32 0.0, %v5994
    %5996 = vmatprep.mubr.bf16.mxu0 %v4893
    %5997 = vmatmul.mubr.bf16.gmra.mxu0 %v4892
    %v5998 = vpop.f32.mrf.mxu0
    %v5999 = vadd.f32 0.0, %v5998
    %v6000 = vpop.f32.mrf.mxu0
    %v6001 = vadd.f32 0.0, %v6000
    %v6002 = vpop.f32.mrf.mxu0
    %v6003 = vadd.f32 0.0, %v6002
    %v6004 = vpop.f32.mrf.mxu0
    %v6005 = vadd.f32 0.0, %v6004
    %6006 = vmatprep.mubr.bf16.mxu0 %v4901
    %6007 = vmatmul.mubr.bf16.gmra.mxu0 %v4900
    %v6008 = vpop.f32.mrf.mxu0
    %v6009 = vadd.f32 0.0, %v6008
    %v6010 = vpop.f32.mrf.mxu0
    %v6011 = vadd.f32 0.0, %v6010
    %v6012 = vpop.f32.mrf.mxu0
    %v6013 = vadd.f32 0.0, %v6012
    %v6014 = vpop.f32.mrf.mxu0
    %v6015 = vadd.f32 0.0, %v6014
    %6016 = vmatprep.mubr.bf16.mxu0 %v4909
    %6017 = vmatmul.mubr.bf16.gmra.mxu0 %v4908
    %v6018 = vpop.f32.mrf.mxu0
    %v6019 = vadd.f32 0.0, %v6018
    %v6020 = vpop.f32.mrf.mxu0
    %v6021 = vadd.f32 0.0, %v6020
    %v6022 = vpop.f32.mrf.mxu0
    %v6023 = vadd.f32 0.0, %v6022
    %v6024 = vpop.f32.mrf.mxu0
    %v6025 = vadd.f32 0.0, %v6024
    %6026 = vmatprep.mubr.bf16.mxu0 %v4917
    %6027 = vmatmul.mubr.bf16.gmra.mxu0 %v4916
    %v6028 = vpop.f32.mrf.mxu0
    %v6029 = vadd.f32 0.0, %v6028
    %v6030 = vpop.f32.mrf.mxu0
    %v6031 = vadd.f32 0.0, %v6030
    %v6032 = vpop.f32.mrf.mxu0
    %v6033 = vadd.f32 0.0, %v6032
    %v6034 = vpop.f32.mrf.mxu0
    %v6035 = vadd.f32 0.0, %v6034
    %6036 = vmatprep.mubr.bf16.mxu0 %v4925
    %6037 = vmatmul.mubr.bf16.gmra.mxu0 %v4924
    %v6038 = vpop.f32.mrf.mxu0
    %v6039 = vadd.f32 0.0, %v6038
    %v6040 = vpop.f32.mrf.mxu0
    %v6041 = vadd.f32 0.0, %v6040
    %v6042 = vpop.f32.mrf.mxu0
    %v6043 = vadd.f32 0.0, %v6042
    %v6044 = vpop.f32.mrf.mxu0
    %v6045 = vadd.f32 0.0, %v6044
    %6046 = vmatprep.mubr.bf16.mxu0 %v4933
    %6047 = vmatmul.mubr.bf16.gmra.mxu0 %v4932
    %v6048 = vpop.f32.mrf.mxu0
    %v6049 = vadd.f32 0.0, %v6048
    %v6050 = vpop.f32.mrf.mxu0
    %v6051 = vadd.f32 0.0, %v6050
    %v6052 = vpop.f32.mrf.mxu0
    %v6053 = vadd.f32 0.0, %v6052
    %v6054 = vpop.f32.mrf.mxu0
    %v6055 = vadd.f32 0.0, %v6054
    %6056 = vmatprep.mubr.bf16.mxu0 %v4941
    %6057 = vmatmul.mubr.bf16.gmra.mxu0 %v4940
    %v6058 = vpop.f32.mrf.mxu0
    %v6059 = vadd.f32 0.0, %v6058
    %v6060 = vpop.f32.mrf.mxu0
    %v6061 = vadd.f32 0.0, %v6060
    %v6062 = vpop.f32.mrf.mxu0
    %v6063 = vadd.f32 0.0, %v6062
    %v6064 = vpop.f32.mrf.mxu0
    %v6065 = vadd.f32 0.0, %v6064
    %6066 = vmatprep.mubr.bf16.mxu0 %v4949
    %6067 = vmatmul.mubr.bf16.gmra.mxu0 %v4948
    %v6068 = vpop.f32.mrf.mxu0
    %v6069 = vadd.f32 0.0, %v6068
    %v6070 = vpop.f32.mrf.mxu0
    %v6071 = vadd.f32 0.0, %v6070
    %v6072 = vpop.f32.mrf.mxu0
    %v6073 = vadd.f32 0.0, %v6072
    %v6074 = vpop.f32.mrf.mxu0
    %v6075 = vadd.f32 0.0, %v6074
    %6076 = vdwg.mxu0
    %6077 = vmatprep.subr.bf16.mxu0 %v5515
    %6078 = vmatpush1.bf16.msra.mxu0 %v5514
    %6079 = vmatprep.subr.bf16.mxu0 %v5513
    %6080 = vmatpush1.bf16.msra.mxu0 %v5512
    %6081 = vmatprep.subr.bf16.mxu0 %v5511
    %6082 = vmatpush1.bf16.msra.mxu0 %v5510
    %6083 = vmatprep.subr.bf16.mxu0 %v5509
    %6084 = vmatpush1.bf16.msra.mxu0 %v5508
    %6085 = vmatprep.subr.bf16.mxu0 %v5507
    %6086 = vmatpush1.bf16.msra.mxu0 %v5506
    %6087 = vmatprep.subr.bf16.mxu0 %v5505
    %6088 = vmatpush1.bf16.msra.mxu0 %v5504
    %6089 = vmatprep.subr.bf16.mxu0 %v5503
    %6090 = vmatpush1.bf16.msra.mxu0 %v5502
    %6091 = vmatprep.subr.bf16.mxu0 %v5501
    %6092 = vmatpush1.bf16.msra.mxu0 %v5500
    %6093 = vmatprep.subr.bf16.mxu0 %v5531
    %6094 = vmatpush2.bf16.msra.mxu0 %v5530
    %6095 = vmatprep.subr.bf16.mxu0 %v5529
    %6096 = vmatpush2.bf16.msra.mxu0 %v5528
    %6097 = vmatprep.subr.bf16.mxu0 %v5527
    %6098 = vmatpush2.bf16.msra.mxu0 %v5526
    %6099 = vmatprep.subr.bf16.mxu0 %v5525
    %6100 = vmatpush2.bf16.msra.mxu0 %v5524
    %6101 = vmatprep.subr.bf16.mxu0 %v5523
    %6102 = vmatpush2.bf16.msra.mxu0 %v5522
    %6103 = vmatprep.subr.bf16.mxu0 %v5521
    %6104 = vmatpush2.bf16.msra.mxu0 %v5520
    %6105 = vmatprep.subr.bf16.mxu0 %v5519
    %6106 = vmatpush2.bf16.msra.mxu0 %v5518
    %6107 = vmatprep.subr.bf16.mxu0 %v5517
    %6108 = vmatpush2.bf16.msra.mxu0 %v5516
    %6109 = vmatprep.mubr.bf16.mxu0 %v4703
    %6110 = vmatmul.mubr.bf16.gmra.mxu0 %v4702
    %v6111 = vpop.f32.mrf.mxu0
    %v6112 = vadd.f32 %v5759, %v6111
    %v6113 = vpop.f32.mrf.mxu0
    %v6114 = vadd.f32 %v5761, %v6113
    %v6115 = vpop.f32.mrf.mxu0
    %v6116 = vadd.f32 %v5763, %v6115
    %v6117 = vpop.f32.mrf.mxu0
    %v6118 = vadd.f32 %v5765, %v6117
    %6119 = vmatprep.mubr.bf16.mxu0 %v4711
    %6120 = vmatmul.mubr.bf16.gmra.mxu0 %v4710
    %v6121 = vpop.f32.mrf.mxu0
    %v6122 = vadd.f32 %v5769, %v6121
    %v6123 = vpop.f32.mrf.mxu0
    %v6124 = vadd.f32 %v5771, %v6123
    %v6125 = vpop.f32.mrf.mxu0
    %v6126 = vadd.f32 %v5773, %v6125
    %v6127 = vpop.f32.mrf.mxu0
    %v6128 = vadd.f32 %v5775, %v6127
    %6129 = vmatprep.mubr.bf16.mxu0 %v4719
    %6130 = vmatmul.mubr.bf16.gmra.mxu0 %v4718
    %v6131 = vpop.f32.mrf.mxu0
    %v6132 = vadd.f32 %v5779, %v6131
    %v6133 = vpop.f32.mrf.mxu0
    %v6134 = vadd.f32 %v5781, %v6133
    %v6135 = vpop.f32.mrf.mxu0
    %v6136 = vadd.f32 %v5783, %v6135
    %v6137 = vpop.f32.mrf.mxu0
    %v6138 = vadd.f32 %v5785, %v6137
    %6139 = vmatprep.mubr.bf16.mxu0 %v4727
    %6140 = vmatmul.mubr.bf16.gmra.mxu0 %v4726
    %v6141 = vpop.f32.mrf.mxu0
    %v6142 = vadd.f32 %v5789, %v6141
    %v6143 = vpop.f32.mrf.mxu0
    %v6144 = vadd.f32 %v5791, %v6143
    %v6145 = vpop.f32.mrf.mxu0
    %v6146 = vadd.f32 %v5793, %v6145
    %v6147 = vpop.f32.mrf.mxu0
    %v6148 = vadd.f32 %v5795, %v6147
    %6149 = vmatprep.mubr.bf16.mxu0 %v4735
    %6150 = vmatmul.mubr.bf16.gmra.mxu0 %v4734
    %v6151 = vpop.f32.mrf.mxu0
    %v6152 = vadd.f32 %v5799, %v6151
    %v6153 = vpop.f32.mrf.mxu0
    %v6154 = vadd.f32 %v5801, %v6153
    %v6155 = vpop.f32.mrf.mxu0
    %v6156 = vadd.f32 %v5803, %v6155
    %v6157 = vpop.f32.mrf.mxu0
    %v6158 = vadd.f32 %v5805, %v6157
    %6159 = vmatprep.mubr.bf16.mxu0 %v4743
    %6160 = vmatmul.mubr.bf16.gmra.mxu0 %v4742
    %v6161 = vpop.f32.mrf.mxu0
    %v6162 = vadd.f32 %v5809, %v6161
    %v6163 = vpop.f32.mrf.mxu0
    %v6164 = vadd.f32 %v5811, %v6163
    %v6165 = vpop.f32.mrf.mxu0
    %v6166 = vadd.f32 %v5813, %v6165
    %v6167 = vpop.f32.mrf.mxu0
    %v6168 = vadd.f32 %v5815, %v6167
    %6169 = vmatprep.mubr.bf16.mxu0 %v4751
    %6170 = vmatmul.mubr.bf16.gmra.mxu0 %v4750
    %v6171 = vpop.f32.mrf.mxu0
    %v6172 = vadd.f32 %v5819, %v6171
    %v6173 = vpop.f32.mrf.mxu0
    %v6174 = vadd.f32 %v5821, %v6173
    %v6175 = vpop.f32.mrf.mxu0
    %v6176 = vadd.f32 %v5823, %v6175
    %v6177 = vpop.f32.mrf.mxu0
    %v6178 = vadd.f32 %v5825, %v6177
    %6179 = vmatprep.mubr.bf16.mxu0 %v4759
    %6180 = vmatmul.mubr.bf16.gmra.mxu0 %v4758
    %v6181 = vpop.f32.mrf.mxu0
    %v6182 = vadd.f32 %v5829, %v6181
    %v6183 = vpop.f32.mrf.mxu0
    %v6184 = vadd.f32 %v5831, %v6183
    %v6185 = vpop.f32.mrf.mxu0
    %v6186 = vadd.f32 %v5833, %v6185
    %v6187 = vpop.f32.mrf.mxu0
    %v6188 = vadd.f32 %v5835, %v6187
    %6189 = vmatprep.mubr.bf16.mxu0 %v4767
    %6190 = vmatmul.mubr.bf16.gmra.mxu0 %v4766
    %v6191 = vpop.f32.mrf.mxu0
    %v6192 = vadd.f32 %v5839, %v6191
    %v6193 = vpop.f32.mrf.mxu0
    %v6194 = vadd.f32 %v5841, %v6193
    %v6195 = vpop.f32.mrf.mxu0
    %v6196 = vadd.f32 %v5843, %v6195
    %v6197 = vpop.f32.mrf.mxu0
    %v6198 = vadd.f32 %v5845, %v6197
    %6199 = vmatprep.mubr.bf16.mxu0 %v4775
    %6200 = vmatmul.mubr.bf16.gmra.mxu0 %v4774
    %v6201 = vpop.f32.mrf.mxu0
    %v6202 = vadd.f32 %v5849, %v6201
    %v6203 = vpop.f32.mrf.mxu0
    %v6204 = vadd.f32 %v5851, %v6203
    %v6205 = vpop.f32.mrf.mxu0
    %v6206 = vadd.f32 %v5853, %v6205
    %v6207 = vpop.f32.mrf.mxu0
    %v6208 = vadd.f32 %v5855, %v6207
    %6209 = vmatprep.mubr.bf16.mxu0 %v4783
    %6210 = vmatmul.mubr.bf16.gmra.mxu0 %v4782
    %v6211 = vpop.f32.mrf.mxu0
    %v6212 = vadd.f32 %v5859, %v6211
    %v6213 = vpop.f32.mrf.mxu0
    %v6214 = vadd.f32 %v5861, %v6213
    %v6215 = vpop.f32.mrf.mxu0
    %v6216 = vadd.f32 %v5863, %v6215
    %v6217 = vpop.f32.mrf.mxu0
    %v6218 = vadd.f32 %v5865, %v6217
    %6219 = vmatprep.mubr.bf16.mxu0 %v4791
    %6220 = vmatmul.mubr.bf16.gmra.mxu0 %v4790
    %v6221 = vpop.f32.mrf.mxu0
    %v6222 = vadd.f32 %v5869, %v6221
    %v6223 = vpop.f32.mrf.mxu0
    %v6224 = vadd.f32 %v5871, %v6223
    %v6225 = vpop.f32.mrf.mxu0
    %v6226 = vadd.f32 %v5873, %v6225
    %v6227 = vpop.f32.mrf.mxu0
    %v6228 = vadd.f32 %v5875, %v6227
    %6229 = vmatprep.mubr.bf16.mxu0 %v4799
    %6230 = vmatmul.mubr.bf16.gmra.mxu0 %v4798
    %v6231 = vpop.f32.mrf.mxu0
    %v6232 = vadd.f32 %v5879, %v6231
    %v6233 = vpop.f32.mrf.mxu0
    %v6234 = vadd.f32 %v5881, %v6233
    %v6235 = vpop.f32.mrf.mxu0
    %v6236 = vadd.f32 %v5883, %v6235
    %v6237 = vpop.f32.mrf.mxu0
    %v6238 = vadd.f32 %v5885, %v6237
    %6239 = vmatprep.mubr.bf16.mxu0 %v4807
    %6240 = vmatmul.mubr.bf16.gmra.mxu0 %v4806
    %v6241 = vpop.f32.mrf.mxu0
    %v6242 = vadd.f32 %v5889, %v6241
    %v6243 = vpop.f32.mrf.mxu0
    %v6244 = vadd.f32 %v5891, %v6243
    %v6245 = vpop.f32.mrf.mxu0
    %v6246 = vadd.f32 %v5893, %v6245
    %v6247 = vpop.f32.mrf.mxu0
    %v6248 = vadd.f32 %v5895, %v6247
    %6249 = vmatprep.mubr.bf16.mxu0 %v4815
    %6250 = vmatmul.mubr.bf16.gmra.mxu0 %v4814
    %v6251 = vpop.f32.mrf.mxu0
    %v6252 = vadd.f32 %v5899, %v6251
    %v6253 = vpop.f32.mrf.mxu0
    %v6254 = vadd.f32 %v5901, %v6253
    %v6255 = vpop.f32.mrf.mxu0
    %v6256 = vadd.f32 %v5903, %v6255
    %v6257 = vpop.f32.mrf.mxu0
    %v6258 = vadd.f32 %v5905, %v6257
    %6259 = vmatprep.mubr.bf16.mxu0 %v4823
    %6260 = vmatmul.mubr.bf16.gmra.mxu0 %v4822
    %v6261 = vpop.f32.mrf.mxu0
    %v6262 = vadd.f32 %v5909, %v6261
    %v6263 = vpop.f32.mrf.mxu0
    %v6264 = vadd.f32 %v5911, %v6263
    %v6265 = vpop.f32.mrf.mxu0
    %v6266 = vadd.f32 %v5913, %v6265
    %v6267 = vpop.f32.mrf.mxu0
    %v6268 = vadd.f32 %v5915, %v6267
    %6269 = vmatprep.mubr.bf16.mxu0 %v4831
    %6270 = vmatmul.mubr.bf16.gmra.mxu0 %v4830
    %v6271 = vpop.f32.mrf.mxu0
    %v6272 = vadd.f32 %v5919, %v6271
    %v6273 = vpop.f32.mrf.mxu0
    %v6274 = vadd.f32 %v5921, %v6273
    %v6275 = vpop.f32.mrf.mxu0
    %v6276 = vadd.f32 %v5923, %v6275
    %v6277 = vpop.f32.mrf.mxu0
    %v6278 = vadd.f32 %v5925, %v6277
    %6279 = vmatprep.mubr.bf16.mxu0 %v4839
    %6280 = vmatmul.mubr.bf16.gmra.mxu0 %v4838
    %v6281 = vpop.f32.mrf.mxu0
    %v6282 = vadd.f32 %v5929, %v6281
    %v6283 = vpop.f32.mrf.mxu0
    %v6284 = vadd.f32 %v5931, %v6283
    %v6285 = vpop.f32.mrf.mxu0
    %v6286 = vadd.f32 %v5933, %v6285
    %v6287 = vpop.f32.mrf.mxu0
    %v6288 = vadd.f32 %v5935, %v6287
    %6289 = vmatprep.mubr.bf16.mxu0 %v4847
    %6290 = vmatmul.mubr.bf16.gmra.mxu0 %v4846
    %v6291 = vpop.f32.mrf.mxu0
    %v6292 = vadd.f32 %v5939, %v6291
    %v6293 = vpop.f32.mrf.mxu0
    %v6294 = vadd.f32 %v5941, %v6293
    %v6295 = vpop.f32.mrf.mxu0
    %v6296 = vadd.f32 %v5943, %v6295
    %v6297 = vpop.f32.mrf.mxu0
    %v6298 = vadd.f32 %v5945, %v6297
    %6299 = vmatprep.mubr.bf16.mxu0 %v4855
    %6300 = vmatmul.mubr.bf16.gmra.mxu0 %v4854
    %v6301 = vpop.f32.mrf.mxu0
    %v6302 = vadd.f32 %v5949, %v6301
    %v6303 = vpop.f32.mrf.mxu0
    %v6304 = vadd.f32 %v5951, %v6303
    %v6305 = vpop.f32.mrf.mxu0
    %v6306 = vadd.f32 %v5953, %v6305
    %v6307 = vpop.f32.mrf.mxu0
    %v6308 = vadd.f32 %v5955, %v6307
    %6309 = vmatprep.mubr.bf16.mxu0 %v4863
    %6310 = vmatmul.mubr.bf16.gmra.mxu0 %v4862
    %v6311 = vpop.f32.mrf.mxu0
    %v6312 = vadd.f32 %v5959, %v6311
    %v6313 = vpop.f32.mrf.mxu0
    %v6314 = vadd.f32 %v5961, %v6313
    %v6315 = vpop.f32.mrf.mxu0
    %v6316 = vadd.f32 %v5963, %v6315
    %v6317 = vpop.f32.mrf.mxu0
    %v6318 = vadd.f32 %v5965, %v6317
    %6319 = vmatprep.mubr.bf16.mxu0 %v4871
    %6320 = vmatmul.mubr.bf16.gmra.mxu0 %v4870
    %v6321 = vpop.f32.mrf.mxu0
    %v6322 = vadd.f32 %v5969, %v6321
    %v6323 = vpop.f32.mrf.mxu0
    %v6324 = vadd.f32 %v5971, %v6323
    %v6325 = vpop.f32.mrf.mxu0
    %v6326 = vadd.f32 %v5973, %v6325
    %v6327 = vpop.f32.mrf.mxu0
    %v6328 = vadd.f32 %v5975, %v6327
    %6329 = vmatprep.mubr.bf16.mxu0 %v4879
    %6330 = vmatmul.mubr.bf16.gmra.mxu0 %v4878
    %v6331 = vpop.f32.mrf.mxu0
    %v6332 = vadd.f32 %v5979, %v6331
    %v6333 = vpop.f32.mrf.mxu0
    %v6334 = vadd.f32 %v5981, %v6333
    %v6335 = vpop.f32.mrf.mxu0
    %v6336 = vadd.f32 %v5983, %v6335
    %v6337 = vpop.f32.mrf.mxu0
    %v6338 = vadd.f32 %v5985, %v6337
    %6339 = vmatprep.mubr.bf16.mxu0 %v4887
    %6340 = vmatmul.mubr.bf16.gmra.mxu0 %v4886
    %v6341 = vpop.f32.mrf.mxu0
    %v6342 = vadd.f32 %v5989, %v6341
    %v6343 = vpop.f32.mrf.mxu0
    %v6344 = vadd.f32 %v5991, %v6343
    %v6345 = vpop.f32.mrf.mxu0
    %v6346 = vadd.f32 %v5993, %v6345
    %v6347 = vpop.f32.mrf.mxu0
    %v6348 = vadd.f32 %v5995, %v6347
    %6349 = vmatprep.mubr.bf16.mxu0 %v4895
    %6350 = vmatmul.mubr.bf16.gmra.mxu0 %v4894
    %v6351 = vpop.f32.mrf.mxu0
    %v6352 = vadd.f32 %v5999, %v6351
    %v6353 = vpop.f32.mrf.mxu0
    %v6354 = vadd.f32 %v6001, %v6353
    %v6355 = vpop.f32.mrf.mxu0
    %v6356 = vadd.f32 %v6003, %v6355
    %v6357 = vpop.f32.mrf.mxu0
    %v6358 = vadd.f32 %v6005, %v6357
    %6359 = vmatprep.mubr.bf16.mxu0 %v4903
    %6360 = vmatmul.mubr.bf16.gmra.mxu0 %v4902
    %v6361 = vpop.f32.mrf.mxu0
    %v6362 = vadd.f32 %v6009, %v6361
    %v6363 = vpop.f32.mrf.mxu0
    %v6364 = vadd.f32 %v6011, %v6363
    %v6365 = vpop.f32.mrf.mxu0
    %v6366 = vadd.f32 %v6013, %v6365
    %v6367 = vpop.f32.mrf.mxu0
    %v6368 = vadd.f32 %v6015, %v6367
    %6369 = vmatprep.mubr.bf16.mxu0 %v4911
    %6370 = vmatmul.mubr.bf16.gmra.mxu0 %v4910
    %v6371 = vpop.f32.mrf.mxu0
    %v6372 = vadd.f32 %v6019, %v6371
    %v6373 = vpop.f32.mrf.mxu0
    %v6374 = vadd.f32 %v6021, %v6373
    %v6375 = vpop.f32.mrf.mxu0
    %v6376 = vadd.f32 %v6023, %v6375
    %v6377 = vpop.f32.mrf.mxu0
    %v6378 = vadd.f32 %v6025, %v6377
    %6379 = vmatprep.mubr.bf16.mxu0 %v4919
    %6380 = vmatmul.mubr.bf16.gmra.mxu0 %v4918
    %v6381 = vpop.f32.mrf.mxu0
    %v6382 = vadd.f32 %v6029, %v6381
    %v6383 = vpop.f32.mrf.mxu0
    %v6384 = vadd.f32 %v6031, %v6383
    %v6385 = vpop.f32.mrf.mxu0
    %v6386 = vadd.f32 %v6033, %v6385
    %v6387 = vpop.f32.mrf.mxu0
    %v6388 = vadd.f32 %v6035, %v6387
    %6389 = vmatprep.mubr.bf16.mxu0 %v4927
    %6390 = vmatmul.mubr.bf16.gmra.mxu0 %v4926
    %v6391 = vpop.f32.mrf.mxu0
    %v6392 = vadd.f32 %v6039, %v6391
    %v6393 = vpop.f32.mrf.mxu0
    %v6394 = vadd.f32 %v6041, %v6393
    %v6395 = vpop.f32.mrf.mxu0
    %v6396 = vadd.f32 %v6043, %v6395
    %v6397 = vpop.f32.mrf.mxu0
    %v6398 = vadd.f32 %v6045, %v6397
    %6399 = vmatprep.mubr.bf16.mxu0 %v4935
    %6400 = vmatmul.mubr.bf16.gmra.mxu0 %v4934
    %v6401 = vpop.f32.mrf.mxu0
    %v6402 = vadd.f32 %v6049, %v6401
    %v6403 = vpop.f32.mrf.mxu0
    %v6404 = vadd.f32 %v6051, %v6403
    %v6405 = vpop.f32.mrf.mxu0
    %v6406 = vadd.f32 %v6053, %v6405
    %v6407 = vpop.f32.mrf.mxu0
    %v6408 = vadd.f32 %v6055, %v6407
    %6409 = vmatprep.mubr.bf16.mxu0 %v4943
    %6410 = vmatmul.mubr.bf16.gmra.mxu0 %v4942
    %v6411 = vpop.f32.mrf.mxu0
    %v6412 = vadd.f32 %v6059, %v6411
    %v6413 = vpop.f32.mrf.mxu0
    %v6414 = vadd.f32 %v6061, %v6413
    %v6415 = vpop.f32.mrf.mxu0
    %v6416 = vadd.f32 %v6063, %v6415
    %v6417 = vpop.f32.mrf.mxu0
    %v6418 = vadd.f32 %v6065, %v6417
    %6419 = vmatprep.mubr.bf16.mxu0 %v4951
    %6420 = vmatmul.mubr.bf16.gmra.mxu0 %v4950
    %v6421 = vpop.f32.mrf.mxu0
    %v6422 = vadd.f32 %v6069, %v6421
    %v6423 = vpop.f32.mrf.mxu0
    %v6424 = vadd.f32 %v6071, %v6423
    %v6425 = vpop.f32.mrf.mxu0
    %v6426 = vadd.f32 %v6073, %v6425
    %v6427 = vpop.f32.mrf.mxu0
    %v6428 = vadd.f32 %v6075, %v6427
    %6429 = vdwg.mxu0
    %6430 = vmatprep.subr.bf16.mxu0 %v5547
    %6431 = vmatpush1.bf16.msra.mxu0 %v5546
    %6432 = vmatprep.subr.bf16.mxu0 %v5545
    %6433 = vmatpush1.bf16.msra.mxu0 %v5544
    %6434 = vmatprep.subr.bf16.mxu0 %v5543
    %6435 = vmatpush1.bf16.msra.mxu0 %v5542
    %6436 = vmatprep.subr.bf16.mxu0 %v5541
    %6437 = vmatpush1.bf16.msra.mxu0 %v5540
    %6438 = vmatprep.subr.bf16.mxu0 %v5539
    %6439 = vmatpush1.bf16.msra.mxu0 %v5538
    %6440 = vmatprep.subr.bf16.mxu0 %v5537
    %6441 = vmatpush1.bf16.msra.mxu0 %v5536
    %6442 = vmatprep.subr.bf16.mxu0 %v5535
    %6443 = vmatpush1.bf16.msra.mxu0 %v5534
    %6444 = vmatprep.subr.bf16.mxu0 %v5533
    %6445 = vmatpush1.bf16.msra.mxu0 %v5532
    %6446 = vmatprep.subr.bf16.mxu0 %v5563
    %6447 = vmatpush2.bf16.msra.mxu0 %v5562
    %6448 = vmatprep.subr.bf16.mxu0 %v5561
    %6449 = vmatpush2.bf16.msra.mxu0 %v5560
    %6450 = vmatprep.subr.bf16.mxu0 %v5559
    %6451 = vmatpush2.bf16.msra.mxu0 %v5558
    %6452 = vmatprep.subr.bf16.mxu0 %v5557
    %6453 = vmatpush2.bf16.msra.mxu0 %v5556
    %6454 = vmatprep.subr.bf16.mxu0 %v5555
    %6455 = vmatpush2.bf16.msra.mxu0 %v5554
    %6456 = vmatprep.subr.bf16.mxu0 %v5553
    %6457 = vmatpush2.bf16.msra.mxu0 %v5552
    %6458 = vmatprep.subr.bf16.mxu0 %v5551
    %6459 = vmatpush2.bf16.msra.mxu0 %v5550
    %6460 = vmatprep.subr.bf16.mxu0 %v5549
    %6461 = vmatpush2.bf16.msra.mxu0 %v5548
    %6462 = vmatprep.mubr.bf16.mxu0 %v4705
    %6463 = vmatmul.mubr.bf16.gmra.mxu0 %v4704
    %v6464 = vpop.f32.mrf.mxu0
    %v6465 = vadd.f32 %v6112, %v6464
    %v6466 = vpop.f32.mrf.mxu0
    %v6467 = vadd.f32 %v6114, %v6466
    %v6468 = vpop.f32.mrf.mxu0
    %v6469 = vadd.f32 %v6116, %v6468
    %v6470 = vpop.f32.mrf.mxu0
    %v6471 = vadd.f32 %v6118, %v6470
    %6472 = vmatprep.mubr.bf16.mxu0 %v4713
    %6473 = vmatmul.mubr.bf16.gmra.mxu0 %v4712
    %v6474 = vpop.f32.mrf.mxu0
    %v6475 = vadd.f32 %v6122, %v6474
    %v6476 = vpop.f32.mrf.mxu0
    %v6477 = vadd.f32 %v6124, %v6476
    %v6478 = vpop.f32.mrf.mxu0
    %v6479 = vadd.f32 %v6126, %v6478
    %v6480 = vpop.f32.mrf.mxu0
    %v6481 = vadd.f32 %v6128, %v6480
    %6482 = vmatprep.mubr.bf16.mxu0 %v4721
    %6483 = vmatmul.mubr.bf16.gmra.mxu0 %v4720
    %v6484 = vpop.f32.mrf.mxu0
    %v6485 = vadd.f32 %v6132, %v6484
    %v6486 = vpop.f32.mrf.mxu0
    %v6487 = vadd.f32 %v6134, %v6486
    %v6488 = vpop.f32.mrf.mxu0
    %v6489 = vadd.f32 %v6136, %v6488
    %v6490 = vpop.f32.mrf.mxu0
    %v6491 = vadd.f32 %v6138, %v6490
    %6492 = vmatprep.mubr.bf16.mxu0 %v4729
    %6493 = vmatmul.mubr.bf16.gmra.mxu0 %v4728
    %v6494 = vpop.f32.mrf.mxu0
    %v6495 = vadd.f32 %v6142, %v6494
    %v6496 = vpop.f32.mrf.mxu0
    %v6497 = vadd.f32 %v6144, %v6496
    %v6498 = vpop.f32.mrf.mxu0
    %v6499 = vadd.f32 %v6146, %v6498
    %v6500 = vpop.f32.mrf.mxu0
    %v6501 = vadd.f32 %v6148, %v6500
    %6502 = vmatprep.mubr.bf16.mxu0 %v4737
    %6503 = vmatmul.mubr.bf16.gmra.mxu0 %v4736
    %v6504 = vpop.f32.mrf.mxu0
    %v6505 = vadd.f32 %v6152, %v6504
    %v6506 = vpop.f32.mrf.mxu0
    %v6507 = vadd.f32 %v6154, %v6506
    %v6508 = vpop.f32.mrf.mxu0
    %v6509 = vadd.f32 %v6156, %v6508
    %v6510 = vpop.f32.mrf.mxu0
    %v6511 = vadd.f32 %v6158, %v6510
    %6512 = vmatprep.mubr.bf16.mxu0 %v4745
    %6513 = vmatmul.mubr.bf16.gmra.mxu0 %v4744
    %v6514 = vpop.f32.mrf.mxu0
    %v6515 = vadd.f32 %v6162, %v6514
    %v6516 = vpop.f32.mrf.mxu0
    %v6517 = vadd.f32 %v6164, %v6516
    %v6518 = vpop.f32.mrf.mxu0
    %v6519 = vadd.f32 %v6166, %v6518
    %v6520 = vpop.f32.mrf.mxu0
    %v6521 = vadd.f32 %v6168, %v6520
    %6522 = vmatprep.mubr.bf16.mxu0 %v4753
    %6523 = vmatmul.mubr.bf16.gmra.mxu0 %v4752
    %v6524 = vpop.f32.mrf.mxu0
    %v6525 = vadd.f32 %v6172, %v6524
    %v6526 = vpop.f32.mrf.mxu0
    %v6527 = vadd.f32 %v6174, %v6526
    %v6528 = vpop.f32.mrf.mxu0
    %v6529 = vadd.f32 %v6176, %v6528
    %v6530 = vpop.f32.mrf.mxu0
    %v6531 = vadd.f32 %v6178, %v6530
    %6532 = vmatprep.mubr.bf16.mxu0 %v4761
    %6533 = vmatmul.mubr.bf16.gmra.mxu0 %v4760
    %v6534 = vpop.f32.mrf.mxu0
    %v6535 = vadd.f32 %v6182, %v6534
    %v6536 = vpop.f32.mrf.mxu0
    %v6537 = vadd.f32 %v6184, %v6536
    %v6538 = vpop.f32.mrf.mxu0
    %v6539 = vadd.f32 %v6186, %v6538
    %v6540 = vpop.f32.mrf.mxu0
    %v6541 = vadd.f32 %v6188, %v6540
    %6542 = vmatprep.mubr.bf16.mxu0 %v4769
    %6543 = vmatmul.mubr.bf16.gmra.mxu0 %v4768
    %v6544 = vpop.f32.mrf.mxu0
    %v6545 = vadd.f32 %v6192, %v6544
    %v6546 = vpop.f32.mrf.mxu0
    %v6547 = vadd.f32 %v6194, %v6546
    %v6548 = vpop.f32.mrf.mxu0
    %v6549 = vadd.f32 %v6196, %v6548
    %v6550 = vpop.f32.mrf.mxu0
    %v6551 = vadd.f32 %v6198, %v6550
    %6552 = vmatprep.mubr.bf16.mxu0 %v4777
    %6553 = vmatmul.mubr.bf16.gmra.mxu0 %v4776
    %v6554 = vpop.f32.mrf.mxu0
    %v6555 = vadd.f32 %v6202, %v6554
    %v6556 = vpop.f32.mrf.mxu0
    %v6557 = vadd.f32 %v6204, %v6556
    %v6558 = vpop.f32.mrf.mxu0
    %v6559 = vadd.f32 %v6206, %v6558
    %v6560 = vpop.f32.mrf.mxu0
    %v6561 = vadd.f32 %v6208, %v6560
    %6562 = vmatprep.mubr.bf16.mxu0 %v4785
    %6563 = vmatmul.mubr.bf16.gmra.mxu0 %v4784
    %v6564 = vpop.f32.mrf.mxu0
    %v6565 = vadd.f32 %v6212, %v6564
    %v6566 = vpop.f32.mrf.mxu0
    %v6567 = vadd.f32 %v6214, %v6566
    %v6568 = vpop.f32.mrf.mxu0
    %v6569 = vadd.f32 %v6216, %v6568
    %v6570 = vpop.f32.mrf.mxu0
    %v6571 = vadd.f32 %v6218, %v6570
    %6572 = vmatprep.mubr.bf16.mxu0 %v4793
    %6573 = vmatmul.mubr.bf16.gmra.mxu0 %v4792
    %v6574 = vpop.f32.mrf.mxu0
    %v6575 = vadd.f32 %v6222, %v6574
    %v6576 = vpop.f32.mrf.mxu0
    %v6577 = vadd.f32 %v6224, %v6576
    %v6578 = vpop.f32.mrf.mxu0
    %v6579 = vadd.f32 %v6226, %v6578
    %v6580 = vpop.f32.mrf.mxu0
    %v6581 = vadd.f32 %v6228, %v6580
    %6582 = vmatprep.mubr.bf16.mxu0 %v4801
    %6583 = vmatmul.mubr.bf16.gmra.mxu0 %v4800
    %v6584 = vpop.f32.mrf.mxu0
    %v6585 = vadd.f32 %v6232, %v6584
    %v6586 = vpop.f32.mrf.mxu0
    %v6587 = vadd.f32 %v6234, %v6586
    %v6588 = vpop.f32.mrf.mxu0
    %v6589 = vadd.f32 %v6236, %v6588
    %v6590 = vpop.f32.mrf.mxu0
    %v6591 = vadd.f32 %v6238, %v6590
    %6592 = vmatprep.mubr.bf16.mxu0 %v4809
    %6593 = vmatmul.mubr.bf16.gmra.mxu0 %v4808
    %v6594 = vpop.f32.mrf.mxu0
    %v6595 = vadd.f32 %v6242, %v6594
    %v6596 = vpop.f32.mrf.mxu0
    %v6597 = vadd.f32 %v6244, %v6596
    %v6598 = vpop.f32.mrf.mxu0
    %v6599 = vadd.f32 %v6246, %v6598
    %v6600 = vpop.f32.mrf.mxu0
    %v6601 = vadd.f32 %v6248, %v6600
    %6602 = vmatprep.mubr.bf16.mxu0 %v4817
    %6603 = vmatmul.mubr.bf16.gmra.mxu0 %v4816
    %v6604 = vpop.f32.mrf.mxu0
    %v6605 = vadd.f32 %v6252, %v6604
    %v6606 = vpop.f32.mrf.mxu0
    %v6607 = vadd.f32 %v6254, %v6606
    %v6608 = vpop.f32.mrf.mxu0
    %v6609 = vadd.f32 %v6256, %v6608
    %v6610 = vpop.f32.mrf.mxu0
    %v6611 = vadd.f32 %v6258, %v6610
    %6612 = vmatprep.mubr.bf16.mxu0 %v4825
    %6613 = vmatmul.mubr.bf16.gmra.mxu0 %v4824
    %v6614 = vpop.f32.mrf.mxu0
    %v6615 = vadd.f32 %v6262, %v6614
    %v6616 = vpop.f32.mrf.mxu0
    %v6617 = vadd.f32 %v6264, %v6616
    %v6618 = vpop.f32.mrf.mxu0
    %v6619 = vadd.f32 %v6266, %v6618
    %v6620 = vpop.f32.mrf.mxu0
    %v6621 = vadd.f32 %v6268, %v6620
    %6622 = vmatprep.mubr.bf16.mxu0 %v4833
    %6623 = vmatmul.mubr.bf16.gmra.mxu0 %v4832
    %v6624 = vpop.f32.mrf.mxu0
    %v6625 = vadd.f32 %v6272, %v6624
    %v6626 = vpop.f32.mrf.mxu0
    %v6627 = vadd.f32 %v6274, %v6626
    %v6628 = vpop.f32.mrf.mxu0
    %v6629 = vadd.f32 %v6276, %v6628
    %v6630 = vpop.f32.mrf.mxu0
    %v6631 = vadd.f32 %v6278, %v6630
    %6632 = vmatprep.mubr.bf16.mxu0 %v4841
    %6633 = vmatmul.mubr.bf16.gmra.mxu0 %v4840
    %v6634 = vpop.f32.mrf.mxu0
    %v6635 = vadd.f32 %v6282, %v6634
    %v6636 = vpop.f32.mrf.mxu0
    %v6637 = vadd.f32 %v6284, %v6636
    %v6638 = vpop.f32.mrf.mxu0
    %v6639 = vadd.f32 %v6286, %v6638
    %v6640 = vpop.f32.mrf.mxu0
    %v6641 = vadd.f32 %v6288, %v6640
    %6642 = vmatprep.mubr.bf16.mxu0 %v4849
    %6643 = vmatmul.mubr.bf16.gmra.mxu0 %v4848
    %v6644 = vpop.f32.mrf.mxu0
    %v6645 = vadd.f32 %v6292, %v6644
    %v6646 = vpop.f32.mrf.mxu0
    %v6647 = vadd.f32 %v6294, %v6646
    %v6648 = vpop.f32.mrf.mxu0
    %v6649 = vadd.f32 %v6296, %v6648
    %v6650 = vpop.f32.mrf.mxu0
    %v6651 = vadd.f32 %v6298, %v6650
    %6652 = vmatprep.mubr.bf16.mxu0 %v4857
    %6653 = vmatmul.mubr.bf16.gmra.mxu0 %v4856
    %v6654 = vpop.f32.mrf.mxu0
    %v6655 = vadd.f32 %v6302, %v6654
    %v6656 = vpop.f32.mrf.mxu0
    %v6657 = vadd.f32 %v6304, %v6656
    %v6658 = vpop.f32.mrf.mxu0
    %v6659 = vadd.f32 %v6306, %v6658
    %v6660 = vpop.f32.mrf.mxu0
    %v6661 = vadd.f32 %v6308, %v6660
    %6662 = vmatprep.mubr.bf16.mxu0 %v4865
    %6663 = vmatmul.mubr.bf16.gmra.mxu0 %v4864
    %v6664 = vpop.f32.mrf.mxu0
    %v6665 = vadd.f32 %v6312, %v6664
    %v6666 = vpop.f32.mrf.mxu0
    %v6667 = vadd.f32 %v6314, %v6666
    %v6668 = vpop.f32.mrf.mxu0
    %v6669 = vadd.f32 %v6316, %v6668
    %v6670 = vpop.f32.mrf.mxu0
    %v6671 = vadd.f32 %v6318, %v6670
    %6672 = vmatprep.mubr.bf16.mxu0 %v4873
    %6673 = vmatmul.mubr.bf16.gmra.mxu0 %v4872
    %v6674 = vpop.f32.mrf.mxu0
    %v6675 = vadd.f32 %v6322, %v6674
    %v6676 = vpop.f32.mrf.mxu0
    %v6677 = vadd.f32 %v6324, %v6676
    %v6678 = vpop.f32.mrf.mxu0
    %v6679 = vadd.f32 %v6326, %v6678
    %v6680 = vpop.f32.mrf.mxu0
    %v6681 = vadd.f32 %v6328, %v6680
    %6682 = vmatprep.mubr.bf16.mxu0 %v4881
    %6683 = vmatmul.mubr.bf16.gmra.mxu0 %v4880
    %v6684 = vpop.f32.mrf.mxu0
    %v6685 = vadd.f32 %v6332, %v6684
    %v6686 = vpop.f32.mrf.mxu0
    %v6687 = vadd.f32 %v6334, %v6686
    %v6688 = vpop.f32.mrf.mxu0
    %v6689 = vadd.f32 %v6336, %v6688
    %v6690 = vpop.f32.mrf.mxu0
    %v6691 = vadd.f32 %v6338, %v6690
    %6692 = vmatprep.mubr.bf16.mxu0 %v4889
    %6693 = vmatmul.mubr.bf16.gmra.mxu0 %v4888
    %v6694 = vpop.f32.mrf.mxu0
    %v6695 = vadd.f32 %v6342, %v6694
    %v6696 = vpop.f32.mrf.mxu0
    %v6697 = vadd.f32 %v6344, %v6696
    %v6698 = vpop.f32.mrf.mxu0
    %v6699 = vadd.f32 %v6346, %v6698
    %v6700 = vpop.f32.mrf.mxu0
    %v6701 = vadd.f32 %v6348, %v6700
    %6702 = vmatprep.mubr.bf16.mxu0 %v4897
    %6703 = vmatmul.mubr.bf16.gmra.mxu0 %v4896
    %v6704 = vpop.f32.mrf.mxu0
    %v6705 = vadd.f32 %v6352, %v6704
    %v6706 = vpop.f32.mrf.mxu0
    %v6707 = vadd.f32 %v6354, %v6706
    %v6708 = vpop.f32.mrf.mxu0
    %v6709 = vadd.f32 %v6356, %v6708
    %v6710 = vpop.f32.mrf.mxu0
    %v6711 = vadd.f32 %v6358, %v6710
    %6712 = vmatprep.mubr.bf16.mxu0 %v4905
    %6713 = vmatmul.mubr.bf16.gmra.mxu0 %v4904
    %v6714 = vpop.f32.mrf.mxu0
    %v6715 = vadd.f32 %v6362, %v6714
    %v6716 = vpop.f32.mrf.mxu0
    %v6717 = vadd.f32 %v6364, %v6716
    %v6718 = vpop.f32.mrf.mxu0
    %v6719 = vadd.f32 %v6366, %v6718
    %v6720 = vpop.f32.mrf.mxu0
    %v6721 = vadd.f32 %v6368, %v6720
    %6722 = vmatprep.mubr.bf16.mxu0 %v4913
    %6723 = vmatmul.mubr.bf16.gmra.mxu0 %v4912
    %v6724 = vpop.f32.mrf.mxu0
    %v6725 = vadd.f32 %v6372, %v6724
    %v6726 = vpop.f32.mrf.mxu0
    %v6727 = vadd.f32 %v6374, %v6726
    %v6728 = vpop.f32.mrf.mxu0
    %v6729 = vadd.f32 %v6376, %v6728
    %v6730 = vpop.f32.mrf.mxu0
    %v6731 = vadd.f32 %v6378, %v6730
    %6732 = vmatprep.mubr.bf16.mxu0 %v4921
    %6733 = vmatmul.mubr.bf16.gmra.mxu0 %v4920
    %v6734 = vpop.f32.mrf.mxu0
    %v6735 = vadd.f32 %v6382, %v6734
    %v6736 = vpop.f32.mrf.mxu0
    %v6737 = vadd.f32 %v6384, %v6736
    %v6738 = vpop.f32.mrf.mxu0
    %v6739 = vadd.f32 %v6386, %v6738
    %v6740 = vpop.f32.mrf.mxu0
    %v6741 = vadd.f32 %v6388, %v6740
    %6742 = vmatprep.mubr.bf16.mxu0 %v4929
    %6743 = vmatmul.mubr.bf16.gmra.mxu0 %v4928
    %v6744 = vpop.f32.mrf.mxu0
    %v6745 = vadd.f32 %v6392, %v6744
    %v6746 = vpop.f32.mrf.mxu0
    %v6747 = vadd.f32 %v6394, %v6746
    %v6748 = vpop.f32.mrf.mxu0
    %v6749 = vadd.f32 %v6396, %v6748
    %v6750 = vpop.f32.mrf.mxu0
    %v6751 = vadd.f32 %v6398, %v6750
    %6752 = vmatprep.mubr.bf16.mxu0 %v4937
    %6753 = vmatmul.mubr.bf16.gmra.mxu0 %v4936
    %v6754 = vpop.f32.mrf.mxu0
    %v6755 = vadd.f32 %v6402, %v6754
    %v6756 = vpop.f32.mrf.mxu0
    %v6757 = vadd.f32 %v6404, %v6756
    %v6758 = vpop.f32.mrf.mxu0
    %v6759 = vadd.f32 %v6406, %v6758
    %v6760 = vpop.f32.mrf.mxu0
    %v6761 = vadd.f32 %v6408, %v6760
    %6762 = vmatprep.mubr.bf16.mxu0 %v4945
    %6763 = vmatmul.mubr.bf16.gmra.mxu0 %v4944
    %v6764 = vpop.f32.mrf.mxu0
    %v6765 = vadd.f32 %v6412, %v6764
    %v6766 = vpop.f32.mrf.mxu0
    %v6767 = vadd.f32 %v6414, %v6766
    %v6768 = vpop.f32.mrf.mxu0
    %v6769 = vadd.f32 %v6416, %v6768
    %v6770 = vpop.f32.mrf.mxu0
    %v6771 = vadd.f32 %v6418, %v6770
    %6772 = vmatprep.mubr.bf16.mxu0 %v4953
    %6773 = vmatmul.mubr.bf16.gmra.mxu0 %v4952
    %v6774 = vpop.f32.mrf.mxu0
    %v6775 = vadd.f32 %v6422, %v6774
    %v6776 = vpop.f32.mrf.mxu0
    %v6777 = vadd.f32 %v6424, %v6776
    %v6778 = vpop.f32.mrf.mxu0
    %v6779 = vadd.f32 %v6426, %v6778
    %v6780 = vpop.f32.mrf.mxu0
    %v6781 = vadd.f32 %v6428, %v6780
    %6782 = vdwg.mxu0
    %6783 = vmatprep.subr.bf16.mxu0 %v5579
    %6784 = vmatpush1.bf16.msra.mxu0 %v5578
    %6785 = vmatprep.subr.bf16.mxu0 %v5577
    %6786 = vmatpush1.bf16.msra.mxu0 %v5576
    %6787 = vmatprep.subr.bf16.mxu0 %v5575
    %6788 = vmatpush1.bf16.msra.mxu0 %v5574
    %6789 = vmatprep.subr.bf16.mxu0 %v5573
    %6790 = vmatpush1.bf16.msra.mxu0 %v5572
    %6791 = vmatprep.subr.bf16.mxu0 %v5571
    %6792 = vmatpush1.bf16.msra.mxu0 %v5570
    %6793 = vmatprep.subr.bf16.mxu0 %v5569
    %6794 = vmatpush1.bf16.msra.mxu0 %v5568
    %6795 = vmatprep.subr.bf16.mxu0 %v5567
    %6796 = vmatpush1.bf16.msra.mxu0 %v5566
    %6797 = vmatprep.subr.bf16.mxu0 %v5565
    %6798 = vmatpush1.bf16.msra.mxu0 %v5564
    %6799 = vmatprep.subr.bf16.mxu0 %v5595
    %6800 = vmatpush2.bf16.msra.mxu0 %v5594
    %6801 = vmatprep.subr.bf16.mxu0 %v5593
    %6802 = vmatpush2.bf16.msra.mxu0 %v5592
    %6803 = vmatprep.subr.bf16.mxu0 %v5591
    %6804 = vmatpush2.bf16.msra.mxu0 %v5590
    %6805 = vmatprep.subr.bf16.mxu0 %v5589
    %6806 = vmatpush2.bf16.msra.mxu0 %v5588
    %6807 = vmatprep.subr.bf16.mxu0 %v5587
    %6808 = vmatpush2.bf16.msra.mxu0 %v5586
    %6809 = vmatprep.subr.bf16.mxu0 %v5585
    %6810 = vmatpush2.bf16.msra.mxu0 %v5584
    %6811 = vmatprep.subr.bf16.mxu0 %v5583
    %6812 = vmatpush2.bf16.msra.mxu0 %v5582
    %6813 = vmatprep.subr.bf16.mxu0 %v5581
    %6814 = vmatpush2.bf16.msra.mxu0 %v5580
    %6815 = vmatprep.mubr.bf16.mxu0 %v4707
    %6816 = vmatmul.mubr.bf16.gmra.mxu0 %v4706
    %v6817 = vpop.f32.mrf.mxu0
    %v6818 = vadd.f32 %v6465, %v6817
    %v6819 = vpop.f32.mrf.mxu0
    %v6820 = vadd.f32 %v6467, %v6819
    %v6821 = vpop.f32.mrf.mxu0
    %v6822 = vadd.f32 %v6469, %v6821
    %v6823 = vpop.f32.mrf.mxu0
    %v6824 = vadd.f32 %v6471, %v6823
    %6825 = vmatprep.mubr.bf16.mxu0 %v4715
    %6826 = vmatmul.mubr.bf16.gmra.mxu0 %v4714
    %v6827 = vpop.f32.mrf.mxu0
    %v6828 = vadd.f32 %v6475, %v6827
    %v6829 = vpop.f32.mrf.mxu0
    %v6830 = vadd.f32 %v6477, %v6829
    %v6831 = vpop.f32.mrf.mxu0
    %v6832 = vadd.f32 %v6479, %v6831
    %v6833 = vpop.f32.mrf.mxu0
    %v6834 = vadd.f32 %v6481, %v6833
    %6835 = vmatprep.mubr.bf16.mxu0 %v4723
    %6836 = vmatmul.mubr.bf16.gmra.mxu0 %v4722
    %v6837 = vpop.f32.mrf.mxu0
    %v6838 = vadd.f32 %v6485, %v6837
    %v6839 = vpop.f32.mrf.mxu0
    %v6840 = vadd.f32 %v6487, %v6839
    %v6841 = vpop.f32.mrf.mxu0
    %v6842 = vadd.f32 %v6489, %v6841
    %v6843 = vpop.f32.mrf.mxu0
    %v6844 = vadd.f32 %v6491, %v6843
    %6845 = vmatprep.mubr.bf16.mxu0 %v4731
    %6846 = vmatmul.mubr.bf16.gmra.mxu0 %v4730
    %v6847 = vpop.f32.mrf.mxu0
    %v6848 = vadd.f32 %v6495, %v6847
    %v6849 = vpop.f32.mrf.mxu0
    %v6850 = vadd.f32 %v6497, %v6849
    %v6851 = vpop.f32.mrf.mxu0
    %v6852 = vadd.f32 %v6499, %v6851
    %v6853 = vpop.f32.mrf.mxu0
    %v6854 = vadd.f32 %v6501, %v6853
    %6855 = vmatprep.mubr.bf16.mxu0 %v4739
    %6856 = vmatmul.mubr.bf16.gmra.mxu0 %v4738
    %v6857 = vpop.f32.mrf.mxu0
    %v6858 = vadd.f32 %v6505, %v6857
    %v6859 = vpop.f32.mrf.mxu0
    %v6860 = vadd.f32 %v6507, %v6859
    %v6861 = vpop.f32.mrf.mxu0
    %v6862 = vadd.f32 %v6509, %v6861
    %v6863 = vpop.f32.mrf.mxu0
    %v6864 = vadd.f32 %v6511, %v6863
    %6865 = vmatprep.mubr.bf16.mxu0 %v4747
    %6866 = vmatmul.mubr.bf16.gmra.mxu0 %v4746
    %v6867 = vpop.f32.mrf.mxu0
    %v6868 = vadd.f32 %v6515, %v6867
    %v6869 = vpop.f32.mrf.mxu0
    %v6870 = vadd.f32 %v6517, %v6869
    %v6871 = vpop.f32.mrf.mxu0
    %v6872 = vadd.f32 %v6519, %v6871
    %v6873 = vpop.f32.mrf.mxu0
    %v6874 = vadd.f32 %v6521, %v6873
    %6875 = vmatprep.mubr.bf16.mxu0 %v4755
    %6876 = vmatmul.mubr.bf16.gmra.mxu0 %v4754
    %v6877 = vpop.f32.mrf.mxu0
    %v6878 = vadd.f32 %v6525, %v6877
    %v6879 = vpop.f32.mrf.mxu0
    %v6880 = vadd.f32 %v6527, %v6879
    %v6881 = vpop.f32.mrf.mxu0
    %v6882 = vadd.f32 %v6529, %v6881
    %v6883 = vpop.f32.mrf.mxu0
    %v6884 = vadd.f32 %v6531, %v6883
    %6885 = vmatprep.mubr.bf16.mxu0 %v4763
    %6886 = vmatmul.mubr.bf16.gmra.mxu0 %v4762
    %v6887 = vpop.f32.mrf.mxu0
    %v6888 = vadd.f32 %v6535, %v6887
    %v6889 = vpop.f32.mrf.mxu0
    %v6890 = vadd.f32 %v6537, %v6889
    %v6891 = vpop.f32.mrf.mxu0
    %v6892 = vadd.f32 %v6539, %v6891
    %v6893 = vpop.f32.mrf.mxu0
    %v6894 = vadd.f32 %v6541, %v6893
    %6895 = vmatprep.mubr.bf16.mxu0 %v4771
    %6896 = vmatmul.mubr.bf16.gmra.mxu0 %v4770
    %v6897 = vpop.f32.mrf.mxu0
    %v6898 = vadd.f32 %v6545, %v6897
    %v6899 = vpop.f32.mrf.mxu0
    %v6900 = vadd.f32 %v6547, %v6899
    %v6901 = vpop.f32.mrf.mxu0
    %v6902 = vadd.f32 %v6549, %v6901
    %v6903 = vpop.f32.mrf.mxu0
    %v6904 = vadd.f32 %v6551, %v6903
    %6905 = vmatprep.mubr.bf16.mxu0 %v4779
    %6906 = vmatmul.mubr.bf16.gmra.mxu0 %v4778
    %v6907 = vpop.f32.mrf.mxu0
    %v6908 = vadd.f32 %v6555, %v6907
    %v6909 = vpop.f32.mrf.mxu0
    %v6910 = vadd.f32 %v6557, %v6909
    %v6911 = vpop.f32.mrf.mxu0
    %v6912 = vadd.f32 %v6559, %v6911
    %v6913 = vpop.f32.mrf.mxu0
    %v6914 = vadd.f32 %v6561, %v6913
    %6915 = vmatprep.mubr.bf16.mxu0 %v4787
    %6916 = vmatmul.mubr.bf16.gmra.mxu0 %v4786
    %v6917 = vpop.f32.mrf.mxu0
    %v6918 = vadd.f32 %v6565, %v6917
    %v6919 = vpop.f32.mrf.mxu0
    %v6920 = vadd.f32 %v6567, %v6919
    %v6921 = vpop.f32.mrf.mxu0
    %v6922 = vadd.f32 %v6569, %v6921
    %v6923 = vpop.f32.mrf.mxu0
    %v6924 = vadd.f32 %v6571, %v6923
    %6925 = vmatprep.mubr.bf16.mxu0 %v4795
    %6926 = vmatmul.mubr.bf16.gmra.mxu0 %v4794
    %v6927 = vpop.f32.mrf.mxu0
    %v6928 = vadd.f32 %v6575, %v6927
    %v6929 = vpop.f32.mrf.mxu0
    %v6930 = vadd.f32 %v6577, %v6929
    %v6931 = vpop.f32.mrf.mxu0
    %v6932 = vadd.f32 %v6579, %v6931
    %v6933 = vpop.f32.mrf.mxu0
    %v6934 = vadd.f32 %v6581, %v6933
    %6935 = vmatprep.mubr.bf16.mxu0 %v4803
    %6936 = vmatmul.mubr.bf16.gmra.mxu0 %v4802
    %v6937 = vpop.f32.mrf.mxu0
    %v6938 = vadd.f32 %v6585, %v6937
    %v6939 = vpop.f32.mrf.mxu0
    %v6940 = vadd.f32 %v6587, %v6939
    %v6941 = vpop.f32.mrf.mxu0
    %v6942 = vadd.f32 %v6589, %v6941
    %v6943 = vpop.f32.mrf.mxu0
    %v6944 = vadd.f32 %v6591, %v6943
    %6945 = vmatprep.mubr.bf16.mxu0 %v4811
    %6946 = vmatmul.mubr.bf16.gmra.mxu0 %v4810
    %v6947 = vpop.f32.mrf.mxu0
    %v6948 = vadd.f32 %v6595, %v6947
    %v6949 = vpop.f32.mrf.mxu0
    %v6950 = vadd.f32 %v6597, %v6949
    %v6951 = vpop.f32.mrf.mxu0
    %v6952 = vadd.f32 %v6599, %v6951
    %v6953 = vpop.f32.mrf.mxu0
    %v6954 = vadd.f32 %v6601, %v6953
    %6955 = vmatprep.mubr.bf16.mxu0 %v4819
    %6956 = vmatmul.mubr.bf16.gmra.mxu0 %v4818
    %v6957 = vpop.f32.mrf.mxu0
    %v6958 = vadd.f32 %v6605, %v6957
    %v6959 = vpop.f32.mrf.mxu0
    %v6960 = vadd.f32 %v6607, %v6959
    %v6961 = vpop.f32.mrf.mxu0
    %v6962 = vadd.f32 %v6609, %v6961
    %v6963 = vpop.f32.mrf.mxu0
    %v6964 = vadd.f32 %v6611, %v6963
    %6965 = vmatprep.mubr.bf16.mxu0 %v4827
    %6966 = vmatmul.mubr.bf16.gmra.mxu0 %v4826
    %v6967 = vpop.f32.mrf.mxu0
    %v6968 = vadd.f32 %v6615, %v6967
    %v6969 = vpop.f32.mrf.mxu0
    %v6970 = vadd.f32 %v6617, %v6969
    %v6971 = vpop.f32.mrf.mxu0
    %v6972 = vadd.f32 %v6619, %v6971
    %v6973 = vpop.f32.mrf.mxu0
    %v6974 = vadd.f32 %v6621, %v6973
    %6975 = vmatprep.mubr.bf16.mxu0 %v4835
    %6976 = vmatmul.mubr.bf16.gmra.mxu0 %v4834
    %v6977 = vpop.f32.mrf.mxu0
    %v6978 = vadd.f32 %v6625, %v6977
    %v6979 = vpop.f32.mrf.mxu0
    %v6980 = vadd.f32 %v6627, %v6979
    %v6981 = vpop.f32.mrf.mxu0
    %v6982 = vadd.f32 %v6629, %v6981
    %v6983 = vpop.f32.mrf.mxu0
    %v6984 = vadd.f32 %v6631, %v6983
    %6985 = vmatprep.mubr.bf16.mxu0 %v4843
    %6986 = vmatmul.mubr.bf16.gmra.mxu0 %v4842
    %v6987 = vpop.f32.mrf.mxu0
    %v6988 = vadd.f32 %v6635, %v6987
    %v6989 = vpop.f32.mrf.mxu0
    %v6990 = vadd.f32 %v6637, %v6989
    %v6991 = vpop.f32.mrf.mxu0
    %v6992 = vadd.f32 %v6639, %v6991
    %v6993 = vpop.f32.mrf.mxu0
    %v6994 = vadd.f32 %v6641, %v6993
    %6995 = vmatprep.mubr.bf16.mxu0 %v4851
    %6996 = vmatmul.mubr.bf16.gmra.mxu0 %v4850
    %v6997 = vpop.f32.mrf.mxu0
    %v6998 = vadd.f32 %v6645, %v6997
    %v6999 = vpop.f32.mrf.mxu0
    %v7000 = vadd.f32 %v6647, %v6999
    %v7001 = vpop.f32.mrf.mxu0
    %v7002 = vadd.f32 %v6649, %v7001
    %v7003 = vpop.f32.mrf.mxu0
    %v7004 = vadd.f32 %v6651, %v7003
    %7005 = vmatprep.mubr.bf16.mxu0 %v4859
    %7006 = vmatmul.mubr.bf16.gmra.mxu0 %v4858
    %v7007 = vpop.f32.mrf.mxu0
    %v7008 = vadd.f32 %v6655, %v7007
    %v7009 = vpop.f32.mrf.mxu0
    %v7010 = vadd.f32 %v6657, %v7009
    %v7011 = vpop.f32.mrf.mxu0
    %v7012 = vadd.f32 %v6659, %v7011
    %v7013 = vpop.f32.mrf.mxu0
    %v7014 = vadd.f32 %v6661, %v7013
    %7015 = vmatprep.mubr.bf16.mxu0 %v4867
    %7016 = vmatmul.mubr.bf16.gmra.mxu0 %v4866
    %v7017 = vpop.f32.mrf.mxu0
    %v7018 = vadd.f32 %v6665, %v7017
    %v7019 = vpop.f32.mrf.mxu0
    %v7020 = vadd.f32 %v6667, %v7019
    %v7021 = vpop.f32.mrf.mxu0
    %v7022 = vadd.f32 %v6669, %v7021
    %v7023 = vpop.f32.mrf.mxu0
    %v7024 = vadd.f32 %v6671, %v7023
    %7025 = vmatprep.mubr.bf16.mxu0 %v4875
    %7026 = vmatmul.mubr.bf16.gmra.mxu0 %v4874
    %v7027 = vpop.f32.mrf.mxu0
    %v7028 = vadd.f32 %v6675, %v7027
    %v7029 = vpop.f32.mrf.mxu0
    %v7030 = vadd.f32 %v6677, %v7029
    %v7031 = vpop.f32.mrf.mxu0
    %v7032 = vadd.f32 %v6679, %v7031
    %v7033 = vpop.f32.mrf.mxu0
    %v7034 = vadd.f32 %v6681, %v7033
    %7035 = vmatprep.mubr.bf16.mxu0 %v4883
    %7036 = vmatmul.mubr.bf16.gmra.mxu0 %v4882
    %v7037 = vpop.f32.mrf.mxu0
    %v7038 = vadd.f32 %v6685, %v7037
    %v7039 = vpop.f32.mrf.mxu0
    %v7040 = vadd.f32 %v6687, %v7039
    %v7041 = vpop.f32.mrf.mxu0
    %v7042 = vadd.f32 %v6689, %v7041
    %v7043 = vpop.f32.mrf.mxu0
    %v7044 = vadd.f32 %v6691, %v7043
    %7045 = vmatprep.mubr.bf16.mxu0 %v4891
    %7046 = vmatmul.mubr.bf16.gmra.mxu0 %v4890
    %v7047 = vpop.f32.mrf.mxu0
    %v7048 = vadd.f32 %v6695, %v7047
    %v7049 = vpop.f32.mrf.mxu0
    %v7050 = vadd.f32 %v6697, %v7049
    %v7051 = vpop.f32.mrf.mxu0
    %v7052 = vadd.f32 %v6699, %v7051
    %v7053 = vpop.f32.mrf.mxu0
    %v7054 = vadd.f32 %v6701, %v7053
    %7055 = vmatprep.mubr.bf16.mxu0 %v4899
    %7056 = vmatmul.mubr.bf16.gmra.mxu0 %v4898
    %v7057 = vpop.f32.mrf.mxu0
    %v7058 = vadd.f32 %v6705, %v7057
    %v7059 = vpop.f32.mrf.mxu0
    %v7060 = vadd.f32 %v6707, %v7059
    %v7061 = vpop.f32.mrf.mxu0
    %v7062 = vadd.f32 %v6709, %v7061
    %v7063 = vpop.f32.mrf.mxu0
    %v7064 = vadd.f32 %v6711, %v7063
    %7065 = vmatprep.mubr.bf16.mxu0 %v4907
    %7066 = vmatmul.mubr.bf16.gmra.mxu0 %v4906
    %v7067 = vpop.f32.mrf.mxu0
    %v7068 = vadd.f32 %v6715, %v7067
    %v7069 = vpop.f32.mrf.mxu0
    %v7070 = vadd.f32 %v6717, %v7069
    %v7071 = vpop.f32.mrf.mxu0
    %v7072 = vadd.f32 %v6719, %v7071
    %v7073 = vpop.f32.mrf.mxu0
    %v7074 = vadd.f32 %v6721, %v7073
    %7075 = vmatprep.mubr.bf16.mxu0 %v4915
    %7076 = vmatmul.mubr.bf16.gmra.mxu0 %v4914
    %v7077 = vpop.f32.mrf.mxu0
    %v7078 = vadd.f32 %v6725, %v7077
    %v7079 = vpop.f32.mrf.mxu0
    %v7080 = vadd.f32 %v6727, %v7079
    %v7081 = vpop.f32.mrf.mxu0
    %v7082 = vadd.f32 %v6729, %v7081
    %v7083 = vpop.f32.mrf.mxu0
    %v7084 = vadd.f32 %v6731, %v7083
    %7085 = vmatprep.mubr.bf16.mxu0 %v4923
    %7086 = vmatmul.mubr.bf16.gmra.mxu0 %v4922
    %v7087 = vpop.f32.mrf.mxu0
    %v7088 = vadd.f32 %v6735, %v7087
    %v7089 = vpop.f32.mrf.mxu0
    %v7090 = vadd.f32 %v6737, %v7089
    %v7091 = vpop.f32.mrf.mxu0
    %v7092 = vadd.f32 %v6739, %v7091
    %v7093 = vpop.f32.mrf.mxu0
    %v7094 = vadd.f32 %v6741, %v7093
    %7095 = vmatprep.mubr.bf16.mxu0 %v4931
    %7096 = vmatmul.mubr.bf16.gmra.mxu0 %v4930
    %v7097 = vpop.f32.mrf.mxu0
    %v7098 = vadd.f32 %v6745, %v7097
    %v7099 = vpop.f32.mrf.mxu0
    %v7100 = vadd.f32 %v6747, %v7099
    %v7101 = vpop.f32.mrf.mxu0
    %v7102 = vadd.f32 %v6749, %v7101
    %v7103 = vpop.f32.mrf.mxu0
    %v7104 = vadd.f32 %v6751, %v7103
    %7105 = vmatprep.mubr.bf16.mxu0 %v4939
    %7106 = vmatmul.mubr.bf16.gmra.mxu0 %v4938
    %v7107 = vpop.f32.mrf.mxu0
    %v7108 = vadd.f32 %v6755, %v7107
    %v7109 = vpop.f32.mrf.mxu0
    %v7110 = vadd.f32 %v6757, %v7109
    %v7111 = vpop.f32.mrf.mxu0
    %v7112 = vadd.f32 %v6759, %v7111
    %v7113 = vpop.f32.mrf.mxu0
    %v7114 = vadd.f32 %v6761, %v7113
    %7115 = vmatprep.mubr.bf16.mxu0 %v4947
    %7116 = vmatmul.mubr.bf16.gmra.mxu0 %v4946
    %v7117 = vpop.f32.mrf.mxu0
    %v7118 = vadd.f32 %v6765, %v7117
    %v7119 = vpop.f32.mrf.mxu0
    %v7120 = vadd.f32 %v6767, %v7119
    %v7121 = vpop.f32.mrf.mxu0
    %v7122 = vadd.f32 %v6769, %v7121
    %v7123 = vpop.f32.mrf.mxu0
    %v7124 = vadd.f32 %v6771, %v7123
    %7125 = vmatprep.mubr.bf16.mxu0 %v4955
    %7126 = vmatmul.mubr.bf16.gmra.mxu0 %v4954
    %v7127 = vpop.f32.mrf.mxu0
    %v7128 = vadd.f32 %v6775, %v7127
    %v7129 = vpop.f32.mrf.mxu0
    %v7130 = vadd.f32 %v6777, %v7129
    %v7131 = vpop.f32.mrf.mxu0
    %v7132 = vadd.f32 %v6779, %v7131
    %v7133 = vpop.f32.mrf.mxu0
    %v7134 = vadd.f32 %v6781, %v7133
    %7135 = vdwg.mxu0
    %v7136 = vadd.f32 %v62, %v6818
    %v7137 = vadd.f32 %v63, %v6820
    %v7138 = vadd.f32 %v64, %v6822
    %v7139 = vadd.f32 %v65, %v6824
    %v7140 = vadd.f32 %v66, %v6828
    %v7141 = vadd.f32 %v67, %v6830
    %v7142 = vadd.f32 %v68, %v6832
    %v7143 = vadd.f32 %v69, %v6834
    %v7144 = vadd.f32 %v70, %v6838
    %v7145 = vadd.f32 %v71, %v6840
    %v7146 = vadd.f32 %v72, %v6842
    %v7147 = vadd.f32 %v73, %v6844
    %v7148 = vadd.f32 %v74, %v6848
    %v7149 = vadd.f32 %v75, %v6850
    %v7150 = vadd.f32 %v76, %v6852
    %v7151 = vadd.f32 %v77, %v6854
    %v7152 = vadd.f32 %v78, %v6858
    %v7153 = vadd.f32 %v79, %v6860
    %v7154 = vadd.f32 %v80, %v6862
    %v7155 = vadd.f32 %v81, %v6864
    %v7156 = vadd.f32 %v82, %v6868
    %v7157 = vadd.f32 %v83, %v6870
    %v7158 = vadd.f32 %v84, %v6872
    %v7159 = vadd.f32 %v85, %v6874
    %v7160 = vadd.f32 %v86, %v6878
    %v7161 = vadd.f32 %v87, %v6880
    %v7162 = vadd.f32 %v88, %v6882
    %v7163 = vadd.f32 %v89, %v6884
    %v7164 = vadd.f32 %v90, %v6888
    %v7165 = vadd.f32 %v91, %v6890
    %v7166 = vadd.f32 %v92, %v6892
    %v7167 = vadd.f32 %v93, %v6894
    %v7168 = vadd.f32 %v94, %v6898
    %v7169 = vadd.f32 %v95, %v6900
    %v7170 = vadd.f32 %v96, %v6902
    %v7171 = vadd.f32 %v97, %v6904
    %v7172 = vadd.f32 %v98, %v6908
    %v7173 = vadd.f32 %v99, %v6910
    %v7174 = vadd.f32 %v100, %v6912
    %v7175 = vadd.f32 %v101, %v6914
    %v7176 = vadd.f32 %v102, %v6918
    %v7177 = vadd.f32 %v103, %v6920
    %v7178 = vadd.f32 %v104, %v6922
    %v7179 = vadd.f32 %v105, %v6924
    %v7180 = vadd.f32 %v106, %v6928
    %v7181 = vadd.f32 %v107, %v6930
    %v7182 = vadd.f32 %v108, %v6932
    %v7183 = vadd.f32 %v109, %v6934
    %v7184 = vadd.f32 %v110, %v6938
    %v7185 = vadd.f32 %v111, %v6940
    %v7186 = vadd.f32 %v112, %v6942
    %v7187 = vadd.f32 %v113, %v6944
    %v7188 = vadd.f32 %v114, %v6948
    %v7189 = vadd.f32 %v115, %v6950
    %v7190 = vadd.f32 %v116, %v6952
    %v7191 = vadd.f32 %v117, %v6954
    %v7192 = vadd.f32 %v118, %v6958
    %v7193 = vadd.f32 %v119, %v6960
    %v7194 = vadd.f32 %v120, %v6962
    %v7195 = vadd.f32 %v121, %v6964
    %v7196 = vadd.f32 %v122, %v6968
    %v7197 = vadd.f32 %v123, %v6970
    %v7198 = vadd.f32 %v124, %v6972
    %v7199 = vadd.f32 %v125, %v6974
    %v7200 = vadd.f32 %v126, %v6978
    %v7201 = vadd.f32 %v127, %v6980
    %v7202 = vadd.f32 %v128, %v6982
    %v7203 = vadd.f32 %v129, %v6984
    %v7204 = vadd.f32 %v130, %v6988
    %v7205 = vadd.f32 %v131, %v6990
    %v7206 = vadd.f32 %v132, %v6992
    %v7207 = vadd.f32 %v133, %v6994
    %v7208 = vadd.f32 %v134, %v6998
    %v7209 = vadd.f32 %v135, %v7000
    %v7210 = vadd.f32 %v136, %v7002
    %v7211 = vadd.f32 %v137, %v7004
    %v7212 = vadd.f32 %v138, %v7008
    %v7213 = vadd.f32 %v139, %v7010
    %v7214 = vadd.f32 %v140, %v7012
    %v7215 = vadd.f32 %v141, %v7014
    %v7216 = vadd.f32 %v142, %v7018
    %v7217 = vadd.f32 %v143, %v7020
    %v7218 = vadd.f32 %v144, %v7022
    %v7219 = vadd.f32 %v145, %v7024
    %v7220 = vadd.f32 %v146, %v7028
    %v7221 = vadd.f32 %v147, %v7030
    %v7222 = vadd.f32 %v148, %v7032
    %v7223 = vadd.f32 %v149, %v7034
    %v7224 = vadd.f32 %v150, %v7038
    %v7225 = vadd.f32 %v151, %v7040
    %v7226 = vadd.f32 %v152, %v7042
    %v7227 = vadd.f32 %v153, %v7044
    %v7228 = vadd.f32 %v154, %v7048
    %v7229 = vadd.f32 %v155, %v7050
    %v7230 = vadd.f32 %v156, %v7052
    %v7231 = vadd.f32 %v157, %v7054
    %v7232 = vadd.f32 %v158, %v7058
    %v7233 = vadd.f32 %v159, %v7060
    %v7234 = vadd.f32 %v160, %v7062
    %v7235 = vadd.f32 %v161, %v7064
    %v7236 = vadd.f32 %v162, %v7068
    %v7237 = vadd.f32 %v163, %v7070
    %v7238 = vadd.f32 %v164, %v7072
    %v7239 = vadd.f32 %v165, %v7074
    %v7240 = vadd.f32 %v166, %v7078
    %v7241 = vadd.f32 %v167, %v7080
    %v7242 = vadd.f32 %v168, %v7082
    %v7243 = vadd.f32 %v169, %v7084
    %v7244 = vadd.f32 %v170, %v7088
    %v7245 = vadd.f32 %v171, %v7090
    %v7246 = vadd.f32 %v172, %v7092
    %v7247 = vadd.f32 %v173, %v7094
    %v7248 = vadd.f32 %v174, %v7098
    %v7249 = vadd.f32 %v175, %v7100
    %v7250 = vadd.f32 %v176, %v7102
    %v7251 = vadd.f32 %v177, %v7104
    %v7252 = vadd.f32 %v178, %v7108
    %v7253 = vadd.f32 %v179, %v7110
    %v7254 = vadd.f32 %v180, %v7112
    %v7255 = vadd.f32 %v181, %v7114
    %v7256 = vadd.f32 %v182, %v7118
    %v7257 = vadd.f32 %v183, %v7120
    %v7258 = vadd.f32 %v184, %v7122
    %v7259 = vadd.f32 %v185, %v7124
    %v7260 = vadd.f32 %v186, %v7128
    %v7261 = vadd.f32 %v187, %v7130
    %v7262 = vadd.f32 %v188, %v7132
    %v7263 = vadd.f32 %v189, %v7134
    %7264 = vst [vmem:[#allocation8] sm:$0xff] %v7136
    %7265 = vst [vmem:[#allocation8 + $0x8] sm:$0xff] %v7137
    %7266 = vst [vmem:[#allocation8 + $0x10] sm:$0xff] %v7138
    %7267 = vst [vmem:[#allocation8 + $0x18] sm:$0xff] %v7139
    %7268 = vst [vmem:[#allocation8 + $0x20] sm:$0xff] %v7140
    %7269 = vst [vmem:[#allocation8 + $0x28] sm:$0xff] %v7141
    %7270 = vst [vmem:[#allocation8 + $0x30] sm:$0xff] %v7142
    %7271 = vst [vmem:[#allocation8 + $0x38] sm:$0xff] %v7143
    %7272 = vst [vmem:[#allocation8 + $0x40] sm:$0xff] %v7144
    %7273 = vst [vmem:[#allocation8 + $0x48] sm:$0xff] %v7145
    %7274 = vst [vmem:[#allocation8 + $0x50] sm:$0xff] %v7146
    %7275 = vst [vmem:[#allocation8 + $0x58] sm:$0xff] %v7147
    %7276 = vst [vmem:[#allocation8 + $0x60] sm:$0xff] %v7148
    %7277 = vst [vmem:[#allocation8 + $0x68] sm:$0xff] %v7149
    %7278 = vst [vmem:[#allocation8 + $0x70] sm:$0xff] %v7150
    %7279 = vst [vmem:[#allocation8 + $0x78] sm:$0xff] %v7151
    %7280 = vst [vmem:[#allocation8 + $0x80] sm:$0xff] %v7152
    %7281 = vst [vmem:[#allocation8 + $0x88] sm:$0xff] %v7153
    %7282 = vst [vmem:[#allocation8 + $0x90] sm:$0xff] %v7154
    %7283 = vst [vmem:[#allocation8 + $0x98] sm:$0xff] %v7155
    %7284 = vst [vmem:[#allocation8 + $0xa0] sm:$0xff] %v7156
    %7285 = vst [vmem:[#allocation8 + $0xa8] sm:$0xff] %v7157
    %7286 = vst [vmem:[#allocation8 + $0xb0] sm:$0xff] %v7158
    %7287 = vst [vmem:[#allocation8 + $0xb8] sm:$0xff] %v7159
    %7288 = vst [vmem:[#allocation8 + $0xc0] sm:$0xff] %v7160
    %7289 = vst [vmem:[#allocation8 + $0xc8] sm:$0xff] %v7161
    %7290 = vst [vmem:[#allocation8 + $0xd0] sm:$0xff] %v7162
    %7291 = vst [vmem:[#allocation8 + $0xd8] sm:$0xff] %v7163
    %7292 = vst [vmem:[#allocation8 + $0xe0] sm:$0xff] %v7164
    %7293 = vst [vmem:[#allocation8 + $0xe8] sm:$0xff] %v7165
    %7294 = vst [vmem:[#allocation8 + $0xf0] sm:$0xff] %v7166
    %7295 = vst [vmem:[#allocation8 + $0xf8] sm:$0xff] %v7167
    %7296 = vst [vmem:[#allocation8 + $0x100] sm:$0xff] %v7168
    %7297 = vst [vmem:[#allocation8 + $0x108] sm:$0xff] %v7169
    %7298 = vst [vmem:[#allocation8 + $0x110] sm:$0xff] %v7170
    %7299 = vst [vmem:[#allocation8 + $0x118] sm:$0xff] %v7171
    %7300 = vst [vmem:[#allocation8 + $0x120] sm:$0xff] %v7172
    %7301 = vst [vmem:[#allocation8 + $0x128] sm:$0xff] %v7173
    %7302 = vst [vmem:[#allocation8 + $0x130] sm:$0xff] %v7174
    %7303 = vst [vmem:[#allocation8 + $0x138] sm:$0xff] %v7175
    %7304 = vst [vmem:[#allocation8 + $0x140] sm:$0xff] %v7176
    %7305 = vst [vmem:[#allocation8 + $0x148] sm:$0xff] %v7177
    %7306 = vst [vmem:[#allocation8 + $0x150] sm:$0xff] %v7178
    %7307 = vst [vmem:[#allocation8 + $0x158] sm:$0xff] %v7179
    %7308 = vst [vmem:[#allocation8 + $0x160] sm:$0xff] %v7180
    %7309 = vst [vmem:[#allocation8 + $0x168] sm:$0xff] %v7181
    %7310 = vst [vmem:[#allocation8 + $0x170] sm:$0xff] %v7182
    %7311 = vst [vmem:[#allocation8 + $0x178] sm:$0xff] %v7183
    %7312 = vst [vmem:[#allocation8 + $0x180] sm:$0xff] %v7184
    %7313 = vst [vmem:[#allocation8 + $0x188] sm:$0xff] %v7185
    %7314 = vst [vmem:[#allocation8 + $0x190] sm:$0xff] %v7186
    %7315 = vst [vmem:[#allocation8 + $0x198] sm:$0xff] %v7187
    %7316 = vst [vmem:[#allocation8 + $0x1a0] sm:$0xff] %v7188
    %7317 = vst [vmem:[#allocation8 + $0x1a8] sm:$0xff] %v7189
    %7318 = vst [vmem:[#allocation8 + $0x1b0] sm:$0xff] %v7190
    %7319 = vst [vmem:[#allocation8 + $0x1b8] sm:$0xff] %v7191
    %7320 = vst [vmem:[#allocation8 + $0x1c0] sm:$0xff] %v7192
    %7321 = vst [vmem:[#allocation8 + $0x1c8] sm:$0xff] %v7193
    %7322 = vst [vmem:[#allocation8 + $0x1d0] sm:$0xff] %v7194
    %7323 = vst [vmem:[#allocation8 + $0x1d8] sm:$0xff] %v7195
    %7324 = vst [vmem:[#allocation8 + $0x1e0] sm:$0xff] %v7196
    %7325 = vst [vmem:[#allocation8 + $0x1e8] sm:$0xff] %v7197
    %7326 = vst [vmem:[#allocation8 + $0x1f0] sm:$0xff] %v7198
    %7327 = vst [vmem:[#allocation8 + $0x1f8] sm:$0xff] %v7199
    %7328 = vst [vmem:[#allocation8 + $0x200] sm:$0xff] %v7200
    %7329 = vst [vmem:[#allocation8 + $0x208] sm:$0xff] %v7201
    %7330 = vst [vmem:[#allocation8 + $0x210] sm:$0xff] %v7202
    %7331 = vst [vmem:[#allocation8 + $0x218] sm:$0xff] %v7203
    %7332 = vst [vmem:[#allocation8 + $0x220] sm:$0xff] %v7204
    %7333 = vst [vmem:[#allocation8 + $0x228] sm:$0xff] %v7205
    %7334 = vst [vmem:[#allocation8 + $0x230] sm:$0xff] %v7206
    %7335 = vst [vmem:[#allocation8 + $0x238] sm:$0xff] %v7207
    %7336 = vst [vmem:[#allocation8 + $0x240] sm:$0xff] %v7208
    %7337 = vst [vmem:[#allocation8 + $0x248] sm:$0xff] %v7209
    %7338 = vst [vmem:[#allocation8 + $0x250] sm:$0xff] %v7210
    %7339 = vst [vmem:[#allocation8 + $0x258] sm:$0xff] %v7211
    %7340 = vst [vmem:[#allocation8 + $0x260] sm:$0xff] %v7212
    %7341 = vst [vmem:[#allocation8 + $0x268] sm:$0xff] %v7213
    %7342 = vst [vmem:[#allocation8 + $0x270] sm:$0xff] %v7214
    %7343 = vst [vmem:[#allocation8 + $0x278] sm:$0xff] %v7215
    %7344 = vst [vmem:[#allocation8 + $0x280] sm:$0xff] %v7216
    %7345 = vst [vmem:[#allocation8 + $0x288] sm:$0xff] %v7217
    %7346 = vst [vmem:[#allocation8 + $0x290] sm:$0xff] %v7218
    %7347 = vst [vmem:[#allocation8 + $0x298] sm:$0xff] %v7219
    %7348 = vst [vmem:[#allocation8 + $0x2a0] sm:$0xff] %v7220
    %7349 = vst [vmem:[#allocation8 + $0x2a8] sm:$0xff] %v7221
    %7350 = vst [vmem:[#allocation8 + $0x2b0] sm:$0xff] %v7222
    %7351 = vst [vmem:[#allocation8 + $0x2b8] sm:$0xff] %v7223
    %7352 = vst [vmem:[#allocation8 + $0x2c0] sm:$0xff] %v7224
    %7353 = vst [vmem:[#allocation8 + $0x2c8] sm:$0xff] %v7225
    %7354 = vst [vmem:[#allocation8 + $0x2d0] sm:$0xff] %v7226
    %7355 = vst [vmem:[#allocation8 + $0x2d8] sm:$0xff] %v7227
    %7356 = vst [vmem:[#allocation8 + $0x2e0] sm:$0xff] %v7228
    %7357 = vst [vmem:[#allocation8 + $0x2e8] sm:$0xff] %v7229
    %7358 = vst [vmem:[#allocation8 + $0x2f0] sm:$0xff] %v7230
    %7359 = vst [vmem:[#allocation8 + $0x2f8] sm:$0xff] %v7231
    %7360 = vst [vmem:[#allocation8 + $0x300] sm:$0xff] %v7232
    %7361 = vst [vmem:[#allocation8 + $0x308] sm:$0xff] %v7233
    %7362 = vst [vmem:[#allocation8 + $0x310] sm:$0xff] %v7234
    %7363 = vst [vmem:[#allocation8 + $0x318] sm:$0xff] %v7235
    %7364 = vst [vmem:[#allocation8 + $0x320] sm:$0xff] %v7236
    %7365 = vst [vmem:[#allocation8 + $0x328] sm:$0xff] %v7237
    %7366 = vst [vmem:[#allocation8 + $0x330] sm:$0xff] %v7238
    %7367 = vst [vmem:[#allocation8 + $0x338] sm:$0xff] %v7239
    %7368 = vst [vmem:[#allocation8 + $0x340] sm:$0xff] %v7240
    %7369 = vst [vmem:[#allocation8 + $0x348] sm:$0xff] %v7241
    %7370 = vst [vmem:[#allocation8 + $0x350] sm:$0xff] %v7242
    %7371 = vst [vmem:[#allocation8 + $0x358] sm:$0xff] %v7243
    %7372 = vst [vmem:[#allocation8 + $0x360] sm:$0xff] %v7244
    %7373 = vst [vmem:[#allocation8 + $0x368] sm:$0xff] %v7245
    %7374 = vst [vmem:[#allocation8 + $0x370] sm:$0xff] %v7246
    %7375 = vst [vmem:[#allocation8 + $0x378] sm:$0xff] %v7247
    %7376 = vst [vmem:[#allocation8 + $0x380] sm:$0xff] %v7248
    %7377 = vst [vmem:[#allocation8 + $0x388] sm:$0xff] %v7249
    %7378 = vst [vmem:[#allocation8 + $0x390] sm:$0xff] %v7250
    %7379 = vst [vmem:[#allocation8 + $0x398] sm:$0xff] %v7251
    %7380 = vst [vmem:[#allocation8 + $0x3a0] sm:$0xff] %v7252
    %7381 = vst [vmem:[#allocation8 + $0x3a8] sm:$0xff] %v7253
    %7382 = vst [vmem:[#allocation8 + $0x3b0] sm:$0xff] %v7254
    %7383 = vst [vmem:[#allocation8 + $0x3b8] sm:$0xff] %v7255
    %7384 = vst [vmem:[#allocation8 + $0x3c0] sm:$0xff] %v7256
    %7385 = vst [vmem:[#allocation8 + $0x3c8] sm:$0xff] %v7257
    %7386 = vst [vmem:[#allocation8 + $0x3d0] sm:$0xff] %v7258
    %7387 = vst [vmem:[#allocation8 + $0x3d8] sm:$0xff] %v7259
    %7388 = vst [vmem:[#allocation8 + $0x3e0] sm:$0xff] %v7260
    %7389 = vst [vmem:[#allocation8 + $0x3e8] sm:$0xff] %v7261
    %7390 = vst [vmem:[#allocation8 + $0x3f0] sm:$0xff] %v7262
    %7391 = vst [vmem:[#allocation8 + $0x3f8] sm:$0xff] %v7263
    // Predicated region
    $region34: #{tpu_custom_call.1} parent=1 // pred_check
      _
    $region35: #{tpu_custom_call.1} parent=1 // pred_check_branch
      %7393 = sbr.rel (0) target = $region37
    $region36: #{tpu_custom_call.1} parent=1 // pred_region
      %s7395 = ssub.s32 16384, 16384
      %7396 = vsyncadd [#allocation4], %s7395
      %s7397 = sshll.u32 [#allocation8], 4
      %s7398 = int_to_ptr.vmem [resolvable:$true] %s7397
      %7403 = dma.vmem_to_hbm [thread:$0]  %s7398, 16384, %s5, [#allocation4], 256, 256, 16
    $region37: #{tpu_custom_call.1} parent=1 // pred_fallthru
      _
    // Predicated region
    $region38: #{tpu_custom_call.1} parent=1 // pred_check
      _
    $region39: #{tpu_custom_call.1} parent=1 // pred_check_branch
      %7405 = sbr.rel (0) target = $region41
    $region40: #{tpu_custom_call.1} parent=1 // pred_region
      %7406 = dma.done [#allocation4], 16384
    $region41: #{tpu_custom_call.1} parent=1 // pred_fallthru
      _
    %7407 = vsyncpa [#allocation3], 1
    %7408 = vsyncpa [#allocation6], 1
    %7409 = vsyncpa [#allocation4], 1

</llo_original>
